<compile_context>
chip_gen: v6e
topology: v6e:2x2x1
jax: 0.10.0
libtpu: 0.0.40
codegen_flags: <defaults>
</compile_context>

<pallas_src>
from functools import partial

import jax
import jax.numpy as jnp
from jax import lax
from jax.experimental import pallas as pl
from jax.experimental.pallas import tpu as pltpu


def msa_kernel(x_ref, wqkv_ref, bqkv_ref, wproj_ref, bproj_ref, o_ref,
               qp_s, k_s, v_s, *, heads, head_dim, q_stride, num_windows):
    """One grid step = one batch element (all windows, all heads).

    x_ref    : [N, dim]              tokens of one batch element (token = s*W + w)
    wqkv_ref : [dim, 3*dim_out]      fused qkv projection weight (y = x @ W + b)
    bqkv_ref : [1, 3*dim_out]
    wproj_ref: [dim_out, dim_out]
    bproj_ref: [1, dim_out]
    o_ref    : [Q, W*dim_out]        lane-dense; element (q, w*C+c) == token (q*W+w), ch c
    qp_s     : [Nq, dim_out] VMEM    pooled q staging (rows ordered q*W + w)
    k_s, v_s : [N,  dim_out] VMEM    k / v staging (rows ordered s*W + w)
    """
    N, _ = x_ref.shape
    C = heads * head_dim          # dim_out
    W = num_windows
    S = N // W                    # tokens per window (pre q-pooling)
    Nq = N // q_stride
    Q = S // q_stride             # query tokens per window
    scale = head_dim ** (-0.5)

    x = x_ref[...].astype(jnp.float32)
    wproj = wproj_ref[...]
    bproj = bproj_ref[...]

    # Fused QKV projection: one fat MXU matmul for the whole batch element.
    qkv = jnp.dot(x, wqkv_ref[...], preferred_element_type=jnp.float32) + bqkv_ref[...]

    q_all = qkv[:, 0:C]
    k_all = qkv[:, C:2 * C]
    v_all = qkv[:, 2 * C:3 * C]

    # q pooling, hoisted out of the head loop, on full channel width.
    # Rows of q_all are n = i*Nq + (q*W + w)  (q_stride index i is the slow axis),
    # so pooling is a max over q_stride contiguous row blocks and the result rows
    # are already in the final token order q*W + w.
    qp = q_all[0:Nq, :]
    for i in range(1, q_stride):
        qp = jnp.maximum(qp, q_all[i * Nq:(i + 1) * Nq, :])
    qp = qp * scale               # fold softmax scale into q once

    # Stage into VMEM scratch so per-window rows can be gathered with strided loads.
    qp_s[...] = qp
    k_s[...] = k_all
    v_s[...] = v_all

    # Contract last axis of both operands (no explicit transpose of k).
    dnums = (((1,), (1,)), ((), ()))

    win_outs = []
    for w in range(W):            # static unrolled; windows are independent
        qw = qp_s[pl.ds(w, Q, W), :]     # [Q, C]  rows q*W + w
        kw = k_s[pl.ds(w, S, W), :]      # [S, C]  rows s*W + w
        vw = v_s[pl.ds(w, S, W), :]      # [S, C]

        head_outs = []
        # Heads handled with a short static loop (heads=4 here); per-head attention
        # is batched per window via full-width loads above and a single per-window
        # output projection below.
        for h in range(heads):
            sl = slice(h * head_dim, (h + 1) * head_dim)
            qh = qw[:, sl]               # [Q, hd]
            kh = kw[:, sl]               # [S, hd]
            vh = vw[:, sl]               # [S, hd]

            s = lax.dot_general(qh, kh, dnums,
                                preferred_element_type=jnp.float32)   # [Q, S]
            s = s - jnp.max(s, axis=-1, keepdims=True)
            p = jnp.exp(s)
            l = jnp.sum(p, axis=-1, keepdims=True)
            oh = jnp.dot(p, vh, preferred_element_type=jnp.float32)   # [Q, hd]
            # Deferred softmax normalization on the small [Q, hd] tensor.
            oh = oh * pl.reciprocal(l, approx=False)
            head_outs.append(oh)

        attn_w = jnp.concatenate(head_outs, axis=-1)                  # [Q, C]
        out_w = jnp.dot(attn_w, wproj,
                        preferred_element_type=jnp.float32) + bproj   # [Q, C]
        win_outs.append(out_w)

    # Single lane-dense [Q, W*C] store; the wrapper reshape to [B, Q*W, C] is free.
    o_ref[...] = jnp.concatenate(win_outs, axis=-1).astype(o_ref.dtype)


def multi_scale_attention(x, wqkv, bqkv, wproj, bproj, *, heads, q_stride,
                          window_size, use_mask_unit_attn):
    """x: [B, N, dim] -> [B, N // q_stride, dim_out]  (PyTorch token order)."""
    B, N, dim = x.shape
    C = wproj.shape[0]            # dim_out
    head_dim = C // heads
    W = N // (q_stride * window_size) if use_mask_unit_attn else 1
    S = N // W
    Q = S // q_stride
    Nq = N // q_stride            # == Q * W

    bqkv2 = bqkv.reshape(1, -1)
    bproj2 = bproj.reshape(1, -1)

    kernel = partial(msa_kernel, heads=heads, head_dim=head_dim,
                     q_stride=q_stride, num_windows=W)

    out = pl.pallas_call(
        kernel,
        out_shape=jax.ShapeDtypeStruct((B, Q, W * C), x.dtype),
        grid_spec=pltpu.PrefetchScalarGridSpec(
            num_scalar_prefetch=0,
            grid=(B,),
            in_specs=[
                pl.BlockSpec((None, N, dim), lambda b: (b, 0, 0)),
                pl.BlockSpec((dim, 3 * C), lambda b: (0, 0)),
                pl.BlockSpec((1, 3 * C), lambda b: (0, 0)),
                pl.BlockSpec((C, C), lambda b: (0, 0)),
                pl.BlockSpec((1, C), lambda b: (0, 0)),
            ],
            out_specs=pl.BlockSpec((None, Q, W * C), lambda b: (b, 0, 0)),
            scratch_shapes=[
                pltpu.VMEM((Nq, C), jnp.float32),   # pooled q
                pltpu.VMEM((N, C), jnp.float32),    # k
                pltpu.VMEM((N, C), jnp.float32),    # v
            ],
        ),
        compiler_params=pltpu.CompilerParams(
            dimension_semantics=("parallel",)),
    )(x, wqkv, bqkv2, wproj, bproj2)

    # [B, Q, W*C] and [B, Q*W, C] share the same contiguous layout -> free reshape.
    # TODO(synk): for production Hiera dims (heads 8-16, large num_windows), move
    # windows onto a grid axis and batch heads with bf16 MXU inputs.
    return out.reshape(B, Nq, C)


def reference(x, wqkv, bqkv, wproj, bproj, *, heads, q_stride, window_size,
              use_mask_unit_attn):
    """Pure-JAX mirror of the PyTorch forward (same weight layout: y = x @ W + b)."""
    B, N, _ = x.shape
    dim_out = wproj.shape[0]
    head_dim = dim_out // heads
    num_windows = N // (q_stride * window_size) if use_mask_unit_attn else 1
    qkv = (x @ wqkv + bqkv).reshape(B, -1, num_windows, 3, heads, head_dim)
    qkv = jnp.transpose(qkv, (3, 0, 4, 2, 1, 5))       # [3, B, H, W, S, hd]
    q, k, v = qkv[0], qkv[1], qkv[2]
    if q_stride > 1:
        S = q.shape[3]
        q = q.reshape(B, heads, num_windows, q_stride, S // q_stride, head_dim).max(axis=3)
    scale = head_dim ** (-0.5)
    attn = jax.nn.softmax(jnp.einsum('bhwqd,bhwkd->bhwqk', q, k) * scale, axis=-1)
    o = jnp.einsum('bhwqk,bhwkd->bhwqd', attn, v)
    o = jnp.transpose(o, (0, 3, 2, 1, 4)).reshape(B, -1, dim_out)   # .transpose(1, 3)
    return o @ wproj + bproj


if __name__ == "__main__":
    # Module hyper-parameters (small, consistent with the forward's constraints).
    dim, dim_out, heads = 32, 32, 4
    q_stride, window_size, use_mask_unit_attn = 2, 4, True
    B, N = 2, 64                    # N divisible by q_stride * window_size

    key = jax.random.PRNGKey(0)
    k0, k1, k2, k3, k4 = jax.random.split(key, 5)
    x = jax.random.normal(k0, (B, N, dim), jnp.float32)
    wqkv = jax.random.normal(k1, (dim, 3 * dim_out), jnp.float32) * 0.05
    bqkv = jax.random.normal(k2, (3 * dim_out,), jnp.float32) * 0.05
    wproj = jax.random.normal(k3, (dim_out, dim_out), jnp.float32) * 0.05
    bproj = jax.random.normal(k4, (dim_out,), jnp.float32) * 0.05

    out = multi_scale_attention(x, wqkv, bqkv, wproj, bproj,
                                heads=heads, q_stride=q_stride,
                                window_size=window_size,
                                use_mask_unit_attn=use_mask_unit_attn)
    out = jax.block_until_ready(out)

    ref = reference(x, wqkv, bqkv, wproj, bproj,
                    heads=heads, q_stride=q_stride, window_size=window_size,
                    use_mask_unit_attn=use_mask_unit_attn)

    assert out.shape == (B, N // q_stride, dim_out), out.shape
    assert jnp.allclose(out, ref, rtol=1e-5, atol=2e-5), \
        float(jnp.max(jnp.abs(out - ref)))
    print("KERNEL_OK")
</pallas_src>

<mosaic_0001>
module attributes {stable_mosaic.version = 11 : i64} {
  func.func @msa_kernel(%arg0: i32, %arg1: memref<1x64x32xf32, #tpu.memory_space<vmem>>, %arg2: memref<32x96xf32, #tpu.memory_space<vmem>>, %arg3: memref<1x96xf32, #tpu.memory_space<vmem>>, %arg4: memref<32x32xf32, #tpu.memory_space<vmem>>, %arg5: memref<1x32xf32, #tpu.memory_space<vmem>>, %arg6: memref<1x4x256xf32, #tpu.memory_space<vmem>>, %arg7: memref<32x32xf32, #tpu.memory_space<vmem>>, %arg8: memref<64x32xf32, #tpu.memory_space<vmem>>, %arg9: memref<64x32xf32, #tpu.memory_space<vmem>>) attributes {dimension_semantics = [#tpu.dimension_semantics<parallel>], iteration_bounds = array<i64: 2>, scalar_prefetch = 0 : i64, scratch_operands = 3 : i64, tpu.core_type = #tpu.core_type<tc>, window_params = [{transform_indices = @transform_0, window_bounds = array<i64: 1, 64, 32>}, {pipeline_mode = #tpu.pipeline_mode<synchronous>, transform_indices = @transform_1, window_bounds = array<i64: 32, 96>}, {pipeline_mode = #tpu.pipeline_mode<synchronous>, transform_indices = @transform_2, window_bounds = array<i64: 1, 96>}, {pipeline_mode = #tpu.pipeline_mode<synchronous>, transform_indices = @transform_3, window_bounds = array<i64: 32, 32>}, {pipeline_mode = #tpu.pipeline_mode<synchronous>, transform_indices = @transform_4, window_bounds = array<i64: 1, 32>}, {transform_indices = @transform_5, window_bounds = array<i64: 1, 4, 256>}]} {
    %c0 = arith.constant 0 : index
    %c0_0 = arith.constant 0 : index
    %c0_1 = arith.constant 0 : index
    %0 = vector.load %arg1[%c0, %c0_0, %c0_1] : memref<1x64x32xf32, #tpu.memory_space<vmem>>, vector<1x64x32xf32>
    %1 = vector.shape_cast %0 : vector<1x64x32xf32> to vector<64x32xf32>
    %c0_2 = arith.constant 0 : index
    %c0_3 = arith.constant 0 : index
    %2 = vector.load %arg4[%c0_2, %c0_3] : memref<32x32xf32, #tpu.memory_space<vmem>>, vector<32x32xf32>
    %c0_4 = arith.constant 0 : index
    %c0_5 = arith.constant 0 : index
    %3 = vector.load %arg5[%c0_4, %c0_5] : memref<1x32xf32, #tpu.memory_space<vmem>>, vector<1x32xf32>
    %c0_6 = arith.constant 0 : index
    %c0_7 = arith.constant 0 : index
    %4 = vector.load %arg2[%c0_6, %c0_7] : memref<32x96xf32, #tpu.memory_space<vmem>>, vector<32x96xf32>
    %cst = arith.constant dense<0.000000e+00> : vector<64x96xf32>
    %5 = tpu.matmul %1, %4, %cst {dimension_numbers = #tpu.dot_dimension_numbers<[1], [0], [0], [1], [0, 0, 1, 1], [], []>} : vector<64x32xf32>, vector<32x96xf32>, vector<64x96xf32> -> vector<64x96xf32>
    %c0_8 = arith.constant 0 : index
    %c0_9 = arith.constant 0 : index
    %6 = vector.load %arg3[%c0_8, %c0_9] : memref<1x96xf32, #tpu.memory_space<vmem>>, vector<1x96xf32>
    %7 = vector.broadcast %6 : vector<1x96xf32> to vector<64x96xf32>
    %8 = arith.addf %5, %7 : vector<64x96xf32>
    %9 = vector.extract_strided_slice %8 {offsets = [0, 0], sizes = [64, 32], strides = [1, 1]} : vector<64x96xf32> to vector<64x32xf32>
    %10 = vector.extract_strided_slice %8 {offsets = [0, 32], sizes = [64, 32], strides = [1, 1]} : vector<64x96xf32> to vector<64x32xf32>
    %11 = vector.extract_strided_slice %8 {offsets = [0, 64], sizes = [64, 32], strides = [1, 1]} : vector<64x96xf32> to vector<64x32xf32>
    %12 = vector.extract_strided_slice %9 {offsets = [0, 0], sizes = [32, 32], strides = [1, 1]} : vector<64x32xf32> to vector<32x32xf32>
    %13 = vector.extract_strided_slice %9 {offsets = [32, 0], sizes = [32, 32], strides = [1, 1]} : vector<64x32xf32> to vector<32x32xf32>
    %14 = arith.maximumf %12, %13 : vector<32x32xf32>
    %cst_10 = arith.constant 0.353553385 : f32
    %15 = vector.broadcast %cst_10 : f32 to vector<32x32xf32>
    %16 = arith.mulf %14, %15 : vector<32x32xf32>
    %c0_11 = arith.constant 0 : index
    %c0_12 = arith.constant 0 : index
    %17 = vector.load %arg7[%c0_11, %c0_12] : memref<32x32xf32, #tpu.memory_space<vmem>>, vector<32x32xf32>
    tpu.vector_store %arg7[%c0_11, %c0_12], %16 {strides = array<i32>} : memref<32x32xf32, #tpu.memory_space<vmem>>, vector<32x32xf32>,
    %c0_13 = arith.constant 0 : index
    %c0_14 = arith.constant 0 : index
    %18 = vector.load %arg8[%c0_13, %c0_14] : memref<64x32xf32, #tpu.memory_space<vmem>>, vector<64x32xf32>
    tpu.vector_store %arg8[%c0_13, %c0_14], %10 {strides = array<i32>} : memref<64x32xf32, #tpu.memory_space<vmem>>, vector<64x32xf32>,
    %c0_15 = arith.constant 0 : index
    %c0_16 = arith.constant 0 : index
    %19 = vector.load %arg9[%c0_15, %c0_16] : memref<64x32xf32, #tpu.memory_space<vmem>>, vector<64x32xf32>
    tpu.vector_store %arg9[%c0_15, %c0_16], %11 {strides = array<i32>} : memref<64x32xf32, #tpu.memory_space<vmem>>, vector<64x32xf32>,
    %c0_17 = arith.constant 0 : index
    %c0_18 = arith.constant 0 : index
    %20 = tpu.strided_load %arg7[%c0_17, %c0_18] {strides = array<i32: 8, 1>} : memref<32x32xf32, #tpu.memory_space<vmem>>, vector<4x32xf32>
    %c0_19 = arith.constant 0 : index
    %c0_20 = arith.constant 0 : index
    %21 = tpu.strided_load %arg8[%c0_19, %c0_20] {strides = array<i32: 8, 1>} : memref<64x32xf32, #tpu.memory_space<vmem>>, vector<8x32xf32>
    %c0_21 = arith.constant 0 : index
    %c0_22 = arith.constant 0 : index
    %22 = tpu.strided_load %arg9[%c0_21, %c0_22] {strides = array<i32: 8, 1>} : memref<64x32xf32, #tpu.memory_space<vmem>>, vector<8x32xf32>
    %23 = vector.extract_strided_slice %20 {offsets = [0, 0], sizes = [4, 8], strides = [1, 1]} : vector<4x32xf32> to vector<4x8xf32>
    %24 = vector.extract_strided_slice %21 {offsets = [0, 0], sizes = [8, 8], strides = [1, 1]} : vector<8x32xf32> to vector<8x8xf32>
    %25 = vector.extract_strided_slice %22 {offsets = [0, 0], sizes = [8, 8], strides = [1, 1]} : vector<8x32xf32> to vector<8x8xf32>
    %cst_23 = arith.constant dense<0.000000e+00> : vector<4x8xf32>
    %26 = tpu.matmul %23, %24, %cst_23 {dimension_numbers = #tpu.dot_dimension_numbers<[1], [1], [0], [0], [0, 0, 1, 0], [], []>} : vector<4x8xf32>, vector<8x8xf32>, vector<4x8xf32> -> vector<4x8xf32>
    %cst_24 = arith.constant dense<0xFF800000> : vector<4xf32>
    %27 = vector.multi_reduction <maximumf>, %26, %cst_24 [1] : vector<4x8xf32> to vector<4xf32>
    %28 = vector.shape_cast %27 : vector<4xf32> to vector<4x1xf32>
    %29 = vector.broadcast %28 : vector<4x1xf32> to vector<4x8xf32>
    %30 = arith.subf %26, %29 : vector<4x8xf32>
    %31 = math.exp %30 : vector<4x8xf32>
    %cst_25 = arith.constant dense<0.000000e+00> : vector<4xf32>
    %32 = vector.multi_reduction <add>, %31, %cst_25 [1] : vector<4x8xf32> to vector<4xf32>
    %33 = vector.shape_cast %32 : vector<4xf32> to vector<4x1xf32>
    %cst_26 = arith.constant dense<0.000000e+00> : vector<4x8xf32>
    %34 = tpu.matmul %31, %25, %cst_26 {dimension_numbers = #tpu.dot_dimension_numbers<[1], [0], [0], [1], [0, 0, 1, 1], [], []>} : vector<4x8xf32>, vector<8x8xf32>, vector<4x8xf32> -> vector<4x8xf32>
    %35 = tpu.reciprocal %33 : vector<4x1xf32> -> vector<4x1xf32>
    %36 = vector.broadcast %35 : vector<4x1xf32> to vector<4x8xf32>
    %37 = arith.mulf %34, %36 : vector<4x8xf32>
    %38 = vector.extract_strided_slice %20 {offsets = [0, 8], sizes = [4, 8], strides = [1, 1]} : vector<4x32xf32> to vector<4x8xf32>
    %39 = vector.extract_strided_slice %21 {offsets = [0, 8], sizes = [8, 8], strides = [1, 1]} : vector<8x32xf32> to vector<8x8xf32>
    %40 = vector.extract_strided_slice %22 {offsets = [0, 8], sizes = [8, 8], strides = [1, 1]} : vector<8x32xf32> to vector<8x8xf32>
    %cst_27 = arith.constant dense<0.000000e+00> : vector<4x8xf32>
    %41 = tpu.matmul %38, %39, %cst_27 {dimension_numbers = #tpu.dot_dimension_numbers<[1], [1], [0], [0], [0, 0, 1, 0], [], []>} : vector<4x8xf32>, vector<8x8xf32>, vector<4x8xf32> -> vector<4x8xf32>
    %cst_28 = arith.constant dense<0xFF800000> : vector<4xf32>
    %42 = vector.multi_reduction <maximumf>, %41, %cst_28 [1] : vector<4x8xf32> to vector<4xf32>
    %43 = vector.shape_cast %42 : vector<4xf32> to vector<4x1xf32>
    %44 = vector.broadcast %43 : vector<4x1xf32> to vector<4x8xf32>
    %45 = arith.subf %41, %44 : vector<4x8xf32>
    %46 = math.exp %45 : vector<4x8xf32>
    %cst_29 = arith.constant dense<0.000000e+00> : vector<4xf32>
    %47 = vector.multi_reduction <add>, %46, %cst_29 [1] : vector<4x8xf32> to vector<4xf32>
    %48 = vector.shape_cast %47 : vector<4xf32> to vector<4x1xf32>
    %cst_30 = arith.constant dense<0.000000e+00> : vector<4x8xf32>
    %49 = tpu.matmul %46, %40, %cst_30 {dimension_numbers = #tpu.dot_dimension_numbers<[1], [0], [0], [1], [0, 0, 1, 1], [], []>} : vector<4x8xf32>, vector<8x8xf32>, vector<4x8xf32> -> vector<4x8xf32>
    %50 = tpu.reciprocal %48 : vector<4x1xf32> -> vector<4x1xf32>
    %51 = vector.broadcast %50 : vector<4x1xf32> to vector<4x8xf32>
    %52 = arith.mulf %49, %51 : vector<4x8xf32>
    %53 = vector.extract_strided_slice %20 {offsets = [0, 16], sizes = [4, 8], strides = [1, 1]} : vector<4x32xf32> to vector<4x8xf32>
    %54 = vector.extract_strided_slice %21 {offsets = [0, 16], sizes = [8, 8], strides = [1, 1]} : vector<8x32xf32> to vector<8x8xf32>
    %55 = vector.extract_strided_slice %22 {offsets = [0, 16], sizes = [8, 8], strides = [1, 1]} : vector<8x32xf32> to vector<8x8xf32>
    %cst_31 = arith.constant dense<0.000000e+00> : vector<4x8xf32>
    %56 = tpu.matmul %53, %54, %cst_31 {dimension_numbers = #tpu.dot_dimension_numbers<[1], [1], [0], [0], [0, 0, 1, 0], [], []>} : vector<4x8xf32>, vector<8x8xf32>, vector<4x8xf32> -> vector<4x8xf32>
    %cst_32 = arith.constant dense<0xFF800000> : vector<4xf32>
    %57 = vector.multi_reduction <maximumf>, %56, %cst_32 [1] : vector<4x8xf32> to vector<4xf32>
    %58 = vector.shape_cast %57 : vector<4xf32> to vector<4x1xf32>
    %59 = vector.broadcast %58 : vector<4x1xf32> to vector<4x8xf32>
    %60 = arith.subf %56, %59 : vector<4x8xf32>
    %61 = math.exp %60 : vector<4x8xf32>
    %cst_33 = arith.constant dense<0.000000e+00> : vector<4xf32>
    %62 = vector.multi_reduction <add>, %61, %cst_33 [1] : vector<4x8xf32> to vector<4xf32>
    %63 = vector.shape_cast %62 : vector<4xf32> to vector<4x1xf32>
    %cst_34 = arith.constant dense<0.000000e+00> : vector<4x8xf32>
    %64 = tpu.matmul %61, %55, %cst_34 {dimension_numbers = #tpu.dot_dimension_numbers<[1], [0], [0], [1], [0, 0, 1, 1], [], []>} : vector<4x8xf32>, vector<8x8xf32>, vector<4x8xf32> -> vector<4x8xf32>
    %65 = tpu.reciprocal %63 : vector<4x1xf32> -> vector<4x1xf32>
    %66 = vector.broadcast %65 : vector<4x1xf32> to vector<4x8xf32>
    %67 = arith.mulf %64, %66 : vector<4x8xf32>
    %68 = vector.extract_strided_slice %20 {offsets = [0, 24], sizes = [4, 8], strides = [1, 1]} : vector<4x32xf32> to vector<4x8xf32>
    %69 = vector.extract_strided_slice %21 {offsets = [0, 24], sizes = [8, 8], strides = [1, 1]} : vector<8x32xf32> to vector<8x8xf32>
    %70 = vector.extract_strided_slice %22 {offsets = [0, 24], sizes = [8, 8], strides = [1, 1]} : vector<8x32xf32> to vector<8x8xf32>
    %cst_35 = arith.constant dense<0.000000e+00> : vector<4x8xf32>
    %71 = tpu.matmul %68, %69, %cst_35 {dimension_numbers = #tpu.dot_dimension_numbers<[1], [1], [0], [0], [0, 0, 1, 0], [], []>} : vector<4x8xf32>, vector<8x8xf32>, vector<4x8xf32> -> vector<4x8xf32>
    %cst_36 = arith.constant dense<0xFF800000> : vector<4xf32>
    %72 = vector.multi_reduction <maximumf>, %71, %cst_36 [1] : vector<4x8xf32> to vector<4xf32>
    %73 = vector.shape_cast %72 : vector<4xf32> to vector<4x1xf32>
    %74 = vector.broadcast %73 : vector<4x1xf32> to vector<4x8xf32>
    %75 = arith.subf %71, %74 : vector<4x8xf32>
    %76 = math.exp %75 : vector<4x8xf32>
    %cst_37 = arith.constant dense<0.000000e+00> : vector<4xf32>
    %77 = vector.multi_reduction <add>, %76, %cst_37 [1] : vector<4x8xf32> to vector<4xf32>
    %78 = vector.shape_cast %77 : vector<4xf32> to vector<4x1xf32>
    %cst_38 = arith.constant dense<0.000000e+00> : vector<4x8xf32>
    %79 = tpu.matmul %76, %70, %cst_38 {dimension_numbers = #tpu.dot_dimension_numbers<[1], [0], [0], [1], [0, 0, 1, 1], [], []>} : vector<4x8xf32>, vector<8x8xf32>, vector<4x8xf32> -> vector<4x8xf32>
    %80 = tpu.reciprocal %78 : vector<4x1xf32> -> vector<4x1xf32>
    %81 = vector.broadcast %80 : vector<4x1xf32> to vector<4x8xf32>
    %82 = arith.mulf %79, %81 : vector<4x8xf32>
    %83 = tpu.concatenate %37, %52, %67, %82 in 1 : vector<4x8xf32>, vector<4x8xf32>, vector<4x8xf32>, vector<4x8xf32> -> vector<4x32xf32>
    %cst_39 = arith.constant dense<0.000000e+00> : vector<4x32xf32>
    %84 = tpu.matmul %83, %2, %cst_39 {dimension_numbers = #tpu.dot_dimension_numbers<[1], [0], [0], [1], [0, 0, 1, 1], [], []>} : vector<4x32xf32>, vector<32x32xf32>, vector<4x32xf32> -> vector<4x32xf32>
    %85 = vector.broadcast %3 : vector<1x32xf32> to vector<4x32xf32>
    %86 = arith.addf %84, %85 : vector<4x32xf32>
    %c1 = arith.constant 1 : index
    %c0_40 = arith.constant 0 : index
    %87 = tpu.strided_load %arg7[%c1, %c0_40] {strides = array<i32: 8, 1>} : memref<32x32xf32, #tpu.memory_space<vmem>>, vector<4x32xf32>
    %c1_41 = arith.constant 1 : index
    %c0_42 = arith.constant 0 : index
    %88 = tpu.strided_load %arg8[%c1_41, %c0_42] {strides = array<i32: 8, 1>} : memref<64x32xf32, #tpu.memory_space<vmem>>, vector<8x32xf32>
    %c1_43 = arith.constant 1 : index
    %c0_44 = arith.constant 0 : index
    %89 = tpu.strided_load %arg9[%c1_43, %c0_44] {strides = array<i32: 8, 1>} : memref<64x32xf32, #tpu.memory_space<vmem>>, vector<8x32xf32>
    %90 = vector.extract_strided_slice %87 {offsets = [0, 0], sizes = [4, 8], strides = [1, 1]} : vector<4x32xf32> to vector<4x8xf32>
    %91 = vector.extract_strided_slice %88 {offsets = [0, 0], sizes = [8, 8], strides = [1, 1]} : vector<8x32xf32> to vector<8x8xf32>
    %92 = vector.extract_strided_slice %89 {offsets = [0, 0], sizes = [8, 8], strides = [1, 1]} : vector<8x32xf32> to vector<8x8xf32>
    %cst_45 = arith.constant dense<0.000000e+00> : vector<4x8xf32>
    %93 = tpu.matmul %90, %91, %cst_45 {dimension_numbers = #tpu.dot_dimension_numbers<[1], [1], [0], [0], [0, 0, 1, 0], [], []>} : vector<4x8xf32>, vector<8x8xf32>, vector<4x8xf32> -> vector<4x8xf32>
    %cst_46 = arith.constant dense<0xFF800000> : vector<4xf32>
    %94 = vector.multi_reduction <maximumf>, %93, %cst_46 [1] : vector<4x8xf32> to vector<4xf32>
    %95 = vector.shape_cast %94 : vector<4xf32> to vector<4x1xf32>
    %96 = vector.broadcast %95 : vector<4x1xf32> to vector<4x8xf32>
    %97 = arith.subf %93, %96 : vector<4x8xf32>
    %98 = math.exp %97 : vector<4x8xf32>
    %cst_47 = arith.constant dense<0.000000e+00> : vector<4xf32>
    %99 = vector.multi_reduction <add>, %98, %cst_47 [1] : vector<4x8xf32> to vector<4xf32>
    %100 = vector.shape_cast %99 : vector<4xf32> to vector<4x1xf32>
    %cst_48 = arith.constant dense<0.000000e+00> : vector<4x8xf32>
    %101 = tpu.matmul %98, %92, %cst_48 {dimension_numbers = #tpu.dot_dimension_numbers<[1], [0], [0], [1], [0, 0, 1, 1], [], []>} : vector<4x8xf32>, vector<8x8xf32>, vector<4x8xf32> -> vector<4x8xf32>
    %102 = tpu.reciprocal %100 : vector<4x1xf32> -> vector<4x1xf32>
    %103 = vector.broadcast %102 : vector<4x1xf32> to vector<4x8xf32>
    %104 = arith.mulf %101, %103 : vector<4x8xf32>
    %105 = vector.extract_strided_slice %87 {offsets = [0, 8], sizes = [4, 8], strides = [1, 1]} : vector<4x32xf32> to vector<4x8xf32>
    %106 = vector.extract_strided_slice %88 {offsets = [0, 8], sizes = [8, 8], strides = [1, 1]} : vector<8x32xf32> to vector<8x8xf32>
    %107 = vector.extract_strided_slice %89 {offsets = [0, 8], sizes = [8, 8], strides = [1, 1]} : vector<8x32xf32> to vector<8x8xf32>
    %cst_49 = arith.constant dense<0.000000e+00> : vector<4x8xf32>
    %108 = tpu.matmul %105, %106, %cst_49 {dimension_numbers = #tpu.dot_dimension_numbers<[1], [1], [0], [0], [0, 0, 1, 0], [], []>} : vector<4x8xf32>, vector<8x8xf32>, vector<4x8xf32> -> vector<4x8xf32>
    %cst_50 = arith.constant dense<0xFF800000> : vector<4xf32>
    %109 = vector.multi_reduction <maximumf>, %108, %cst_50 [1] : vector<4x8xf32> to vector<4xf32>
    %110 = vector.shape_cast %109 : vector<4xf32> to vector<4x1xf32>
    %111 = vector.broadcast %110 : vector<4x1xf32> to vector<4x8xf32>
    %112 = arith.subf %108, %111 : vector<4x8xf32>
    %113 = math.exp %112 : vector<4x8xf32>
    %cst_51 = arith.constant dense<0.000000e+00> : vector<4xf32>
    %114 = vector.multi_reduction <add>, %113, %cst_51 [1] : vector<4x8xf32> to vector<4xf32>
    %115 = vector.shape_cast %114 : vector<4xf32> to vector<4x1xf32>
    %cst_52 = arith.constant dense<0.000000e+00> : vector<4x8xf32>
    %116 = tpu.matmul %113, %107, %cst_52 {dimension_numbers = #tpu.dot_dimension_numbers<[1], [0], [0], [1], [0, 0, 1, 1], [], []>} : vector<4x8xf32>, vector<8x8xf32>, vector<4x8xf32> -> vector<4x8xf32>
    %117 = tpu.reciprocal %115 : vector<4x1xf32> -> vector<4x1xf32>
    %118 = vector.broadcast %117 : vector<4x1xf32> to vector<4x8xf32>
    %119 = arith.mulf %116, %118 : vector<4x8xf32>
    %120 = vector.extract_strided_slice %87 {offsets = [0, 16], sizes = [4, 8], strides = [1, 1]} : vector<4x32xf32> to vector<4x8xf32>
    %121 = vector.extract_strided_slice %88 {offsets = [0, 16], sizes = [8, 8], strides = [1, 1]} : vector<8x32xf32> to vector<8x8xf32>
    %122 = vector.extract_strided_slice %89 {offsets = [0, 16], sizes = [8, 8], strides = [1, 1]} : vector<8x32xf32> to vector<8x8xf32>
    %cst_53 = arith.constant dense<0.000000e+00> : vector<4x8xf32>
    %123 = tpu.matmul %120, %121, %cst_53 {dimension_numbers = #tpu.dot_dimension_numbers<[1], [1], [0], [0], [0, 0, 1, 0], [], []>} : vector<4x8xf32>, vector<8x8xf32>, vector<4x8xf32> -> vector<4x8xf32>
    %cst_54 = arith.constant dense<0xFF800000> : vector<4xf32>
    %124 = vector.multi_reduction <maximumf>, %123, %cst_54 [1] : vector<4x8xf32> to vector<4xf32>
    %125 = vector.shape_cast %124 : vector<4xf32> to vector<4x1xf32>
    %126 = vector.broadcast %125 : vector<4x1xf32> to vector<4x8xf32>
    %127 = arith.subf %123, %126 : vector<4x8xf32>
    %128 = math.exp %127 : vector<4x8xf32>
    %cst_55 = arith.constant dense<0.000000e+00> : vector<4xf32>
    %129 = vector.multi_reduction <add>, %128, %cst_55 [1] : vector<4x8xf32> to vector<4xf32>
    %130 = vector.shape_cast %129 : vector<4xf32> to vector<4x1xf32>
    %cst_56 = arith.constant dense<0.000000e+00> : vector<4x8xf32>
    %131 = tpu.matmul %128, %122, %cst_56 {dimension_numbers = #tpu.dot_dimension_numbers<[1], [0], [0], [1], [0, 0, 1, 1], [], []>} : vector<4x8xf32>, vector<8x8xf32>, vector<4x8xf32> -> vector<4x8xf32>
    %132 = tpu.reciprocal %130 : vector<4x1xf32> -> vector<4x1xf32>
    %133 = vector.broadcast %132 : vector<4x1xf32> to vector<4x8xf32>
    %134 = arith.mulf %131, %133 : vector<4x8xf32>
    %135 = vector.extract_strided_slice %87 {offsets = [0, 24], sizes = [4, 8], strides = [1, 1]} : vector<4x32xf32> to vector<4x8xf32>
    %136 = vector.extract_strided_slice %88 {offsets = [0, 24], sizes = [8, 8], strides = [1, 1]} : vector<8x32xf32> to vector<8x8xf32>
    %137 = vector.extract_strided_slice %89 {offsets = [0, 24], sizes = [8, 8], strides = [1, 1]} : vector<8x32xf32> to vector<8x8xf32>
    %cst_57 = arith.constant dense<0.000000e+00> : vector<4x8xf32>
    %138 = tpu.matmul %135, %136, %cst_57 {dimension_numbers = #tpu.dot_dimension_numbers<[1], [1], [0], [0], [0, 0, 1, 0], [], []>} : vector<4x8xf32>, vector<8x8xf32>, vector<4x8xf32> -> vector<4x8xf32>
    %cst_58 = arith.constant dense<0xFF800000> : vector<4xf32>
    %139 = vector.multi_reduction <maximumf>, %138, %cst_58 [1] : vector<4x8xf32> to vector<4xf32>
    %140 = vector.shape_cast %139 : vector<4xf32> to vector<4x1xf32>
    %141 = vector.broadcast %140 : vector<4x1xf32> to vector<4x8xf32>
    %142 = arith.subf %138, %141 : vector<4x8xf32>
    %143 = math.exp %142 : vector<4x8xf32>
    %cst_59 = arith.constant dense<0.000000e+00> : vector<4xf32>
    %144 = vector.multi_reduction <add>, %143, %cst_59 [1] : vector<4x8xf32> to vector<4xf32>
    %145 = vector.shape_cast %144 : vector<4xf32> to vector<4x1xf32>
    %cst_60 = arith.constant dense<0.000000e+00> : vector<4x8xf32>
    %146 = tpu.matmul %143, %137, %cst_60 {dimension_numbers = #tpu.dot_dimension_numbers<[1], [0], [0], [1], [0, 0, 1, 1], [], []>} : vector<4x8xf32>, vector<8x8xf32>, vector<4x8xf32> -> vector<4x8xf32>
    %147 = tpu.reciprocal %145 : vector<4x1xf32> -> vector<4x1xf32>
    %148 = vector.broadcast %147 : vector<4x1xf32> to vector<4x8xf32>
    %149 = arith.mulf %146, %148 : vector<4x8xf32>
    %150 = tpu.concatenate %104, %119, %134, %149 in 1 : vector<4x8xf32>, vector<4x8xf32>, vector<4x8xf32>, vector<4x8xf32> -> vector<4x32xf32>
    %cst_61 = arith.constant dense<0.000000e+00> : vector<4x32xf32>
    %151 = tpu.matmul %150, %2, %cst_61 {dimension_numbers = #tpu.dot_dimension_numbers<[1], [0], [0], [1], [0, 0, 1, 1], [], []>} : vector<4x32xf32>, vector<32x32xf32>, vector<4x32xf32> -> vector<4x32xf32>
    %152 = vector.broadcast %3 : vector<1x32xf32> to vector<4x32xf32>
    %153 = arith.addf %151, %152 : vector<4x32xf32>
    %c2 = arith.constant 2 : index
    %c0_62 = arith.constant 0 : index
    %154 = tpu.strided_load %arg7[%c2, %c0_62] {strides = array<i32: 8, 1>} : memref<32x32xf32, #tpu.memory_space<vmem>>, vector<4x32xf32>
    %c2_63 = arith.constant 2 : index
    %c0_64 = arith.constant 0 : index
    %155 = tpu.strided_load %arg8[%c2_63, %c0_64] {strides = array<i32: 8, 1>} : memref<64x32xf32, #tpu.memory_space<vmem>>, vector<8x32xf32>
    %c2_65 = arith.constant 2 : index
    %c0_66 = arith.constant 0 : index
    %156 = tpu.strided_load %arg9[%c2_65, %c0_66] {strides = array<i32: 8, 1>} : memref<64x32xf32, #tpu.memory_space<vmem>>, vector<8x32xf32>
    %157 = vector.extract_strided_slice %154 {offsets = [0, 0], sizes = [4, 8], strides = [1, 1]} : vector<4x32xf32> to vector<4x8xf32>
    %158 = vector.extract_strided_slice %155 {offsets = [0, 0], sizes = [8, 8], strides = [1, 1]} : vector<8x32xf32> to vector<8x8xf32>
    %159 = vector.extract_strided_slice %156 {offsets = [0, 0], sizes = [8, 8], strides = [1, 1]} : vector<8x32xf32> to vector<8x8xf32>
    %cst_67 = arith.constant dense<0.000000e+00> : vector<4x8xf32>
    %160 = tpu.matmul %157, %158, %cst_67 {dimension_numbers = #tpu.dot_dimension_numbers<[1], [1], [0], [0], [0, 0, 1, 0], [], []>} : vector<4x8xf32>, vector<8x8xf32>, vector<4x8xf32> -> vector<4x8xf32>
    %cst_68 = arith.constant dense<0xFF800000> : vector<4xf32>
    %161 = vector.multi_reduction <maximumf>, %160, %cst_68 [1] : vector<4x8xf32> to vector<4xf32>
    %162 = vector.shape_cast %161 : vector<4xf32> to vector<4x1xf32>
    %163 = vector.broadcast %162 : vector<4x1xf32> to vector<4x8xf32>
    %164 = arith.subf %160, %163 : vector<4x8xf32>
    %165 = math.exp %164 : vector<4x8xf32>
    %cst_69 = arith.constant dense<0.000000e+00> : vector<4xf32>
    %166 = vector.multi_reduction <add>, %165, %cst_69 [1] : vector<4x8xf32> to vector<4xf32>
    %167 = vector.shape_cast %166 : vector<4xf32> to vector<4x1xf32>
    %cst_70 = arith.constant dense<0.000000e+00> : vector<4x8xf32>
    %168 = tpu.matmul %165, %159, %cst_70 {dimension_numbers = #tpu.dot_dimension_numbers<[1], [0], [0], [1], [0, 0, 1, 1], [], []>} : vector<4x8xf32>, vector<8x8xf32>, vector<4x8xf32> -> vector<4x8xf32>
    %169 = tpu.reciprocal %167 : vector<4x1xf32> -> vector<4x1xf32>
    %170 = vector.broadcast %169 : vector<4x1xf32> to vector<4x8xf32>
    %171 = arith.mulf %168, %170 : vector<4x8xf32>
    %172 = vector.extract_strided_slice %154 {offsets = [0, 8], sizes = [4, 8], strides = [1, 1]} : vector<4x32xf32> to vector<4x8xf32>
    %173 = vector.extract_strided_slice %155 {offsets = [0, 8], sizes = [8, 8], strides = [1, 1]} : vector<8x32xf32> to vector<8x8xf32>
    %174 = vector.extract_strided_slice %156 {offsets = [0, 8], sizes = [8, 8], strides = [1, 1]} : vector<8x32xf32> to vector<8x8xf32>
    %cst_71 = arith.constant dense<0.000000e+00> : vector<4x8xf32>
    %175 = tpu.matmul %172, %173, %cst_71 {dimension_numbers = #tpu.dot_dimension_numbers<[1], [1], [0], [0], [0, 0, 1, 0], [], []>} : vector<4x8xf32>, vector<8x8xf32>, vector<4x8xf32> -> vector<4x8xf32>
    %cst_72 = arith.constant dense<0xFF800000> : vector<4xf32>
    %176 = vector.multi_reduction <maximumf>, %175, %cst_72 [1] : vector<4x8xf32> to vector<4xf32>
    %177 = vector.shape_cast %176 : vector<4xf32> to vector<4x1xf32>
    %178 = vector.broadcast %177 : vector<4x1xf32> to vector<4x8xf32>
    %179 = arith.subf %175, %178 : vector<4x8xf32>
    %180 = math.exp %179 : vector<4x8xf32>
    %cst_73 = arith.constant dense<0.000000e+00> : vector<4xf32>
    %181 = vector.multi_reduction <add>, %180, %cst_73 [1] : vector<4x8xf32> to vector<4xf32>
    %182 = vector.shape_cast %181 : vector<4xf32> to vector<4x1xf32>
    %cst_74 = arith.constant dense<0.000000e+00> : vector<4x8xf32>
    %183 = tpu.matmul %180, %174, %cst_74 {dimension_numbers = #tpu.dot_dimension_numbers<[1], [0], [0], [1], [0, 0, 1, 1], [], []>} : vector<4x8xf32>, vector<8x8xf32>, vector<4x8xf32> -> vector<4x8xf32>
    %184 = tpu.reciprocal %182 : vector<4x1xf32> -> vector<4x1xf32>
    %185 = vector.broadcast %184 : vector<4x1xf32> to vector<4x8xf32>
    %186 = arith.mulf %183, %185 : vector<4x8xf32>
    %187 = vector.extract_strided_slice %154 {offsets = [0, 16], sizes = [4, 8], strides = [1, 1]} : vector<4x32xf32> to vector<4x8xf32>
    %188 = vector.extract_strided_slice %155 {offsets = [0, 16], sizes = [8, 8], strides = [1, 1]} : vector<8x32xf32> to vector<8x8xf32>
    %189 = vector.extract_strided_slice %156 {offsets = [0, 16], sizes = [8, 8], strides = [1, 1]} : vector<8x32xf32> to vector<8x8xf32>
    %cst_75 = arith.constant dense<0.000000e+00> : vector<4x8xf32>
    %190 = tpu.matmul %187, %188, %cst_75 {dimension_numbers = #tpu.dot_dimension_numbers<[1], [1], [0], [0], [0, 0, 1, 0], [], []>} : vector<4x8xf32>, vector<8x8xf32>, vector<4x8xf32> -> vector<4x8xf32>
    %cst_76 = arith.constant dense<0xFF800000> : vector<4xf32>
    %191 = vector.multi_reduction <maximumf>, %190, %cst_76 [1] : vector<4x8xf32> to vector<4xf32>
    %192 = vector.shape_cast %191 : vector<4xf32> to vector<4x1xf32>
    %193 = vector.broadcast %192 : vector<4x1xf32> to vector<4x8xf32>
    %194 = arith.subf %190, %193 : vector<4x8xf32>
    %195 = math.exp %194 : vector<4x8xf32>
    %cst_77 = arith.constant dense<0.000000e+00> : vector<4xf32>
    %196 = vector.multi_reduction <add>, %195, %cst_77 [1] : vector<4x8xf32> to vector<4xf32>
    %197 = vector.shape_cast %196 : vector<4xf32> to vector<4x1xf32>
    %cst_78 = arith.constant dense<0.000000e+00> : vector<4x8xf32>
    %198 = tpu.matmul %195, %189, %cst_78 {dimension_numbers = #tpu.dot_dimension_numbers<[1], [0], [0], [1], [0, 0, 1, 1], [], []>} : vector<4x8xf32>, vector<8x8xf32>, vector<4x8xf32> -> vector<4x8xf32>
    %199 = tpu.reciprocal %197 : vector<4x1xf32> -> vector<4x1xf32>
    %200 = vector.broadcast %199 : vector<4x1xf32> to vector<4x8xf32>
    %201 = arith.mulf %198, %200 : vector<4x8xf32>
    %202 = vector.extract_strided_slice %154 {offsets = [0, 24], sizes = [4, 8], strides = [1, 1]} : vector<4x32xf32> to vector<4x8xf32>
    %203 = vector.extract_strided_slice %155 {offsets = [0, 24], sizes = [8, 8], strides = [1, 1]} : vector<8x32xf32> to vector<8x8xf32>
    %204 = vector.extract_strided_slice %156 {offsets = [0, 24], sizes = [8, 8], strides = [1, 1]} : vector<8x32xf32> to vector<8x8xf32>
    %cst_79 = arith.constant dense<0.000000e+00> : vector<4x8xf32>
    %205 = tpu.matmul %202, %203, %cst_79 {dimension_numbers = #tpu.dot_dimension_numbers<[1], [1], [0], [0], [0, 0, 1, 0], [], []>} : vector<4x8xf32>, vector<8x8xf32>, vector<4x8xf32> -> vector<4x8xf32>
    %cst_80 = arith.constant dense<0xFF800000> : vector<4xf32>
    %206 = vector.multi_reduction <maximumf>, %205, %cst_80 [1] : vector<4x8xf32> to vector<4xf32>
    %207 = vector.shape_cast %206 : vector<4xf32> to vector<4x1xf32>
    %208 = vector.broadcast %207 : vector<4x1xf32> to vector<4x8xf32>
    %209 = arith.subf %205, %208 : vector<4x8xf32>
    %210 = math.exp %209 : vector<4x8xf32>
    %cst_81 = arith.constant dense<0.000000e+00> : vector<4xf32>
    %211 = vector.multi_reduction <add>, %210, %cst_81 [1] : vector<4x8xf32> to vector<4xf32>
    %212 = vector.shape_cast %211 : vector<4xf32> to vector<4x1xf32>
    %cst_82 = arith.constant dense<0.000000e+00> : vector<4x8xf32>
    %213 = tpu.matmul %210, %204, %cst_82 {dimension_numbers = #tpu.dot_dimension_numbers<[1], [0], [0], [1], [0, 0, 1, 1], [], []>} : vector<4x8xf32>, vector<8x8xf32>, vector<4x8xf32> -> vector<4x8xf32>
    %214 = tpu.reciprocal %212 : vector<4x1xf32> -> vector<4x1xf32>
    %215 = vector.broadcast %214 : vector<4x1xf32> to vector<4x8xf32>
    %216 = arith.mulf %213, %215 : vector<4x8xf32>
    %217 = tpu.concatenate %171, %186, %201, %216 in 1 : vector<4x8xf32>, vector<4x8xf32>, vector<4x8xf32>, vector<4x8xf32> -> vector<4x32xf32>
    %cst_83 = arith.constant dense<0.000000e+00> : vector<4x32xf32>
    %218 = tpu.matmul %217, %2, %cst_83 {dimension_numbers = #tpu.dot_dimension_numbers<[1], [0], [0], [1], [0, 0, 1, 1], [], []>} : vector<4x32xf32>, vector<32x32xf32>, vector<4x32xf32> -> vector<4x32xf32>
    %219 = vector.broadcast %3 : vector<1x32xf32> to vector<4x32xf32>
    %220 = arith.addf %218, %219 : vector<4x32xf32>
    %c3 = arith.constant 3 : index
    %c0_84 = arith.constant 0 : index
    %221 = tpu.strided_load %arg7[%c3, %c0_84] {strides = array<i32: 8, 1>} : memref<32x32xf32, #tpu.memory_space<vmem>>, vector<4x32xf32>
    %c3_85 = arith.constant 3 : index
    %c0_86 = arith.constant 0 : index
    %222 = tpu.strided_load %arg8[%c3_85, %c0_86] {strides = array<i32: 8, 1>} : memref<64x32xf32, #tpu.memory_space<vmem>>, vector<8x32xf32>
    %c3_87 = arith.constant 3 : index
    %c0_88 = arith.constant 0 : index
    %223 = tpu.strided_load %arg9[%c3_87, %c0_88] {strides = array<i32: 8, 1>} : memref<64x32xf32, #tpu.memory_space<vmem>>, vector<8x32xf32>
    %224 = vector.extract_strided_slice %221 {offsets = [0, 0], sizes = [4, 8], strides = [1, 1]} : vector<4x32xf32> to vector<4x8xf32>
    %225 = vector.extract_strided_slice %222 {offsets = [0, 0], sizes = [8, 8], strides = [1, 1]} : vector<8x32xf32> to vector<8x8xf32>
    %226 = vector.extract_strided_slice %223 {offsets = [0, 0], sizes = [8, 8], strides = [1, 1]} : vector<8x32xf32> to vector<8x8xf32>
    %cst_89 = arith.constant dense<0.000000e+00> : vector<4x8xf32>
    %227 = tpu.matmul %224, %225, %cst_89 {dimension_numbers = #tpu.dot_dimension_numbers<[1], [1], [0], [0], [0, 0, 1, 0], [], []>} : vector<4x8xf32>, vector<8x8xf32>, vector<4x8xf32> -> vector<4x8xf32>
    %cst_90 = arith.constant dense<0xFF800000> : vector<4xf32>
    %228 = vector.multi_reduction <maximumf>, %227, %cst_90 [1] : vector<4x8xf32> to vector<4xf32>
    %229 = vector.shape_cast %228 : vector<4xf32> to vector<4x1xf32>
    %230 = vector.broadcast %229 : vector<4x1xf32> to vector<4x8xf32>
    %231 = arith.subf %227, %230 : vector<4x8xf32>
    %232 = math.exp %231 : vector<4x8xf32>
    %cst_91 = arith.constant dense<0.000000e+00> : vector<4xf32>
    %233 = vector.multi_reduction <add>, %232, %cst_91 [1] : vector<4x8xf32> to vector<4xf32>
    %234 = vector.shape_cast %233 : vector<4xf32> to vector<4x1xf32>
    %cst_92 = arith.constant dense<0.000000e+00> : vector<4x8xf32>
    %235 = tpu.matmul %232, %226, %cst_92 {dimension_numbers = #tpu.dot_dimension_numbers<[1], [0], [0], [1], [0, 0, 1, 1], [], []>} : vector<4x8xf32>, vector<8x8xf32>, vector<4x8xf32> -> vector<4x8xf32>
    %236 = tpu.reciprocal %234 : vector<4x1xf32> -> vector<4x1xf32>
    %237 = vector.broadcast %236 : vector<4x1xf32> to vector<4x8xf32>
    %238 = arith.mulf %235, %237 : vector<4x8xf32>
    %239 = vector.extract_strided_slice %221 {offsets = [0, 8], sizes = [4, 8], strides = [1, 1]} : vector<4x32xf32> to vector<4x8xf32>
    %240 = vector.extract_strided_slice %222 {offsets = [0, 8], sizes = [8, 8], strides = [1, 1]} : vector<8x32xf32> to vector<8x8xf32>
    %241 = vector.extract_strided_slice %223 {offsets = [0, 8], sizes = [8, 8], strides = [1, 1]} : vector<8x32xf32> to vector<8x8xf32>
    %cst_93 = arith.constant dense<0.000000e+00> : vector<4x8xf32>
    %242 = tpu.matmul %239, %240, %cst_93 {dimension_numbers = #tpu.dot_dimension_numbers<[1], [1], [0], [0], [0, 0, 1, 0], [], []>} : vector<4x8xf32>, vector<8x8xf32>, vector<4x8xf32> -> vector<4x8xf32>
    %cst_94 = arith.constant dense<0xFF800000> : vector<4xf32>
    %243 = vector.multi_reduction <maximumf>, %242, %cst_94 [1] : vector<4x8xf32> to vector<4xf32>
    %244 = vector.shape_cast %243 : vector<4xf32> to vector<4x1xf32>
    %245 = vector.broadcast %244 : vector<4x1xf32> to vector<4x8xf32>
    %246 = arith.subf %242, %245 : vector<4x8xf32>
    %247 = math.exp %246 : vector<4x8xf32>
    %cst_95 = arith.constant dense<0.000000e+00> : vector<4xf32>
    %248 = vector.multi_reduction <add>, %247, %cst_95 [1] : vector<4x8xf32> to vector<4xf32>
    %249 = vector.shape_cast %248 : vector<4xf32> to vector<4x1xf32>
    %cst_96 = arith.constant dense<0.000000e+00> : vector<4x8xf32>
    %250 = tpu.matmul %247, %241, %cst_96 {dimension_numbers = #tpu.dot_dimension_numbers<[1], [0], [0], [1], [0, 0, 1, 1], [], []>} : vector<4x8xf32>, vector<8x8xf32>, vector<4x8xf32> -> vector<4x8xf32>
    %251 = tpu.reciprocal %249 : vector<4x1xf32> -> vector<4x1xf32>
    %252 = vector.broadcast %251 : vector<4x1xf32> to vector<4x8xf32>
    %253 = arith.mulf %250, %252 : vector<4x8xf32>
    %254 = vector.extract_strided_slice %221 {offsets = [0, 16], sizes = [4, 8], strides = [1, 1]} : vector<4x32xf32> to vector<4x8xf32>
    %255 = vector.extract_strided_slice %222 {offsets = [0, 16], sizes = [8, 8], strides = [1, 1]} : vector<8x32xf32> to vector<8x8xf32>
    %256 = vector.extract_strided_slice %223 {offsets = [0, 16], sizes = [8, 8], strides = [1, 1]} : vector<8x32xf32> to vector<8x8xf32>
    %cst_97 = arith.constant dense<0.000000e+00> : vector<4x8xf32>
    %257 = tpu.matmul %254, %255, %cst_97 {dimension_numbers = #tpu.dot_dimension_numbers<[1], [1], [0], [0], [0, 0, 1, 0], [], []>} : vector<4x8xf32>, vector<8x8xf32>, vector<4x8xf32> -> vector<4x8xf32>
    %cst_98 = arith.constant dense<0xFF800000> : vector<4xf32>
    %258 = vector.multi_reduction <maximumf>, %257, %cst_98 [1] : vector<4x8xf32> to vector<4xf32>
    %259 = vector.shape_cast %258 : vector<4xf32> to vector<4x1xf32>
    %260 = vector.broadcast %259 : vector<4x1xf32> to vector<4x8xf32>
    %261 = arith.subf %257, %260 : vector<4x8xf32>
    %262 = math.exp %261 : vector<4x8xf32>
    %cst_99 = arith.constant dense<0.000000e+00> : vector<4xf32>
    %263 = vector.multi_reduction <add>, %262, %cst_99 [1] : vector<4x8xf32> to vector<4xf32>
    %264 = vector.shape_cast %263 : vector<4xf32> to vector<4x1xf32>
    %cst_100 = arith.constant dense<0.000000e+00> : vector<4x8xf32>
    %265 = tpu.matmul %262, %256, %cst_100 {dimension_numbers = #tpu.dot_dimension_numbers<[1], [0], [0], [1], [0, 0, 1, 1], [], []>} : vector<4x8xf32>, vector<8x8xf32>, vector<4x8xf32> -> vector<4x8xf32>
    %266 = tpu.reciprocal %264 : vector<4x1xf32> -> vector<4x1xf32>
    %267 = vector.broadcast %266 : vector<4x1xf32> to vector<4x8xf32>
    %268 = arith.mulf %265, %267 : vector<4x8xf32>
    %269 = vector.extract_strided_slice %221 {offsets = [0, 24], sizes = [4, 8], strides = [1, 1]} : vector<4x32xf32> to vector<4x8xf32>
    %270 = vector.extract_strided_slice %222 {offsets = [0, 24], sizes = [8, 8], strides = [1, 1]} : vector<8x32xf32> to vector<8x8xf32>
    %271 = vector.extract_strided_slice %223 {offsets = [0, 24], sizes = [8, 8], strides = [1, 1]} : vector<8x32xf32> to vector<8x8xf32>
    %cst_101 = arith.constant dense<0.000000e+00> : vector<4x8xf32>
    %272 = tpu.matmul %269, %270, %cst_101 {dimension_numbers = #tpu.dot_dimension_numbers<[1], [1], [0], [0], [0, 0, 1, 0], [], []>} : vector<4x8xf32>, vector<8x8xf32>, vector<4x8xf32> -> vector<4x8xf32>
    %cst_102 = arith.constant dense<0xFF800000> : vector<4xf32>
    %273 = vector.multi_reduction <maximumf>, %272, %cst_102 [1] : vector<4x8xf32> to vector<4xf32>
    %274 = vector.shape_cast %273 : vector<4xf32> to vector<4x1xf32>
    %275 = vector.broadcast %274 : vector<4x1xf32> to vector<4x8xf32>
    %276 = arith.subf %272, %275 : vector<4x8xf32>
    %277 = math.exp %276 : vector<4x8xf32>
    %cst_103 = arith.constant dense<0.000000e+00> : vector<4xf32>
    %278 = vector.multi_reduction <add>, %277, %cst_103 [1] : vector<4x8xf32> to vector<4xf32>
    %279 = vector.shape_cast %278 : vector<4xf32> to vector<4x1xf32>
    %cst_104 = arith.constant dense<0.000000e+00> : vector<4x8xf32>
    %280 = tpu.matmul %277, %271, %cst_104 {dimension_numbers = #tpu.dot_dimension_numbers<[1], [0], [0], [1], [0, 0, 1, 1], [], []>} : vector<4x8xf32>, vector<8x8xf32>, vector<4x8xf32> -> vector<4x8xf32>
    %281 = tpu.reciprocal %279 : vector<4x1xf32> -> vector<4x1xf32>
    %282 = vector.broadcast %281 : vector<4x1xf32> to vector<4x8xf32>
    %283 = arith.mulf %280, %282 : vector<4x8xf32>
    %284 = tpu.concatenate %238, %253, %268, %283 in 1 : vector<4x8xf32>, vector<4x8xf32>, vector<4x8xf32>, vector<4x8xf32> -> vector<4x32xf32>
    %cst_105 = arith.constant dense<0.000000e+00> : vector<4x32xf32>
    %285 = tpu.matmul %284, %2, %cst_105 {dimension_numbers = #tpu.dot_dimension_numbers<[1], [0], [0], [1], [0, 0, 1, 1], [], []>} : vector<4x32xf32>, vector<32x32xf32>, vector<4x32xf32> -> vector<4x32xf32>
    %286 = vector.broadcast %3 : vector<1x32xf32> to vector<4x32xf32>
    %287 = arith.addf %285, %286 : vector<4x32xf32>
    %c4 = arith.constant 4 : index
    %c0_106 = arith.constant 0 : index
    %288 = tpu.strided_load %arg7[%c4, %c0_106] {strides = array<i32: 8, 1>} : memref<32x32xf32, #tpu.memory_space<vmem>>, vector<4x32xf32>
    %c4_107 = arith.constant 4 : index
    %c0_108 = arith.constant 0 : index
    %289 = tpu.strided_load %arg8[%c4_107, %c0_108] {strides = array<i32: 8, 1>} : memref<64x32xf32, #tpu.memory_space<vmem>>, vector<8x32xf32>
    %c4_109 = arith.constant 4 : index
    %c0_110 = arith.constant 0 : index
    %290 = tpu.strided_load %arg9[%c4_109, %c0_110] {strides = array<i32: 8, 1>} : memref<64x32xf32, #tpu.memory_space<vmem>>, vector<8x32xf32>
    %291 = vector.extract_strided_slice %288 {offsets = [0, 0], sizes = [4, 8], strides = [1, 1]} : vector<4x32xf32> to vector<4x8xf32>
    %292 = vector.extract_strided_slice %289 {offsets = [0, 0], sizes = [8, 8], strides = [1, 1]} : vector<8x32xf32> to vector<8x8xf32>
    %293 = vector.extract_strided_slice %290 {offsets = [0, 0], sizes = [8, 8], strides = [1, 1]} : vector<8x32xf32> to vector<8x8xf32>
    %cst_111 = arith.constant dense<0.000000e+00> : vector<4x8xf32>
    %294 = tpu.matmul %291, %292, %cst_111 {dimension_numbers = #tpu.dot_dimension_numbers<[1], [1], [0], [0], [0, 0, 1, 0], [], []>} : vector<4x8xf32>, vector<8x8xf32>, vector<4x8xf32> -> vector<4x8xf32>
    %cst_112 = arith.constant dense<0xFF800000> : vector<4xf32>
    %295 = vector.multi_reduction <maximumf>, %294, %cst_112 [1] : vector<4x8xf32> to vector<4xf32>
    %296 = vector.shape_cast %295 : vector<4xf32> to vector<4x1xf32>
    %297 = vector.broadcast %296 : vector<4x1xf32> to vector<4x8xf32>
    %298 = arith.subf %294, %297 : vector<4x8xf32>
    %299 = math.exp %298 : vector<4x8xf32>
    %cst_113 = arith.constant dense<0.000000e+00> : vector<4xf32>
    %300 = vector.multi_reduction <add>, %299, %cst_113 [1] : vector<4x8xf32> to vector<4xf32>
    %301 = vector.shape_cast %300 : vector<4xf32> to vector<4x1xf32>
    %cst_114 = arith.constant dense<0.000000e+00> : vector<4x8xf32>
    %302 = tpu.matmul %299, %293, %cst_114 {dimension_numbers = #tpu.dot_dimension_numbers<[1], [0], [0], [1], [0, 0, 1, 1], [], []>} : vector<4x8xf32>, vector<8x8xf32>, vector<4x8xf32> -> vector<4x8xf32>
    %303 = tpu.reciprocal %301 : vector<4x1xf32> -> vector<4x1xf32>
    %304 = vector.broadcast %303 : vector<4x1xf32> to vector<4x8xf32>
    %305 = arith.mulf %302, %304 : vector<4x8xf32>
    %306 = vector.extract_strided_slice %288 {offsets = [0, 8], sizes = [4, 8], strides = [1, 1]} : vector<4x32xf32> to vector<4x8xf32>
    %307 = vector.extract_strided_slice %289 {offsets = [0, 8], sizes = [8, 8], strides = [1, 1]} : vector<8x32xf32> to vector<8x8xf32>
    %308 = vector.extract_strided_slice %290 {offsets = [0, 8], sizes = [8, 8], strides = [1, 1]} : vector<8x32xf32> to vector<8x8xf32>
    %cst_115 = arith.constant dense<0.000000e+00> : vector<4x8xf32>
    %309 = tpu.matmul %306, %307, %cst_115 {dimension_numbers = #tpu.dot_dimension_numbers<[1], [1], [0], [0], [0, 0, 1, 0], [], []>} : vector<4x8xf32>, vector<8x8xf32>, vector<4x8xf32> -> vector<4x8xf32>
    %cst_116 = arith.constant dense<0xFF800000> : vector<4xf32>
    %310 = vector.multi_reduction <maximumf>, %309, %cst_116 [1] : vector<4x8xf32> to vector<4xf32>
    %311 = vector.shape_cast %310 : vector<4xf32> to vector<4x1xf32>
    %312 = vector.broadcast %311 : vector<4x1xf32> to vector<4x8xf32>
    %313 = arith.subf %309, %312 : vector<4x8xf32>
    %314 = math.exp %313 : vector<4x8xf32>
    %cst_117 = arith.constant dense<0.000000e+00> : vector<4xf32>
    %315 = vector.multi_reduction <add>, %314, %cst_117 [1] : vector<4x8xf32> to vector<4xf32>
    %316 = vector.shape_cast %315 : vector<4xf32> to vector<4x1xf32>
    %cst_118 = arith.constant dense<0.000000e+00> : vector<4x8xf32>
    %317 = tpu.matmul %314, %308, %cst_118 {dimension_numbers = #tpu.dot_dimension_numbers<[1], [0], [0], [1], [0, 0, 1, 1], [], []>} : vector<4x8xf32>, vector<8x8xf32>, vector<4x8xf32> -> vector<4x8xf32>
    %318 = tpu.reciprocal %316 : vector<4x1xf32> -> vector<4x1xf32>
    %319 = vector.broadcast %318 : vector<4x1xf32> to vector<4x8xf32>
    %320 = arith.mulf %317, %319 : vector<4x8xf32>
    %321 = vector.extract_strided_slice %288 {offsets = [0, 16], sizes = [4, 8], strides = [1, 1]} : vector<4x32xf32> to vector<4x8xf32>
    %322 = vector.extract_strided_slice %289 {offsets = [0, 16], sizes = [8, 8], strides = [1, 1]} : vector<8x32xf32> to vector<8x8xf32>
    %323 = vector.extract_strided_slice %290 {offsets = [0, 16], sizes = [8, 8], strides = [1, 1]} : vector<8x32xf32> to vector<8x8xf32>
    %cst_119 = arith.constant dense<0.000000e+00> : vector<4x8xf32>
    %324 = tpu.matmul %321, %322, %cst_119 {dimension_numbers = #tpu.dot_dimension_numbers<[1], [1], [0], [0], [0, 0, 1, 0], [], []>} : vector<4x8xf32>, vector<8x8xf32>, vector<4x8xf32> -> vector<4x8xf32>
    %cst_120 = arith.constant dense<0xFF800000> : vector<4xf32>
    %325 = vector.multi_reduction <maximumf>, %324, %cst_120 [1] : vector<4x8xf32> to vector<4xf32>
    %326 = vector.shape_cast %325 : vector<4xf32> to vector<4x1xf32>
    %327 = vector.broadcast %326 : vector<4x1xf32> to vector<4x8xf32>
    %328 = arith.subf %324, %327 : vector<4x8xf32>
    %329 = math.exp %328 : vector<4x8xf32>
    %cst_121 = arith.constant dense<0.000000e+00> : vector<4xf32>
    %330 = vector.multi_reduction <add>, %329, %cst_121 [1] : vector<4x8xf32> to vector<4xf32>
    %331 = vector.shape_cast %330 : vector<4xf32> to vector<4x1xf32>
    %cst_122 = arith.constant dense<0.000000e+00> : vector<4x8xf32>
    %332 = tpu.matmul %329, %323, %cst_122 {dimension_numbers = #tpu.dot_dimension_numbers<[1], [0], [0], [1], [0, 0, 1, 1], [], []>} : vector<4x8xf32>, vector<8x8xf32>, vector<4x8xf32> -> vector<4x8xf32>
    %333 = tpu.reciprocal %331 : vector<4x1xf32> -> vector<4x1xf32>
    %334 = vector.broadcast %333 : vector<4x1xf32> to vector<4x8xf32>
    %335 = arith.mulf %332, %334 : vector<4x8xf32>
    %336 = vector.extract_strided_slice %288 {offsets = [0, 24], sizes = [4, 8], strides = [1, 1]} : vector<4x32xf32> to vector<4x8xf32>
    %337 = vector.extract_strided_slice %289 {offsets = [0, 24], sizes = [8, 8], strides = [1, 1]} : vector<8x32xf32> to vector<8x8xf32>
    %338 = vector.extract_strided_slice %290 {offsets = [0, 24], sizes = [8, 8], strides = [1, 1]} : vector<8x32xf32> to vector<8x8xf32>
    %cst_123 = arith.constant dense<0.000000e+00> : vector<4x8xf32>
    %339 = tpu.matmul %336, %337, %cst_123 {dimension_numbers = #tpu.dot_dimension_numbers<[1], [1], [0], [0], [0, 0, 1, 0], [], []>} : vector<4x8xf32>, vector<8x8xf32>, vector<4x8xf32> -> vector<4x8xf32>
    %cst_124 = arith.constant dense<0xFF800000> : vector<4xf32>
    %340 = vector.multi_reduction <maximumf>, %339, %cst_124 [1] : vector<4x8xf32> to vector<4xf32>
    %341 = vector.shape_cast %340 : vector<4xf32> to vector<4x1xf32>
    %342 = vector.broadcast %341 : vector<4x1xf32> to vector<4x8xf32>
    %343 = arith.subf %339, %342 : vector<4x8xf32>
    %344 = math.exp %343 : vector<4x8xf32>
    %cst_125 = arith.constant dense<0.000000e+00> : vector<4xf32>
    %345 = vector.multi_reduction <add>, %344, %cst_125 [1] : vector<4x8xf32> to vector<4xf32>
    %346 = vector.shape_cast %345 : vector<4xf32> to vector<4x1xf32>
    %cst_126 = arith.constant dense<0.000000e+00> : vector<4x8xf32>
    %347 = tpu.matmul %344, %338, %cst_126 {dimension_numbers = #tpu.dot_dimension_numbers<[1], [0], [0], [1], [0, 0, 1, 1], [], []>} : vector<4x8xf32>, vector<8x8xf32>, vector<4x8xf32> -> vector<4x8xf32>
    %348 = tpu.reciprocal %346 : vector<4x1xf32> -> vector<4x1xf32>
    %349 = vector.broadcast %348 : vector<4x1xf32> to vector<4x8xf32>
    %350 = arith.mulf %347, %349 : vector<4x8xf32>
    %351 = tpu.concatenate %305, %320, %335, %350 in 1 : vector<4x8xf32>, vector<4x8xf32>, vector<4x8xf32>, vector<4x8xf32> -> vector<4x32xf32>
    %cst_127 = arith.constant dense<0.000000e+00> : vector<4x32xf32>
    %352 = tpu.matmul %351, %2, %cst_127 {dimension_numbers = #tpu.dot_dimension_numbers<[1], [0], [0], [1], [0, 0, 1, 1], [], []>} : vector<4x32xf32>, vector<32x32xf32>, vector<4x32xf32> -> vector<4x32xf32>
    %353 = vector.broadcast %3 : vector<1x32xf32> to vector<4x32xf32>
    %354 = arith.addf %352, %353 : vector<4x32xf32>
    %c5 = arith.constant 5 : index
    %c0_128 = arith.constant 0 : index
    %355 = tpu.strided_load %arg7[%c5, %c0_128] {strides = array<i32: 8, 1>} : memref<32x32xf32, #tpu.memory_space<vmem>>, vector<4x32xf32>
    %c5_129 = arith.constant 5 : index
    %c0_130 = arith.constant 0 : index
    %356 = tpu.strided_load %arg8[%c5_129, %c0_130] {strides = array<i32: 8, 1>} : memref<64x32xf32, #tpu.memory_space<vmem>>, vector<8x32xf32>
    %c5_131 = arith.constant 5 : index
    %c0_132 = arith.constant 0 : index
    %357 = tpu.strided_load %arg9[%c5_131, %c0_132] {strides = array<i32: 8, 1>} : memref<64x32xf32, #tpu.memory_space<vmem>>, vector<8x32xf32>
    %358 = vector.extract_strided_slice %355 {offsets = [0, 0], sizes = [4, 8], strides = [1, 1]} : vector<4x32xf32> to vector<4x8xf32>
    %359 = vector.extract_strided_slice %356 {offsets = [0, 0], sizes = [8, 8], strides = [1, 1]} : vector<8x32xf32> to vector<8x8xf32>
    %360 = vector.extract_strided_slice %357 {offsets = [0, 0], sizes = [8, 8], strides = [1, 1]} : vector<8x32xf32> to vector<8x8xf32>
    %cst_133 = arith.constant dense<0.000000e+00> : vector<4x8xf32>
    %361 = tpu.matmul %358, %359, %cst_133 {dimension_numbers = #tpu.dot_dimension_numbers<[1], [1], [0], [0], [0, 0, 1, 0], [], []>} : vector<4x8xf32>, vector<8x8xf32>, vector<4x8xf32> -> vector<4x8xf32>
    %cst_134 = arith.constant dense<0xFF800000> : vector<4xf32>
    %362 = vector.multi_reduction <maximumf>, %361, %cst_134 [1] : vector<4x8xf32> to vector<4xf32>
    %363 = vector.shape_cast %362 : vector<4xf32> to vector<4x1xf32>
    %364 = vector.broadcast %363 : vector<4x1xf32> to vector<4x8xf32>
    %365 = arith.subf %361, %364 : vector<4x8xf32>
    %366 = math.exp %365 : vector<4x8xf32>
    %cst_135 = arith.constant dense<0.000000e+00> : vector<4xf32>
    %367 = vector.multi_reduction <add>, %366, %cst_135 [1] : vector<4x8xf32> to vector<4xf32>
    %368 = vector.shape_cast %367 : vector<4xf32> to vector<4x1xf32>
    %cst_136 = arith.constant dense<0.000000e+00> : vector<4x8xf32>
    %369 = tpu.matmul %366, %360, %cst_136 {dimension_numbers = #tpu.dot_dimension_numbers<[1], [0], [0], [1], [0, 0, 1, 1], [], []>} : vector<4x8xf32>, vector<8x8xf32>, vector<4x8xf32> -> vector<4x8xf32>
    %370 = tpu.reciprocal %368 : vector<4x1xf32> -> vector<4x1xf32>
    %371 = vector.broadcast %370 : vector<4x1xf32> to vector<4x8xf32>
    %372 = arith.mulf %369, %371 : vector<4x8xf32>
    %373 = vector.extract_strided_slice %355 {offsets = [0, 8], sizes = [4, 8], strides = [1, 1]} : vector<4x32xf32> to vector<4x8xf32>
    %374 = vector.extract_strided_slice %356 {offsets = [0, 8], sizes = [8, 8], strides = [1, 1]} : vector<8x32xf32> to vector<8x8xf32>
    %375 = vector.extract_strided_slice %357 {offsets = [0, 8], sizes = [8, 8], strides = [1, 1]} : vector<8x32xf32> to vector<8x8xf32>
    %cst_137 = arith.constant dense<0.000000e+00> : vector<4x8xf32>
    %376 = tpu.matmul %373, %374, %cst_137 {dimension_numbers = #tpu.dot_dimension_numbers<[1], [1], [0], [0], [0, 0, 1, 0], [], []>} : vector<4x8xf32>, vector<8x8xf32>, vector<4x8xf32> -> vector<4x8xf32>
    %cst_138 = arith.constant dense<0xFF800000> : vector<4xf32>
    %377 = vector.multi_reduction <maximumf>, %376, %cst_138 [1] : vector<4x8xf32> to vector<4xf32>
    %378 = vector.shape_cast %377 : vector<4xf32> to vector<4x1xf32>
    %379 = vector.broadcast %378 : vector<4x1xf32> to vector<4x8xf32>
    %380 = arith.subf %376, %379 : vector<4x8xf32>
    %381 = math.exp %380 : vector<4x8xf32>
    %cst_139 = arith.constant dense<0.000000e+00> : vector<4xf32>
    %382 = vector.multi_reduction <add>, %381, %cst_139 [1] : vector<4x8xf32> to vector<4xf32>
    %383 = vector.shape_cast %382 : vector<4xf32> to vector<4x1xf32>
    %cst_140 = arith.constant dense<0.000000e+00> : vector<4x8xf32>
    %384 = tpu.matmul %381, %375, %cst_140 {dimension_numbers = #tpu.dot_dimension_numbers<[1], [0], [0], [1], [0, 0, 1, 1], [], []>} : vector<4x8xf32>, vector<8x8xf32>, vector<4x8xf32> -> vector<4x8xf32>
    %385 = tpu.reciprocal %383 : vector<4x1xf32> -> vector<4x1xf32>
    %386 = vector.broadcast %385 : vector<4x1xf32> to vector<4x8xf32>
    %387 = arith.mulf %384, %386 : vector<4x8xf32>
    %388 = vector.extract_strided_slice %355 {offsets = [0, 16], sizes = [4, 8], strides = [1, 1]} : vector<4x32xf32> to vector<4x8xf32>
    %389 = vector.extract_strided_slice %356 {offsets = [0, 16], sizes = [8, 8], strides = [1, 1]} : vector<8x32xf32> to vector<8x8xf32>
    %390 = vector.extract_strided_slice %357 {offsets = [0, 16], sizes = [8, 8], strides = [1, 1]} : vector<8x32xf32> to vector<8x8xf32>
    %cst_141 = arith.constant dense<0.000000e+00> : vector<4x8xf32>
    %391 = tpu.matmul %388, %389, %cst_141 {dimension_numbers = #tpu.dot_dimension_numbers<[1], [1], [0], [0], [0, 0, 1, 0], [], []>} : vector<4x8xf32>, vector<8x8xf32>, vector<4x8xf32> -> vector<4x8xf32>
    %cst_142 = arith.constant dense<0xFF800000> : vector<4xf32>
    %392 = vector.multi_reduction <maximumf>, %391, %cst_142 [1] : vector<4x8xf32> to vector<4xf32>
    %393 = vector.shape_cast %392 : vector<4xf32> to vector<4x1xf32>
    %394 = vector.broadcast %393 : vector<4x1xf32> to vector<4x8xf32>
    %395 = arith.subf %391, %394 : vector<4x8xf32>
    %396 = math.exp %395 : vector<4x8xf32>
    %cst_143 = arith.constant dense<0.000000e+00> : vector<4xf32>
    %397 = vector.multi_reduction <add>, %396, %cst_143 [1] : vector<4x8xf32> to vector<4xf32>
    %398 = vector.shape_cast %397 : vector<4xf32> to vector<4x1xf32>
    %cst_144 = arith.constant dense<0.000000e+00> : vector<4x8xf32>
    %399 = tpu.matmul %396, %390, %cst_144 {dimension_numbers = #tpu.dot_dimension_numbers<[1], [0], [0], [1], [0, 0, 1, 1], [], []>} : vector<4x8xf32>, vector<8x8xf32>, vector<4x8xf32> -> vector<4x8xf32>
    %400 = tpu.reciprocal %398 : vector<4x1xf32> -> vector<4x1xf32>
    %401 = vector.broadcast %400 : vector<4x1xf32> to vector<4x8xf32>
    %402 = arith.mulf %399, %401 : vector<4x8xf32>
    %403 = vector.extract_strided_slice %355 {offsets = [0, 24], sizes = [4, 8], strides = [1, 1]} : vector<4x32xf32> to vector<4x8xf32>
    %404 = vector.extract_strided_slice %356 {offsets = [0, 24], sizes = [8, 8], strides = [1, 1]} : vector<8x32xf32> to vector<8x8xf32>
    %405 = vector.extract_strided_slice %357 {offsets = [0, 24], sizes = [8, 8], strides = [1, 1]} : vector<8x32xf32> to vector<8x8xf32>
    %cst_145 = arith.constant dense<0.000000e+00> : vector<4x8xf32>
    %406 = tpu.matmul %403, %404, %cst_145 {dimension_numbers = #tpu.dot_dimension_numbers<[1], [1], [0], [0], [0, 0, 1, 0], [], []>} : vector<4x8xf32>, vector<8x8xf32>, vector<4x8xf32> -> vector<4x8xf32>
    %cst_146 = arith.constant dense<0xFF800000> : vector<4xf32>
    %407 = vector.multi_reduction <maximumf>, %406, %cst_146 [1] : vector<4x8xf32> to vector<4xf32>
    %408 = vector.shape_cast %407 : vector<4xf32> to vector<4x1xf32>
    %409 = vector.broadcast %408 : vector<4x1xf32> to vector<4x8xf32>
    %410 = arith.subf %406, %409 : vector<4x8xf32>
    %411 = math.exp %410 : vector<4x8xf32>
    %cst_147 = arith.constant dense<0.000000e+00> : vector<4xf32>
    %412 = vector.multi_reduction <add>, %411, %cst_147 [1] : vector<4x8xf32> to vector<4xf32>
    %413 = vector.shape_cast %412 : vector<4xf32> to vector<4x1xf32>
    %cst_148 = arith.constant dense<0.000000e+00> : vector<4x8xf32>
    %414 = tpu.matmul %411, %405, %cst_148 {dimension_numbers = #tpu.dot_dimension_numbers<[1], [0], [0], [1], [0, 0, 1, 1], [], []>} : vector<4x8xf32>, vector<8x8xf32>, vector<4x8xf32> -> vector<4x8xf32>
    %415 = tpu.reciprocal %413 : vector<4x1xf32> -> vector<4x1xf32>
    %416 = vector.broadcast %415 : vector<4x1xf32> to vector<4x8xf32>
    %417 = arith.mulf %414, %416 : vector<4x8xf32>
    %418 = tpu.concatenate %372, %387, %402, %417 in 1 : vector<4x8xf32>, vector<4x8xf32>, vector<4x8xf32>, vector<4x8xf32> -> vector<4x32xf32>
    %cst_149 = arith.constant dense<0.000000e+00> : vector<4x32xf32>
    %419 = tpu.matmul %418, %2, %cst_149 {dimension_numbers = #tpu.dot_dimension_numbers<[1], [0], [0], [1], [0, 0, 1, 1], [], []>} : vector<4x32xf32>, vector<32x32xf32>, vector<4x32xf32> -> vector<4x32xf32>
    %420 = vector.broadcast %3 : vector<1x32xf32> to vector<4x32xf32>
    %421 = arith.addf %419, %420 : vector<4x32xf32>
    %c6 = arith.constant 6 : index
    %c0_150 = arith.constant 0 : index
    %422 = tpu.strided_load %arg7[%c6, %c0_150] {strides = array<i32: 8, 1>} : memref<32x32xf32, #tpu.memory_space<vmem>>, vector<4x32xf32>
    %c6_151 = arith.constant 6 : index
    %c0_152 = arith.constant 0 : index
    %423 = tpu.strided_load %arg8[%c6_151, %c0_152] {strides = array<i32: 8, 1>} : memref<64x32xf32, #tpu.memory_space<vmem>>, vector<8x32xf32>
    %c6_153 = arith.constant 6 : index
    %c0_154 = arith.constant 0 : index
    %424 = tpu.strided_load %arg9[%c6_153, %c0_154] {strides = array<i32: 8, 1>} : memref<64x32xf32, #tpu.memory_space<vmem>>, vector<8x32xf32>
    %425 = vector.extract_strided_slice %422 {offsets = [0, 0], sizes = [4, 8], strides = [1, 1]} : vector<4x32xf32> to vector<4x8xf32>
    %426 = vector.extract_strided_slice %423 {offsets = [0, 0], sizes = [8, 8], strides = [1, 1]} : vector<8x32xf32> to vector<8x8xf32>
    %427 = vector.extract_strided_slice %424 {offsets = [0, 0], sizes = [8, 8], strides = [1, 1]} : vector<8x32xf32> to vector<8x8xf32>
    %cst_155 = arith.constant dense<0.000000e+00> : vector<4x8xf32>
    %428 = tpu.matmul %425, %426, %cst_155 {dimension_numbers = #tpu.dot_dimension_numbers<[1], [1], [0], [0], [0, 0, 1, 0], [], []>} : vector<4x8xf32>, vector<8x8xf32>, vector<4x8xf32> -> vector<4x8xf32>
    %cst_156 = arith.constant dense<0xFF800000> : vector<4xf32>
    %429 = vector.multi_reduction <maximumf>, %428, %cst_156 [1] : vector<4x8xf32> to vector<4xf32>
    %430 = vector.shape_cast %429 : vector<4xf32> to vector<4x1xf32>
    %431 = vector.broadcast %430 : vector<4x1xf32> to vector<4x8xf32>
    %432 = arith.subf %428, %431 : vector<4x8xf32>
    %433 = math.exp %432 : vector<4x8xf32>
    %cst_157 = arith.constant dense<0.000000e+00> : vector<4xf32>
    %434 = vector.multi_reduction <add>, %433, %cst_157 [1] : vector<4x8xf32> to vector<4xf32>
    %435 = vector.shape_cast %434 : vector<4xf32> to vector<4x1xf32>
    %cst_158 = arith.constant dense<0.000000e+00> : vector<4x8xf32>
    %436 = tpu.matmul %433, %427, %cst_158 {dimension_numbers = #tpu.dot_dimension_numbers<[1], [0], [0], [1], [0, 0, 1, 1], [], []>} : vector<4x8xf32>, vector<8x8xf32>, vector<4x8xf32> -> vector<4x8xf32>
    %437 = tpu.reciprocal %435 : vector<4x1xf32> -> vector<4x1xf32>
    %438 = vector.broadcast %437 : vector<4x1xf32> to vector<4x8xf32>
    %439 = arith.mulf %436, %438 : vector<4x8xf32>
    %440 = vector.extract_strided_slice %422 {offsets = [0, 8], sizes = [4, 8], strides = [1, 1]} : vector<4x32xf32> to vector<4x8xf32>
    %441 = vector.extract_strided_slice %423 {offsets = [0, 8], sizes = [8, 8], strides = [1, 1]} : vector<8x32xf32> to vector<8x8xf32>
    %442 = vector.extract_strided_slice %424 {offsets = [0, 8], sizes = [8, 8], strides = [1, 1]} : vector<8x32xf32> to vector<8x8xf32>
    %cst_159 = arith.constant dense<0.000000e+00> : vector<4x8xf32>
    %443 = tpu.matmul %440, %441, %cst_159 {dimension_numbers = #tpu.dot_dimension_numbers<[1], [1], [0], [0], [0, 0, 1, 0], [], []>} : vector<4x8xf32>, vector<8x8xf32>, vector<4x8xf32> -> vector<4x8xf32>
    %cst_160 = arith.constant dense<0xFF800000> : vector<4xf32>
    %444 = vector.multi_reduction <maximumf>, %443, %cst_160 [1] : vector<4x8xf32> to vector<4xf32>
    %445 = vector.shape_cast %444 : vector<4xf32> to vector<4x1xf32>
    %446 = vector.broadcast %445 : vector<4x1xf32> to vector<4x8xf32>
    %447 = arith.subf %443, %446 : vector<4x8xf32>
    %448 = math.exp %447 : vector<4x8xf32>
    %cst_161 = arith.constant dense<0.000000e+00> : vector<4xf32>
    %449 = vector.multi_reduction <add>, %448, %cst_161 [1] : vector<4x8xf32> to vector<4xf32>
    %450 = vector.shape_cast %449 : vector<4xf32> to vector<4x1xf32>
    %cst_162 = arith.constant dense<0.000000e+00> : vector<4x8xf32>
    %451 = tpu.matmul %448, %442, %cst_162 {dimension_numbers = #tpu.dot_dimension_numbers<[1], [0], [0], [1], [0, 0, 1, 1], [], []>} : vector<4x8xf32>, vector<8x8xf32>, vector<4x8xf32> -> vector<4x8xf32>
    %452 = tpu.reciprocal %450 : vector<4x1xf32> -> vector<4x1xf32>
    %453 = vector.broadcast %452 : vector<4x1xf32> to vector<4x8xf32>
    %454 = arith.mulf %451, %453 : vector<4x8xf32>
    %455 = vector.extract_strided_slice %422 {offsets = [0, 16], sizes = [4, 8], strides = [1, 1]} : vector<4x32xf32> to vector<4x8xf32>
    %456 = vector.extract_strided_slice %423 {offsets = [0, 16], sizes = [8, 8], strides = [1, 1]} : vector<8x32xf32> to vector<8x8xf32>
    %457 = vector.extract_strided_slice %424 {offsets = [0, 16], sizes = [8, 8], strides = [1, 1]} : vector<8x32xf32> to vector<8x8xf32>
    %cst_163 = arith.constant dense<0.000000e+00> : vector<4x8xf32>
    %458 = tpu.matmul %455, %456, %cst_163 {dimension_numbers = #tpu.dot_dimension_numbers<[1], [1], [0], [0], [0, 0, 1, 0], [], []>} : vector<4x8xf32>, vector<8x8xf32>, vector<4x8xf32> -> vector<4x8xf32>
    %cst_164 = arith.constant dense<0xFF800000> : vector<4xf32>
    %459 = vector.multi_reduction <maximumf>, %458, %cst_164 [1] : vector<4x8xf32> to vector<4xf32>
    %460 = vector.shape_cast %459 : vector<4xf32> to vector<4x1xf32>
    %461 = vector.broadcast %460 : vector<4x1xf32> to vector<4x8xf32>
    %462 = arith.subf %458, %461 : vector<4x8xf32>
    %463 = math.exp %462 : vector<4x8xf32>
    %cst_165 = arith.constant dense<0.000000e+00> : vector<4xf32>
    %464 = vector.multi_reduction <add>, %463, %cst_165 [1] : vector<4x8xf32> to vector<4xf32>
    %465 = vector.shape_cast %464 : vector<4xf32> to vector<4x1xf32>
    %cst_166 = arith.constant dense<0.000000e+00> : vector<4x8xf32>
    %466 = tpu.matmul %463, %457, %cst_166 {dimension_numbers = #tpu.dot_dimension_numbers<[1], [0], [0], [1], [0, 0, 1, 1], [], []>} : vector<4x8xf32>, vector<8x8xf32>, vector<4x8xf32> -> vector<4x8xf32>
    %467 = tpu.reciprocal %465 : vector<4x1xf32> -> vector<4x1xf32>
    %468 = vector.broadcast %467 : vector<4x1xf32> to vector<4x8xf32>
    %469 = arith.mulf %466, %468 : vector<4x8xf32>
    %470 = vector.extract_strided_slice %422 {offsets = [0, 24], sizes = [4, 8], strides = [1, 1]} : vector<4x32xf32> to vector<4x8xf32>
    %471 = vector.extract_strided_slice %423 {offsets = [0, 24], sizes = [8, 8], strides = [1, 1]} : vector<8x32xf32> to vector<8x8xf32>
    %472 = vector.extract_strided_slice %424 {offsets = [0, 24], sizes = [8, 8], strides = [1, 1]} : vector<8x32xf32> to vector<8x8xf32>
    %cst_167 = arith.constant dense<0.000000e+00> : vector<4x8xf32>
    %473 = tpu.matmul %470, %471, %cst_167 {dimension_numbers = #tpu.dot_dimension_numbers<[1], [1], [0], [0], [0, 0, 1, 0], [], []>} : vector<4x8xf32>, vector<8x8xf32>, vector<4x8xf32> -> vector<4x8xf32>
    %cst_168 = arith.constant dense<0xFF800000> : vector<4xf32>
    %474 = vector.multi_reduction <maximumf>, %473, %cst_168 [1] : vector<4x8xf32> to vector<4xf32>
    %475 = vector.shape_cast %474 : vector<4xf32> to vector<4x1xf32>
    %476 = vector.broadcast %475 : vector<4x1xf32> to vector<4x8xf32>
    %477 = arith.subf %473, %476 : vector<4x8xf32>
    %478 = math.exp %477 : vector<4x8xf32>
    %cst_169 = arith.constant dense<0.000000e+00> : vector<4xf32>
    %479 = vector.multi_reduction <add>, %478, %cst_169 [1] : vector<4x8xf32> to vector<4xf32>
    %480 = vector.shape_cast %479 : vector<4xf32> to vector<4x1xf32>
    %cst_170 = arith.constant dense<0.000000e+00> : vector<4x8xf32>
    %481 = tpu.matmul %478, %472, %cst_170 {dimension_numbers = #tpu.dot_dimension_numbers<[1], [0], [0], [1], [0, 0, 1, 1], [], []>} : vector<4x8xf32>, vector<8x8xf32>, vector<4x8xf32> -> vector<4x8xf32>
    %482 = tpu.reciprocal %480 : vector<4x1xf32> -> vector<4x1xf32>
    %483 = vector.broadcast %482 : vector<4x1xf32> to vector<4x8xf32>
    %484 = arith.mulf %481, %483 : vector<4x8xf32>
    %485 = tpu.concatenate %439, %454, %469, %484 in 1 : vector<4x8xf32>, vector<4x8xf32>, vector<4x8xf32>, vector<4x8xf32> -> vector<4x32xf32>
    %cst_171 = arith.constant dense<0.000000e+00> : vector<4x32xf32>
    %486 = tpu.matmul %485, %2, %cst_171 {dimension_numbers = #tpu.dot_dimension_numbers<[1], [0], [0], [1], [0, 0, 1, 1], [], []>} : vector<4x32xf32>, vector<32x32xf32>, vector<4x32xf32> -> vector<4x32xf32>
    %487 = vector.broadcast %3 : vector<1x32xf32> to vector<4x32xf32>
    %488 = arith.addf %486, %487 : vector<4x32xf32>
    %c7 = arith.constant 7 : index
    %c0_172 = arith.constant 0 : index
    %489 = tpu.strided_load %arg7[%c7, %c0_172] {strides = array<i32: 8, 1>} : memref<32x32xf32, #tpu.memory_space<vmem>>, vector<4x32xf32>
    %c7_173 = arith.constant 7 : index
    %c0_174 = arith.constant 0 : index
    %490 = tpu.strided_load %arg8[%c7_173, %c0_174] {strides = array<i32: 8, 1>} : memref<64x32xf32, #tpu.memory_space<vmem>>, vector<8x32xf32>
    %c7_175 = arith.constant 7 : index
    %c0_176 = arith.constant 0 : index
    %491 = tpu.strided_load %arg9[%c7_175, %c0_176] {strides = array<i32: 8, 1>} : memref<64x32xf32, #tpu.memory_space<vmem>>, vector<8x32xf32>
    %492 = vector.extract_strided_slice %489 {offsets = [0, 0], sizes = [4, 8], strides = [1, 1]} : vector<4x32xf32> to vector<4x8xf32>
    %493 = vector.extract_strided_slice %490 {offsets = [0, 0], sizes = [8, 8], strides = [1, 1]} : vector<8x32xf32> to vector<8x8xf32>
    %494 = vector.extract_strided_slice %491 {offsets = [0, 0], sizes = [8, 8], strides = [1, 1]} : vector<8x32xf32> to vector<8x8xf32>
    %cst_177 = arith.constant dense<0.000000e+00> : vector<4x8xf32>
    %495 = tpu.matmul %492, %493, %cst_177 {dimension_numbers = #tpu.dot_dimension_numbers<[1], [1], [0], [0], [0, 0, 1, 0], [], []>} : vector<4x8xf32>, vector<8x8xf32>, vector<4x8xf32> -> vector<4x8xf32>
    %cst_178 = arith.constant dense<0xFF800000> : vector<4xf32>
    %496 = vector.multi_reduction <maximumf>, %495, %cst_178 [1] : vector<4x8xf32> to vector<4xf32>
    %497 = vector.shape_cast %496 : vector<4xf32> to vector<4x1xf32>
    %498 = vector.broadcast %497 : vector<4x1xf32> to vector<4x8xf32>
    %499 = arith.subf %495, %498 : vector<4x8xf32>
    %500 = math.exp %499 : vector<4x8xf32>
    %cst_179 = arith.constant dense<0.000000e+00> : vector<4xf32>
    %501 = vector.multi_reduction <add>, %500, %cst_179 [1] : vector<4x8xf32> to vector<4xf32>
    %502 = vector.shape_cast %501 : vector<4xf32> to vector<4x1xf32>
    %cst_180 = arith.constant dense<0.000000e+00> : vector<4x8xf32>
    %503 = tpu.matmul %500, %494, %cst_180 {dimension_numbers = #tpu.dot_dimension_numbers<[1], [0], [0], [1], [0, 0, 1, 1], [], []>} : vector<4x8xf32>, vector<8x8xf32>, vector<4x8xf32> -> vector<4x8xf32>
    %504 = tpu.reciprocal %502 : vector<4x1xf32> -> vector<4x1xf32>
    %505 = vector.broadcast %504 : vector<4x1xf32> to vector<4x8xf32>
    %506 = arith.mulf %503, %505 : vector<4x8xf32>
    %507 = vector.extract_strided_slice %489 {offsets = [0, 8], sizes = [4, 8], strides = [1, 1]} : vector<4x32xf32> to vector<4x8xf32>
    %508 = vector.extract_strided_slice %490 {offsets = [0, 8], sizes = [8, 8], strides = [1, 1]} : vector<8x32xf32> to vector<8x8xf32>
    %509 = vector.extract_strided_slice %491 {offsets = [0, 8], sizes = [8, 8], strides = [1, 1]} : vector<8x32xf32> to vector<8x8xf32>
    %cst_181 = arith.constant dense<0.000000e+00> : vector<4x8xf32>
    %510 = tpu.matmul %507, %508, %cst_181 {dimension_numbers = #tpu.dot_dimension_numbers<[1], [1], [0], [0], [0, 0, 1, 0], [], []>} : vector<4x8xf32>, vector<8x8xf32>, vector<4x8xf32> -> vector<4x8xf32>
    %cst_182 = arith.constant dense<0xFF800000> : vector<4xf32>
    %511 = vector.multi_reduction <maximumf>, %510, %cst_182 [1] : vector<4x8xf32> to vector<4xf32>
    %512 = vector.shape_cast %511 : vector<4xf32> to vector<4x1xf32>
    %513 = vector.broadcast %512 : vector<4x1xf32> to vector<4x8xf32>
    %514 = arith.subf %510, %513 : vector<4x8xf32>
    %515 = math.exp %514 : vector<4x8xf32>
    %cst_183 = arith.constant dense<0.000000e+00> : vector<4xf32>
    %516 = vector.multi_reduction <add>, %515, %cst_183 [1] : vector<4x8xf32> to vector<4xf32>
    %517 = vector.shape_cast %516 : vector<4xf32> to vector<4x1xf32>
    %cst_184 = arith.constant dense<0.000000e+00> : vector<4x8xf32>
    %518 = tpu.matmul %515, %509, %cst_184 {dimension_numbers = #tpu.dot_dimension_numbers<[1], [0], [0], [1], [0, 0, 1, 1], [], []>} : vector<4x8xf32>, vector<8x8xf32>, vector<4x8xf32> -> vector<4x8xf32>
    %519 = tpu.reciprocal %517 : vector<4x1xf32> -> vector<4x1xf32>
    %520 = vector.broadcast %519 : vector<4x1xf32> to vector<4x8xf32>
    %521 = arith.mulf %518, %520 : vector<4x8xf32>
    %522 = vector.extract_strided_slice %489 {offsets = [0, 16], sizes = [4, 8], strides = [1, 1]} : vector<4x32xf32> to vector<4x8xf32>
    %523 = vector.extract_strided_slice %490 {offsets = [0, 16], sizes = [8, 8], strides = [1, 1]} : vector<8x32xf32> to vector<8x8xf32>
    %524 = vector.extract_strided_slice %491 {offsets = [0, 16], sizes = [8, 8], strides = [1, 1]} : vector<8x32xf32> to vector<8x8xf32>
    %cst_185 = arith.constant dense<0.000000e+00> : vector<4x8xf32>
    %525 = tpu.matmul %522, %523, %cst_185 {dimension_numbers = #tpu.dot_dimension_numbers<[1], [1], [0], [0], [0, 0, 1, 0], [], []>} : vector<4x8xf32>, vector<8x8xf32>, vector<4x8xf32> -> vector<4x8xf32>
    %cst_186 = arith.constant dense<0xFF800000> : vector<4xf32>
    %526 = vector.multi_reduction <maximumf>, %525, %cst_186 [1] : vector<4x8xf32> to vector<4xf32>
    %527 = vector.shape_cast %526 : vector<4xf32> to vector<4x1xf32>
    %528 = vector.broadcast %527 : vector<4x1xf32> to vector<4x8xf32>
    %529 = arith.subf %525, %528 : vector<4x8xf32>
    %530 = math.exp %529 : vector<4x8xf32>
    %cst_187 = arith.constant dense<0.000000e+00> : vector<4xf32>
    %531 = vector.multi_reduction <add>, %530, %cst_187 [1] : vector<4x8xf32> to vector<4xf32>
    %532 = vector.shape_cast %531 : vector<4xf32> to vector<4x1xf32>
    %cst_188 = arith.constant dense<0.000000e+00> : vector<4x8xf32>
    %533 = tpu.matmul %530, %524, %cst_188 {dimension_numbers = #tpu.dot_dimension_numbers<[1], [0], [0], [1], [0, 0, 1, 1], [], []>} : vector<4x8xf32>, vector<8x8xf32>, vector<4x8xf32> -> vector<4x8xf32>
    %534 = tpu.reciprocal %532 : vector<4x1xf32> -> vector<4x1xf32>
    %535 = vector.broadcast %534 : vector<4x1xf32> to vector<4x8xf32>
    %536 = arith.mulf %533, %535 : vector<4x8xf32>
    %537 = vector.extract_strided_slice %489 {offsets = [0, 24], sizes = [4, 8], strides = [1, 1]} : vector<4x32xf32> to vector<4x8xf32>
    %538 = vector.extract_strided_slice %490 {offsets = [0, 24], sizes = [8, 8], strides = [1, 1]} : vector<8x32xf32> to vector<8x8xf32>
    %539 = vector.extract_strided_slice %491 {offsets = [0, 24], sizes = [8, 8], strides = [1, 1]} : vector<8x32xf32> to vector<8x8xf32>
    %cst_189 = arith.constant dense<0.000000e+00> : vector<4x8xf32>
    %540 = tpu.matmul %537, %538, %cst_189 {dimension_numbers = #tpu.dot_dimension_numbers<[1], [1], [0], [0], [0, 0, 1, 0], [], []>} : vector<4x8xf32>, vector<8x8xf32>, vector<4x8xf32> -> vector<4x8xf32>
    %cst_190 = arith.constant dense<0xFF800000> : vector<4xf32>
    %541 = vector.multi_reduction <maximumf>, %540, %cst_190 [1] : vector<4x8xf32> to vector<4xf32>
    %542 = vector.shape_cast %541 : vector<4xf32> to vector<4x1xf32>
    %543 = vector.broadcast %542 : vector<4x1xf32> to vector<4x8xf32>
    %544 = arith.subf %540, %543 : vector<4x8xf32>
    %545 = math.exp %544 : vector<4x8xf32>
    %cst_191 = arith.constant dense<0.000000e+00> : vector<4xf32>
    %546 = vector.multi_reduction <add>, %545, %cst_191 [1] : vector<4x8xf32> to vector<4xf32>
    %547 = vector.shape_cast %546 : vector<4xf32> to vector<4x1xf32>
    %cst_192 = arith.constant dense<0.000000e+00> : vector<4x8xf32>
    %548 = tpu.matmul %545, %539, %cst_192 {dimension_numbers = #tpu.dot_dimension_numbers<[1], [0], [0], [1], [0, 0, 1, 1], [], []>} : vector<4x8xf32>, vector<8x8xf32>, vector<4x8xf32> -> vector<4x8xf32>
    %549 = tpu.reciprocal %547 : vector<4x1xf32> -> vector<4x1xf32>
    %550 = vector.broadcast %549 : vector<4x1xf32> to vector<4x8xf32>
    %551 = arith.mulf %548, %550 : vector<4x8xf32>
    %552 = tpu.concatenate %506, %521, %536, %551 in 1 : vector<4x8xf32>, vector<4x8xf32>, vector<4x8xf32>, vector<4x8xf32> -> vector<4x32xf32>
    %cst_193 = arith.constant dense<0.000000e+00> : vector<4x32xf32>
    %553 = tpu.matmul %552, %2, %cst_193 {dimension_numbers = #tpu.dot_dimension_numbers<[1], [0], [0], [1], [0, 0, 1, 1], [], []>} : vector<4x32xf32>, vector<32x32xf32>, vector<4x32xf32> -> vector<4x32xf32>
    %554 = vector.broadcast %3 : vector<1x32xf32> to vector<4x32xf32>
    %555 = arith.addf %553, %554 : vector<4x32xf32>
    %556 = tpu.concatenate %86, %153, %220, %287, %354, %421, %488, %555 in 1 : vector<4x32xf32>, vector<4x32xf32>, vector<4x32xf32>, vector<4x32xf32>, vector<4x32xf32>, vector<4x32xf32>, vector<4x32xf32>, vector<4x32xf32> -> vector<4x256xf32>
    %c0_194 = arith.constant 0 : index
    %c0_195 = arith.constant 0 : index
    %c0_196 = arith.constant 0 : index
    %557 = vector.load %arg6[%c0_194, %c0_195, %c0_196] : memref<1x4x256xf32, #tpu.memory_space<vmem>>, vector<1x4x256xf32>
    %558 = vector.shape_cast %557 : vector<1x4x256xf32> to vector<4x256xf32>
    %559 = vector.shape_cast %556 : vector<4x256xf32> to vector<1x4x256xf32>
    tpu.vector_store %arg6[%c0_194, %c0_195, %c0_196], %559 {strides = array<i32>} : memref<1x4x256xf32, #tpu.memory_space<vmem>>, vector<1x4x256xf32>,
    return
  }
  func.func @transform_0(%arg0: i32) -> (i32, i32, i32) {
    %c0_i32 = arith.constant 0 : i32
    %c0_i32_0 = arith.constant 0 : i32
    %c0_i32_1 = arith.constant 0 : i32
    return %arg0, %c0_i32, %c0_i32_0 : i32, i32, i32
  }
  func.func @transform_1(%arg0: i32) -> (i32, i32) {
    %c0_i32 = arith.constant 0 : i32
    %c0_i32_0 = arith.constant 0 : i32
    %c0_i32_1 = arith.constant 0 : i32
    return %c0_i32, %c0_i32_0 : i32, i32
  }
  func.func @transform_2(%arg0: i32) -> (i32, i32) {
    %c0_i32 = arith.constant 0 : i32
    %c0_i32_0 = arith.constant 0 : i32
    %c0_i32_1 = arith.constant 0 : i32
    return %c0_i32, %c0_i32_0 : i32, i32
  }
  func.func @transform_3(%arg0: i32) -> (i32, i32) {
    %c0_i32 = arith.constant 0 : i32
    %c0_i32_0 = arith.constant 0 : i32
    %c0_i32_1 = arith.constant 0 : i32
    return %c0_i32, %c0_i32_0 : i32, i32
  }
  func.func @transform_4(%arg0: i32) -> (i32, i32) {
    %c0_i32 = arith.constant 0 : i32
    %c0_i32_0 = arith.constant 0 : i32
    %c0_i32_1 = arith.constant 0 : i32
    return %c0_i32, %c0_i32_0 : i32, i32
  }
  func.func @transform_5(%arg0: i32) -> (i32, i32, i32) {
    %c0_i32 = arith.constant 0 : i32
    %c0_i32_0 = arith.constant 0 : i32
    %c0_i32_1 = arith.constant 0 : i32
    return %arg0, %c0_i32, %c0_i32_0 : i32, i32, i32
  }
}

</mosaic_0001>

<llo_original>
// kernel: tpu_custom_call.1
$region0: #{tpu_custom_call.1}
  #allocation0 [shape = 'u32[]', space=smem, size = 0x4, offset = 0x4, fixed_abs, tag = 'smem constant byte address 0x4 - core index']
  #allocation1 [shape = 'u32[144,128]{1,0:T(1,128)}', space=vmem, size = 0x12000, scoped, tag = 'internal scratch']
  #allocation2 [shape = 'f32[32,32]{1,0:T(8,128)}', space=vmem, size = 0x4000, scoped, tag = 'scratch operand']
  #allocation3 [shape = 'f32[64,32]{1,0:T(8,128)}', space=vmem, size = 0x8000, scoped, tag = 'scratch operand']
  #allocation4 [shape = 'f32[64,32]{1,0:T(8,128)}', space=vmem, size = 0x8000, scoped, tag = 'scratch operand']
  %s0 = inlined_call_operand.vmem [shape: f32[2,64,32], index: 0, kind: input, shape index: {}]
  %s1 = inlined_call_operand.vmem [shape: f32[32,96], index: 1, kind: input, shape index: {}]
  %s2 = inlined_call_operand.vmem [shape: f32[1,96], index: 2, kind: input, shape index: {}]
  %s3 = inlined_call_operand.vmem [shape: f32[32,32], index: 3, kind: input, shape index: {}]
  %s4 = inlined_call_operand.vmem [shape: f32[1,32], index: 4, kind: input, shape index: {}]
  %s5 = inlined_call_operand.hbm [shape: f32[2,4,256], index: 5, kind: output, shape index: {}]
  %s6 = sld [smem:[#allocation0]]
  $region53: #{tpu_custom_call.1} parent=0
    _
  %s8 = ssub.s32 1, %s6
  %s9 = scalar_select 0, %s8, %s6
  $region1: #{tpu_custom_call.1} parent=0
    #allocation5 [shape = 'u8[8192]{0}', space=vmem, size = 0x2000, scoped, tag = 'output window, operand 0']
    #allocation6 [shape = 's32[2]{0}', space=sflag, size = 0x8, scoped, tag = 'scoped memory for tpu_custom_call.1']
    %10 = vsyncpa [#allocation6], 0
    %s11 = scalar_lea.sflag [#allocation6], 1
    %12 = vsyncpa %s11, 0
    loop: start=0, step=1, limit=4
    $region2: #{tpu_custom_call.1} parent=1 // loop_pre_header
      _
    $region3: #{tpu_custom_call.1} parent=1 // loop_header
      %s14 = sphi 0, %s18
      %p15 = scmp.ge.s32.totalorder %s14, 4
      %s24 = sphi 0, %s26
      %s27 = sphi 0, %s24
      %s28 = sphi 0, %s27
      %s44 = sphi 0, %s28
      %s48 = sphi 0, %s48
      %s50 = sphi 0, %s48
      %s51 = sphi 0, %s50
      %s65 = sphi 0, %s51
      %s69 = sphi 0, %s69
      %s71 = sphi 0, %s69
      %s72 = sphi 0, %s71
      %s86 = sphi 0, %s72
      %s90 = sphi 0, %s90
      %s92 = sphi 0, %s90
      %s93 = sphi 0, %s92
      %s107 = sphi 0, %s93
      %s111 = sphi 0, %s111
      %s113 = sphi 0, %s111
      %s114 = sphi 0, %s113
      %s128 = sphi 0, %s114
      %s134 = sphi 0, %s136
      %s137 = sphi 0, %s134
      %s138 = sphi 0, %s137
      %s154 = sphi 0, %s138
    $region4: #{tpu_custom_call.1} parent=1 // loop_header_branch
      %17 = sbr.rel (%p15) target = $region8
    $region5: #{tpu_custom_call.1} parent=1 // loop_body
      %s19 = ssub.s32 %s14, 1
      %s20 = ssub.s32 %s14, 2
      %s21 = sadd.s32 %s14, 1
      %s22 = ssub.s32 %s14, %s21
      %p23 = scmp.eq.s32.totalorder %s22, 0
      %s25 = sadd.s32 %s24, 1
      %s26 = scalar_select %p23, %s24, %s25
      %p29 = pneg %p23
      %p30 = scmp.eq.s32.totalorder %s14, 1
      %p31 = por %p29, %p30
      %p32 = scmp.ne.s32.totalorder %s24, %s27
      %p33 = scmp.eq.s32.totalorder %s14, 0
      %p34 = por %p32, %p33
      %p35 = scmp.ne.s32.totalorder %s24, %s27
      %p36 = scmp.eq.s32.totalorder %s19, 1
      %p37 = por %p35, %p36
      %p38 = scmp.ne.s32.totalorder %s27, %s28
      %p39 = scmp.eq.s32.totalorder %s19, 0
      %p40 = por %p38, %p39
      %p41 = scmp.ne.s32.totalorder %s27, %s28
      %p42 = scmp.eq.s32.totalorder %s20, 1
      %p43 = por %p41, %p42
      %p45 = scmp.ne.s32.totalorder %s28, %s44
      %p46 = scmp.eq.s32.totalorder %s20, 0
      %p47 = por %p45, %p46
      %s49 = sadd.s32 %s48, 1
      %p52 = scmp.eq.s32.totalorder %s14, 1
      %p53 = scmp.ne.s32.totalorder %s48, %s50
      %p54 = scmp.eq.s32.totalorder %s14, 0
      %p55 = por %p53, %p54
      %p56 = scmp.ne.s32.totalorder %s48, %s50
      %p57 = scmp.eq.s32.totalorder %s19, 1
      %p58 = por %p56, %p57
      %p59 = scmp.ne.s32.totalorder %s50, %s51
      %p60 = scmp.eq.s32.totalorder %s19, 0
      %p61 = por %p59, %p60
      %p62 = scmp.ne.s32.totalorder %s50, %s51
      %p63 = scmp.eq.s32.totalorder %s20, 1
      %p64 = por %p62, %p63
      %p66 = scmp.ne.s32.totalorder %s51, %s65
      %p67 = scmp.eq.s32.totalorder %s20, 0
      %p68 = por %p66, %p67
      %s70 = sadd.s32 %s69, 1
      %p73 = scmp.eq.s32.totalorder %s14, 1
      %p74 = scmp.ne.s32.totalorder %s69, %s71
      %p75 = scmp.eq.s32.totalorder %s14, 0
      %p76 = por %p74, %p75
      %p77 = scmp.ne.s32.totalorder %s69, %s71
      %p78 = scmp.eq.s32.totalorder %s19, 1
      %p79 = por %p77, %p78
      %p80 = scmp.ne.s32.totalorder %s71, %s72
      %p81 = scmp.eq.s32.totalorder %s19, 0
      %p82 = por %p80, %p81
      %p83 = scmp.ne.s32.totalorder %s71, %s72
      %p84 = scmp.eq.s32.totalorder %s20, 1
      %p85 = por %p83, %p84
      %p87 = scmp.ne.s32.totalorder %s72, %s86
      %p88 = scmp.eq.s32.totalorder %s20, 0
      %p89 = por %p87, %p88
      %s91 = sadd.s32 %s90, 1
      %p94 = scmp.eq.s32.totalorder %s14, 1
      %p95 = scmp.ne.s32.totalorder %s90, %s92
      %p96 = scmp.eq.s32.totalorder %s14, 0
      %p97 = por %p95, %p96
      %p98 = scmp.ne.s32.totalorder %s90, %s92
      %p99 = scmp.eq.s32.totalorder %s19, 1
      %p100 = por %p98, %p99
      %p101 = scmp.ne.s32.totalorder %s92, %s93
      %p102 = scmp.eq.s32.totalorder %s19, 0
      %p103 = por %p101, %p102
      %p104 = scmp.ne.s32.totalorder %s92, %s93
      %p105 = scmp.eq.s32.totalorder %s20, 1
      %p106 = por %p104, %p105
      %p108 = scmp.ne.s32.totalorder %s93, %s107
      %p109 = scmp.eq.s32.totalorder %s20, 0
      %p110 = por %p108, %p109
      %s112 = sadd.s32 %s111, 1
      %p115 = scmp.eq.s32.totalorder %s14, 1
      %p116 = scmp.ne.s32.totalorder %s111, %s113
      %p117 = scmp.eq.s32.totalorder %s14, 0
      %p118 = por %p116, %p117
      %p119 = scmp.ne.s32.totalorder %s111, %s113
      %p120 = scmp.eq.s32.totalorder %s19, 1
      %p121 = por %p119, %p120
      %p122 = scmp.ne.s32.totalorder %s113, %s114
      %p123 = scmp.eq.s32.totalorder %s19, 0
      %p124 = por %p122, %p123
      %p125 = scmp.ne.s32.totalorder %s113, %s114
      %p126 = scmp.eq.s32.totalorder %s20, 1
      %p127 = por %p125, %p126
      %p129 = scmp.ne.s32.totalorder %s114, %s128
      %p130 = scmp.eq.s32.totalorder %s20, 0
      %p131 = por %p129, %p130
      %s132 = ssub.s32 %s14, %s21
      %p133 = scmp.eq.s32.totalorder %s132, 0
      %s135 = sadd.s32 %s134, 1
      %s136 = scalar_select %p133, %s134, %s135
      %p139 = pneg %p133
      %p140 = scmp.eq.s32.totalorder %s14, 1
      %p141 = por %p139, %p140
      %p142 = scmp.ne.s32.totalorder %s134, %s137
      %p143 = scmp.eq.s32.totalorder %s14, 0
      %p144 = por %p142, %p143
      %p145 = scmp.ne.s32.totalorder %s134, %s137
      %p146 = scmp.eq.s32.totalorder %s19, 1
      %p147 = por %p145, %p146
      %p148 = scmp.ne.s32.totalorder %s137, %s138
      %p149 = scmp.eq.s32.totalorder %s19, 0
      %p150 = por %p148, %p149
      %p151 = scmp.ne.s32.totalorder %s137, %s138
      %p152 = scmp.eq.s32.totalorder %s20, 1
      %p153 = por %p151, %p152
      %p155 = scmp.ne.s32.totalorder %s138, %s154
      %p156 = scmp.eq.s32.totalorder %s20, 0
      %p157 = por %p155, %p156
      %p158 = scmp.le.s32.totalorder 1, %s14
      %p159 = scmp.lt.s32.totalorder %s14, 3
      %p160 = pnand %p158, %p159
      %p161 = pneg %p160
      // Predicated region
      $region9: #{tpu_custom_call.1} parent=5 // pred_check
        _
      $region10: #{tpu_custom_call.1} parent=5 // pred_check_branch
        %163 = sbr.rel (%p160) target = $region12
      $region11: #{tpu_custom_call.1} parent=5 // pred_region
        %s164 = ssub.s32 %s14, 1
        // Predicated region
        $region13: #{tpu_custom_call.1} parent=11 // pred_check
          %p165 = pneg %p61
        $region14: #{tpu_custom_call.1} parent=11 // pred_check_branch
          %167 = sbr.rel (%p165) target = $region16
        $region15: #{tpu_custom_call.1} parent=11 // pred_region
          _
        $region16: #{tpu_custom_call.1} parent=11 // pred_fallthru
          _
        // Predicated region
        $region17: #{tpu_custom_call.1} parent=11 // pred_check
          %p168 = pneg %p82
        $region18: #{tpu_custom_call.1} parent=11 // pred_check_branch
          %170 = sbr.rel (%p168) target = $region20
        $region19: #{tpu_custom_call.1} parent=11 // pred_region
          _
        $region20: #{tpu_custom_call.1} parent=11 // pred_fallthru
          _
        // Predicated region
        $region21: #{tpu_custom_call.1} parent=11 // pred_check
          %p171 = pneg %p103
        $region22: #{tpu_custom_call.1} parent=11 // pred_check_branch
          %173 = sbr.rel (%p171) target = $region24
        $region23: #{tpu_custom_call.1} parent=11 // pred_region
          _
        $region24: #{tpu_custom_call.1} parent=11 // pred_fallthru
          _
        // Predicated region
        $region25: #{tpu_custom_call.1} parent=11 // pred_check
          %p174 = pneg %p124
        $region26: #{tpu_custom_call.1} parent=11 // pred_check_branch
          %176 = sbr.rel (%p174) target = $region28
        $region27: #{tpu_custom_call.1} parent=11 // pred_region
          _
        $region28: #{tpu_custom_call.1} parent=11 // pred_fallthru
          _
      $region12: #{tpu_custom_call.1} parent=5 // pred_fallthru
        _
      %p177 = scmp.lt.s32.totalorder %s14, 2
      // Predicated region
      $region29: #{tpu_custom_call.1} parent=5 // pred_check
        %p178 = pneg %p177
      $region30: #{tpu_custom_call.1} parent=5 // pred_check_branch
        %180 = sbr.rel (%p178) target = $region32
      $region31: #{tpu_custom_call.1} parent=5 // pred_region
        // Predicated region
        $region33: #{tpu_custom_call.1} parent=31 // pred_check
          %p181 = pneg %p34
        $region34: #{tpu_custom_call.1} parent=31 // pred_check_branch
          %183 = sbr.rel (%p181) target = $region36
        $region35: #{tpu_custom_call.1} parent=31 // pred_region
          %p184 = scmp.lt.s32.totalorder %s14, 1
          %s185 = scalar_select %p184, %s14, 1
          %s186 = smul.addr %s185, 8
          %s187 = smul.addr %s186, 8
          %s188 = scalar_lea.vmem %s0, %s187
        $region36: #{tpu_custom_call.1} parent=31 // pred_fallthru
          _
      $region32: #{tpu_custom_call.1} parent=5 // pred_fallthru
        _
      %p189 = scmp.le.s32.totalorder 1, %s14
      %p190 = scmp.lt.s32.totalorder %s14, 3
      %p191 = pnand %p189, %p190
      %p192 = pneg %p191
      // Predicated region
      $region37: #{tpu_custom_call.1} parent=5 // pred_check
        _
      $region38: #{tpu_custom_call.1} parent=5 // pred_check_branch
        %194 = sbr.rel (%p191) target = $region40
      $region39: #{tpu_custom_call.1} parent=5 // pred_region
        %s195 = ssub.s32 %s14, 1
        %p196 = scmp.lt.s32.totalorder %s19, 1
        %s197 = scalar_select %p196, %s19, 1
        %s198 = smul.addr %s197, 8
        %s199 = smul.addr %s198, 8
        %s200 = scalar_lea.vmem %s0, %s199
        %p201 = pneg %p40
        %p202 = pneg %p37
        %p203 = pneg %p61
        %p204 = pneg %p58
        %p205 = pneg %p82
        %p206 = pneg %p79
        %p207 = pneg %p103
        %p208 = pneg %p100
        %p209 = pneg %p124
        %p210 = pneg %p121
        %p211 = pneg %p150
        %p212 = pneg %p147
        %s213 = sand.u32 %s137, 1
        %s214 = scalar_lea.sflag [#allocation6], %s213
        %s215 = sand.u32 %s137, 1
        %s216 = smul.addr %s215, 8
        %s217 = scalar_lea.vmem [#allocation5], %s216
        %p218 = scmp.lt.s32.totalorder %s19, 1
        %s219 = scalar_select %p218, %s19, 1
        %s220 = smul.addr %s219, 8
        %s221 = smul.addr %s220, 8
        %s222 = scalar_lea.vmem %s0, %s221
        %v223 = vld [vmem:[%s222] sm:$0xff]
        %v224 = vld [vmem:[%s222 + $0x8] sm:$0xff]
        %v225 = vld [vmem:[%s222 + $0x10] sm:$0xff]
        %v226 = vld [vmem:[%s222 + $0x18] sm:$0xff]
        %v227 = vld [vmem:[%s222 + $0x20] sm:$0xff]
        %v228 = vld [vmem:[%s222 + $0x28] sm:$0xff]
        %v229 = vld [vmem:[%s222 + $0x30] sm:$0xff]
        %v230 = vld [vmem:[%s222 + $0x38] sm:$0xff]
        %v231 = vld [vmem:[%s3] sm:$0xff]
        %v232 = vld [vmem:[%s3 + $0x8] sm:$0xff]
        %v233 = vld [vmem:[%s3 + $0x10] sm:$0xff]
        %v234 = vld [vmem:[%s3 + $0x18] sm:$0xff]
        %v235 = vld [vmem:[%s4] sm:$0x1]
        %v236 = vld [vmem:[%s1] sm:$0xff]
        %v237 = vld [vmem:[%s1 + $0x8] sm:$0xff]
        %v238 = vld [vmem:[%s1 + $0x10] sm:$0xff]
        %v239 = vld [vmem:[%s1 + $0x18] sm:$0xff]
        %v240 = vld [vmem:[%s2] sm:$0x1]
        %v242 = vlaneseq
        %v243 = vshrl.u32 %v242, 7
        %v244 = vsub.s32 0, %v243
        %v245 = vrot.slane %v240, %v244
        %vm247 = vcmask 261120
        %v249 = vsel %vm247, %v223, 0
        %v252 = vsel %vm247, %v224, 0
        %v255 = vsel %vm247, %v225, 0
        %v258 = vsel %vm247, %v226, 0
        %v261 = vsel %vm247, %v227, 0
        %v264 = vsel %vm247, %v228, 0
        %v267 = vsel %vm247, %v229, 0
        %v270 = vsel %vm247, %v230, 0
        %272 = vmatprep.subr.mxu0 0.0
        %273 = vmatpush1.msra.mxu0 0.0
        %274 = vmatprep.subr.mxu0 0.0
        %275 = vmatpush1.msra.mxu0 0.0
        %276 = vmatprep.subr.mxu0 0.0
        %277 = vmatpush1.msra.mxu0 0.0
        %278 = vmatprep.subr.mxu0 0.0
        %279 = vmatpush1.msra.mxu0 0.0
        %280 = vmatprep.subr.mxu0 0.0
        %281 = vmatpush1.msra.mxu0 0.0
        %282 = vmatprep.subr.mxu0 0.0
        %283 = vmatpush1.msra.mxu0 0.0
        %284 = vmatprep.subr.mxu0 0.0
        %285 = vmatpush1.msra.mxu0 0.0
        %286 = vmatprep.subr.mxu0 0.0
        %287 = vmatpush1.msra.mxu0 0.0
        %288 = vmatprep.subr.mxu0 0.0
        %289 = vmatpush1.msra.mxu0 0.0
        %290 = vmatprep.subr.mxu0 0.0
        %291 = vmatpush1.msra.mxu0 0.0
        %292 = vmatprep.subr.mxu0 0.0
        %293 = vmatpush1.msra.mxu0 0.0
        %294 = vmatprep.subr.mxu0 0.0
        %295 = vmatpush1.msra.mxu0 0.0
        %296 = vmatprep.subr.mxu0 0.0
        %297 = vmatpush1.msra.mxu0 %v239
        %298 = vmatprep.subr.mxu0 0.0
        %299 = vmatpush1.msra.mxu0 %v238
        %300 = vmatprep.subr.mxu0 0.0
        %301 = vmatpush1.msra.mxu0 %v237
        %302 = vmatprep.subr.mxu0 0.0
        %303 = vmatpush1.msra.mxu0 %v236
        %304 = vmatprep.subr.mxu0 0.0
        %305 = vmatpush2.msra.mxu0 0.0
        %306 = vmatprep.subr.mxu0 0.0
        %307 = vmatpush2.msra.mxu0 0.0
        %308 = vmatprep.subr.mxu0 0.0
        %309 = vmatpush2.msra.mxu0 0.0
        %310 = vmatprep.subr.mxu0 0.0
        %311 = vmatpush2.msra.mxu0 0.0
        %312 = vmatprep.subr.mxu0 0.0
        %313 = vmatpush2.msra.mxu0 0.0
        %314 = vmatprep.subr.mxu0 0.0
        %315 = vmatpush2.msra.mxu0 0.0
        %316 = vmatprep.subr.mxu0 0.0
        %317 = vmatpush2.msra.mxu0 0.0
        %318 = vmatprep.subr.mxu0 0.0
        %319 = vmatpush2.msra.mxu0 0.0
        %320 = vmatprep.subr.mxu0 0.0
        %321 = vmatpush2.msra.mxu0 0.0
        %322 = vmatprep.subr.mxu0 0.0
        %323 = vmatpush2.msra.mxu0 0.0
        %324 = vmatprep.subr.mxu0 0.0
        %325 = vmatpush2.msra.mxu0 0.0
        %326 = vmatprep.subr.mxu0 0.0
        %327 = vmatpush2.msra.mxu0 0.0
        %328 = vmatprep.subr.mxu0 0.0
        %329 = vmatpush2.msra.mxu0 0.0
        %330 = vmatprep.subr.mxu0 0.0
        %331 = vmatpush2.msra.mxu0 0.0
        %332 = vmatprep.subr.mxu0 0.0
        %333 = vmatpush2.msra.mxu0 0.0
        %334 = vmatprep.subr.mxu0 0.0
        %335 = vmatpush2.msra.mxu0 0.0
        %336 = vmatprep.mubr.f32.mxu0 0.0
        %337 = vmatmul.mubr.f32.gmra.mxu0 %v249
        %v338 = vpop.f32.mrf.mxu0
        %v339 = vadd.f32 %v245, %v338
        %v340 = vpop.f32.mrf.mxu0
        %341 = vmatprep.mubr.f32.mxu0 0.0
        %342 = vmatmul.mubr.f32.gmra.mxu0 %v252
        %v343 = vpop.f32.mrf.mxu0
        %v344 = vadd.f32 %v245, %v343
        %v345 = vpop.f32.mrf.mxu0
        %346 = vmatprep.mubr.f32.mxu0 0.0
        %347 = vmatmul.mubr.f32.gmra.mxu0 %v255
        %v348 = vpop.f32.mrf.mxu0
        %v349 = vadd.f32 %v245, %v348
        %v350 = vpop.f32.mrf.mxu0
        %351 = vmatprep.mubr.f32.mxu0 0.0
        %352 = vmatmul.mubr.f32.gmra.mxu0 %v258
        %v353 = vpop.f32.mrf.mxu0
        %v354 = vadd.f32 %v245, %v353
        %v355 = vpop.f32.mrf.mxu0
        %356 = vmatprep.mubr.f32.mxu0 0.0
        %357 = vmatmul.mubr.f32.gmra.mxu0 %v261
        %v358 = vpop.f32.mrf.mxu0
        %v359 = vadd.f32 %v245, %v358
        %v360 = vpop.f32.mrf.mxu0
        %361 = vmatprep.mubr.f32.mxu0 0.0
        %362 = vmatmul.mubr.f32.gmra.mxu0 %v264
        %v363 = vpop.f32.mrf.mxu0
        %v364 = vadd.f32 %v245, %v363
        %v365 = vpop.f32.mrf.mxu0
        %366 = vmatprep.mubr.f32.mxu0 0.0
        %367 = vmatmul.mubr.f32.gmra.mxu0 %v267
        %v368 = vpop.f32.mrf.mxu0
        %v369 = vadd.f32 %v245, %v368
        %v370 = vpop.f32.mrf.mxu0
        %371 = vmatprep.mubr.f32.mxu0 0.0
        %372 = vmatmul.mubr.f32.gmra.mxu0 %v270
        %v373 = vpop.f32.mrf.mxu0
        %v374 = vadd.f32 %v245, %v373
        %v375 = vpop.f32.mrf.mxu0
        %376 = vdwg.mxu0
        %v377 = vmax.f32 %v339, %v359
        %v378 = vmax.f32 %v344, %v364
        %v379 = vmax.f32 %v349, %v369
        %v380 = vmax.f32 %v354, %v374
        %v381 = vmul.f32 %v377, 0.35355338
        %v382 = vmul.f32 %v378, 0.35355338
        %v383 = vmul.f32 %v379, 0.35355338
        %v384 = vmul.f32 %v380, 0.35355338
        %385 = vst.msk [vmem:[#allocation2] sm:$0xff] %vm247, %v381
        %386 = vst.msk [vmem:[#allocation2 + $0x8] sm:$0xff] %vm247, %v382
        %387 = vst.msk [vmem:[#allocation2 + $0x10] sm:$0xff] %vm247, %v383
        %388 = vst.msk [vmem:[#allocation2 + $0x18] sm:$0xff] %vm247, %v384
        %397 = vrot.lane.b32.xlu0 %v339, 96
        %v398 = vpop.permute.xlu0 %397
        %399 = vrot.lane.b32.xlu0 %v344, 96
        %v400 = vpop.permute.xlu0 %399
        %401 = vrot.lane.b32.xlu0 %v349, 96
        %v402 = vpop.permute.xlu0 %401
        %403 = vrot.lane.b32.xlu0 %v354, 96
        %v404 = vpop.permute.xlu0 %403
        %405 = vrot.lane.b32.xlu0 %v359, 96
        %v406 = vpop.permute.xlu0 %405
        %407 = vrot.lane.b32.xlu0 %v364, 96
        %v408 = vpop.permute.xlu0 %407
        %409 = vrot.lane.b32.xlu0 %v369, 96
        %v410 = vpop.permute.xlu0 %409
        %411 = vrot.lane.b32.xlu0 %v374, 96
        %v412 = vpop.permute.xlu0 %411
        %421 = vst.msk [vmem:[#allocation3] sm:$0xff] %vm247, %v398
        %422 = vst.msk [vmem:[#allocation3 + $0x8] sm:$0xff] %vm247, %v400
        %423 = vst.msk [vmem:[#allocation3 + $0x10] sm:$0xff] %vm247, %v402
        %424 = vst.msk [vmem:[#allocation3 + $0x18] sm:$0xff] %vm247, %v404
        %425 = vst.msk [vmem:[#allocation3 + $0x20] sm:$0xff] %vm247, %v406
        %426 = vst.msk [vmem:[#allocation3 + $0x28] sm:$0xff] %vm247, %v408
        %427 = vst.msk [vmem:[#allocation3 + $0x30] sm:$0xff] %vm247, %v410
        %428 = vst.msk [vmem:[#allocation3 + $0x38] sm:$0xff] %vm247, %v412
        %429 = vrot.lane.b32.xlu0 %v339, 64
        %v430 = vpop.permute.xlu0 %429
        %431 = vrot.lane.b32.xlu0 %v344, 64
        %v432 = vpop.permute.xlu0 %431
        %433 = vrot.lane.b32.xlu0 %v349, 64
        %v434 = vpop.permute.xlu0 %433
        %435 = vrot.lane.b32.xlu0 %v354, 64
        %v436 = vpop.permute.xlu0 %435
        %437 = vrot.lane.b32.xlu0 %v359, 64
        %v438 = vpop.permute.xlu0 %437
        %439 = vrot.lane.b32.xlu0 %v364, 64
        %v440 = vpop.permute.xlu0 %439
        %441 = vrot.lane.b32.xlu0 %v369, 64
        %v442 = vpop.permute.xlu0 %441
        %443 = vrot.lane.b32.xlu0 %v374, 64
        %v444 = vpop.permute.xlu0 %443
        %453 = vst.msk [vmem:[#allocation4] sm:$0xff] %vm247, %v430
        %454 = vst.msk [vmem:[#allocation4 + $0x8] sm:$0xff] %vm247, %v432
        %455 = vst.msk [vmem:[#allocation4 + $0x10] sm:$0xff] %vm247, %v434
        %456 = vst.msk [vmem:[#allocation4 + $0x18] sm:$0xff] %vm247, %v436
        %457 = vst.msk [vmem:[#allocation4 + $0x20] sm:$0xff] %vm247, %v438
        %458 = vst.msk [vmem:[#allocation4 + $0x28] sm:$0xff] %vm247, %v440
        %459 = vst.msk [vmem:[#allocation4 + $0x30] sm:$0xff] %vm247, %v442
        %460 = vst.msk [vmem:[#allocation4 + $0x38] sm:$0xff] %vm247, %v444
        %v461 = vld [vmem:[#allocation2] ss:$8 sm:$0xf]
        %v462 = vld [vmem:[#allocation3] ss:$8 sm:$0xf]
        %v463 = vld [vmem:[#allocation3] ss:$8 sm:$0xf0]
        %v464 = vor.u32 %v462, %v463
        %v465 = vld [vmem:[#allocation4] ss:$8 sm:$0xf]
        %v466 = vld [vmem:[#allocation4] ss:$8 sm:$0xf0]
        %v467 = vor.u32 %v465, %v466
        %vm468 = vcmask 64512
        %v470 = vsel %vm468, %v461, 0
        %v473 = vsel %vm468, %v464, 0
        %475 = vmatprep.subr.mxu0 0.0
        %476 = vmatpush1.xpose.msra.mxu0 0.0
        %477 = vmatprep.subr.mxu0 0.0
        %478 = vmatpush1.xpose.msra.mxu0 0.0
        %479 = vmatprep.subr.mxu0 0.0
        %480 = vmatpush1.xpose.msra.mxu0 0.0
        %481 = vmatprep.subr.mxu0 0.0
        %482 = vmatpush1.xpose.msra.mxu0 0.0
        %483 = vmatprep.subr.mxu0 0.0
        %484 = vmatpush1.xpose.msra.mxu0 0.0
        %485 = vmatprep.subr.mxu0 0.0
        %486 = vmatpush1.xpose.msra.mxu0 0.0
        %487 = vmatprep.subr.mxu0 0.0
        %488 = vmatpush1.xpose.msra.mxu0 0.0
        %489 = vmatprep.subr.mxu0 0.0
        %490 = vmatpush1.xpose.msra.mxu0 0.0
        %491 = vmatprep.subr.mxu0 0.0
        %492 = vmatpush1.xpose.msra.mxu0 0.0
        %493 = vmatprep.subr.mxu0 0.0
        %494 = vmatpush1.xpose.msra.mxu0 0.0
        %495 = vmatprep.subr.mxu0 0.0
        %496 = vmatpush1.xpose.msra.mxu0 0.0
        %497 = vmatprep.subr.mxu0 0.0
        %498 = vmatpush1.xpose.msra.mxu0 0.0
        %499 = vmatprep.subr.mxu0 0.0
        %500 = vmatpush1.xpose.msra.mxu0 0.0
        %501 = vmatprep.subr.mxu0 0.0
        %502 = vmatpush1.xpose.msra.mxu0 0.0
        %503 = vmatprep.subr.mxu0 0.0
        %504 = vmatpush1.xpose.msra.mxu0 0.0
        %505 = vmatprep.subr.mxu0 0.0
        %506 = vmatpush1.xpose.msra.mxu0 %v473
        %507 = vmatprep.subr.mxu0 0.0
        %508 = vmatpush2.xpose.msra.mxu0 0.0
        %509 = vmatprep.subr.mxu0 0.0
        %510 = vmatpush2.xpose.msra.mxu0 0.0
        %511 = vmatprep.subr.mxu0 0.0
        %512 = vmatpush2.xpose.msra.mxu0 0.0
        %513 = vmatprep.subr.mxu0 0.0
        %514 = vmatpush2.xpose.msra.mxu0 0.0
        %515 = vmatprep.subr.mxu0 0.0
        %516 = vmatpush2.xpose.msra.mxu0 0.0
        %517 = vmatprep.subr.mxu0 0.0
        %518 = vmatpush2.xpose.msra.mxu0 0.0
        %519 = vmatprep.subr.mxu0 0.0
        %520 = vmatpush2.xpose.msra.mxu0 0.0
        %521 = vmatprep.subr.mxu0 0.0
        %522 = vmatpush2.xpose.msra.mxu0 0.0
        %523 = vmatprep.subr.mxu0 0.0
        %524 = vmatpush2.xpose.msra.mxu0 0.0
        %525 = vmatprep.subr.mxu0 0.0
        %526 = vmatpush2.xpose.msra.mxu0 0.0
        %527 = vmatprep.subr.mxu0 0.0
        %528 = vmatpush2.xpose.msra.mxu0 0.0
        %529 = vmatprep.subr.mxu0 0.0
        %530 = vmatpush2.xpose.msra.mxu0 0.0
        %531 = vmatprep.subr.mxu0 0.0
        %532 = vmatpush2.xpose.msra.mxu0 0.0
        %533 = vmatprep.subr.mxu0 0.0
        %534 = vmatpush2.xpose.msra.mxu0 0.0
        %535 = vmatprep.subr.mxu0 0.0
        %536 = vmatpush2.xpose.msra.mxu0 0.0
        %537 = vmatprep.subr.mxu0 0.0
        %538 = vmatpush2.xpose.msra.mxu0 0.0
        %539 = vmatprep.mubr.f32.mxu0 0.0
        %540 = vmatmul.mubr.f32.gmra.mxu0 %v470
        %v541 = vpop.f32.mrf.mxu0
        %v542 = vadd.f32 0.0, %v541
        %v543 = vpop.f32.mrf.mxu0
        %544 = vdwg.mxu0
        %vm545 = vcmask 60416
        %v546 = vsel %vm545, %v542, -inf
        %547 = vmax.xlane.f32.xlu0 %v546
        %v548 = vpop.xlane.xlu0 %547
        %v549 = vsub.f32 %v542, %v548
        %v550 = vmul.f32 %v549, 1.442695
        %v551 = vpow.pop %v550
        %v552 = vsel %vm545, %v551, 0.0
        %553 = vadd.xlane.f32.xlu0 %v552
        %v554 = vpop.xlane.xlu0 %553
        %v556 = vsel %vm468, %v551, 0
        %558 = vmatprep.subr.mxu0 0.0
        %559 = vmatpush1.msra.mxu0 0.0
        %560 = vmatprep.subr.mxu0 0.0
        %561 = vmatpush1.msra.mxu0 0.0
        %562 = vmatprep.subr.mxu0 0.0
        %563 = vmatpush1.msra.mxu0 0.0
        %564 = vmatprep.subr.mxu0 0.0
        %565 = vmatpush1.msra.mxu0 0.0
        %566 = vmatprep.subr.mxu0 0.0
        %567 = vmatpush1.msra.mxu0 0.0
        %568 = vmatprep.subr.mxu0 0.0
        %569 = vmatpush1.msra.mxu0 0.0
        %570 = vmatprep.subr.mxu0 0.0
        %571 = vmatpush1.msra.mxu0 0.0
        %572 = vmatprep.subr.mxu0 0.0
        %573 = vmatpush1.msra.mxu0 0.0
        %574 = vmatprep.subr.mxu0 0.0
        %575 = vmatpush1.msra.mxu0 0.0
        %576 = vmatprep.subr.mxu0 0.0
        %577 = vmatpush1.msra.mxu0 0.0
        %578 = vmatprep.subr.mxu0 0.0
        %579 = vmatpush1.msra.mxu0 0.0
        %580 = vmatprep.subr.mxu0 0.0
        %581 = vmatpush1.msra.mxu0 0.0
        %582 = vmatprep.subr.mxu0 0.0
        %583 = vmatpush1.msra.mxu0 0.0
        %584 = vmatprep.subr.mxu0 0.0
        %585 = vmatpush1.msra.mxu0 0.0
        %586 = vmatprep.subr.mxu0 0.0
        %587 = vmatpush1.msra.mxu0 0.0
        %588 = vmatprep.subr.mxu0 0.0
        %589 = vmatpush1.msra.mxu0 %v467
        %590 = vmatprep.subr.mxu0 0.0
        %591 = vmatpush2.msra.mxu0 0.0
        %592 = vmatprep.subr.mxu0 0.0
        %593 = vmatpush2.msra.mxu0 0.0
        %594 = vmatprep.subr.mxu0 0.0
        %595 = vmatpush2.msra.mxu0 0.0
        %596 = vmatprep.subr.mxu0 0.0
        %597 = vmatpush2.msra.mxu0 0.0
        %598 = vmatprep.subr.mxu0 0.0
        %599 = vmatpush2.msra.mxu0 0.0
        %600 = vmatprep.subr.mxu0 0.0
        %601 = vmatpush2.msra.mxu0 0.0
        %602 = vmatprep.subr.mxu0 0.0
        %603 = vmatpush2.msra.mxu0 0.0
        %604 = vmatprep.subr.mxu0 0.0
        %605 = vmatpush2.msra.mxu0 0.0
        %606 = vmatprep.subr.mxu0 0.0
        %607 = vmatpush2.msra.mxu0 0.0
        %608 = vmatprep.subr.mxu0 0.0
        %609 = vmatpush2.msra.mxu0 0.0
        %610 = vmatprep.subr.mxu0 0.0
        %611 = vmatpush2.msra.mxu0 0.0
        %612 = vmatprep.subr.mxu0 0.0
        %613 = vmatpush2.msra.mxu0 0.0
        %614 = vmatprep.subr.mxu0 0.0
        %615 = vmatpush2.msra.mxu0 0.0
        %616 = vmatprep.subr.mxu0 0.0
        %617 = vmatpush2.msra.mxu0 0.0
        %618 = vmatprep.subr.mxu0 0.0
        %619 = vmatpush2.msra.mxu0 0.0
        %620 = vmatprep.subr.mxu0 0.0
        %621 = vmatpush2.msra.mxu0 0.0
        %622 = vmatprep.mubr.f32.mxu0 0.0
        %623 = vmatmul.mubr.f32.gmra.mxu0 %v556
        %v624 = vpop.f32.mrf.mxu0
        %v625 = vadd.f32 0.0, %v624
        %v626 = vpop.f32.mrf.mxu0
        %627 = vdwg.mxu0
        %v628 = vrcp.pop %v554
        %v629 = vmul.f32 %v625, %v628
        %630 = vrot.lane.b32.xlu0 %v461, 120
        %v631 = vpop.permute.xlu0 %630
        %632 = vrot.lane.b32.xlu0 %v464, 120
        %v633 = vpop.permute.xlu0 %632
        %v634 = vsel %vm468, %v631, 0
        %v636 = vsel %vm468, %v633, 0
        %638 = vmatprep.subr.mxu0 0.0
        %639 = vmatpush1.xpose.msra.mxu0 0.0
        %640 = vmatprep.subr.mxu0 0.0
        %641 = vmatpush1.xpose.msra.mxu0 0.0
        %642 = vmatprep.subr.mxu0 0.0
        %643 = vmatpush1.xpose.msra.mxu0 0.0
        %644 = vmatprep.subr.mxu0 0.0
        %645 = vmatpush1.xpose.msra.mxu0 0.0
        %646 = vmatprep.subr.mxu0 0.0
        %647 = vmatpush1.xpose.msra.mxu0 0.0
        %648 = vmatprep.subr.mxu0 0.0
        %649 = vmatpush1.xpose.msra.mxu0 0.0
        %650 = vmatprep.subr.mxu0 0.0
        %651 = vmatpush1.xpose.msra.mxu0 0.0
        %652 = vmatprep.subr.mxu0 0.0
        %653 = vmatpush1.xpose.msra.mxu0 0.0
        %654 = vmatprep.subr.mxu0 0.0
        %655 = vmatpush1.xpose.msra.mxu0 0.0
        %656 = vmatprep.subr.mxu0 0.0
        %657 = vmatpush1.xpose.msra.mxu0 0.0
        %658 = vmatprep.subr.mxu0 0.0
        %659 = vmatpush1.xpose.msra.mxu0 0.0
        %660 = vmatprep.subr.mxu0 0.0
        %661 = vmatpush1.xpose.msra.mxu0 0.0
        %662 = vmatprep.subr.mxu0 0.0
        %663 = vmatpush1.xpose.msra.mxu0 0.0
        %664 = vmatprep.subr.mxu0 0.0
        %665 = vmatpush1.xpose.msra.mxu0 0.0
        %666 = vmatprep.subr.mxu0 0.0
        %667 = vmatpush1.xpose.msra.mxu0 0.0
        %668 = vmatprep.subr.mxu0 0.0
        %669 = vmatpush1.xpose.msra.mxu0 %v636
        %670 = vmatprep.subr.mxu0 0.0
        %671 = vmatpush2.xpose.msra.mxu0 0.0
        %672 = vmatprep.subr.mxu0 0.0
        %673 = vmatpush2.xpose.msra.mxu0 0.0
        %674 = vmatprep.subr.mxu0 0.0
        %675 = vmatpush2.xpose.msra.mxu0 0.0
        %676 = vmatprep.subr.mxu0 0.0
        %677 = vmatpush2.xpose.msra.mxu0 0.0
        %678 = vmatprep.subr.mxu0 0.0
        %679 = vmatpush2.xpose.msra.mxu0 0.0
        %680 = vmatprep.subr.mxu0 0.0
        %681 = vmatpush2.xpose.msra.mxu0 0.0
        %682 = vmatprep.subr.mxu0 0.0
        %683 = vmatpush2.xpose.msra.mxu0 0.0
        %684 = vmatprep.subr.mxu0 0.0
        %685 = vmatpush2.xpose.msra.mxu0 0.0
        %686 = vmatprep.subr.mxu0 0.0
        %687 = vmatpush2.xpose.msra.mxu0 0.0
        %688 = vmatprep.subr.mxu0 0.0
        %689 = vmatpush2.xpose.msra.mxu0 0.0
        %690 = vmatprep.subr.mxu0 0.0
        %691 = vmatpush2.xpose.msra.mxu0 0.0
        %692 = vmatprep.subr.mxu0 0.0
        %693 = vmatpush2.xpose.msra.mxu0 0.0
        %694 = vmatprep.subr.mxu0 0.0
        %695 = vmatpush2.xpose.msra.mxu0 0.0
        %696 = vmatprep.subr.mxu0 0.0
        %697 = vmatpush2.xpose.msra.mxu0 0.0
        %698 = vmatprep.subr.mxu0 0.0
        %699 = vmatpush2.xpose.msra.mxu0 0.0
        %700 = vmatprep.subr.mxu0 0.0
        %701 = vmatpush2.xpose.msra.mxu0 0.0
        %702 = vmatprep.mubr.f32.mxu0 0.0
        %703 = vmatmul.mubr.f32.gmra.mxu0 %v634
        %v704 = vpop.f32.mrf.mxu0
        %v705 = vadd.f32 0.0, %v704
        %v706 = vpop.f32.mrf.mxu0
        %707 = vdwg.mxu0
        %v708 = vsel %vm545, %v705, -inf
        %709 = vmax.xlane.f32.xlu0 %v708
        %v710 = vpop.xlane.xlu0 %709
        %v711 = vsub.f32 %v705, %v710
        %v712 = vmul.f32 %v711, 1.442695
        %v713 = vpow.pop %v712
        %v714 = vsel %vm545, %v713, 0.0
        %715 = vadd.xlane.f32.xlu0 %v714
        %v716 = vpop.xlane.xlu0 %715
        %718 = vrot.lane.b32.xlu0 %v467, 120
        %v719 = vpop.permute.xlu0 %718
        %v722 = vsel %vm468, %v713, 0
        %724 = vmatprep.subr.mxu0 0.0
        %725 = vmatpush1.msra.mxu0 0.0
        %726 = vmatprep.subr.mxu0 0.0
        %727 = vmatpush1.msra.mxu0 0.0
        %728 = vmatprep.subr.mxu0 0.0
        %729 = vmatpush1.msra.mxu0 0.0
        %730 = vmatprep.subr.mxu0 0.0
        %731 = vmatpush1.msra.mxu0 0.0
        %732 = vmatprep.subr.mxu0 0.0
        %733 = vmatpush1.msra.mxu0 0.0
        %734 = vmatprep.subr.mxu0 0.0
        %735 = vmatpush1.msra.mxu0 0.0
        %736 = vmatprep.subr.mxu0 0.0
        %737 = vmatpush1.msra.mxu0 0.0
        %738 = vmatprep.subr.mxu0 0.0
        %739 = vmatpush1.msra.mxu0 0.0
        %740 = vmatprep.subr.mxu0 0.0
        %741 = vmatpush1.msra.mxu0 0.0
        %742 = vmatprep.subr.mxu0 0.0
        %743 = vmatpush1.msra.mxu0 0.0
        %744 = vmatprep.subr.mxu0 0.0
        %745 = vmatpush1.msra.mxu0 0.0
        %746 = vmatprep.subr.mxu0 0.0
        %747 = vmatpush1.msra.mxu0 0.0
        %748 = vmatprep.subr.mxu0 0.0
        %749 = vmatpush1.msra.mxu0 0.0
        %750 = vmatprep.subr.mxu0 0.0
        %751 = vmatpush1.msra.mxu0 0.0
        %752 = vmatprep.subr.mxu0 0.0
        %753 = vmatpush1.msra.mxu0 0.0
        %754 = vmatprep.subr.mxu0 0.0
        %755 = vmatpush1.msra.mxu0 %v719
        %756 = vmatprep.subr.mxu0 0.0
        %757 = vmatpush2.msra.mxu0 0.0
        %758 = vmatprep.subr.mxu0 0.0
        %759 = vmatpush2.msra.mxu0 0.0
        %760 = vmatprep.subr.mxu0 0.0
        %761 = vmatpush2.msra.mxu0 0.0
        %762 = vmatprep.subr.mxu0 0.0
        %763 = vmatpush2.msra.mxu0 0.0
        %764 = vmatprep.subr.mxu0 0.0
        %765 = vmatpush2.msra.mxu0 0.0
        %766 = vmatprep.subr.mxu0 0.0
        %767 = vmatpush2.msra.mxu0 0.0
        %768 = vmatprep.subr.mxu0 0.0
        %769 = vmatpush2.msra.mxu0 0.0
        %770 = vmatprep.subr.mxu0 0.0
        %771 = vmatpush2.msra.mxu0 0.0
        %772 = vmatprep.subr.mxu0 0.0
        %773 = vmatpush2.msra.mxu0 0.0
        %774 = vmatprep.subr.mxu0 0.0
        %775 = vmatpush2.msra.mxu0 0.0
        %776 = vmatprep.subr.mxu0 0.0
        %777 = vmatpush2.msra.mxu0 0.0
        %778 = vmatprep.subr.mxu0 0.0
        %779 = vmatpush2.msra.mxu0 0.0
        %780 = vmatprep.subr.mxu0 0.0
        %781 = vmatpush2.msra.mxu0 0.0
        %782 = vmatprep.subr.mxu0 0.0
        %783 = vmatpush2.msra.mxu0 0.0
        %784 = vmatprep.subr.mxu0 0.0
        %785 = vmatpush2.msra.mxu0 0.0
        %786 = vmatprep.subr.mxu0 0.0
        %787 = vmatpush2.msra.mxu0 0.0
        %788 = vmatprep.mubr.f32.mxu0 0.0
        %789 = vmatmul.mubr.f32.gmra.mxu0 %v722
        %v790 = vpop.f32.mrf.mxu0
        %v791 = vadd.f32 0.0, %v790
        %v792 = vpop.f32.mrf.mxu0
        %793 = vdwg.mxu0
        %v794 = vrcp.pop %v716
        %v795 = vmul.f32 %v791, %v794
        %796 = vrot.lane.b32.xlu0 %v461, 112
        %v797 = vpop.permute.xlu0 %796
        %798 = vrot.lane.b32.xlu0 %v464, 112
        %v799 = vpop.permute.xlu0 %798
        %v800 = vsel %vm468, %v797, 0
        %v802 = vsel %vm468, %v799, 0
        %804 = vmatprep.subr.mxu0 0.0
        %805 = vmatpush1.xpose.msra.mxu0 0.0
        %806 = vmatprep.subr.mxu0 0.0
        %807 = vmatpush1.xpose.msra.mxu0 0.0
        %808 = vmatprep.subr.mxu0 0.0
        %809 = vmatpush1.xpose.msra.mxu0 0.0
        %810 = vmatprep.subr.mxu0 0.0
        %811 = vmatpush1.xpose.msra.mxu0 0.0
        %812 = vmatprep.subr.mxu0 0.0
        %813 = vmatpush1.xpose.msra.mxu0 0.0
        %814 = vmatprep.subr.mxu0 0.0
        %815 = vmatpush1.xpose.msra.mxu0 0.0
        %816 = vmatprep.subr.mxu0 0.0
        %817 = vmatpush1.xpose.msra.mxu0 0.0
        %818 = vmatprep.subr.mxu0 0.0
        %819 = vmatpush1.xpose.msra.mxu0 0.0
        %820 = vmatprep.subr.mxu0 0.0
        %821 = vmatpush1.xpose.msra.mxu0 0.0
        %822 = vmatprep.subr.mxu0 0.0
        %823 = vmatpush1.xpose.msra.mxu0 0.0
        %824 = vmatprep.subr.mxu0 0.0
        %825 = vmatpush1.xpose.msra.mxu0 0.0
        %826 = vmatprep.subr.mxu0 0.0
        %827 = vmatpush1.xpose.msra.mxu0 0.0
        %828 = vmatprep.subr.mxu0 0.0
        %829 = vmatpush1.xpose.msra.mxu0 0.0
        %830 = vmatprep.subr.mxu0 0.0
        %831 = vmatpush1.xpose.msra.mxu0 0.0
        %832 = vmatprep.subr.mxu0 0.0
        %833 = vmatpush1.xpose.msra.mxu0 0.0
        %834 = vmatprep.subr.mxu0 0.0
        %835 = vmatpush1.xpose.msra.mxu0 %v802
        %836 = vmatprep.subr.mxu0 0.0
        %837 = vmatpush2.xpose.msra.mxu0 0.0
        %838 = vmatprep.subr.mxu0 0.0
        %839 = vmatpush2.xpose.msra.mxu0 0.0
        %840 = vmatprep.subr.mxu0 0.0
        %841 = vmatpush2.xpose.msra.mxu0 0.0
        %842 = vmatprep.subr.mxu0 0.0
        %843 = vmatpush2.xpose.msra.mxu0 0.0
        %844 = vmatprep.subr.mxu0 0.0
        %845 = vmatpush2.xpose.msra.mxu0 0.0
        %846 = vmatprep.subr.mxu0 0.0
        %847 = vmatpush2.xpose.msra.mxu0 0.0
        %848 = vmatprep.subr.mxu0 0.0
        %849 = vmatpush2.xpose.msra.mxu0 0.0
        %850 = vmatprep.subr.mxu0 0.0
        %851 = vmatpush2.xpose.msra.mxu0 0.0
        %852 = vmatprep.subr.mxu0 0.0
        %853 = vmatpush2.xpose.msra.mxu0 0.0
        %854 = vmatprep.subr.mxu0 0.0
        %855 = vmatpush2.xpose.msra.mxu0 0.0
        %856 = vmatprep.subr.mxu0 0.0
        %857 = vmatpush2.xpose.msra.mxu0 0.0
        %858 = vmatprep.subr.mxu0 0.0
        %859 = vmatpush2.xpose.msra.mxu0 0.0
        %860 = vmatprep.subr.mxu0 0.0
        %861 = vmatpush2.xpose.msra.mxu0 0.0
        %862 = vmatprep.subr.mxu0 0.0
        %863 = vmatpush2.xpose.msra.mxu0 0.0
        %864 = vmatprep.subr.mxu0 0.0
        %865 = vmatpush2.xpose.msra.mxu0 0.0
        %866 = vmatprep.subr.mxu0 0.0
        %867 = vmatpush2.xpose.msra.mxu0 0.0
        %868 = vmatprep.mubr.f32.mxu0 0.0
        %869 = vmatmul.mubr.f32.gmra.mxu0 %v800
        %v870 = vpop.f32.mrf.mxu0
        %v871 = vadd.f32 0.0, %v870
        %v872 = vpop.f32.mrf.mxu0
        %873 = vdwg.mxu0
        %v874 = vsel %vm545, %v871, -inf
        %875 = vmax.xlane.f32.xlu0 %v874
        %v876 = vpop.xlane.xlu0 %875
        %v877 = vsub.f32 %v871, %v876
        %v878 = vmul.f32 %v877, 1.442695
        %v879 = vpow.pop %v878
        %v880 = vsel %vm545, %v879, 0.0
        %881 = vadd.xlane.f32.xlu0 %v880
        %v882 = vpop.xlane.xlu0 %881
        %883 = vrot.lane.b32.xlu0 %v467, 112
        %v884 = vpop.permute.xlu0 %883
        %v887 = vsel %vm468, %v879, 0
        %889 = vmatprep.subr.mxu0 0.0
        %890 = vmatpush1.msra.mxu0 0.0
        %891 = vmatprep.subr.mxu0 0.0
        %892 = vmatpush1.msra.mxu0 0.0
        %893 = vmatprep.subr.mxu0 0.0
        %894 = vmatpush1.msra.mxu0 0.0
        %895 = vmatprep.subr.mxu0 0.0
        %896 = vmatpush1.msra.mxu0 0.0
        %897 = vmatprep.subr.mxu0 0.0
        %898 = vmatpush1.msra.mxu0 0.0
        %899 = vmatprep.subr.mxu0 0.0
        %900 = vmatpush1.msra.mxu0 0.0
        %901 = vmatprep.subr.mxu0 0.0
        %902 = vmatpush1.msra.mxu0 0.0
        %903 = vmatprep.subr.mxu0 0.0
        %904 = vmatpush1.msra.mxu0 0.0
        %905 = vmatprep.subr.mxu0 0.0
        %906 = vmatpush1.msra.mxu0 0.0
        %907 = vmatprep.subr.mxu0 0.0
        %908 = vmatpush1.msra.mxu0 0.0
        %909 = vmatprep.subr.mxu0 0.0
        %910 = vmatpush1.msra.mxu0 0.0
        %911 = vmatprep.subr.mxu0 0.0
        %912 = vmatpush1.msra.mxu0 0.0
        %913 = vmatprep.subr.mxu0 0.0
        %914 = vmatpush1.msra.mxu0 0.0
        %915 = vmatprep.subr.mxu0 0.0
        %916 = vmatpush1.msra.mxu0 0.0
        %917 = vmatprep.subr.mxu0 0.0
        %918 = vmatpush1.msra.mxu0 0.0
        %919 = vmatprep.subr.mxu0 0.0
        %920 = vmatpush1.msra.mxu0 %v884
        %921 = vmatprep.subr.mxu0 0.0
        %922 = vmatpush2.msra.mxu0 0.0
        %923 = vmatprep.subr.mxu0 0.0
        %924 = vmatpush2.msra.mxu0 0.0
        %925 = vmatprep.subr.mxu0 0.0
        %926 = vmatpush2.msra.mxu0 0.0
        %927 = vmatprep.subr.mxu0 0.0
        %928 = vmatpush2.msra.mxu0 0.0
        %929 = vmatprep.subr.mxu0 0.0
        %930 = vmatpush2.msra.mxu0 0.0
        %931 = vmatprep.subr.mxu0 0.0
        %932 = vmatpush2.msra.mxu0 0.0
        %933 = vmatprep.subr.mxu0 0.0
        %934 = vmatpush2.msra.mxu0 0.0
        %935 = vmatprep.subr.mxu0 0.0
        %936 = vmatpush2.msra.mxu0 0.0
        %937 = vmatprep.subr.mxu0 0.0
        %938 = vmatpush2.msra.mxu0 0.0
        %939 = vmatprep.subr.mxu0 0.0
        %940 = vmatpush2.msra.mxu0 0.0
        %941 = vmatprep.subr.mxu0 0.0
        %942 = vmatpush2.msra.mxu0 0.0
        %943 = vmatprep.subr.mxu0 0.0
        %944 = vmatpush2.msra.mxu0 0.0
        %945 = vmatprep.subr.mxu0 0.0
        %946 = vmatpush2.msra.mxu0 0.0
        %947 = vmatprep.subr.mxu0 0.0
        %948 = vmatpush2.msra.mxu0 0.0
        %949 = vmatprep.subr.mxu0 0.0
        %950 = vmatpush2.msra.mxu0 0.0
        %951 = vmatprep.subr.mxu0 0.0
        %952 = vmatpush2.msra.mxu0 0.0
        %953 = vmatprep.mubr.f32.mxu0 0.0
        %954 = vmatmul.mubr.f32.gmra.mxu0 %v887
        %v955 = vpop.f32.mrf.mxu0
        %v956 = vadd.f32 0.0, %v955
        %v957 = vpop.f32.mrf.mxu0
        %958 = vdwg.mxu0
        %v959 = vrcp.pop %v882
        %v960 = vmul.f32 %v956, %v959
        %961 = vrot.lane.b32.xlu0 %v461, 104
        %v962 = vpop.permute.xlu0 %961
        %963 = vrot.lane.b32.xlu0 %v464, 104
        %v964 = vpop.permute.xlu0 %963
        %v965 = vsel %vm468, %v962, 0
        %v967 = vsel %vm468, %v964, 0
        %969 = vmatprep.subr.mxu0 0.0
        %970 = vmatpush1.xpose.msra.mxu0 0.0
        %971 = vmatprep.subr.mxu0 0.0
        %972 = vmatpush1.xpose.msra.mxu0 0.0
        %973 = vmatprep.subr.mxu0 0.0
        %974 = vmatpush1.xpose.msra.mxu0 0.0
        %975 = vmatprep.subr.mxu0 0.0
        %976 = vmatpush1.xpose.msra.mxu0 0.0
        %977 = vmatprep.subr.mxu0 0.0
        %978 = vmatpush1.xpose.msra.mxu0 0.0
        %979 = vmatprep.subr.mxu0 0.0
        %980 = vmatpush1.xpose.msra.mxu0 0.0
        %981 = vmatprep.subr.mxu0 0.0
        %982 = vmatpush1.xpose.msra.mxu0 0.0
        %983 = vmatprep.subr.mxu0 0.0
        %984 = vmatpush1.xpose.msra.mxu0 0.0
        %985 = vmatprep.subr.mxu0 0.0
        %986 = vmatpush1.xpose.msra.mxu0 0.0
        %987 = vmatprep.subr.mxu0 0.0
        %988 = vmatpush1.xpose.msra.mxu0 0.0
        %989 = vmatprep.subr.mxu0 0.0
        %990 = vmatpush1.xpose.msra.mxu0 0.0
        %991 = vmatprep.subr.mxu0 0.0
        %992 = vmatpush1.xpose.msra.mxu0 0.0
        %993 = vmatprep.subr.mxu0 0.0
        %994 = vmatpush1.xpose.msra.mxu0 0.0
        %995 = vmatprep.subr.mxu0 0.0
        %996 = vmatpush1.xpose.msra.mxu0 0.0
        %997 = vmatprep.subr.mxu0 0.0
        %998 = vmatpush1.xpose.msra.mxu0 0.0
        %999 = vmatprep.subr.mxu0 0.0
        %1000 = vmatpush1.xpose.msra.mxu0 %v967
        %1001 = vmatprep.subr.mxu0 0.0
        %1002 = vmatpush2.xpose.msra.mxu0 0.0
        %1003 = vmatprep.subr.mxu0 0.0
        %1004 = vmatpush2.xpose.msra.mxu0 0.0
        %1005 = vmatprep.subr.mxu0 0.0
        %1006 = vmatpush2.xpose.msra.mxu0 0.0
        %1007 = vmatprep.subr.mxu0 0.0
        %1008 = vmatpush2.xpose.msra.mxu0 0.0
        %1009 = vmatprep.subr.mxu0 0.0
        %1010 = vmatpush2.xpose.msra.mxu0 0.0
        %1011 = vmatprep.subr.mxu0 0.0
        %1012 = vmatpush2.xpose.msra.mxu0 0.0
        %1013 = vmatprep.subr.mxu0 0.0
        %1014 = vmatpush2.xpose.msra.mxu0 0.0
        %1015 = vmatprep.subr.mxu0 0.0
        %1016 = vmatpush2.xpose.msra.mxu0 0.0
        %1017 = vmatprep.subr.mxu0 0.0
        %1018 = vmatpush2.xpose.msra.mxu0 0.0
        %1019 = vmatprep.subr.mxu0 0.0
        %1020 = vmatpush2.xpose.msra.mxu0 0.0
        %1021 = vmatprep.subr.mxu0 0.0
        %1022 = vmatpush2.xpose.msra.mxu0 0.0
        %1023 = vmatprep.subr.mxu0 0.0
        %1024 = vmatpush2.xpose.msra.mxu0 0.0
        %1025 = vmatprep.subr.mxu0 0.0
        %1026 = vmatpush2.xpose.msra.mxu0 0.0
        %1027 = vmatprep.subr.mxu0 0.0
        %1028 = vmatpush2.xpose.msra.mxu0 0.0
        %1029 = vmatprep.subr.mxu0 0.0
        %1030 = vmatpush2.xpose.msra.mxu0 0.0
        %1031 = vmatprep.subr.mxu0 0.0
        %1032 = vmatpush2.xpose.msra.mxu0 0.0
        %1033 = vmatprep.mubr.f32.mxu0 0.0
        %1034 = vmatmul.mubr.f32.gmra.mxu0 %v965
        %v1035 = vpop.f32.mrf.mxu0
        %v1036 = vadd.f32 0.0, %v1035
        %v1037 = vpop.f32.mrf.mxu0
        %1038 = vdwg.mxu0
        %v1039 = vsel %vm545, %v1036, -inf
        %1040 = vmax.xlane.f32.xlu0 %v1039
        %v1041 = vpop.xlane.xlu0 %1040
        %v1042 = vsub.f32 %v1036, %v1041
        %v1043 = vmul.f32 %v1042, 1.442695
        %v1044 = vpow.pop %v1043
        %v1045 = vsel %vm545, %v1044, 0.0
        %1046 = vadd.xlane.f32.xlu0 %v1045
        %v1047 = vpop.xlane.xlu0 %1046
        %1048 = vrot.lane.b32.xlu0 %v467, 104
        %v1049 = vpop.permute.xlu0 %1048
        %v1052 = vsel %vm468, %v1044, 0
        %1054 = vmatprep.subr.mxu0 0.0
        %1055 = vmatpush1.msra.mxu0 0.0
        %1056 = vmatprep.subr.mxu0 0.0
        %1057 = vmatpush1.msra.mxu0 0.0
        %1058 = vmatprep.subr.mxu0 0.0
        %1059 = vmatpush1.msra.mxu0 0.0
        %1060 = vmatprep.subr.mxu0 0.0
        %1061 = vmatpush1.msra.mxu0 0.0
        %1062 = vmatprep.subr.mxu0 0.0
        %1063 = vmatpush1.msra.mxu0 0.0
        %1064 = vmatprep.subr.mxu0 0.0
        %1065 = vmatpush1.msra.mxu0 0.0
        %1066 = vmatprep.subr.mxu0 0.0
        %1067 = vmatpush1.msra.mxu0 0.0
        %1068 = vmatprep.subr.mxu0 0.0
        %1069 = vmatpush1.msra.mxu0 0.0
        %1070 = vmatprep.subr.mxu0 0.0
        %1071 = vmatpush1.msra.mxu0 0.0
        %1072 = vmatprep.subr.mxu0 0.0
        %1073 = vmatpush1.msra.mxu0 0.0
        %1074 = vmatprep.subr.mxu0 0.0
        %1075 = vmatpush1.msra.mxu0 0.0
        %1076 = vmatprep.subr.mxu0 0.0
        %1077 = vmatpush1.msra.mxu0 0.0
        %1078 = vmatprep.subr.mxu0 0.0
        %1079 = vmatpush1.msra.mxu0 0.0
        %1080 = vmatprep.subr.mxu0 0.0
        %1081 = vmatpush1.msra.mxu0 0.0
        %1082 = vmatprep.subr.mxu0 0.0
        %1083 = vmatpush1.msra.mxu0 0.0
        %1084 = vmatprep.subr.mxu0 0.0
        %1085 = vmatpush1.msra.mxu0 %v1049
        %1086 = vmatprep.subr.mxu0 0.0
        %1087 = vmatpush2.msra.mxu0 0.0
        %1088 = vmatprep.subr.mxu0 0.0
        %1089 = vmatpush2.msra.mxu0 0.0
        %1090 = vmatprep.subr.mxu0 0.0
        %1091 = vmatpush2.msra.mxu0 0.0
        %1092 = vmatprep.subr.mxu0 0.0
        %1093 = vmatpush2.msra.mxu0 0.0
        %1094 = vmatprep.subr.mxu0 0.0
        %1095 = vmatpush2.msra.mxu0 0.0
        %1096 = vmatprep.subr.mxu0 0.0
        %1097 = vmatpush2.msra.mxu0 0.0
        %1098 = vmatprep.subr.mxu0 0.0
        %1099 = vmatpush2.msra.mxu0 0.0
        %1100 = vmatprep.subr.mxu0 0.0
        %1101 = vmatpush2.msra.mxu0 0.0
        %1102 = vmatprep.subr.mxu0 0.0
        %1103 = vmatpush2.msra.mxu0 0.0
        %1104 = vmatprep.subr.mxu0 0.0
        %1105 = vmatpush2.msra.mxu0 0.0
        %1106 = vmatprep.subr.mxu0 0.0
        %1107 = vmatpush2.msra.mxu0 0.0
        %1108 = vmatprep.subr.mxu0 0.0
        %1109 = vmatpush2.msra.mxu0 0.0
        %1110 = vmatprep.subr.mxu0 0.0
        %1111 = vmatpush2.msra.mxu0 0.0
        %1112 = vmatprep.subr.mxu0 0.0
        %1113 = vmatpush2.msra.mxu0 0.0
        %1114 = vmatprep.subr.mxu0 0.0
        %1115 = vmatpush2.msra.mxu0 0.0
        %1116 = vmatprep.subr.mxu0 0.0
        %1117 = vmatpush2.msra.mxu0 0.0
        %1118 = vmatprep.mubr.f32.mxu0 0.0
        %1119 = vmatmul.mubr.f32.gmra.mxu0 %v1052
        %v1120 = vpop.f32.mrf.mxu0
        %v1121 = vadd.f32 0.0, %v1120
        %v1122 = vpop.f32.mrf.mxu0
        %1123 = vdwg.mxu0
        %v1124 = vrcp.pop %v1047
        %v1125 = vmul.f32 %v1121, %v1124
        %1127 = vrot.lane.b32.xlu0 %v795, 8
        %v1128 = vpop.permute.xlu0 %1127
        %1131 = vrot.lane.b32.xlu0 %v960, 16
        %v1132 = vpop.permute.xlu0 %1131
        %1135 = vrot.lane.b32.xlu0 %v1125, 24
        %v1136 = vpop.permute.xlu0 %1135
        %v1138 = vsel %vm468, %v629, %v1128
        %vm1139 = vcmask 130048
        %v1140 = vsel %vm1139, %v1138, %v1132
        %vm1141 = vcmask 195584
        %v1142 = vsel %vm1141, %v1140, %v1136
        %v1144 = vlaneseq
        %v1145 = vshrl.u32 %v1144, 7
        %v1146 = vsub.s32 0, %v1145
        %v1147 = vrot.slane %v235, %v1146
        %v1150 = vsel %vm247, %v1142, 0
        %1152 = vmatprep.subr.mxu0 0.0
        %1153 = vmatpush1.msra.mxu0 0.0
        %1154 = vmatprep.subr.mxu0 0.0
        %1155 = vmatpush1.msra.mxu0 0.0
        %1156 = vmatprep.subr.mxu0 0.0
        %1157 = vmatpush1.msra.mxu0 0.0
        %1158 = vmatprep.subr.mxu0 0.0
        %1159 = vmatpush1.msra.mxu0 0.0
        %1160 = vmatprep.subr.mxu0 0.0
        %1161 = vmatpush1.msra.mxu0 0.0
        %1162 = vmatprep.subr.mxu0 0.0
        %1163 = vmatpush1.msra.mxu0 0.0
        %1164 = vmatprep.subr.mxu0 0.0
        %1165 = vmatpush1.msra.mxu0 0.0
        %1166 = vmatprep.subr.mxu0 0.0
        %1167 = vmatpush1.msra.mxu0 0.0
        %1168 = vmatprep.subr.mxu0 0.0
        %1169 = vmatpush1.msra.mxu0 0.0
        %1170 = vmatprep.subr.mxu0 0.0
        %1171 = vmatpush1.msra.mxu0 0.0
        %1172 = vmatprep.subr.mxu0 0.0
        %1173 = vmatpush1.msra.mxu0 0.0
        %1174 = vmatprep.subr.mxu0 0.0
        %1175 = vmatpush1.msra.mxu0 0.0
        %1176 = vmatprep.subr.mxu0 0.0
        %1177 = vmatpush1.msra.mxu0 %v234
        %1178 = vmatprep.subr.mxu0 0.0
        %1179 = vmatpush1.msra.mxu0 %v233
        %1180 = vmatprep.subr.mxu0 0.0
        %1181 = vmatpush1.msra.mxu0 %v232
        %1182 = vmatprep.subr.mxu0 0.0
        %1183 = vmatpush1.msra.mxu0 %v231
        %1184 = vmatprep.subr.mxu0 0.0
        %1185 = vmatpush2.msra.mxu0 0.0
        %1186 = vmatprep.subr.mxu0 0.0
        %1187 = vmatpush2.msra.mxu0 0.0
        %1188 = vmatprep.subr.mxu0 0.0
        %1189 = vmatpush2.msra.mxu0 0.0
        %1190 = vmatprep.subr.mxu0 0.0
        %1191 = vmatpush2.msra.mxu0 0.0
        %1192 = vmatprep.subr.mxu0 0.0
        %1193 = vmatpush2.msra.mxu0 0.0
        %1194 = vmatprep.subr.mxu0 0.0
        %1195 = vmatpush2.msra.mxu0 0.0
        %1196 = vmatprep.subr.mxu0 0.0
        %1197 = vmatpush2.msra.mxu0 0.0
        %1198 = vmatprep.subr.mxu0 0.0
        %1199 = vmatpush2.msra.mxu0 0.0
        %1200 = vmatprep.subr.mxu0 0.0
        %1201 = vmatpush2.msra.mxu0 0.0
        %1202 = vmatprep.subr.mxu0 0.0
        %1203 = vmatpush2.msra.mxu0 0.0
        %1204 = vmatprep.subr.mxu0 0.0
        %1205 = vmatpush2.msra.mxu0 0.0
        %1206 = vmatprep.subr.mxu0 0.0
        %1207 = vmatpush2.msra.mxu0 0.0
        %1208 = vmatprep.subr.mxu0 0.0
        %1209 = vmatpush2.msra.mxu0 0.0
        %1210 = vmatprep.subr.mxu0 0.0
        %1211 = vmatpush2.msra.mxu0 0.0
        %1212 = vmatprep.subr.mxu0 0.0
        %1213 = vmatpush2.msra.mxu0 0.0
        %1214 = vmatprep.subr.mxu0 0.0
        %1215 = vmatpush2.msra.mxu0 0.0
        %1216 = vmatprep.mubr.f32.mxu0 0.0
        %1217 = vmatmul.mubr.f32.gmra.mxu0 %v1150
        %v1218 = vpop.f32.mrf.mxu0
        %v1219 = vadd.f32 %v1147, %v1218
        %v1220 = vpop.f32.mrf.mxu0
        %1221 = vdwg.mxu0
        %s1222 = scalar_lea.vmem [#allocation2], 1
        %v1223 = vld [vmem:[%s1222] ss:$8 sm:$0xf]
        %s1224 = scalar_lea.vmem [#allocation3], 1
        %v1225 = vld [vmem:[%s1224] ss:$8 sm:$0xf]
        %v1226 = vld [vmem:[%s1224] ss:$8 sm:$0xf0]
        %v1227 = vor.u32 %v1225, %v1226
        %s1228 = scalar_lea.vmem [#allocation4], 1
        %v1229 = vld [vmem:[%s1228] ss:$8 sm:$0xf]
        %v1230 = vld [vmem:[%s1228] ss:$8 sm:$0xf0]
        %v1231 = vor.u32 %v1229, %v1230
        %v1233 = vsel %vm468, %v1223, 0
        %v1236 = vsel %vm468, %v1227, 0
        %1238 = vmatprep.subr.mxu0 0.0
        %1239 = vmatpush1.xpose.msra.mxu0 0.0
        %1240 = vmatprep.subr.mxu0 0.0
        %1241 = vmatpush1.xpose.msra.mxu0 0.0
        %1242 = vmatprep.subr.mxu0 0.0
        %1243 = vmatpush1.xpose.msra.mxu0 0.0
        %1244 = vmatprep.subr.mxu0 0.0
        %1245 = vmatpush1.xpose.msra.mxu0 0.0
        %1246 = vmatprep.subr.mxu0 0.0
        %1247 = vmatpush1.xpose.msra.mxu0 0.0
        %1248 = vmatprep.subr.mxu0 0.0
        %1249 = vmatpush1.xpose.msra.mxu0 0.0
        %1250 = vmatprep.subr.mxu0 0.0
        %1251 = vmatpush1.xpose.msra.mxu0 0.0
        %1252 = vmatprep.subr.mxu0 0.0
        %1253 = vmatpush1.xpose.msra.mxu0 0.0
        %1254 = vmatprep.subr.mxu0 0.0
        %1255 = vmatpush1.xpose.msra.mxu0 0.0
        %1256 = vmatprep.subr.mxu0 0.0
        %1257 = vmatpush1.xpose.msra.mxu0 0.0
        %1258 = vmatprep.subr.mxu0 0.0
        %1259 = vmatpush1.xpose.msra.mxu0 0.0
        %1260 = vmatprep.subr.mxu0 0.0
        %1261 = vmatpush1.xpose.msra.mxu0 0.0
        %1262 = vmatprep.subr.mxu0 0.0
        %1263 = vmatpush1.xpose.msra.mxu0 0.0
        %1264 = vmatprep.subr.mxu0 0.0
        %1265 = vmatpush1.xpose.msra.mxu0 0.0
        %1266 = vmatprep.subr.mxu0 0.0
        %1267 = vmatpush1.xpose.msra.mxu0 0.0
        %1268 = vmatprep.subr.mxu0 0.0
        %1269 = vmatpush1.xpose.msra.mxu0 %v1236
        %1270 = vmatprep.subr.mxu0 0.0
        %1271 = vmatpush2.xpose.msra.mxu0 0.0
        %1272 = vmatprep.subr.mxu0 0.0
        %1273 = vmatpush2.xpose.msra.mxu0 0.0
        %1274 = vmatprep.subr.mxu0 0.0
        %1275 = vmatpush2.xpose.msra.mxu0 0.0
        %1276 = vmatprep.subr.mxu0 0.0
        %1277 = vmatpush2.xpose.msra.mxu0 0.0
        %1278 = vmatprep.subr.mxu0 0.0
        %1279 = vmatpush2.xpose.msra.mxu0 0.0
        %1280 = vmatprep.subr.mxu0 0.0
        %1281 = vmatpush2.xpose.msra.mxu0 0.0
        %1282 = vmatprep.subr.mxu0 0.0
        %1283 = vmatpush2.xpose.msra.mxu0 0.0
        %1284 = vmatprep.subr.mxu0 0.0
        %1285 = vmatpush2.xpose.msra.mxu0 0.0
        %1286 = vmatprep.subr.mxu0 0.0
        %1287 = vmatpush2.xpose.msra.mxu0 0.0
        %1288 = vmatprep.subr.mxu0 0.0
        %1289 = vmatpush2.xpose.msra.mxu0 0.0
        %1290 = vmatprep.subr.mxu0 0.0
        %1291 = vmatpush2.xpose.msra.mxu0 0.0
        %1292 = vmatprep.subr.mxu0 0.0
        %1293 = vmatpush2.xpose.msra.mxu0 0.0
        %1294 = vmatprep.subr.mxu0 0.0
        %1295 = vmatpush2.xpose.msra.mxu0 0.0
        %1296 = vmatprep.subr.mxu0 0.0
        %1297 = vmatpush2.xpose.msra.mxu0 0.0
        %1298 = vmatprep.subr.mxu0 0.0
        %1299 = vmatpush2.xpose.msra.mxu0 0.0
        %1300 = vmatprep.subr.mxu0 0.0
        %1301 = vmatpush2.xpose.msra.mxu0 0.0
        %1302 = vmatprep.mubr.f32.mxu0 0.0
        %1303 = vmatmul.mubr.f32.gmra.mxu0 %v1233
        %v1304 = vpop.f32.mrf.mxu0
        %v1305 = vadd.f32 0.0, %v1304
        %v1306 = vpop.f32.mrf.mxu0
        %1307 = vdwg.mxu0
        %v1308 = vsel %vm545, %v1305, -inf
        %1309 = vmax.xlane.f32.xlu0 %v1308
        %v1310 = vpop.xlane.xlu0 %1309
        %v1311 = vsub.f32 %v1305, %v1310
        %v1312 = vmul.f32 %v1311, 1.442695
        %v1313 = vpow.pop %v1312
        %v1314 = vsel %vm545, %v1313, 0.0
        %1315 = vadd.xlane.f32.xlu0 %v1314
        %v1316 = vpop.xlane.xlu0 %1315
        %v1318 = vsel %vm468, %v1313, 0
        %1320 = vmatprep.subr.mxu0 0.0
        %1321 = vmatpush1.msra.mxu0 0.0
        %1322 = vmatprep.subr.mxu0 0.0
        %1323 = vmatpush1.msra.mxu0 0.0
        %1324 = vmatprep.subr.mxu0 0.0
        %1325 = vmatpush1.msra.mxu0 0.0
        %1326 = vmatprep.subr.mxu0 0.0
        %1327 = vmatpush1.msra.mxu0 0.0
        %1328 = vmatprep.subr.mxu0 0.0
        %1329 = vmatpush1.msra.mxu0 0.0
        %1330 = vmatprep.subr.mxu0 0.0
        %1331 = vmatpush1.msra.mxu0 0.0
        %1332 = vmatprep.subr.mxu0 0.0
        %1333 = vmatpush1.msra.mxu0 0.0
        %1334 = vmatprep.subr.mxu0 0.0
        %1335 = vmatpush1.msra.mxu0 0.0
        %1336 = vmatprep.subr.mxu0 0.0
        %1337 = vmatpush1.msra.mxu0 0.0
        %1338 = vmatprep.subr.mxu0 0.0
        %1339 = vmatpush1.msra.mxu0 0.0
        %1340 = vmatprep.subr.mxu0 0.0
        %1341 = vmatpush1.msra.mxu0 0.0
        %1342 = vmatprep.subr.mxu0 0.0
        %1343 = vmatpush1.msra.mxu0 0.0
        %1344 = vmatprep.subr.mxu0 0.0
        %1345 = vmatpush1.msra.mxu0 0.0
        %1346 = vmatprep.subr.mxu0 0.0
        %1347 = vmatpush1.msra.mxu0 0.0
        %1348 = vmatprep.subr.mxu0 0.0
        %1349 = vmatpush1.msra.mxu0 0.0
        %1350 = vmatprep.subr.mxu0 0.0
        %1351 = vmatpush1.msra.mxu0 %v1231
        %1352 = vmatprep.subr.mxu0 0.0
        %1353 = vmatpush2.msra.mxu0 0.0
        %1354 = vmatprep.subr.mxu0 0.0
        %1355 = vmatpush2.msra.mxu0 0.0
        %1356 = vmatprep.subr.mxu0 0.0
        %1357 = vmatpush2.msra.mxu0 0.0
        %1358 = vmatprep.subr.mxu0 0.0
        %1359 = vmatpush2.msra.mxu0 0.0
        %1360 = vmatprep.subr.mxu0 0.0
        %1361 = vmatpush2.msra.mxu0 0.0
        %1362 = vmatprep.subr.mxu0 0.0
        %1363 = vmatpush2.msra.mxu0 0.0
        %1364 = vmatprep.subr.mxu0 0.0
        %1365 = vmatpush2.msra.mxu0 0.0
        %1366 = vmatprep.subr.mxu0 0.0
        %1367 = vmatpush2.msra.mxu0 0.0
        %1368 = vmatprep.subr.mxu0 0.0
        %1369 = vmatpush2.msra.mxu0 0.0
        %1370 = vmatprep.subr.mxu0 0.0
        %1371 = vmatpush2.msra.mxu0 0.0
        %1372 = vmatprep.subr.mxu0 0.0
        %1373 = vmatpush2.msra.mxu0 0.0
        %1374 = vmatprep.subr.mxu0 0.0
        %1375 = vmatpush2.msra.mxu0 0.0
        %1376 = vmatprep.subr.mxu0 0.0
        %1377 = vmatpush2.msra.mxu0 0.0
        %1378 = vmatprep.subr.mxu0 0.0
        %1379 = vmatpush2.msra.mxu0 0.0
        %1380 = vmatprep.subr.mxu0 0.0
        %1381 = vmatpush2.msra.mxu0 0.0
        %1382 = vmatprep.subr.mxu0 0.0
        %1383 = vmatpush2.msra.mxu0 0.0
        %1384 = vmatprep.mubr.f32.mxu0 0.0
        %1385 = vmatmul.mubr.f32.gmra.mxu0 %v1318
        %v1386 = vpop.f32.mrf.mxu0
        %v1387 = vadd.f32 0.0, %v1386
        %v1388 = vpop.f32.mrf.mxu0
        %1389 = vdwg.mxu0
        %v1390 = vrcp.pop %v1316
        %v1391 = vmul.f32 %v1387, %v1390
        %1392 = vrot.lane.b32.xlu0 %v1223, 120
        %v1393 = vpop.permute.xlu0 %1392
        %1394 = vrot.lane.b32.xlu0 %v1227, 120
        %v1395 = vpop.permute.xlu0 %1394
        %v1396 = vsel %vm468, %v1393, 0
        %v1398 = vsel %vm468, %v1395, 0
        %1400 = vmatprep.subr.mxu0 0.0
        %1401 = vmatpush1.xpose.msra.mxu0 0.0
        %1402 = vmatprep.subr.mxu0 0.0
        %1403 = vmatpush1.xpose.msra.mxu0 0.0
        %1404 = vmatprep.subr.mxu0 0.0
        %1405 = vmatpush1.xpose.msra.mxu0 0.0
        %1406 = vmatprep.subr.mxu0 0.0
        %1407 = vmatpush1.xpose.msra.mxu0 0.0
        %1408 = vmatprep.subr.mxu0 0.0
        %1409 = vmatpush1.xpose.msra.mxu0 0.0
        %1410 = vmatprep.subr.mxu0 0.0
        %1411 = vmatpush1.xpose.msra.mxu0 0.0
        %1412 = vmatprep.subr.mxu0 0.0
        %1413 = vmatpush1.xpose.msra.mxu0 0.0
        %1414 = vmatprep.subr.mxu0 0.0
        %1415 = vmatpush1.xpose.msra.mxu0 0.0
        %1416 = vmatprep.subr.mxu0 0.0
        %1417 = vmatpush1.xpose.msra.mxu0 0.0
        %1418 = vmatprep.subr.mxu0 0.0
        %1419 = vmatpush1.xpose.msra.mxu0 0.0
        %1420 = vmatprep.subr.mxu0 0.0
        %1421 = vmatpush1.xpose.msra.mxu0 0.0
        %1422 = vmatprep.subr.mxu0 0.0
        %1423 = vmatpush1.xpose.msra.mxu0 0.0
        %1424 = vmatprep.subr.mxu0 0.0
        %1425 = vmatpush1.xpose.msra.mxu0 0.0
        %1426 = vmatprep.subr.mxu0 0.0
        %1427 = vmatpush1.xpose.msra.mxu0 0.0
        %1428 = vmatprep.subr.mxu0 0.0
        %1429 = vmatpush1.xpose.msra.mxu0 0.0
        %1430 = vmatprep.subr.mxu0 0.0
        %1431 = vmatpush1.xpose.msra.mxu0 %v1398
        %1432 = vmatprep.subr.mxu0 0.0
        %1433 = vmatpush2.xpose.msra.mxu0 0.0
        %1434 = vmatprep.subr.mxu0 0.0
        %1435 = vmatpush2.xpose.msra.mxu0 0.0
        %1436 = vmatprep.subr.mxu0 0.0
        %1437 = vmatpush2.xpose.msra.mxu0 0.0
        %1438 = vmatprep.subr.mxu0 0.0
        %1439 = vmatpush2.xpose.msra.mxu0 0.0
        %1440 = vmatprep.subr.mxu0 0.0
        %1441 = vmatpush2.xpose.msra.mxu0 0.0
        %1442 = vmatprep.subr.mxu0 0.0
        %1443 = vmatpush2.xpose.msra.mxu0 0.0
        %1444 = vmatprep.subr.mxu0 0.0
        %1445 = vmatpush2.xpose.msra.mxu0 0.0
        %1446 = vmatprep.subr.mxu0 0.0
        %1447 = vmatpush2.xpose.msra.mxu0 0.0
        %1448 = vmatprep.subr.mxu0 0.0
        %1449 = vmatpush2.xpose.msra.mxu0 0.0
        %1450 = vmatprep.subr.mxu0 0.0
        %1451 = vmatpush2.xpose.msra.mxu0 0.0
        %1452 = vmatprep.subr.mxu0 0.0
        %1453 = vmatpush2.xpose.msra.mxu0 0.0
        %1454 = vmatprep.subr.mxu0 0.0
        %1455 = vmatpush2.xpose.msra.mxu0 0.0
        %1456 = vmatprep.subr.mxu0 0.0
        %1457 = vmatpush2.xpose.msra.mxu0 0.0
        %1458 = vmatprep.subr.mxu0 0.0
        %1459 = vmatpush2.xpose.msra.mxu0 0.0
        %1460 = vmatprep.subr.mxu0 0.0
        %1461 = vmatpush2.xpose.msra.mxu0 0.0
        %1462 = vmatprep.subr.mxu0 0.0
        %1463 = vmatpush2.xpose.msra.mxu0 0.0
        %1464 = vmatprep.mubr.f32.mxu0 0.0
        %1465 = vmatmul.mubr.f32.gmra.mxu0 %v1396
        %v1466 = vpop.f32.mrf.mxu0
        %v1467 = vadd.f32 0.0, %v1466
        %v1468 = vpop.f32.mrf.mxu0
        %1469 = vdwg.mxu0
        %v1470 = vsel %vm545, %v1467, -inf
        %1471 = vmax.xlane.f32.xlu0 %v1470
        %v1472 = vpop.xlane.xlu0 %1471
        %v1473 = vsub.f32 %v1467, %v1472
        %v1474 = vmul.f32 %v1473, 1.442695
        %v1475 = vpow.pop %v1474
        %v1476 = vsel %vm545, %v1475, 0.0
        %1477 = vadd.xlane.f32.xlu0 %v1476
        %v1478 = vpop.xlane.xlu0 %1477
        %1480 = vrot.lane.b32.xlu0 %v1231, 120
        %v1481 = vpop.permute.xlu0 %1480
        %v1484 = vsel %vm468, %v1475, 0
        %1486 = vmatprep.subr.mxu0 0.0
        %1487 = vmatpush1.msra.mxu0 0.0
        %1488 = vmatprep.subr.mxu0 0.0
        %1489 = vmatpush1.msra.mxu0 0.0
        %1490 = vmatprep.subr.mxu0 0.0
        %1491 = vmatpush1.msra.mxu0 0.0
        %1492 = vmatprep.subr.mxu0 0.0
        %1493 = vmatpush1.msra.mxu0 0.0
        %1494 = vmatprep.subr.mxu0 0.0
        %1495 = vmatpush1.msra.mxu0 0.0
        %1496 = vmatprep.subr.mxu0 0.0
        %1497 = vmatpush1.msra.mxu0 0.0
        %1498 = vmatprep.subr.mxu0 0.0
        %1499 = vmatpush1.msra.mxu0 0.0
        %1500 = vmatprep.subr.mxu0 0.0
        %1501 = vmatpush1.msra.mxu0 0.0
        %1502 = vmatprep.subr.mxu0 0.0
        %1503 = vmatpush1.msra.mxu0 0.0
        %1504 = vmatprep.subr.mxu0 0.0
        %1505 = vmatpush1.msra.mxu0 0.0
        %1506 = vmatprep.subr.mxu0 0.0
        %1507 = vmatpush1.msra.mxu0 0.0
        %1508 = vmatprep.subr.mxu0 0.0
        %1509 = vmatpush1.msra.mxu0 0.0
        %1510 = vmatprep.subr.mxu0 0.0
        %1511 = vmatpush1.msra.mxu0 0.0
        %1512 = vmatprep.subr.mxu0 0.0
        %1513 = vmatpush1.msra.mxu0 0.0
        %1514 = vmatprep.subr.mxu0 0.0
        %1515 = vmatpush1.msra.mxu0 0.0
        %1516 = vmatprep.subr.mxu0 0.0
        %1517 = vmatpush1.msra.mxu0 %v1481
        %1518 = vmatprep.subr.mxu0 0.0
        %1519 = vmatpush2.msra.mxu0 0.0
        %1520 = vmatprep.subr.mxu0 0.0
        %1521 = vmatpush2.msra.mxu0 0.0
        %1522 = vmatprep.subr.mxu0 0.0
        %1523 = vmatpush2.msra.mxu0 0.0
        %1524 = vmatprep.subr.mxu0 0.0
        %1525 = vmatpush2.msra.mxu0 0.0
        %1526 = vmatprep.subr.mxu0 0.0
        %1527 = vmatpush2.msra.mxu0 0.0
        %1528 = vmatprep.subr.mxu0 0.0
        %1529 = vmatpush2.msra.mxu0 0.0
        %1530 = vmatprep.subr.mxu0 0.0
        %1531 = vmatpush2.msra.mxu0 0.0
        %1532 = vmatprep.subr.mxu0 0.0
        %1533 = vmatpush2.msra.mxu0 0.0
        %1534 = vmatprep.subr.mxu0 0.0
        %1535 = vmatpush2.msra.mxu0 0.0
        %1536 = vmatprep.subr.mxu0 0.0
        %1537 = vmatpush2.msra.mxu0 0.0
        %1538 = vmatprep.subr.mxu0 0.0
        %1539 = vmatpush2.msra.mxu0 0.0
        %1540 = vmatprep.subr.mxu0 0.0
        %1541 = vmatpush2.msra.mxu0 0.0
        %1542 = vmatprep.subr.mxu0 0.0
        %1543 = vmatpush2.msra.mxu0 0.0
        %1544 = vmatprep.subr.mxu0 0.0
        %1545 = vmatpush2.msra.mxu0 0.0
        %1546 = vmatprep.subr.mxu0 0.0
        %1547 = vmatpush2.msra.mxu0 0.0
        %1548 = vmatprep.subr.mxu0 0.0
        %1549 = vmatpush2.msra.mxu0 0.0
        %1550 = vmatprep.mubr.f32.mxu0 0.0
        %1551 = vmatmul.mubr.f32.gmra.mxu0 %v1484
        %v1552 = vpop.f32.mrf.mxu0
        %v1553 = vadd.f32 0.0, %v1552
        %v1554 = vpop.f32.mrf.mxu0
        %1555 = vdwg.mxu0
        %v1556 = vrcp.pop %v1478
        %v1557 = vmul.f32 %v1553, %v1556
        %1558 = vrot.lane.b32.xlu0 %v1223, 112
        %v1559 = vpop.permute.xlu0 %1558
        %1560 = vrot.lane.b32.xlu0 %v1227, 112
        %v1561 = vpop.permute.xlu0 %1560
        %v1562 = vsel %vm468, %v1559, 0
        %v1564 = vsel %vm468, %v1561, 0
        %1566 = vmatprep.subr.mxu0 0.0
        %1567 = vmatpush1.xpose.msra.mxu0 0.0
        %1568 = vmatprep.subr.mxu0 0.0
        %1569 = vmatpush1.xpose.msra.mxu0 0.0
        %1570 = vmatprep.subr.mxu0 0.0
        %1571 = vmatpush1.xpose.msra.mxu0 0.0
        %1572 = vmatprep.subr.mxu0 0.0
        %1573 = vmatpush1.xpose.msra.mxu0 0.0
        %1574 = vmatprep.subr.mxu0 0.0
        %1575 = vmatpush1.xpose.msra.mxu0 0.0
        %1576 = vmatprep.subr.mxu0 0.0
        %1577 = vmatpush1.xpose.msra.mxu0 0.0
        %1578 = vmatprep.subr.mxu0 0.0
        %1579 = vmatpush1.xpose.msra.mxu0 0.0
        %1580 = vmatprep.subr.mxu0 0.0
        %1581 = vmatpush1.xpose.msra.mxu0 0.0
        %1582 = vmatprep.subr.mxu0 0.0
        %1583 = vmatpush1.xpose.msra.mxu0 0.0
        %1584 = vmatprep.subr.mxu0 0.0
        %1585 = vmatpush1.xpose.msra.mxu0 0.0
        %1586 = vmatprep.subr.mxu0 0.0
        %1587 = vmatpush1.xpose.msra.mxu0 0.0
        %1588 = vmatprep.subr.mxu0 0.0
        %1589 = vmatpush1.xpose.msra.mxu0 0.0
        %1590 = vmatprep.subr.mxu0 0.0
        %1591 = vmatpush1.xpose.msra.mxu0 0.0
        %1592 = vmatprep.subr.mxu0 0.0
        %1593 = vmatpush1.xpose.msra.mxu0 0.0
        %1594 = vmatprep.subr.mxu0 0.0
        %1595 = vmatpush1.xpose.msra.mxu0 0.0
        %1596 = vmatprep.subr.mxu0 0.0
        %1597 = vmatpush1.xpose.msra.mxu0 %v1564
        %1598 = vmatprep.subr.mxu0 0.0
        %1599 = vmatpush2.xpose.msra.mxu0 0.0
        %1600 = vmatprep.subr.mxu0 0.0
        %1601 = vmatpush2.xpose.msra.mxu0 0.0
        %1602 = vmatprep.subr.mxu0 0.0
        %1603 = vmatpush2.xpose.msra.mxu0 0.0
        %1604 = vmatprep.subr.mxu0 0.0
        %1605 = vmatpush2.xpose.msra.mxu0 0.0
        %1606 = vmatprep.subr.mxu0 0.0
        %1607 = vmatpush2.xpose.msra.mxu0 0.0
        %1608 = vmatprep.subr.mxu0 0.0
        %1609 = vmatpush2.xpose.msra.mxu0 0.0
        %1610 = vmatprep.subr.mxu0 0.0
        %1611 = vmatpush2.xpose.msra.mxu0 0.0
        %1612 = vmatprep.subr.mxu0 0.0
        %1613 = vmatpush2.xpose.msra.mxu0 0.0
        %1614 = vmatprep.subr.mxu0 0.0
        %1615 = vmatpush2.xpose.msra.mxu0 0.0
        %1616 = vmatprep.subr.mxu0 0.0
        %1617 = vmatpush2.xpose.msra.mxu0 0.0
        %1618 = vmatprep.subr.mxu0 0.0
        %1619 = vmatpush2.xpose.msra.mxu0 0.0
        %1620 = vmatprep.subr.mxu0 0.0
        %1621 = vmatpush2.xpose.msra.mxu0 0.0
        %1622 = vmatprep.subr.mxu0 0.0
        %1623 = vmatpush2.xpose.msra.mxu0 0.0
        %1624 = vmatprep.subr.mxu0 0.0
        %1625 = vmatpush2.xpose.msra.mxu0 0.0
        %1626 = vmatprep.subr.mxu0 0.0
        %1627 = vmatpush2.xpose.msra.mxu0 0.0
        %1628 = vmatprep.subr.mxu0 0.0
        %1629 = vmatpush2.xpose.msra.mxu0 0.0
        %1630 = vmatprep.mubr.f32.mxu0 0.0
        %1631 = vmatmul.mubr.f32.gmra.mxu0 %v1562
        %v1632 = vpop.f32.mrf.mxu0
        %v1633 = vadd.f32 0.0, %v1632
        %v1634 = vpop.f32.mrf.mxu0
        %1635 = vdwg.mxu0
        %v1636 = vsel %vm545, %v1633, -inf
        %1637 = vmax.xlane.f32.xlu0 %v1636
        %v1638 = vpop.xlane.xlu0 %1637
        %v1639 = vsub.f32 %v1633, %v1638
        %v1640 = vmul.f32 %v1639, 1.442695
        %v1641 = vpow.pop %v1640
        %v1642 = vsel %vm545, %v1641, 0.0
        %1643 = vadd.xlane.f32.xlu0 %v1642
        %v1644 = vpop.xlane.xlu0 %1643
        %1645 = vrot.lane.b32.xlu0 %v1231, 112
        %v1646 = vpop.permute.xlu0 %1645
        %v1649 = vsel %vm468, %v1641, 0
        %1651 = vmatprep.subr.mxu0 0.0
        %1652 = vmatpush1.msra.mxu0 0.0
        %1653 = vmatprep.subr.mxu0 0.0
        %1654 = vmatpush1.msra.mxu0 0.0
        %1655 = vmatprep.subr.mxu0 0.0
        %1656 = vmatpush1.msra.mxu0 0.0
        %1657 = vmatprep.subr.mxu0 0.0
        %1658 = vmatpush1.msra.mxu0 0.0
        %1659 = vmatprep.subr.mxu0 0.0
        %1660 = vmatpush1.msra.mxu0 0.0
        %1661 = vmatprep.subr.mxu0 0.0
        %1662 = vmatpush1.msra.mxu0 0.0
        %1663 = vmatprep.subr.mxu0 0.0
        %1664 = vmatpush1.msra.mxu0 0.0
        %1665 = vmatprep.subr.mxu0 0.0
        %1666 = vmatpush1.msra.mxu0 0.0
        %1667 = vmatprep.subr.mxu0 0.0
        %1668 = vmatpush1.msra.mxu0 0.0
        %1669 = vmatprep.subr.mxu0 0.0
        %1670 = vmatpush1.msra.mxu0 0.0
        %1671 = vmatprep.subr.mxu0 0.0
        %1672 = vmatpush1.msra.mxu0 0.0
        %1673 = vmatprep.subr.mxu0 0.0
        %1674 = vmatpush1.msra.mxu0 0.0
        %1675 = vmatprep.subr.mxu0 0.0
        %1676 = vmatpush1.msra.mxu0 0.0
        %1677 = vmatprep.subr.mxu0 0.0
        %1678 = vmatpush1.msra.mxu0 0.0
        %1679 = vmatprep.subr.mxu0 0.0
        %1680 = vmatpush1.msra.mxu0 0.0
        %1681 = vmatprep.subr.mxu0 0.0
        %1682 = vmatpush1.msra.mxu0 %v1646
        %1683 = vmatprep.subr.mxu0 0.0
        %1684 = vmatpush2.msra.mxu0 0.0
        %1685 = vmatprep.subr.mxu0 0.0
        %1686 = vmatpush2.msra.mxu0 0.0
        %1687 = vmatprep.subr.mxu0 0.0
        %1688 = vmatpush2.msra.mxu0 0.0
        %1689 = vmatprep.subr.mxu0 0.0
        %1690 = vmatpush2.msra.mxu0 0.0
        %1691 = vmatprep.subr.mxu0 0.0
        %1692 = vmatpush2.msra.mxu0 0.0
        %1693 = vmatprep.subr.mxu0 0.0
        %1694 = vmatpush2.msra.mxu0 0.0
        %1695 = vmatprep.subr.mxu0 0.0
        %1696 = vmatpush2.msra.mxu0 0.0
        %1697 = vmatprep.subr.mxu0 0.0
        %1698 = vmatpush2.msra.mxu0 0.0
        %1699 = vmatprep.subr.mxu0 0.0
        %1700 = vmatpush2.msra.mxu0 0.0
        %1701 = vmatprep.subr.mxu0 0.0
        %1702 = vmatpush2.msra.mxu0 0.0
        %1703 = vmatprep.subr.mxu0 0.0
        %1704 = vmatpush2.msra.mxu0 0.0
        %1705 = vmatprep.subr.mxu0 0.0
        %1706 = vmatpush2.msra.mxu0 0.0
        %1707 = vmatprep.subr.mxu0 0.0
        %1708 = vmatpush2.msra.mxu0 0.0
        %1709 = vmatprep.subr.mxu0 0.0
        %1710 = vmatpush2.msra.mxu0 0.0
        %1711 = vmatprep.subr.mxu0 0.0
        %1712 = vmatpush2.msra.mxu0 0.0
        %1713 = vmatprep.subr.mxu0 0.0
        %1714 = vmatpush2.msra.mxu0 0.0
        %1715 = vmatprep.mubr.f32.mxu0 0.0
        %1716 = vmatmul.mubr.f32.gmra.mxu0 %v1649
        %v1717 = vpop.f32.mrf.mxu0
        %v1718 = vadd.f32 0.0, %v1717
        %v1719 = vpop.f32.mrf.mxu0
        %1720 = vdwg.mxu0
        %v1721 = vrcp.pop %v1644
        %v1722 = vmul.f32 %v1718, %v1721
        %1723 = vrot.lane.b32.xlu0 %v1223, 104
        %v1724 = vpop.permute.xlu0 %1723
        %1725 = vrot.lane.b32.xlu0 %v1227, 104
        %v1726 = vpop.permute.xlu0 %1725
        %v1727 = vsel %vm468, %v1724, 0
        %v1729 = vsel %vm468, %v1726, 0
        %1731 = vmatprep.subr.mxu0 0.0
        %1732 = vmatpush1.xpose.msra.mxu0 0.0
        %1733 = vmatprep.subr.mxu0 0.0
        %1734 = vmatpush1.xpose.msra.mxu0 0.0
        %1735 = vmatprep.subr.mxu0 0.0
        %1736 = vmatpush1.xpose.msra.mxu0 0.0
        %1737 = vmatprep.subr.mxu0 0.0
        %1738 = vmatpush1.xpose.msra.mxu0 0.0
        %1739 = vmatprep.subr.mxu0 0.0
        %1740 = vmatpush1.xpose.msra.mxu0 0.0
        %1741 = vmatprep.subr.mxu0 0.0
        %1742 = vmatpush1.xpose.msra.mxu0 0.0
        %1743 = vmatprep.subr.mxu0 0.0
        %1744 = vmatpush1.xpose.msra.mxu0 0.0
        %1745 = vmatprep.subr.mxu0 0.0
        %1746 = vmatpush1.xpose.msra.mxu0 0.0
        %1747 = vmatprep.subr.mxu0 0.0
        %1748 = vmatpush1.xpose.msra.mxu0 0.0
        %1749 = vmatprep.subr.mxu0 0.0
        %1750 = vmatpush1.xpose.msra.mxu0 0.0
        %1751 = vmatprep.subr.mxu0 0.0
        %1752 = vmatpush1.xpose.msra.mxu0 0.0
        %1753 = vmatprep.subr.mxu0 0.0
        %1754 = vmatpush1.xpose.msra.mxu0 0.0
        %1755 = vmatprep.subr.mxu0 0.0
        %1756 = vmatpush1.xpose.msra.mxu0 0.0
        %1757 = vmatprep.subr.mxu0 0.0
        %1758 = vmatpush1.xpose.msra.mxu0 0.0
        %1759 = vmatprep.subr.mxu0 0.0
        %1760 = vmatpush1.xpose.msra.mxu0 0.0
        %1761 = vmatprep.subr.mxu0 0.0
        %1762 = vmatpush1.xpose.msra.mxu0 %v1729
        %1763 = vmatprep.subr.mxu0 0.0
        %1764 = vmatpush2.xpose.msra.mxu0 0.0
        %1765 = vmatprep.subr.mxu0 0.0
        %1766 = vmatpush2.xpose.msra.mxu0 0.0
        %1767 = vmatprep.subr.mxu0 0.0
        %1768 = vmatpush2.xpose.msra.mxu0 0.0
        %1769 = vmatprep.subr.mxu0 0.0
        %1770 = vmatpush2.xpose.msra.mxu0 0.0
        %1771 = vmatprep.subr.mxu0 0.0
        %1772 = vmatpush2.xpose.msra.mxu0 0.0
        %1773 = vmatprep.subr.mxu0 0.0
        %1774 = vmatpush2.xpose.msra.mxu0 0.0
        %1775 = vmatprep.subr.mxu0 0.0
        %1776 = vmatpush2.xpose.msra.mxu0 0.0
        %1777 = vmatprep.subr.mxu0 0.0
        %1778 = vmatpush2.xpose.msra.mxu0 0.0
        %1779 = vmatprep.subr.mxu0 0.0
        %1780 = vmatpush2.xpose.msra.mxu0 0.0
        %1781 = vmatprep.subr.mxu0 0.0
        %1782 = vmatpush2.xpose.msra.mxu0 0.0
        %1783 = vmatprep.subr.mxu0 0.0
        %1784 = vmatpush2.xpose.msra.mxu0 0.0
        %1785 = vmatprep.subr.mxu0 0.0
        %1786 = vmatpush2.xpose.msra.mxu0 0.0
        %1787 = vmatprep.subr.mxu0 0.0
        %1788 = vmatpush2.xpose.msra.mxu0 0.0
        %1789 = vmatprep.subr.mxu0 0.0
        %1790 = vmatpush2.xpose.msra.mxu0 0.0
        %1791 = vmatprep.subr.mxu0 0.0
        %1792 = vmatpush2.xpose.msra.mxu0 0.0
        %1793 = vmatprep.subr.mxu0 0.0
        %1794 = vmatpush2.xpose.msra.mxu0 0.0
        %1795 = vmatprep.mubr.f32.mxu0 0.0
        %1796 = vmatmul.mubr.f32.gmra.mxu0 %v1727
        %v1797 = vpop.f32.mrf.mxu0
        %v1798 = vadd.f32 0.0, %v1797
        %v1799 = vpop.f32.mrf.mxu0
        %1800 = vdwg.mxu0
        %v1801 = vsel %vm545, %v1798, -inf
        %1802 = vmax.xlane.f32.xlu0 %v1801
        %v1803 = vpop.xlane.xlu0 %1802
        %v1804 = vsub.f32 %v1798, %v1803
        %v1805 = vmul.f32 %v1804, 1.442695
        %v1806 = vpow.pop %v1805
        %v1807 = vsel %vm545, %v1806, 0.0
        %1808 = vadd.xlane.f32.xlu0 %v1807
        %v1809 = vpop.xlane.xlu0 %1808
        %1810 = vrot.lane.b32.xlu0 %v1231, 104
        %v1811 = vpop.permute.xlu0 %1810
        %v1814 = vsel %vm468, %v1806, 0
        %1816 = vmatprep.subr.mxu0 0.0
        %1817 = vmatpush1.msra.mxu0 0.0
        %1818 = vmatprep.subr.mxu0 0.0
        %1819 = vmatpush1.msra.mxu0 0.0
        %1820 = vmatprep.subr.mxu0 0.0
        %1821 = vmatpush1.msra.mxu0 0.0
        %1822 = vmatprep.subr.mxu0 0.0
        %1823 = vmatpush1.msra.mxu0 0.0
        %1824 = vmatprep.subr.mxu0 0.0
        %1825 = vmatpush1.msra.mxu0 0.0
        %1826 = vmatprep.subr.mxu0 0.0
        %1827 = vmatpush1.msra.mxu0 0.0
        %1828 = vmatprep.subr.mxu0 0.0
        %1829 = vmatpush1.msra.mxu0 0.0
        %1830 = vmatprep.subr.mxu0 0.0
        %1831 = vmatpush1.msra.mxu0 0.0
        %1832 = vmatprep.subr.mxu0 0.0
        %1833 = vmatpush1.msra.mxu0 0.0
        %1834 = vmatprep.subr.mxu0 0.0
        %1835 = vmatpush1.msra.mxu0 0.0
        %1836 = vmatprep.subr.mxu0 0.0
        %1837 = vmatpush1.msra.mxu0 0.0
        %1838 = vmatprep.subr.mxu0 0.0
        %1839 = vmatpush1.msra.mxu0 0.0
        %1840 = vmatprep.subr.mxu0 0.0
        %1841 = vmatpush1.msra.mxu0 0.0
        %1842 = vmatprep.subr.mxu0 0.0
        %1843 = vmatpush1.msra.mxu0 0.0
        %1844 = vmatprep.subr.mxu0 0.0
        %1845 = vmatpush1.msra.mxu0 0.0
        %1846 = vmatprep.subr.mxu0 0.0
        %1847 = vmatpush1.msra.mxu0 %v1811
        %1848 = vmatprep.subr.mxu0 0.0
        %1849 = vmatpush2.msra.mxu0 0.0
        %1850 = vmatprep.subr.mxu0 0.0
        %1851 = vmatpush2.msra.mxu0 0.0
        %1852 = vmatprep.subr.mxu0 0.0
        %1853 = vmatpush2.msra.mxu0 0.0
        %1854 = vmatprep.subr.mxu0 0.0
        %1855 = vmatpush2.msra.mxu0 0.0
        %1856 = vmatprep.subr.mxu0 0.0
        %1857 = vmatpush2.msra.mxu0 0.0
        %1858 = vmatprep.subr.mxu0 0.0
        %1859 = vmatpush2.msra.mxu0 0.0
        %1860 = vmatprep.subr.mxu0 0.0
        %1861 = vmatpush2.msra.mxu0 0.0
        %1862 = vmatprep.subr.mxu0 0.0
        %1863 = vmatpush2.msra.mxu0 0.0
        %1864 = vmatprep.subr.mxu0 0.0
        %1865 = vmatpush2.msra.mxu0 0.0
        %1866 = vmatprep.subr.mxu0 0.0
        %1867 = vmatpush2.msra.mxu0 0.0
        %1868 = vmatprep.subr.mxu0 0.0
        %1869 = vmatpush2.msra.mxu0 0.0
        %1870 = vmatprep.subr.mxu0 0.0
        %1871 = vmatpush2.msra.mxu0 0.0
        %1872 = vmatprep.subr.mxu0 0.0
        %1873 = vmatpush2.msra.mxu0 0.0
        %1874 = vmatprep.subr.mxu0 0.0
        %1875 = vmatpush2.msra.mxu0 0.0
        %1876 = vmatprep.subr.mxu0 0.0
        %1877 = vmatpush2.msra.mxu0 0.0
        %1878 = vmatprep.subr.mxu0 0.0
        %1879 = vmatpush2.msra.mxu0 0.0
        %1880 = vmatprep.mubr.f32.mxu0 0.0
        %1881 = vmatmul.mubr.f32.gmra.mxu0 %v1814
        %v1882 = vpop.f32.mrf.mxu0
        %v1883 = vadd.f32 0.0, %v1882
        %v1884 = vpop.f32.mrf.mxu0
        %1885 = vdwg.mxu0
        %v1886 = vrcp.pop %v1809
        %v1887 = vmul.f32 %v1883, %v1886
        %1889 = vrot.lane.b32.xlu0 %v1557, 8
        %v1890 = vpop.permute.xlu0 %1889
        %1893 = vrot.lane.b32.xlu0 %v1722, 16
        %v1894 = vpop.permute.xlu0 %1893
        %1897 = vrot.lane.b32.xlu0 %v1887, 24
        %v1898 = vpop.permute.xlu0 %1897
        %v1900 = vsel %vm468, %v1391, %v1890
        %v1901 = vsel %vm1139, %v1900, %v1894
        %v1902 = vsel %vm1141, %v1901, %v1898
        %v1904 = vsel %vm247, %v1902, 0
        %1906 = vmatprep.subr.mxu0 0.0
        %1907 = vmatpush1.msra.mxu0 0.0
        %1908 = vmatprep.subr.mxu0 0.0
        %1909 = vmatpush1.msra.mxu0 0.0
        %1910 = vmatprep.subr.mxu0 0.0
        %1911 = vmatpush1.msra.mxu0 0.0
        %1912 = vmatprep.subr.mxu0 0.0
        %1913 = vmatpush1.msra.mxu0 0.0
        %1914 = vmatprep.subr.mxu0 0.0
        %1915 = vmatpush1.msra.mxu0 0.0
        %1916 = vmatprep.subr.mxu0 0.0
        %1917 = vmatpush1.msra.mxu0 0.0
        %1918 = vmatprep.subr.mxu0 0.0
        %1919 = vmatpush1.msra.mxu0 0.0
        %1920 = vmatprep.subr.mxu0 0.0
        %1921 = vmatpush1.msra.mxu0 0.0
        %1922 = vmatprep.subr.mxu0 0.0
        %1923 = vmatpush1.msra.mxu0 0.0
        %1924 = vmatprep.subr.mxu0 0.0
        %1925 = vmatpush1.msra.mxu0 0.0
        %1926 = vmatprep.subr.mxu0 0.0
        %1927 = vmatpush1.msra.mxu0 0.0
        %1928 = vmatprep.subr.mxu0 0.0
        %1929 = vmatpush1.msra.mxu0 0.0
        %1930 = vmatprep.subr.mxu0 0.0
        %1931 = vmatpush1.msra.mxu0 %v234
        %1932 = vmatprep.subr.mxu0 0.0
        %1933 = vmatpush1.msra.mxu0 %v233
        %1934 = vmatprep.subr.mxu0 0.0
        %1935 = vmatpush1.msra.mxu0 %v232
        %1936 = vmatprep.subr.mxu0 0.0
        %1937 = vmatpush1.msra.mxu0 %v231
        %1938 = vmatprep.subr.mxu0 0.0
        %1939 = vmatpush2.msra.mxu0 0.0
        %1940 = vmatprep.subr.mxu0 0.0
        %1941 = vmatpush2.msra.mxu0 0.0
        %1942 = vmatprep.subr.mxu0 0.0
        %1943 = vmatpush2.msra.mxu0 0.0
        %1944 = vmatprep.subr.mxu0 0.0
        %1945 = vmatpush2.msra.mxu0 0.0
        %1946 = vmatprep.subr.mxu0 0.0
        %1947 = vmatpush2.msra.mxu0 0.0
        %1948 = vmatprep.subr.mxu0 0.0
        %1949 = vmatpush2.msra.mxu0 0.0
        %1950 = vmatprep.subr.mxu0 0.0
        %1951 = vmatpush2.msra.mxu0 0.0
        %1952 = vmatprep.subr.mxu0 0.0
        %1953 = vmatpush2.msra.mxu0 0.0
        %1954 = vmatprep.subr.mxu0 0.0
        %1955 = vmatpush2.msra.mxu0 0.0
        %1956 = vmatprep.subr.mxu0 0.0
        %1957 = vmatpush2.msra.mxu0 0.0
        %1958 = vmatprep.subr.mxu0 0.0
        %1959 = vmatpush2.msra.mxu0 0.0
        %1960 = vmatprep.subr.mxu0 0.0
        %1961 = vmatpush2.msra.mxu0 0.0
        %1962 = vmatprep.subr.mxu0 0.0
        %1963 = vmatpush2.msra.mxu0 0.0
        %1964 = vmatprep.subr.mxu0 0.0
        %1965 = vmatpush2.msra.mxu0 0.0
        %1966 = vmatprep.subr.mxu0 0.0
        %1967 = vmatpush2.msra.mxu0 0.0
        %1968 = vmatprep.subr.mxu0 0.0
        %1969 = vmatpush2.msra.mxu0 0.0
        %1970 = vmatprep.mubr.f32.mxu0 0.0
        %1971 = vmatmul.mubr.f32.gmra.mxu0 %v1904
        %v1972 = vpop.f32.mrf.mxu0
        %v1973 = vadd.f32 %v1147, %v1972
        %v1974 = vpop.f32.mrf.mxu0
        %1975 = vdwg.mxu0
        %s1976 = scalar_lea.vmem [#allocation2], 2
        %v1977 = vld [vmem:[%s1976] ss:$8 sm:$0xf]
        %s1978 = scalar_lea.vmem [#allocation3], 2
        %v1979 = vld [vmem:[%s1978] ss:$8 sm:$0xf]
        %v1980 = vld [vmem:[%s1978] ss:$8 sm:$0xf0]
        %v1981 = vor.u32 %v1979, %v1980
        %s1982 = scalar_lea.vmem [#allocation4], 2
        %v1983 = vld [vmem:[%s1982] ss:$8 sm:$0xf]
        %v1984 = vld [vmem:[%s1982] ss:$8 sm:$0xf0]
        %v1985 = vor.u32 %v1983, %v1984
        %v1987 = vsel %vm468, %v1977, 0
        %v1990 = vsel %vm468, %v1981, 0
        %1992 = vmatprep.subr.mxu0 0.0
        %1993 = vmatpush1.xpose.msra.mxu0 0.0
        %1994 = vmatprep.subr.mxu0 0.0
        %1995 = vmatpush1.xpose.msra.mxu0 0.0
        %1996 = vmatprep.subr.mxu0 0.0
        %1997 = vmatpush1.xpose.msra.mxu0 0.0
        %1998 = vmatprep.subr.mxu0 0.0
        %1999 = vmatpush1.xpose.msra.mxu0 0.0
        %2000 = vmatprep.subr.mxu0 0.0
        %2001 = vmatpush1.xpose.msra.mxu0 0.0
        %2002 = vmatprep.subr.mxu0 0.0
        %2003 = vmatpush1.xpose.msra.mxu0 0.0
        %2004 = vmatprep.subr.mxu0 0.0
        %2005 = vmatpush1.xpose.msra.mxu0 0.0
        %2006 = vmatprep.subr.mxu0 0.0
        %2007 = vmatpush1.xpose.msra.mxu0 0.0
        %2008 = vmatprep.subr.mxu0 0.0
        %2009 = vmatpush1.xpose.msra.mxu0 0.0
        %2010 = vmatprep.subr.mxu0 0.0
        %2011 = vmatpush1.xpose.msra.mxu0 0.0
        %2012 = vmatprep.subr.mxu0 0.0
        %2013 = vmatpush1.xpose.msra.mxu0 0.0
        %2014 = vmatprep.subr.mxu0 0.0
        %2015 = vmatpush1.xpose.msra.mxu0 0.0
        %2016 = vmatprep.subr.mxu0 0.0
        %2017 = vmatpush1.xpose.msra.mxu0 0.0
        %2018 = vmatprep.subr.mxu0 0.0
        %2019 = vmatpush1.xpose.msra.mxu0 0.0
        %2020 = vmatprep.subr.mxu0 0.0
        %2021 = vmatpush1.xpose.msra.mxu0 0.0
        %2022 = vmatprep.subr.mxu0 0.0
        %2023 = vmatpush1.xpose.msra.mxu0 %v1990
        %2024 = vmatprep.subr.mxu0 0.0
        %2025 = vmatpush2.xpose.msra.mxu0 0.0
        %2026 = vmatprep.subr.mxu0 0.0
        %2027 = vmatpush2.xpose.msra.mxu0 0.0
        %2028 = vmatprep.subr.mxu0 0.0
        %2029 = vmatpush2.xpose.msra.mxu0 0.0
        %2030 = vmatprep.subr.mxu0 0.0
        %2031 = vmatpush2.xpose.msra.mxu0 0.0
        %2032 = vmatprep.subr.mxu0 0.0
        %2033 = vmatpush2.xpose.msra.mxu0 0.0
        %2034 = vmatprep.subr.mxu0 0.0
        %2035 = vmatpush2.xpose.msra.mxu0 0.0
        %2036 = vmatprep.subr.mxu0 0.0
        %2037 = vmatpush2.xpose.msra.mxu0 0.0
        %2038 = vmatprep.subr.mxu0 0.0
        %2039 = vmatpush2.xpose.msra.mxu0 0.0
        %2040 = vmatprep.subr.mxu0 0.0
        %2041 = vmatpush2.xpose.msra.mxu0 0.0
        %2042 = vmatprep.subr.mxu0 0.0
        %2043 = vmatpush2.xpose.msra.mxu0 0.0
        %2044 = vmatprep.subr.mxu0 0.0
        %2045 = vmatpush2.xpose.msra.mxu0 0.0
        %2046 = vmatprep.subr.mxu0 0.0
        %2047 = vmatpush2.xpose.msra.mxu0 0.0
        %2048 = vmatprep.subr.mxu0 0.0
        %2049 = vmatpush2.xpose.msra.mxu0 0.0
        %2050 = vmatprep.subr.mxu0 0.0
        %2051 = vmatpush2.xpose.msra.mxu0 0.0
        %2052 = vmatprep.subr.mxu0 0.0
        %2053 = vmatpush2.xpose.msra.mxu0 0.0
        %2054 = vmatprep.subr.mxu0 0.0
        %2055 = vmatpush2.xpose.msra.mxu0 0.0
        %2056 = vmatprep.mubr.f32.mxu0 0.0
        %2057 = vmatmul.mubr.f32.gmra.mxu0 %v1987
        %v2058 = vpop.f32.mrf.mxu0
        %v2059 = vadd.f32 0.0, %v2058
        %v2060 = vpop.f32.mrf.mxu0
        %2061 = vdwg.mxu0
        %v2062 = vsel %vm545, %v2059, -inf
        %2063 = vmax.xlane.f32.xlu0 %v2062
        %v2064 = vpop.xlane.xlu0 %2063
        %v2065 = vsub.f32 %v2059, %v2064
        %v2066 = vmul.f32 %v2065, 1.442695
        %v2067 = vpow.pop %v2066
        %v2068 = vsel %vm545, %v2067, 0.0
        %2069 = vadd.xlane.f32.xlu0 %v2068
        %v2070 = vpop.xlane.xlu0 %2069
        %v2072 = vsel %vm468, %v2067, 0
        %2074 = vmatprep.subr.mxu0 0.0
        %2075 = vmatpush1.msra.mxu0 0.0
        %2076 = vmatprep.subr.mxu0 0.0
        %2077 = vmatpush1.msra.mxu0 0.0
        %2078 = vmatprep.subr.mxu0 0.0
        %2079 = vmatpush1.msra.mxu0 0.0
        %2080 = vmatprep.subr.mxu0 0.0
        %2081 = vmatpush1.msra.mxu0 0.0
        %2082 = vmatprep.subr.mxu0 0.0
        %2083 = vmatpush1.msra.mxu0 0.0
        %2084 = vmatprep.subr.mxu0 0.0
        %2085 = vmatpush1.msra.mxu0 0.0
        %2086 = vmatprep.subr.mxu0 0.0
        %2087 = vmatpush1.msra.mxu0 0.0
        %2088 = vmatprep.subr.mxu0 0.0
        %2089 = vmatpush1.msra.mxu0 0.0
        %2090 = vmatprep.subr.mxu0 0.0
        %2091 = vmatpush1.msra.mxu0 0.0
        %2092 = vmatprep.subr.mxu0 0.0
        %2093 = vmatpush1.msra.mxu0 0.0
        %2094 = vmatprep.subr.mxu0 0.0
        %2095 = vmatpush1.msra.mxu0 0.0
        %2096 = vmatprep.subr.mxu0 0.0
        %2097 = vmatpush1.msra.mxu0 0.0
        %2098 = vmatprep.subr.mxu0 0.0
        %2099 = vmatpush1.msra.mxu0 0.0
        %2100 = vmatprep.subr.mxu0 0.0
        %2101 = vmatpush1.msra.mxu0 0.0
        %2102 = vmatprep.subr.mxu0 0.0
        %2103 = vmatpush1.msra.mxu0 0.0
        %2104 = vmatprep.subr.mxu0 0.0
        %2105 = vmatpush1.msra.mxu0 %v1985
        %2106 = vmatprep.subr.mxu0 0.0
        %2107 = vmatpush2.msra.mxu0 0.0
        %2108 = vmatprep.subr.mxu0 0.0
        %2109 = vmatpush2.msra.mxu0 0.0
        %2110 = vmatprep.subr.mxu0 0.0
        %2111 = vmatpush2.msra.mxu0 0.0
        %2112 = vmatprep.subr.mxu0 0.0
        %2113 = vmatpush2.msra.mxu0 0.0
        %2114 = vmatprep.subr.mxu0 0.0
        %2115 = vmatpush2.msra.mxu0 0.0
        %2116 = vmatprep.subr.mxu0 0.0
        %2117 = vmatpush2.msra.mxu0 0.0
        %2118 = vmatprep.subr.mxu0 0.0
        %2119 = vmatpush2.msra.mxu0 0.0
        %2120 = vmatprep.subr.mxu0 0.0
        %2121 = vmatpush2.msra.mxu0 0.0
        %2122 = vmatprep.subr.mxu0 0.0
        %2123 = vmatpush2.msra.mxu0 0.0
        %2124 = vmatprep.subr.mxu0 0.0
        %2125 = vmatpush2.msra.mxu0 0.0
        %2126 = vmatprep.subr.mxu0 0.0
        %2127 = vmatpush2.msra.mxu0 0.0
        %2128 = vmatprep.subr.mxu0 0.0
        %2129 = vmatpush2.msra.mxu0 0.0
        %2130 = vmatprep.subr.mxu0 0.0
        %2131 = vmatpush2.msra.mxu0 0.0
        %2132 = vmatprep.subr.mxu0 0.0
        %2133 = vmatpush2.msra.mxu0 0.0
        %2134 = vmatprep.subr.mxu0 0.0
        %2135 = vmatpush2.msra.mxu0 0.0
        %2136 = vmatprep.subr.mxu0 0.0
        %2137 = vmatpush2.msra.mxu0 0.0
        %2138 = vmatprep.mubr.f32.mxu0 0.0
        %2139 = vmatmul.mubr.f32.gmra.mxu0 %v2072
        %v2140 = vpop.f32.mrf.mxu0
        %v2141 = vadd.f32 0.0, %v2140
        %v2142 = vpop.f32.mrf.mxu0
        %2143 = vdwg.mxu0
        %v2144 = vrcp.pop %v2070
        %v2145 = vmul.f32 %v2141, %v2144
        %2146 = vrot.lane.b32.xlu0 %v1977, 120
        %v2147 = vpop.permute.xlu0 %2146
        %2148 = vrot.lane.b32.xlu0 %v1981, 120
        %v2149 = vpop.permute.xlu0 %2148
        %v2150 = vsel %vm468, %v2147, 0
        %v2152 = vsel %vm468, %v2149, 0
        %2154 = vmatprep.subr.mxu0 0.0
        %2155 = vmatpush1.xpose.msra.mxu0 0.0
        %2156 = vmatprep.subr.mxu0 0.0
        %2157 = vmatpush1.xpose.msra.mxu0 0.0
        %2158 = vmatprep.subr.mxu0 0.0
        %2159 = vmatpush1.xpose.msra.mxu0 0.0
        %2160 = vmatprep.subr.mxu0 0.0
        %2161 = vmatpush1.xpose.msra.mxu0 0.0
        %2162 = vmatprep.subr.mxu0 0.0
        %2163 = vmatpush1.xpose.msra.mxu0 0.0
        %2164 = vmatprep.subr.mxu0 0.0
        %2165 = vmatpush1.xpose.msra.mxu0 0.0
        %2166 = vmatprep.subr.mxu0 0.0
        %2167 = vmatpush1.xpose.msra.mxu0 0.0
        %2168 = vmatprep.subr.mxu0 0.0
        %2169 = vmatpush1.xpose.msra.mxu0 0.0
        %2170 = vmatprep.subr.mxu0 0.0
        %2171 = vmatpush1.xpose.msra.mxu0 0.0
        %2172 = vmatprep.subr.mxu0 0.0
        %2173 = vmatpush1.xpose.msra.mxu0 0.0
        %2174 = vmatprep.subr.mxu0 0.0
        %2175 = vmatpush1.xpose.msra.mxu0 0.0
        %2176 = vmatprep.subr.mxu0 0.0
        %2177 = vmatpush1.xpose.msra.mxu0 0.0
        %2178 = vmatprep.subr.mxu0 0.0
        %2179 = vmatpush1.xpose.msra.mxu0 0.0
        %2180 = vmatprep.subr.mxu0 0.0
        %2181 = vmatpush1.xpose.msra.mxu0 0.0
        %2182 = vmatprep.subr.mxu0 0.0
        %2183 = vmatpush1.xpose.msra.mxu0 0.0
        %2184 = vmatprep.subr.mxu0 0.0
        %2185 = vmatpush1.xpose.msra.mxu0 %v2152
        %2186 = vmatprep.subr.mxu0 0.0
        %2187 = vmatpush2.xpose.msra.mxu0 0.0
        %2188 = vmatprep.subr.mxu0 0.0
        %2189 = vmatpush2.xpose.msra.mxu0 0.0
        %2190 = vmatprep.subr.mxu0 0.0
        %2191 = vmatpush2.xpose.msra.mxu0 0.0
        %2192 = vmatprep.subr.mxu0 0.0
        %2193 = vmatpush2.xpose.msra.mxu0 0.0
        %2194 = vmatprep.subr.mxu0 0.0
        %2195 = vmatpush2.xpose.msra.mxu0 0.0
        %2196 = vmatprep.subr.mxu0 0.0
        %2197 = vmatpush2.xpose.msra.mxu0 0.0
        %2198 = vmatprep.subr.mxu0 0.0
        %2199 = vmatpush2.xpose.msra.mxu0 0.0
        %2200 = vmatprep.subr.mxu0 0.0
        %2201 = vmatpush2.xpose.msra.mxu0 0.0
        %2202 = vmatprep.subr.mxu0 0.0
        %2203 = vmatpush2.xpose.msra.mxu0 0.0
        %2204 = vmatprep.subr.mxu0 0.0
        %2205 = vmatpush2.xpose.msra.mxu0 0.0
        %2206 = vmatprep.subr.mxu0 0.0
        %2207 = vmatpush2.xpose.msra.mxu0 0.0
        %2208 = vmatprep.subr.mxu0 0.0
        %2209 = vmatpush2.xpose.msra.mxu0 0.0
        %2210 = vmatprep.subr.mxu0 0.0
        %2211 = vmatpush2.xpose.msra.mxu0 0.0
        %2212 = vmatprep.subr.mxu0 0.0
        %2213 = vmatpush2.xpose.msra.mxu0 0.0
        %2214 = vmatprep.subr.mxu0 0.0
        %2215 = vmatpush2.xpose.msra.mxu0 0.0
        %2216 = vmatprep.subr.mxu0 0.0
        %2217 = vmatpush2.xpose.msra.mxu0 0.0
        %2218 = vmatprep.mubr.f32.mxu0 0.0
        %2219 = vmatmul.mubr.f32.gmra.mxu0 %v2150
        %v2220 = vpop.f32.mrf.mxu0
        %v2221 = vadd.f32 0.0, %v2220
        %v2222 = vpop.f32.mrf.mxu0
        %2223 = vdwg.mxu0
        %v2224 = vsel %vm545, %v2221, -inf
        %2225 = vmax.xlane.f32.xlu0 %v2224
        %v2226 = vpop.xlane.xlu0 %2225
        %v2227 = vsub.f32 %v2221, %v2226
        %v2228 = vmul.f32 %v2227, 1.442695
        %v2229 = vpow.pop %v2228
        %v2230 = vsel %vm545, %v2229, 0.0
        %2231 = vadd.xlane.f32.xlu0 %v2230
        %v2232 = vpop.xlane.xlu0 %2231
        %2234 = vrot.lane.b32.xlu0 %v1985, 120
        %v2235 = vpop.permute.xlu0 %2234
        %v2238 = vsel %vm468, %v2229, 0
        %2240 = vmatprep.subr.mxu0 0.0
        %2241 = vmatpush1.msra.mxu0 0.0
        %2242 = vmatprep.subr.mxu0 0.0
        %2243 = vmatpush1.msra.mxu0 0.0
        %2244 = vmatprep.subr.mxu0 0.0
        %2245 = vmatpush1.msra.mxu0 0.0
        %2246 = vmatprep.subr.mxu0 0.0
        %2247 = vmatpush1.msra.mxu0 0.0
        %2248 = vmatprep.subr.mxu0 0.0
        %2249 = vmatpush1.msra.mxu0 0.0
        %2250 = vmatprep.subr.mxu0 0.0
        %2251 = vmatpush1.msra.mxu0 0.0
        %2252 = vmatprep.subr.mxu0 0.0
        %2253 = vmatpush1.msra.mxu0 0.0
        %2254 = vmatprep.subr.mxu0 0.0
        %2255 = vmatpush1.msra.mxu0 0.0
        %2256 = vmatprep.subr.mxu0 0.0
        %2257 = vmatpush1.msra.mxu0 0.0
        %2258 = vmatprep.subr.mxu0 0.0
        %2259 = vmatpush1.msra.mxu0 0.0
        %2260 = vmatprep.subr.mxu0 0.0
        %2261 = vmatpush1.msra.mxu0 0.0
        %2262 = vmatprep.subr.mxu0 0.0
        %2263 = vmatpush1.msra.mxu0 0.0
        %2264 = vmatprep.subr.mxu0 0.0
        %2265 = vmatpush1.msra.mxu0 0.0
        %2266 = vmatprep.subr.mxu0 0.0
        %2267 = vmatpush1.msra.mxu0 0.0
        %2268 = vmatprep.subr.mxu0 0.0
        %2269 = vmatpush1.msra.mxu0 0.0
        %2270 = vmatprep.subr.mxu0 0.0
        %2271 = vmatpush1.msra.mxu0 %v2235
        %2272 = vmatprep.subr.mxu0 0.0
        %2273 = vmatpush2.msra.mxu0 0.0
        %2274 = vmatprep.subr.mxu0 0.0
        %2275 = vmatpush2.msra.mxu0 0.0
        %2276 = vmatprep.subr.mxu0 0.0
        %2277 = vmatpush2.msra.mxu0 0.0
        %2278 = vmatprep.subr.mxu0 0.0
        %2279 = vmatpush2.msra.mxu0 0.0
        %2280 = vmatprep.subr.mxu0 0.0
        %2281 = vmatpush2.msra.mxu0 0.0
        %2282 = vmatprep.subr.mxu0 0.0
        %2283 = vmatpush2.msra.mxu0 0.0
        %2284 = vmatprep.subr.mxu0 0.0
        %2285 = vmatpush2.msra.mxu0 0.0
        %2286 = vmatprep.subr.mxu0 0.0
        %2287 = vmatpush2.msra.mxu0 0.0
        %2288 = vmatprep.subr.mxu0 0.0
        %2289 = vmatpush2.msra.mxu0 0.0
        %2290 = vmatprep.subr.mxu0 0.0
        %2291 = vmatpush2.msra.mxu0 0.0
        %2292 = vmatprep.subr.mxu0 0.0
        %2293 = vmatpush2.msra.mxu0 0.0
        %2294 = vmatprep.subr.mxu0 0.0
        %2295 = vmatpush2.msra.mxu0 0.0
        %2296 = vmatprep.subr.mxu0 0.0
        %2297 = vmatpush2.msra.mxu0 0.0
        %2298 = vmatprep.subr.mxu0 0.0
        %2299 = vmatpush2.msra.mxu0 0.0
        %2300 = vmatprep.subr.mxu0 0.0
        %2301 = vmatpush2.msra.mxu0 0.0
        %2302 = vmatprep.subr.mxu0 0.0
        %2303 = vmatpush2.msra.mxu0 0.0
        %2304 = vmatprep.mubr.f32.mxu0 0.0
        %2305 = vmatmul.mubr.f32.gmra.mxu0 %v2238
        %v2306 = vpop.f32.mrf.mxu0
        %v2307 = vadd.f32 0.0, %v2306
        %v2308 = vpop.f32.mrf.mxu0
        %2309 = vdwg.mxu0
        %v2310 = vrcp.pop %v2232
        %v2311 = vmul.f32 %v2307, %v2310
        %2312 = vrot.lane.b32.xlu0 %v1977, 112
        %v2313 = vpop.permute.xlu0 %2312
        %2314 = vrot.lane.b32.xlu0 %v1981, 112
        %v2315 = vpop.permute.xlu0 %2314
        %v2316 = vsel %vm468, %v2313, 0
        %v2318 = vsel %vm468, %v2315, 0
        %2320 = vmatprep.subr.mxu0 0.0
        %2321 = vmatpush1.xpose.msra.mxu0 0.0
        %2322 = vmatprep.subr.mxu0 0.0
        %2323 = vmatpush1.xpose.msra.mxu0 0.0
        %2324 = vmatprep.subr.mxu0 0.0
        %2325 = vmatpush1.xpose.msra.mxu0 0.0
        %2326 = vmatprep.subr.mxu0 0.0
        %2327 = vmatpush1.xpose.msra.mxu0 0.0
        %2328 = vmatprep.subr.mxu0 0.0
        %2329 = vmatpush1.xpose.msra.mxu0 0.0
        %2330 = vmatprep.subr.mxu0 0.0
        %2331 = vmatpush1.xpose.msra.mxu0 0.0
        %2332 = vmatprep.subr.mxu0 0.0
        %2333 = vmatpush1.xpose.msra.mxu0 0.0
        %2334 = vmatprep.subr.mxu0 0.0
        %2335 = vmatpush1.xpose.msra.mxu0 0.0
        %2336 = vmatprep.subr.mxu0 0.0
        %2337 = vmatpush1.xpose.msra.mxu0 0.0
        %2338 = vmatprep.subr.mxu0 0.0
        %2339 = vmatpush1.xpose.msra.mxu0 0.0
        %2340 = vmatprep.subr.mxu0 0.0
        %2341 = vmatpush1.xpose.msra.mxu0 0.0
        %2342 = vmatprep.subr.mxu0 0.0
        %2343 = vmatpush1.xpose.msra.mxu0 0.0
        %2344 = vmatprep.subr.mxu0 0.0
        %2345 = vmatpush1.xpose.msra.mxu0 0.0
        %2346 = vmatprep.subr.mxu0 0.0
        %2347 = vmatpush1.xpose.msra.mxu0 0.0
        %2348 = vmatprep.subr.mxu0 0.0
        %2349 = vmatpush1.xpose.msra.mxu0 0.0
        %2350 = vmatprep.subr.mxu0 0.0
        %2351 = vmatpush1.xpose.msra.mxu0 %v2318
        %2352 = vmatprep.subr.mxu0 0.0
        %2353 = vmatpush2.xpose.msra.mxu0 0.0
        %2354 = vmatprep.subr.mxu0 0.0
        %2355 = vmatpush2.xpose.msra.mxu0 0.0
        %2356 = vmatprep.subr.mxu0 0.0
        %2357 = vmatpush2.xpose.msra.mxu0 0.0
        %2358 = vmatprep.subr.mxu0 0.0
        %2359 = vmatpush2.xpose.msra.mxu0 0.0
        %2360 = vmatprep.subr.mxu0 0.0
        %2361 = vmatpush2.xpose.msra.mxu0 0.0
        %2362 = vmatprep.subr.mxu0 0.0
        %2363 = vmatpush2.xpose.msra.mxu0 0.0
        %2364 = vmatprep.subr.mxu0 0.0
        %2365 = vmatpush2.xpose.msra.mxu0 0.0
        %2366 = vmatprep.subr.mxu0 0.0
        %2367 = vmatpush2.xpose.msra.mxu0 0.0
        %2368 = vmatprep.subr.mxu0 0.0
        %2369 = vmatpush2.xpose.msra.mxu0 0.0
        %2370 = vmatprep.subr.mxu0 0.0
        %2371 = vmatpush2.xpose.msra.mxu0 0.0
        %2372 = vmatprep.subr.mxu0 0.0
        %2373 = vmatpush2.xpose.msra.mxu0 0.0
        %2374 = vmatprep.subr.mxu0 0.0
        %2375 = vmatpush2.xpose.msra.mxu0 0.0
        %2376 = vmatprep.subr.mxu0 0.0
        %2377 = vmatpush2.xpose.msra.mxu0 0.0
        %2378 = vmatprep.subr.mxu0 0.0
        %2379 = vmatpush2.xpose.msra.mxu0 0.0
        %2380 = vmatprep.subr.mxu0 0.0
        %2381 = vmatpush2.xpose.msra.mxu0 0.0
        %2382 = vmatprep.subr.mxu0 0.0
        %2383 = vmatpush2.xpose.msra.mxu0 0.0
        %2384 = vmatprep.mubr.f32.mxu0 0.0
        %2385 = vmatmul.mubr.f32.gmra.mxu0 %v2316
        %v2386 = vpop.f32.mrf.mxu0
        %v2387 = vadd.f32 0.0, %v2386
        %v2388 = vpop.f32.mrf.mxu0
        %2389 = vdwg.mxu0
        %v2390 = vsel %vm545, %v2387, -inf
        %2391 = vmax.xlane.f32.xlu0 %v2390
        %v2392 = vpop.xlane.xlu0 %2391
        %v2393 = vsub.f32 %v2387, %v2392
        %v2394 = vmul.f32 %v2393, 1.442695
        %v2395 = vpow.pop %v2394
        %v2396 = vsel %vm545, %v2395, 0.0
        %2397 = vadd.xlane.f32.xlu0 %v2396
        %v2398 = vpop.xlane.xlu0 %2397
        %2399 = vrot.lane.b32.xlu0 %v1985, 112
        %v2400 = vpop.permute.xlu0 %2399
        %v2403 = vsel %vm468, %v2395, 0
        %2405 = vmatprep.subr.mxu0 0.0
        %2406 = vmatpush1.msra.mxu0 0.0
        %2407 = vmatprep.subr.mxu0 0.0
        %2408 = vmatpush1.msra.mxu0 0.0
        %2409 = vmatprep.subr.mxu0 0.0
        %2410 = vmatpush1.msra.mxu0 0.0
        %2411 = vmatprep.subr.mxu0 0.0
        %2412 = vmatpush1.msra.mxu0 0.0
        %2413 = vmatprep.subr.mxu0 0.0
        %2414 = vmatpush1.msra.mxu0 0.0
        %2415 = vmatprep.subr.mxu0 0.0
        %2416 = vmatpush1.msra.mxu0 0.0
        %2417 = vmatprep.subr.mxu0 0.0
        %2418 = vmatpush1.msra.mxu0 0.0
        %2419 = vmatprep.subr.mxu0 0.0
        %2420 = vmatpush1.msra.mxu0 0.0
        %2421 = vmatprep.subr.mxu0 0.0
        %2422 = vmatpush1.msra.mxu0 0.0
        %2423 = vmatprep.subr.mxu0 0.0
        %2424 = vmatpush1.msra.mxu0 0.0
        %2425 = vmatprep.subr.mxu0 0.0
        %2426 = vmatpush1.msra.mxu0 0.0
        %2427 = vmatprep.subr.mxu0 0.0
        %2428 = vmatpush1.msra.mxu0 0.0
        %2429 = vmatprep.subr.mxu0 0.0
        %2430 = vmatpush1.msra.mxu0 0.0
        %2431 = vmatprep.subr.mxu0 0.0
        %2432 = vmatpush1.msra.mxu0 0.0
        %2433 = vmatprep.subr.mxu0 0.0
        %2434 = vmatpush1.msra.mxu0 0.0
        %2435 = vmatprep.subr.mxu0 0.0
        %2436 = vmatpush1.msra.mxu0 %v2400
        %2437 = vmatprep.subr.mxu0 0.0
        %2438 = vmatpush2.msra.mxu0 0.0
        %2439 = vmatprep.subr.mxu0 0.0
        %2440 = vmatpush2.msra.mxu0 0.0
        %2441 = vmatprep.subr.mxu0 0.0
        %2442 = vmatpush2.msra.mxu0 0.0
        %2443 = vmatprep.subr.mxu0 0.0
        %2444 = vmatpush2.msra.mxu0 0.0
        %2445 = vmatprep.subr.mxu0 0.0
        %2446 = vmatpush2.msra.mxu0 0.0
        %2447 = vmatprep.subr.mxu0 0.0
        %2448 = vmatpush2.msra.mxu0 0.0
        %2449 = vmatprep.subr.mxu0 0.0
        %2450 = vmatpush2.msra.mxu0 0.0
        %2451 = vmatprep.subr.mxu0 0.0
        %2452 = vmatpush2.msra.mxu0 0.0
        %2453 = vmatprep.subr.mxu0 0.0
        %2454 = vmatpush2.msra.mxu0 0.0
        %2455 = vmatprep.subr.mxu0 0.0
        %2456 = vmatpush2.msra.mxu0 0.0
        %2457 = vmatprep.subr.mxu0 0.0
        %2458 = vmatpush2.msra.mxu0 0.0
        %2459 = vmatprep.subr.mxu0 0.0
        %2460 = vmatpush2.msra.mxu0 0.0
        %2461 = vmatprep.subr.mxu0 0.0
        %2462 = vmatpush2.msra.mxu0 0.0
        %2463 = vmatprep.subr.mxu0 0.0
        %2464 = vmatpush2.msra.mxu0 0.0
        %2465 = vmatprep.subr.mxu0 0.0
        %2466 = vmatpush2.msra.mxu0 0.0
        %2467 = vmatprep.subr.mxu0 0.0
        %2468 = vmatpush2.msra.mxu0 0.0
        %2469 = vmatprep.mubr.f32.mxu0 0.0
        %2470 = vmatmul.mubr.f32.gmra.mxu0 %v2403
        %v2471 = vpop.f32.mrf.mxu0
        %v2472 = vadd.f32 0.0, %v2471
        %v2473 = vpop.f32.mrf.mxu0
        %2474 = vdwg.mxu0
        %v2475 = vrcp.pop %v2398
        %v2476 = vmul.f32 %v2472, %v2475
        %2477 = vrot.lane.b32.xlu0 %v1977, 104
        %v2478 = vpop.permute.xlu0 %2477
        %2479 = vrot.lane.b32.xlu0 %v1981, 104
        %v2480 = vpop.permute.xlu0 %2479
        %v2481 = vsel %vm468, %v2478, 0
        %v2483 = vsel %vm468, %v2480, 0
        %2485 = vmatprep.subr.mxu0 0.0
        %2486 = vmatpush1.xpose.msra.mxu0 0.0
        %2487 = vmatprep.subr.mxu0 0.0
        %2488 = vmatpush1.xpose.msra.mxu0 0.0
        %2489 = vmatprep.subr.mxu0 0.0
        %2490 = vmatpush1.xpose.msra.mxu0 0.0
        %2491 = vmatprep.subr.mxu0 0.0
        %2492 = vmatpush1.xpose.msra.mxu0 0.0
        %2493 = vmatprep.subr.mxu0 0.0
        %2494 = vmatpush1.xpose.msra.mxu0 0.0
        %2495 = vmatprep.subr.mxu0 0.0
        %2496 = vmatpush1.xpose.msra.mxu0 0.0
        %2497 = vmatprep.subr.mxu0 0.0
        %2498 = vmatpush1.xpose.msra.mxu0 0.0
        %2499 = vmatprep.subr.mxu0 0.0
        %2500 = vmatpush1.xpose.msra.mxu0 0.0
        %2501 = vmatprep.subr.mxu0 0.0
        %2502 = vmatpush1.xpose.msra.mxu0 0.0
        %2503 = vmatprep.subr.mxu0 0.0
        %2504 = vmatpush1.xpose.msra.mxu0 0.0
        %2505 = vmatprep.subr.mxu0 0.0
        %2506 = vmatpush1.xpose.msra.mxu0 0.0
        %2507 = vmatprep.subr.mxu0 0.0
        %2508 = vmatpush1.xpose.msra.mxu0 0.0
        %2509 = vmatprep.subr.mxu0 0.0
        %2510 = vmatpush1.xpose.msra.mxu0 0.0
        %2511 = vmatprep.subr.mxu0 0.0
        %2512 = vmatpush1.xpose.msra.mxu0 0.0
        %2513 = vmatprep.subr.mxu0 0.0
        %2514 = vmatpush1.xpose.msra.mxu0 0.0
        %2515 = vmatprep.subr.mxu0 0.0
        %2516 = vmatpush1.xpose.msra.mxu0 %v2483
        %2517 = vmatprep.subr.mxu0 0.0
        %2518 = vmatpush2.xpose.msra.mxu0 0.0
        %2519 = vmatprep.subr.mxu0 0.0
        %2520 = vmatpush2.xpose.msra.mxu0 0.0
        %2521 = vmatprep.subr.mxu0 0.0
        %2522 = vmatpush2.xpose.msra.mxu0 0.0
        %2523 = vmatprep.subr.mxu0 0.0
        %2524 = vmatpush2.xpose.msra.mxu0 0.0
        %2525 = vmatprep.subr.mxu0 0.0
        %2526 = vmatpush2.xpose.msra.mxu0 0.0
        %2527 = vmatprep.subr.mxu0 0.0
        %2528 = vmatpush2.xpose.msra.mxu0 0.0
        %2529 = vmatprep.subr.mxu0 0.0
        %2530 = vmatpush2.xpose.msra.mxu0 0.0
        %2531 = vmatprep.subr.mxu0 0.0
        %2532 = vmatpush2.xpose.msra.mxu0 0.0
        %2533 = vmatprep.subr.mxu0 0.0
        %2534 = vmatpush2.xpose.msra.mxu0 0.0
        %2535 = vmatprep.subr.mxu0 0.0
        %2536 = vmatpush2.xpose.msra.mxu0 0.0
        %2537 = vmatprep.subr.mxu0 0.0
        %2538 = vmatpush2.xpose.msra.mxu0 0.0
        %2539 = vmatprep.subr.mxu0 0.0
        %2540 = vmatpush2.xpose.msra.mxu0 0.0
        %2541 = vmatprep.subr.mxu0 0.0
        %2542 = vmatpush2.xpose.msra.mxu0 0.0
        %2543 = vmatprep.subr.mxu0 0.0
        %2544 = vmatpush2.xpose.msra.mxu0 0.0
        %2545 = vmatprep.subr.mxu0 0.0
        %2546 = vmatpush2.xpose.msra.mxu0 0.0
        %2547 = vmatprep.subr.mxu0 0.0
        %2548 = vmatpush2.xpose.msra.mxu0 0.0
        %2549 = vmatprep.mubr.f32.mxu0 0.0
        %2550 = vmatmul.mubr.f32.gmra.mxu0 %v2481
        %v2551 = vpop.f32.mrf.mxu0
        %v2552 = vadd.f32 0.0, %v2551
        %v2553 = vpop.f32.mrf.mxu0
        %2554 = vdwg.mxu0
        %v2555 = vsel %vm545, %v2552, -inf
        %2556 = vmax.xlane.f32.xlu0 %v2555
        %v2557 = vpop.xlane.xlu0 %2556
        %v2558 = vsub.f32 %v2552, %v2557
        %v2559 = vmul.f32 %v2558, 1.442695
        %v2560 = vpow.pop %v2559
        %v2561 = vsel %vm545, %v2560, 0.0
        %2562 = vadd.xlane.f32.xlu0 %v2561
        %v2563 = vpop.xlane.xlu0 %2562
        %2564 = vrot.lane.b32.xlu0 %v1985, 104
        %v2565 = vpop.permute.xlu0 %2564
        %v2568 = vsel %vm468, %v2560, 0
        %2570 = vmatprep.subr.mxu0 0.0
        %2571 = vmatpush1.msra.mxu0 0.0
        %2572 = vmatprep.subr.mxu0 0.0
        %2573 = vmatpush1.msra.mxu0 0.0
        %2574 = vmatprep.subr.mxu0 0.0
        %2575 = vmatpush1.msra.mxu0 0.0
        %2576 = vmatprep.subr.mxu0 0.0
        %2577 = vmatpush1.msra.mxu0 0.0
        %2578 = vmatprep.subr.mxu0 0.0
        %2579 = vmatpush1.msra.mxu0 0.0
        %2580 = vmatprep.subr.mxu0 0.0
        %2581 = vmatpush1.msra.mxu0 0.0
        %2582 = vmatprep.subr.mxu0 0.0
        %2583 = vmatpush1.msra.mxu0 0.0
        %2584 = vmatprep.subr.mxu0 0.0
        %2585 = vmatpush1.msra.mxu0 0.0
        %2586 = vmatprep.subr.mxu0 0.0
        %2587 = vmatpush1.msra.mxu0 0.0
        %2588 = vmatprep.subr.mxu0 0.0
        %2589 = vmatpush1.msra.mxu0 0.0
        %2590 = vmatprep.subr.mxu0 0.0
        %2591 = vmatpush1.msra.mxu0 0.0
        %2592 = vmatprep.subr.mxu0 0.0
        %2593 = vmatpush1.msra.mxu0 0.0
        %2594 = vmatprep.subr.mxu0 0.0
        %2595 = vmatpush1.msra.mxu0 0.0
        %2596 = vmatprep.subr.mxu0 0.0
        %2597 = vmatpush1.msra.mxu0 0.0
        %2598 = vmatprep.subr.mxu0 0.0
        %2599 = vmatpush1.msra.mxu0 0.0
        %2600 = vmatprep.subr.mxu0 0.0
        %2601 = vmatpush1.msra.mxu0 %v2565
        %2602 = vmatprep.subr.mxu0 0.0
        %2603 = vmatpush2.msra.mxu0 0.0
        %2604 = vmatprep.subr.mxu0 0.0
        %2605 = vmatpush2.msra.mxu0 0.0
        %2606 = vmatprep.subr.mxu0 0.0
        %2607 = vmatpush2.msra.mxu0 0.0
        %2608 = vmatprep.subr.mxu0 0.0
        %2609 = vmatpush2.msra.mxu0 0.0
        %2610 = vmatprep.subr.mxu0 0.0
        %2611 = vmatpush2.msra.mxu0 0.0
        %2612 = vmatprep.subr.mxu0 0.0
        %2613 = vmatpush2.msra.mxu0 0.0
        %2614 = vmatprep.subr.mxu0 0.0
        %2615 = vmatpush2.msra.mxu0 0.0
        %2616 = vmatprep.subr.mxu0 0.0
        %2617 = vmatpush2.msra.mxu0 0.0
        %2618 = vmatprep.subr.mxu0 0.0
        %2619 = vmatpush2.msra.mxu0 0.0
        %2620 = vmatprep.subr.mxu0 0.0
        %2621 = vmatpush2.msra.mxu0 0.0
        %2622 = vmatprep.subr.mxu0 0.0
        %2623 = vmatpush2.msra.mxu0 0.0
        %2624 = vmatprep.subr.mxu0 0.0
        %2625 = vmatpush2.msra.mxu0 0.0
        %2626 = vmatprep.subr.mxu0 0.0
        %2627 = vmatpush2.msra.mxu0 0.0
        %2628 = vmatprep.subr.mxu0 0.0
        %2629 = vmatpush2.msra.mxu0 0.0
        %2630 = vmatprep.subr.mxu0 0.0
        %2631 = vmatpush2.msra.mxu0 0.0
        %2632 = vmatprep.subr.mxu0 0.0
        %2633 = vmatpush2.msra.mxu0 0.0
        %2634 = vmatprep.mubr.f32.mxu0 0.0
        %2635 = vmatmul.mubr.f32.gmra.mxu0 %v2568
        %v2636 = vpop.f32.mrf.mxu0
        %v2637 = vadd.f32 0.0, %v2636
        %v2638 = vpop.f32.mrf.mxu0
        %2639 = vdwg.mxu0
        %v2640 = vrcp.pop %v2563
        %v2641 = vmul.f32 %v2637, %v2640
        %2643 = vrot.lane.b32.xlu0 %v2311, 8
        %v2644 = vpop.permute.xlu0 %2643
        %2647 = vrot.lane.b32.xlu0 %v2476, 16
        %v2648 = vpop.permute.xlu0 %2647
        %2651 = vrot.lane.b32.xlu0 %v2641, 24
        %v2652 = vpop.permute.xlu0 %2651
        %v2654 = vsel %vm468, %v2145, %v2644
        %v2655 = vsel %vm1139, %v2654, %v2648
        %v2656 = vsel %vm1141, %v2655, %v2652
        %v2658 = vsel %vm247, %v2656, 0
        %2660 = vmatprep.subr.mxu0 0.0
        %2661 = vmatpush1.msra.mxu0 0.0
        %2662 = vmatprep.subr.mxu0 0.0
        %2663 = vmatpush1.msra.mxu0 0.0
        %2664 = vmatprep.subr.mxu0 0.0
        %2665 = vmatpush1.msra.mxu0 0.0
        %2666 = vmatprep.subr.mxu0 0.0
        %2667 = vmatpush1.msra.mxu0 0.0
        %2668 = vmatprep.subr.mxu0 0.0
        %2669 = vmatpush1.msra.mxu0 0.0
        %2670 = vmatprep.subr.mxu0 0.0
        %2671 = vmatpush1.msra.mxu0 0.0
        %2672 = vmatprep.subr.mxu0 0.0
        %2673 = vmatpush1.msra.mxu0 0.0
        %2674 = vmatprep.subr.mxu0 0.0
        %2675 = vmatpush1.msra.mxu0 0.0
        %2676 = vmatprep.subr.mxu0 0.0
        %2677 = vmatpush1.msra.mxu0 0.0
        %2678 = vmatprep.subr.mxu0 0.0
        %2679 = vmatpush1.msra.mxu0 0.0
        %2680 = vmatprep.subr.mxu0 0.0
        %2681 = vmatpush1.msra.mxu0 0.0
        %2682 = vmatprep.subr.mxu0 0.0
        %2683 = vmatpush1.msra.mxu0 0.0
        %2684 = vmatprep.subr.mxu0 0.0
        %2685 = vmatpush1.msra.mxu0 %v234
        %2686 = vmatprep.subr.mxu0 0.0
        %2687 = vmatpush1.msra.mxu0 %v233
        %2688 = vmatprep.subr.mxu0 0.0
        %2689 = vmatpush1.msra.mxu0 %v232
        %2690 = vmatprep.subr.mxu0 0.0
        %2691 = vmatpush1.msra.mxu0 %v231
        %2692 = vmatprep.subr.mxu0 0.0
        %2693 = vmatpush2.msra.mxu0 0.0
        %2694 = vmatprep.subr.mxu0 0.0
        %2695 = vmatpush2.msra.mxu0 0.0
        %2696 = vmatprep.subr.mxu0 0.0
        %2697 = vmatpush2.msra.mxu0 0.0
        %2698 = vmatprep.subr.mxu0 0.0
        %2699 = vmatpush2.msra.mxu0 0.0
        %2700 = vmatprep.subr.mxu0 0.0
        %2701 = vmatpush2.msra.mxu0 0.0
        %2702 = vmatprep.subr.mxu0 0.0
        %2703 = vmatpush2.msra.mxu0 0.0
        %2704 = vmatprep.subr.mxu0 0.0
        %2705 = vmatpush2.msra.mxu0 0.0
        %2706 = vmatprep.subr.mxu0 0.0
        %2707 = vmatpush2.msra.mxu0 0.0
        %2708 = vmatprep.subr.mxu0 0.0
        %2709 = vmatpush2.msra.mxu0 0.0
        %2710 = vmatprep.subr.mxu0 0.0
        %2711 = vmatpush2.msra.mxu0 0.0
        %2712 = vmatprep.subr.mxu0 0.0
        %2713 = vmatpush2.msra.mxu0 0.0
        %2714 = vmatprep.subr.mxu0 0.0
        %2715 = vmatpush2.msra.mxu0 0.0
        %2716 = vmatprep.subr.mxu0 0.0
        %2717 = vmatpush2.msra.mxu0 0.0
        %2718 = vmatprep.subr.mxu0 0.0
        %2719 = vmatpush2.msra.mxu0 0.0
        %2720 = vmatprep.subr.mxu0 0.0
        %2721 = vmatpush2.msra.mxu0 0.0
        %2722 = vmatprep.subr.mxu0 0.0
        %2723 = vmatpush2.msra.mxu0 0.0
        %2724 = vmatprep.mubr.f32.mxu0 0.0
        %2725 = vmatmul.mubr.f32.gmra.mxu0 %v2658
        %v2726 = vpop.f32.mrf.mxu0
        %v2727 = vadd.f32 %v1147, %v2726
        %v2728 = vpop.f32.mrf.mxu0
        %2729 = vdwg.mxu0
        %s2730 = scalar_lea.vmem [#allocation2], 3
        %v2731 = vld [vmem:[%s2730] ss:$8 sm:$0xf]
        %s2732 = scalar_lea.vmem [#allocation3], 3
        %v2733 = vld [vmem:[%s2732] ss:$8 sm:$0xf]
        %v2734 = vld [vmem:[%s2732] ss:$8 sm:$0xf0]
        %v2735 = vor.u32 %v2733, %v2734
        %s2736 = scalar_lea.vmem [#allocation4], 3
        %v2737 = vld [vmem:[%s2736] ss:$8 sm:$0xf]
        %v2738 = vld [vmem:[%s2736] ss:$8 sm:$0xf0]
        %v2739 = vor.u32 %v2737, %v2738
        %v2741 = vsel %vm468, %v2731, 0
        %v2744 = vsel %vm468, %v2735, 0
        %2746 = vmatprep.subr.mxu0 0.0
        %2747 = vmatpush1.xpose.msra.mxu0 0.0
        %2748 = vmatprep.subr.mxu0 0.0
        %2749 = vmatpush1.xpose.msra.mxu0 0.0
        %2750 = vmatprep.subr.mxu0 0.0
        %2751 = vmatpush1.xpose.msra.mxu0 0.0
        %2752 = vmatprep.subr.mxu0 0.0
        %2753 = vmatpush1.xpose.msra.mxu0 0.0
        %2754 = vmatprep.subr.mxu0 0.0
        %2755 = vmatpush1.xpose.msra.mxu0 0.0
        %2756 = vmatprep.subr.mxu0 0.0
        %2757 = vmatpush1.xpose.msra.mxu0 0.0
        %2758 = vmatprep.subr.mxu0 0.0
        %2759 = vmatpush1.xpose.msra.mxu0 0.0
        %2760 = vmatprep.subr.mxu0 0.0
        %2761 = vmatpush1.xpose.msra.mxu0 0.0
        %2762 = vmatprep.subr.mxu0 0.0
        %2763 = vmatpush1.xpose.msra.mxu0 0.0
        %2764 = vmatprep.subr.mxu0 0.0
        %2765 = vmatpush1.xpose.msra.mxu0 0.0
        %2766 = vmatprep.subr.mxu0 0.0
        %2767 = vmatpush1.xpose.msra.mxu0 0.0
        %2768 = vmatprep.subr.mxu0 0.0
        %2769 = vmatpush1.xpose.msra.mxu0 0.0
        %2770 = vmatprep.subr.mxu0 0.0
        %2771 = vmatpush1.xpose.msra.mxu0 0.0
        %2772 = vmatprep.subr.mxu0 0.0
        %2773 = vmatpush1.xpose.msra.mxu0 0.0
        %2774 = vmatprep.subr.mxu0 0.0
        %2775 = vmatpush1.xpose.msra.mxu0 0.0
        %2776 = vmatprep.subr.mxu0 0.0
        %2777 = vmatpush1.xpose.msra.mxu0 %v2744
        %2778 = vmatprep.subr.mxu0 0.0
        %2779 = vmatpush2.xpose.msra.mxu0 0.0
        %2780 = vmatprep.subr.mxu0 0.0
        %2781 = vmatpush2.xpose.msra.mxu0 0.0
        %2782 = vmatprep.subr.mxu0 0.0
        %2783 = vmatpush2.xpose.msra.mxu0 0.0
        %2784 = vmatprep.subr.mxu0 0.0
        %2785 = vmatpush2.xpose.msra.mxu0 0.0
        %2786 = vmatprep.subr.mxu0 0.0
        %2787 = vmatpush2.xpose.msra.mxu0 0.0
        %2788 = vmatprep.subr.mxu0 0.0
        %2789 = vmatpush2.xpose.msra.mxu0 0.0
        %2790 = vmatprep.subr.mxu0 0.0
        %2791 = vmatpush2.xpose.msra.mxu0 0.0
        %2792 = vmatprep.subr.mxu0 0.0
        %2793 = vmatpush2.xpose.msra.mxu0 0.0
        %2794 = vmatprep.subr.mxu0 0.0
        %2795 = vmatpush2.xpose.msra.mxu0 0.0
        %2796 = vmatprep.subr.mxu0 0.0
        %2797 = vmatpush2.xpose.msra.mxu0 0.0
        %2798 = vmatprep.subr.mxu0 0.0
        %2799 = vmatpush2.xpose.msra.mxu0 0.0
        %2800 = vmatprep.subr.mxu0 0.0
        %2801 = vmatpush2.xpose.msra.mxu0 0.0
        %2802 = vmatprep.subr.mxu0 0.0
        %2803 = vmatpush2.xpose.msra.mxu0 0.0
        %2804 = vmatprep.subr.mxu0 0.0
        %2805 = vmatpush2.xpose.msra.mxu0 0.0
        %2806 = vmatprep.subr.mxu0 0.0
        %2807 = vmatpush2.xpose.msra.mxu0 0.0
        %2808 = vmatprep.subr.mxu0 0.0
        %2809 = vmatpush2.xpose.msra.mxu0 0.0
        %2810 = vmatprep.mubr.f32.mxu0 0.0
        %2811 = vmatmul.mubr.f32.gmra.mxu0 %v2741
        %v2812 = vpop.f32.mrf.mxu0
        %v2813 = vadd.f32 0.0, %v2812
        %v2814 = vpop.f32.mrf.mxu0
        %2815 = vdwg.mxu0
        %v2816 = vsel %vm545, %v2813, -inf
        %2817 = vmax.xlane.f32.xlu0 %v2816
        %v2818 = vpop.xlane.xlu0 %2817
        %v2819 = vsub.f32 %v2813, %v2818
        %v2820 = vmul.f32 %v2819, 1.442695
        %v2821 = vpow.pop %v2820
        %v2822 = vsel %vm545, %v2821, 0.0
        %2823 = vadd.xlane.f32.xlu0 %v2822
        %v2824 = vpop.xlane.xlu0 %2823
        %v2826 = vsel %vm468, %v2821, 0
        %2828 = vmatprep.subr.mxu0 0.0
        %2829 = vmatpush1.msra.mxu0 0.0
        %2830 = vmatprep.subr.mxu0 0.0
        %2831 = vmatpush1.msra.mxu0 0.0
        %2832 = vmatprep.subr.mxu0 0.0
        %2833 = vmatpush1.msra.mxu0 0.0
        %2834 = vmatprep.subr.mxu0 0.0
        %2835 = vmatpush1.msra.mxu0 0.0
        %2836 = vmatprep.subr.mxu0 0.0
        %2837 = vmatpush1.msra.mxu0 0.0
        %2838 = vmatprep.subr.mxu0 0.0
        %2839 = vmatpush1.msra.mxu0 0.0
        %2840 = vmatprep.subr.mxu0 0.0
        %2841 = vmatpush1.msra.mxu0 0.0
        %2842 = vmatprep.subr.mxu0 0.0
        %2843 = vmatpush1.msra.mxu0 0.0
        %2844 = vmatprep.subr.mxu0 0.0
        %2845 = vmatpush1.msra.mxu0 0.0
        %2846 = vmatprep.subr.mxu0 0.0
        %2847 = vmatpush1.msra.mxu0 0.0
        %2848 = vmatprep.subr.mxu0 0.0
        %2849 = vmatpush1.msra.mxu0 0.0
        %2850 = vmatprep.subr.mxu0 0.0
        %2851 = vmatpush1.msra.mxu0 0.0
        %2852 = vmatprep.subr.mxu0 0.0
        %2853 = vmatpush1.msra.mxu0 0.0
        %2854 = vmatprep.subr.mxu0 0.0
        %2855 = vmatpush1.msra.mxu0 0.0
        %2856 = vmatprep.subr.mxu0 0.0
        %2857 = vmatpush1.msra.mxu0 0.0
        %2858 = vmatprep.subr.mxu0 0.0
        %2859 = vmatpush1.msra.mxu0 %v2739
        %2860 = vmatprep.subr.mxu0 0.0
        %2861 = vmatpush2.msra.mxu0 0.0
        %2862 = vmatprep.subr.mxu0 0.0
        %2863 = vmatpush2.msra.mxu0 0.0
        %2864 = vmatprep.subr.mxu0 0.0
        %2865 = vmatpush2.msra.mxu0 0.0
        %2866 = vmatprep.subr.mxu0 0.0
        %2867 = vmatpush2.msra.mxu0 0.0
        %2868 = vmatprep.subr.mxu0 0.0
        %2869 = vmatpush2.msra.mxu0 0.0
        %2870 = vmatprep.subr.mxu0 0.0
        %2871 = vmatpush2.msra.mxu0 0.0
        %2872 = vmatprep.subr.mxu0 0.0
        %2873 = vmatpush2.msra.mxu0 0.0
        %2874 = vmatprep.subr.mxu0 0.0
        %2875 = vmatpush2.msra.mxu0 0.0
        %2876 = vmatprep.subr.mxu0 0.0
        %2877 = vmatpush2.msra.mxu0 0.0
        %2878 = vmatprep.subr.mxu0 0.0
        %2879 = vmatpush2.msra.mxu0 0.0
        %2880 = vmatprep.subr.mxu0 0.0
        %2881 = vmatpush2.msra.mxu0 0.0
        %2882 = vmatprep.subr.mxu0 0.0
        %2883 = vmatpush2.msra.mxu0 0.0
        %2884 = vmatprep.subr.mxu0 0.0
        %2885 = vmatpush2.msra.mxu0 0.0
        %2886 = vmatprep.subr.mxu0 0.0
        %2887 = vmatpush2.msra.mxu0 0.0
        %2888 = vmatprep.subr.mxu0 0.0
        %2889 = vmatpush2.msra.mxu0 0.0
        %2890 = vmatprep.subr.mxu0 0.0
        %2891 = vmatpush2.msra.mxu0 0.0
        %2892 = vmatprep.mubr.f32.mxu0 0.0
        %2893 = vmatmul.mubr.f32.gmra.mxu0 %v2826
        %v2894 = vpop.f32.mrf.mxu0
        %v2895 = vadd.f32 0.0, %v2894
        %v2896 = vpop.f32.mrf.mxu0
        %2897 = vdwg.mxu0
        %v2898 = vrcp.pop %v2824
        %v2899 = vmul.f32 %v2895, %v2898
        %2900 = vrot.lane.b32.xlu0 %v2731, 120
        %v2901 = vpop.permute.xlu0 %2900
        %2902 = vrot.lane.b32.xlu0 %v2735, 120
        %v2903 = vpop.permute.xlu0 %2902
        %v2904 = vsel %vm468, %v2901, 0
        %v2906 = vsel %vm468, %v2903, 0
        %2908 = vmatprep.subr.mxu0 0.0
        %2909 = vmatpush1.xpose.msra.mxu0 0.0
        %2910 = vmatprep.subr.mxu0 0.0
        %2911 = vmatpush1.xpose.msra.mxu0 0.0
        %2912 = vmatprep.subr.mxu0 0.0
        %2913 = vmatpush1.xpose.msra.mxu0 0.0
        %2914 = vmatprep.subr.mxu0 0.0
        %2915 = vmatpush1.xpose.msra.mxu0 0.0
        %2916 = vmatprep.subr.mxu0 0.0
        %2917 = vmatpush1.xpose.msra.mxu0 0.0
        %2918 = vmatprep.subr.mxu0 0.0
        %2919 = vmatpush1.xpose.msra.mxu0 0.0
        %2920 = vmatprep.subr.mxu0 0.0
        %2921 = vmatpush1.xpose.msra.mxu0 0.0
        %2922 = vmatprep.subr.mxu0 0.0
        %2923 = vmatpush1.xpose.msra.mxu0 0.0
        %2924 = vmatprep.subr.mxu0 0.0
        %2925 = vmatpush1.xpose.msra.mxu0 0.0
        %2926 = vmatprep.subr.mxu0 0.0
        %2927 = vmatpush1.xpose.msra.mxu0 0.0
        %2928 = vmatprep.subr.mxu0 0.0
        %2929 = vmatpush1.xpose.msra.mxu0 0.0
        %2930 = vmatprep.subr.mxu0 0.0
        %2931 = vmatpush1.xpose.msra.mxu0 0.0
        %2932 = vmatprep.subr.mxu0 0.0
        %2933 = vmatpush1.xpose.msra.mxu0 0.0
        %2934 = vmatprep.subr.mxu0 0.0
        %2935 = vmatpush1.xpose.msra.mxu0 0.0
        %2936 = vmatprep.subr.mxu0 0.0
        %2937 = vmatpush1.xpose.msra.mxu0 0.0
        %2938 = vmatprep.subr.mxu0 0.0
        %2939 = vmatpush1.xpose.msra.mxu0 %v2906
        %2940 = vmatprep.subr.mxu0 0.0
        %2941 = vmatpush2.xpose.msra.mxu0 0.0
        %2942 = vmatprep.subr.mxu0 0.0
        %2943 = vmatpush2.xpose.msra.mxu0 0.0
        %2944 = vmatprep.subr.mxu0 0.0
        %2945 = vmatpush2.xpose.msra.mxu0 0.0
        %2946 = vmatprep.subr.mxu0 0.0
        %2947 = vmatpush2.xpose.msra.mxu0 0.0
        %2948 = vmatprep.subr.mxu0 0.0
        %2949 = vmatpush2.xpose.msra.mxu0 0.0
        %2950 = vmatprep.subr.mxu0 0.0
        %2951 = vmatpush2.xpose.msra.mxu0 0.0
        %2952 = vmatprep.subr.mxu0 0.0
        %2953 = vmatpush2.xpose.msra.mxu0 0.0
        %2954 = vmatprep.subr.mxu0 0.0
        %2955 = vmatpush2.xpose.msra.mxu0 0.0
        %2956 = vmatprep.subr.mxu0 0.0
        %2957 = vmatpush2.xpose.msra.mxu0 0.0
        %2958 = vmatprep.subr.mxu0 0.0
        %2959 = vmatpush2.xpose.msra.mxu0 0.0
        %2960 = vmatprep.subr.mxu0 0.0
        %2961 = vmatpush2.xpose.msra.mxu0 0.0
        %2962 = vmatprep.subr.mxu0 0.0
        %2963 = vmatpush2.xpose.msra.mxu0 0.0
        %2964 = vmatprep.subr.mxu0 0.0
        %2965 = vmatpush2.xpose.msra.mxu0 0.0
        %2966 = vmatprep.subr.mxu0 0.0
        %2967 = vmatpush2.xpose.msra.mxu0 0.0
        %2968 = vmatprep.subr.mxu0 0.0
        %2969 = vmatpush2.xpose.msra.mxu0 0.0
        %2970 = vmatprep.subr.mxu0 0.0
        %2971 = vmatpush2.xpose.msra.mxu0 0.0
        %2972 = vmatprep.mubr.f32.mxu0 0.0
        %2973 = vmatmul.mubr.f32.gmra.mxu0 %v2904
        %v2974 = vpop.f32.mrf.mxu0
        %v2975 = vadd.f32 0.0, %v2974
        %v2976 = vpop.f32.mrf.mxu0
        %2977 = vdwg.mxu0
        %v2978 = vsel %vm545, %v2975, -inf
        %2979 = vmax.xlane.f32.xlu0 %v2978
        %v2980 = vpop.xlane.xlu0 %2979
        %v2981 = vsub.f32 %v2975, %v2980
        %v2982 = vmul.f32 %v2981, 1.442695
        %v2983 = vpow.pop %v2982
        %v2984 = vsel %vm545, %v2983, 0.0
        %2985 = vadd.xlane.f32.xlu0 %v2984
        %v2986 = vpop.xlane.xlu0 %2985
        %2988 = vrot.lane.b32.xlu0 %v2739, 120
        %v2989 = vpop.permute.xlu0 %2988
        %v2992 = vsel %vm468, %v2983, 0
        %2994 = vmatprep.subr.mxu0 0.0
        %2995 = vmatpush1.msra.mxu0 0.0
        %2996 = vmatprep.subr.mxu0 0.0
        %2997 = vmatpush1.msra.mxu0 0.0
        %2998 = vmatprep.subr.mxu0 0.0
        %2999 = vmatpush1.msra.mxu0 0.0
        %3000 = vmatprep.subr.mxu0 0.0
        %3001 = vmatpush1.msra.mxu0 0.0
        %3002 = vmatprep.subr.mxu0 0.0
        %3003 = vmatpush1.msra.mxu0 0.0
        %3004 = vmatprep.subr.mxu0 0.0
        %3005 = vmatpush1.msra.mxu0 0.0
        %3006 = vmatprep.subr.mxu0 0.0
        %3007 = vmatpush1.msra.mxu0 0.0
        %3008 = vmatprep.subr.mxu0 0.0
        %3009 = vmatpush1.msra.mxu0 0.0
        %3010 = vmatprep.subr.mxu0 0.0
        %3011 = vmatpush1.msra.mxu0 0.0
        %3012 = vmatprep.subr.mxu0 0.0
        %3013 = vmatpush1.msra.mxu0 0.0
        %3014 = vmatprep.subr.mxu0 0.0
        %3015 = vmatpush1.msra.mxu0 0.0
        %3016 = vmatprep.subr.mxu0 0.0
        %3017 = vmatpush1.msra.mxu0 0.0
        %3018 = vmatprep.subr.mxu0 0.0
        %3019 = vmatpush1.msra.mxu0 0.0
        %3020 = vmatprep.subr.mxu0 0.0
        %3021 = vmatpush1.msra.mxu0 0.0
        %3022 = vmatprep.subr.mxu0 0.0
        %3023 = vmatpush1.msra.mxu0 0.0
        %3024 = vmatprep.subr.mxu0 0.0
        %3025 = vmatpush1.msra.mxu0 %v2989
        %3026 = vmatprep.subr.mxu0 0.0
        %3027 = vmatpush2.msra.mxu0 0.0
        %3028 = vmatprep.subr.mxu0 0.0
        %3029 = vmatpush2.msra.mxu0 0.0
        %3030 = vmatprep.subr.mxu0 0.0
        %3031 = vmatpush2.msra.mxu0 0.0
        %3032 = vmatprep.subr.mxu0 0.0
        %3033 = vmatpush2.msra.mxu0 0.0
        %3034 = vmatprep.subr.mxu0 0.0
        %3035 = vmatpush2.msra.mxu0 0.0
        %3036 = vmatprep.subr.mxu0 0.0
        %3037 = vmatpush2.msra.mxu0 0.0
        %3038 = vmatprep.subr.mxu0 0.0
        %3039 = vmatpush2.msra.mxu0 0.0
        %3040 = vmatprep.subr.mxu0 0.0
        %3041 = vmatpush2.msra.mxu0 0.0
        %3042 = vmatprep.subr.mxu0 0.0
        %3043 = vmatpush2.msra.mxu0 0.0
        %3044 = vmatprep.subr.mxu0 0.0
        %3045 = vmatpush2.msra.mxu0 0.0
        %3046 = vmatprep.subr.mxu0 0.0
        %3047 = vmatpush2.msra.mxu0 0.0
        %3048 = vmatprep.subr.mxu0 0.0
        %3049 = vmatpush2.msra.mxu0 0.0
        %3050 = vmatprep.subr.mxu0 0.0
        %3051 = vmatpush2.msra.mxu0 0.0
        %3052 = vmatprep.subr.mxu0 0.0
        %3053 = vmatpush2.msra.mxu0 0.0
        %3054 = vmatprep.subr.mxu0 0.0
        %3055 = vmatpush2.msra.mxu0 0.0
        %3056 = vmatprep.subr.mxu0 0.0
        %3057 = vmatpush2.msra.mxu0 0.0
        %3058 = vmatprep.mubr.f32.mxu0 0.0
        %3059 = vmatmul.mubr.f32.gmra.mxu0 %v2992
        %v3060 = vpop.f32.mrf.mxu0
        %v3061 = vadd.f32 0.0, %v3060
        %v3062 = vpop.f32.mrf.mxu0
        %3063 = vdwg.mxu0
        %v3064 = vrcp.pop %v2986
        %v3065 = vmul.f32 %v3061, %v3064
        %3066 = vrot.lane.b32.xlu0 %v2731, 112
        %v3067 = vpop.permute.xlu0 %3066
        %3068 = vrot.lane.b32.xlu0 %v2735, 112
        %v3069 = vpop.permute.xlu0 %3068
        %v3070 = vsel %vm468, %v3067, 0
        %v3072 = vsel %vm468, %v3069, 0
        %3074 = vmatprep.subr.mxu0 0.0
        %3075 = vmatpush1.xpose.msra.mxu0 0.0
        %3076 = vmatprep.subr.mxu0 0.0
        %3077 = vmatpush1.xpose.msra.mxu0 0.0
        %3078 = vmatprep.subr.mxu0 0.0
        %3079 = vmatpush1.xpose.msra.mxu0 0.0
        %3080 = vmatprep.subr.mxu0 0.0
        %3081 = vmatpush1.xpose.msra.mxu0 0.0
        %3082 = vmatprep.subr.mxu0 0.0
        %3083 = vmatpush1.xpose.msra.mxu0 0.0
        %3084 = vmatprep.subr.mxu0 0.0
        %3085 = vmatpush1.xpose.msra.mxu0 0.0
        %3086 = vmatprep.subr.mxu0 0.0
        %3087 = vmatpush1.xpose.msra.mxu0 0.0
        %3088 = vmatprep.subr.mxu0 0.0
        %3089 = vmatpush1.xpose.msra.mxu0 0.0
        %3090 = vmatprep.subr.mxu0 0.0
        %3091 = vmatpush1.xpose.msra.mxu0 0.0
        %3092 = vmatprep.subr.mxu0 0.0
        %3093 = vmatpush1.xpose.msra.mxu0 0.0
        %3094 = vmatprep.subr.mxu0 0.0
        %3095 = vmatpush1.xpose.msra.mxu0 0.0
        %3096 = vmatprep.subr.mxu0 0.0
        %3097 = vmatpush1.xpose.msra.mxu0 0.0
        %3098 = vmatprep.subr.mxu0 0.0
        %3099 = vmatpush1.xpose.msra.mxu0 0.0
        %3100 = vmatprep.subr.mxu0 0.0
        %3101 = vmatpush1.xpose.msra.mxu0 0.0
        %3102 = vmatprep.subr.mxu0 0.0
        %3103 = vmatpush1.xpose.msra.mxu0 0.0
        %3104 = vmatprep.subr.mxu0 0.0
        %3105 = vmatpush1.xpose.msra.mxu0 %v3072
        %3106 = vmatprep.subr.mxu0 0.0
        %3107 = vmatpush2.xpose.msra.mxu0 0.0
        %3108 = vmatprep.subr.mxu0 0.0
        %3109 = vmatpush2.xpose.msra.mxu0 0.0
        %3110 = vmatprep.subr.mxu0 0.0
        %3111 = vmatpush2.xpose.msra.mxu0 0.0
        %3112 = vmatprep.subr.mxu0 0.0
        %3113 = vmatpush2.xpose.msra.mxu0 0.0
        %3114 = vmatprep.subr.mxu0 0.0
        %3115 = vmatpush2.xpose.msra.mxu0 0.0
        %3116 = vmatprep.subr.mxu0 0.0
        %3117 = vmatpush2.xpose.msra.mxu0 0.0
        %3118 = vmatprep.subr.mxu0 0.0
        %3119 = vmatpush2.xpose.msra.mxu0 0.0
        %3120 = vmatprep.subr.mxu0 0.0
        %3121 = vmatpush2.xpose.msra.mxu0 0.0
        %3122 = vmatprep.subr.mxu0 0.0
        %3123 = vmatpush2.xpose.msra.mxu0 0.0
        %3124 = vmatprep.subr.mxu0 0.0
        %3125 = vmatpush2.xpose.msra.mxu0 0.0
        %3126 = vmatprep.subr.mxu0 0.0
        %3127 = vmatpush2.xpose.msra.mxu0 0.0
        %3128 = vmatprep.subr.mxu0 0.0
        %3129 = vmatpush2.xpose.msra.mxu0 0.0
        %3130 = vmatprep.subr.mxu0 0.0
        %3131 = vmatpush2.xpose.msra.mxu0 0.0
        %3132 = vmatprep.subr.mxu0 0.0
        %3133 = vmatpush2.xpose.msra.mxu0 0.0
        %3134 = vmatprep.subr.mxu0 0.0
        %3135 = vmatpush2.xpose.msra.mxu0 0.0
        %3136 = vmatprep.subr.mxu0 0.0
        %3137 = vmatpush2.xpose.msra.mxu0 0.0
        %3138 = vmatprep.mubr.f32.mxu0 0.0
        %3139 = vmatmul.mubr.f32.gmra.mxu0 %v3070
        %v3140 = vpop.f32.mrf.mxu0
        %v3141 = vadd.f32 0.0, %v3140
        %v3142 = vpop.f32.mrf.mxu0
        %3143 = vdwg.mxu0
        %v3144 = vsel %vm545, %v3141, -inf
        %3145 = vmax.xlane.f32.xlu0 %v3144
        %v3146 = vpop.xlane.xlu0 %3145
        %v3147 = vsub.f32 %v3141, %v3146
        %v3148 = vmul.f32 %v3147, 1.442695
        %v3149 = vpow.pop %v3148
        %v3150 = vsel %vm545, %v3149, 0.0
        %3151 = vadd.xlane.f32.xlu0 %v3150
        %v3152 = vpop.xlane.xlu0 %3151
        %3153 = vrot.lane.b32.xlu0 %v2739, 112
        %v3154 = vpop.permute.xlu0 %3153
        %v3157 = vsel %vm468, %v3149, 0
        %3159 = vmatprep.subr.mxu0 0.0
        %3160 = vmatpush1.msra.mxu0 0.0
        %3161 = vmatprep.subr.mxu0 0.0
        %3162 = vmatpush1.msra.mxu0 0.0
        %3163 = vmatprep.subr.mxu0 0.0
        %3164 = vmatpush1.msra.mxu0 0.0
        %3165 = vmatprep.subr.mxu0 0.0
        %3166 = vmatpush1.msra.mxu0 0.0
        %3167 = vmatprep.subr.mxu0 0.0
        %3168 = vmatpush1.msra.mxu0 0.0
        %3169 = vmatprep.subr.mxu0 0.0
        %3170 = vmatpush1.msra.mxu0 0.0
        %3171 = vmatprep.subr.mxu0 0.0
        %3172 = vmatpush1.msra.mxu0 0.0
        %3173 = vmatprep.subr.mxu0 0.0
        %3174 = vmatpush1.msra.mxu0 0.0
        %3175 = vmatprep.subr.mxu0 0.0
        %3176 = vmatpush1.msra.mxu0 0.0
        %3177 = vmatprep.subr.mxu0 0.0
        %3178 = vmatpush1.msra.mxu0 0.0
        %3179 = vmatprep.subr.mxu0 0.0
        %3180 = vmatpush1.msra.mxu0 0.0
        %3181 = vmatprep.subr.mxu0 0.0
        %3182 = vmatpush1.msra.mxu0 0.0
        %3183 = vmatprep.subr.mxu0 0.0
        %3184 = vmatpush1.msra.mxu0 0.0
        %3185 = vmatprep.subr.mxu0 0.0
        %3186 = vmatpush1.msra.mxu0 0.0
        %3187 = vmatprep.subr.mxu0 0.0
        %3188 = vmatpush1.msra.mxu0 0.0
        %3189 = vmatprep.subr.mxu0 0.0
        %3190 = vmatpush1.msra.mxu0 %v3154
        %3191 = vmatprep.subr.mxu0 0.0
        %3192 = vmatpush2.msra.mxu0 0.0
        %3193 = vmatprep.subr.mxu0 0.0
        %3194 = vmatpush2.msra.mxu0 0.0
        %3195 = vmatprep.subr.mxu0 0.0
        %3196 = vmatpush2.msra.mxu0 0.0
        %3197 = vmatprep.subr.mxu0 0.0
        %3198 = vmatpush2.msra.mxu0 0.0
        %3199 = vmatprep.subr.mxu0 0.0
        %3200 = vmatpush2.msra.mxu0 0.0
        %3201 = vmatprep.subr.mxu0 0.0
        %3202 = vmatpush2.msra.mxu0 0.0
        %3203 = vmatprep.subr.mxu0 0.0
        %3204 = vmatpush2.msra.mxu0 0.0
        %3205 = vmatprep.subr.mxu0 0.0
        %3206 = vmatpush2.msra.mxu0 0.0
        %3207 = vmatprep.subr.mxu0 0.0
        %3208 = vmatpush2.msra.mxu0 0.0
        %3209 = vmatprep.subr.mxu0 0.0
        %3210 = vmatpush2.msra.mxu0 0.0
        %3211 = vmatprep.subr.mxu0 0.0
        %3212 = vmatpush2.msra.mxu0 0.0
        %3213 = vmatprep.subr.mxu0 0.0
        %3214 = vmatpush2.msra.mxu0 0.0
        %3215 = vmatprep.subr.mxu0 0.0
        %3216 = vmatpush2.msra.mxu0 0.0
        %3217 = vmatprep.subr.mxu0 0.0
        %3218 = vmatpush2.msra.mxu0 0.0
        %3219 = vmatprep.subr.mxu0 0.0
        %3220 = vmatpush2.msra.mxu0 0.0
        %3221 = vmatprep.subr.mxu0 0.0
        %3222 = vmatpush2.msra.mxu0 0.0
        %3223 = vmatprep.mubr.f32.mxu0 0.0
        %3224 = vmatmul.mubr.f32.gmra.mxu0 %v3157
        %v3225 = vpop.f32.mrf.mxu0
        %v3226 = vadd.f32 0.0, %v3225
        %v3227 = vpop.f32.mrf.mxu0
        %3228 = vdwg.mxu0
        %v3229 = vrcp.pop %v3152
        %v3230 = vmul.f32 %v3226, %v3229
        %3231 = vrot.lane.b32.xlu0 %v2731, 104
        %v3232 = vpop.permute.xlu0 %3231
        %3233 = vrot.lane.b32.xlu0 %v2735, 104
        %v3234 = vpop.permute.xlu0 %3233
        %v3235 = vsel %vm468, %v3232, 0
        %v3237 = vsel %vm468, %v3234, 0
        %3239 = vmatprep.subr.mxu0 0.0
        %3240 = vmatpush1.xpose.msra.mxu0 0.0
        %3241 = vmatprep.subr.mxu0 0.0
        %3242 = vmatpush1.xpose.msra.mxu0 0.0
        %3243 = vmatprep.subr.mxu0 0.0
        %3244 = vmatpush1.xpose.msra.mxu0 0.0
        %3245 = vmatprep.subr.mxu0 0.0
        %3246 = vmatpush1.xpose.msra.mxu0 0.0
        %3247 = vmatprep.subr.mxu0 0.0
        %3248 = vmatpush1.xpose.msra.mxu0 0.0
        %3249 = vmatprep.subr.mxu0 0.0
        %3250 = vmatpush1.xpose.msra.mxu0 0.0
        %3251 = vmatprep.subr.mxu0 0.0
        %3252 = vmatpush1.xpose.msra.mxu0 0.0
        %3253 = vmatprep.subr.mxu0 0.0
        %3254 = vmatpush1.xpose.msra.mxu0 0.0
        %3255 = vmatprep.subr.mxu0 0.0
        %3256 = vmatpush1.xpose.msra.mxu0 0.0
        %3257 = vmatprep.subr.mxu0 0.0
        %3258 = vmatpush1.xpose.msra.mxu0 0.0
        %3259 = vmatprep.subr.mxu0 0.0
        %3260 = vmatpush1.xpose.msra.mxu0 0.0
        %3261 = vmatprep.subr.mxu0 0.0
        %3262 = vmatpush1.xpose.msra.mxu0 0.0
        %3263 = vmatprep.subr.mxu0 0.0
        %3264 = vmatpush1.xpose.msra.mxu0 0.0
        %3265 = vmatprep.subr.mxu0 0.0
        %3266 = vmatpush1.xpose.msra.mxu0 0.0
        %3267 = vmatprep.subr.mxu0 0.0
        %3268 = vmatpush1.xpose.msra.mxu0 0.0
        %3269 = vmatprep.subr.mxu0 0.0
        %3270 = vmatpush1.xpose.msra.mxu0 %v3237
        %3271 = vmatprep.subr.mxu0 0.0
        %3272 = vmatpush2.xpose.msra.mxu0 0.0
        %3273 = vmatprep.subr.mxu0 0.0
        %3274 = vmatpush2.xpose.msra.mxu0 0.0
        %3275 = vmatprep.subr.mxu0 0.0
        %3276 = vmatpush2.xpose.msra.mxu0 0.0
        %3277 = vmatprep.subr.mxu0 0.0
        %3278 = vmatpush2.xpose.msra.mxu0 0.0
        %3279 = vmatprep.subr.mxu0 0.0
        %3280 = vmatpush2.xpose.msra.mxu0 0.0
        %3281 = vmatprep.subr.mxu0 0.0
        %3282 = vmatpush2.xpose.msra.mxu0 0.0
        %3283 = vmatprep.subr.mxu0 0.0
        %3284 = vmatpush2.xpose.msra.mxu0 0.0
        %3285 = vmatprep.subr.mxu0 0.0
        %3286 = vmatpush2.xpose.msra.mxu0 0.0
        %3287 = vmatprep.subr.mxu0 0.0
        %3288 = vmatpush2.xpose.msra.mxu0 0.0
        %3289 = vmatprep.subr.mxu0 0.0
        %3290 = vmatpush2.xpose.msra.mxu0 0.0
        %3291 = vmatprep.subr.mxu0 0.0
        %3292 = vmatpush2.xpose.msra.mxu0 0.0
        %3293 = vmatprep.subr.mxu0 0.0
        %3294 = vmatpush2.xpose.msra.mxu0 0.0
        %3295 = vmatprep.subr.mxu0 0.0
        %3296 = vmatpush2.xpose.msra.mxu0 0.0
        %3297 = vmatprep.subr.mxu0 0.0
        %3298 = vmatpush2.xpose.msra.mxu0 0.0
        %3299 = vmatprep.subr.mxu0 0.0
        %3300 = vmatpush2.xpose.msra.mxu0 0.0
        %3301 = vmatprep.subr.mxu0 0.0
        %3302 = vmatpush2.xpose.msra.mxu0 0.0
        %3303 = vmatprep.mubr.f32.mxu0 0.0
        %3304 = vmatmul.mubr.f32.gmra.mxu0 %v3235
        %v3305 = vpop.f32.mrf.mxu0
        %v3306 = vadd.f32 0.0, %v3305
        %v3307 = vpop.f32.mrf.mxu0
        %3308 = vdwg.mxu0
        %v3309 = vsel %vm545, %v3306, -inf
        %3310 = vmax.xlane.f32.xlu0 %v3309
        %v3311 = vpop.xlane.xlu0 %3310
        %v3312 = vsub.f32 %v3306, %v3311
        %v3313 = vmul.f32 %v3312, 1.442695
        %v3314 = vpow.pop %v3313
        %v3315 = vsel %vm545, %v3314, 0.0
        %3316 = vadd.xlane.f32.xlu0 %v3315
        %v3317 = vpop.xlane.xlu0 %3316
        %3318 = vrot.lane.b32.xlu0 %v2739, 104
        %v3319 = vpop.permute.xlu0 %3318
        %v3322 = vsel %vm468, %v3314, 0
        %3324 = vmatprep.subr.mxu0 0.0
        %3325 = vmatpush1.msra.mxu0 0.0
        %3326 = vmatprep.subr.mxu0 0.0
        %3327 = vmatpush1.msra.mxu0 0.0
        %3328 = vmatprep.subr.mxu0 0.0
        %3329 = vmatpush1.msra.mxu0 0.0
        %3330 = vmatprep.subr.mxu0 0.0
        %3331 = vmatpush1.msra.mxu0 0.0
        %3332 = vmatprep.subr.mxu0 0.0
        %3333 = vmatpush1.msra.mxu0 0.0
        %3334 = vmatprep.subr.mxu0 0.0
        %3335 = vmatpush1.msra.mxu0 0.0
        %3336 = vmatprep.subr.mxu0 0.0
        %3337 = vmatpush1.msra.mxu0 0.0
        %3338 = vmatprep.subr.mxu0 0.0
        %3339 = vmatpush1.msra.mxu0 0.0
        %3340 = vmatprep.subr.mxu0 0.0
        %3341 = vmatpush1.msra.mxu0 0.0
        %3342 = vmatprep.subr.mxu0 0.0
        %3343 = vmatpush1.msra.mxu0 0.0
        %3344 = vmatprep.subr.mxu0 0.0
        %3345 = vmatpush1.msra.mxu0 0.0
        %3346 = vmatprep.subr.mxu0 0.0
        %3347 = vmatpush1.msra.mxu0 0.0
        %3348 = vmatprep.subr.mxu0 0.0
        %3349 = vmatpush1.msra.mxu0 0.0
        %3350 = vmatprep.subr.mxu0 0.0
        %3351 = vmatpush1.msra.mxu0 0.0
        %3352 = vmatprep.subr.mxu0 0.0
        %3353 = vmatpush1.msra.mxu0 0.0
        %3354 = vmatprep.subr.mxu0 0.0
        %3355 = vmatpush1.msra.mxu0 %v3319
        %3356 = vmatprep.subr.mxu0 0.0
        %3357 = vmatpush2.msra.mxu0 0.0
        %3358 = vmatprep.subr.mxu0 0.0
        %3359 = vmatpush2.msra.mxu0 0.0
        %3360 = vmatprep.subr.mxu0 0.0
        %3361 = vmatpush2.msra.mxu0 0.0
        %3362 = vmatprep.subr.mxu0 0.0
        %3363 = vmatpush2.msra.mxu0 0.0
        %3364 = vmatprep.subr.mxu0 0.0
        %3365 = vmatpush2.msra.mxu0 0.0
        %3366 = vmatprep.subr.mxu0 0.0
        %3367 = vmatpush2.msra.mxu0 0.0
        %3368 = vmatprep.subr.mxu0 0.0
        %3369 = vmatpush2.msra.mxu0 0.0
        %3370 = vmatprep.subr.mxu0 0.0
        %3371 = vmatpush2.msra.mxu0 0.0
        %3372 = vmatprep.subr.mxu0 0.0
        %3373 = vmatpush2.msra.mxu0 0.0
        %3374 = vmatprep.subr.mxu0 0.0
        %3375 = vmatpush2.msra.mxu0 0.0
        %3376 = vmatprep.subr.mxu0 0.0
        %3377 = vmatpush2.msra.mxu0 0.0
        %3378 = vmatprep.subr.mxu0 0.0
        %3379 = vmatpush2.msra.mxu0 0.0
        %3380 = vmatprep.subr.mxu0 0.0
        %3381 = vmatpush2.msra.mxu0 0.0
        %3382 = vmatprep.subr.mxu0 0.0
        %3383 = vmatpush2.msra.mxu0 0.0
        %3384 = vmatprep.subr.mxu0 0.0
        %3385 = vmatpush2.msra.mxu0 0.0
        %3386 = vmatprep.subr.mxu0 0.0
        %3387 = vmatpush2.msra.mxu0 0.0
        %3388 = vmatprep.mubr.f32.mxu0 0.0
        %3389 = vmatmul.mubr.f32.gmra.mxu0 %v3322
        %v3390 = vpop.f32.mrf.mxu0
        %v3391 = vadd.f32 0.0, %v3390
        %v3392 = vpop.f32.mrf.mxu0
        %3393 = vdwg.mxu0
        %v3394 = vrcp.pop %v3317
        %v3395 = vmul.f32 %v3391, %v3394
        %3397 = vrot.lane.b32.xlu0 %v3065, 8
        %v3398 = vpop.permute.xlu0 %3397
        %3401 = vrot.lane.b32.xlu0 %v3230, 16
        %v3402 = vpop.permute.xlu0 %3401
        %3405 = vrot.lane.b32.xlu0 %v3395, 24
        %v3406 = vpop.permute.xlu0 %3405
        %v3408 = vsel %vm468, %v2899, %v3398
        %v3409 = vsel %vm1139, %v3408, %v3402
        %v3410 = vsel %vm1141, %v3409, %v3406
        %v3412 = vsel %vm247, %v3410, 0
        %3414 = vmatprep.subr.mxu0 0.0
        %3415 = vmatpush1.msra.mxu0 0.0
        %3416 = vmatprep.subr.mxu0 0.0
        %3417 = vmatpush1.msra.mxu0 0.0
        %3418 = vmatprep.subr.mxu0 0.0
        %3419 = vmatpush1.msra.mxu0 0.0
        %3420 = vmatprep.subr.mxu0 0.0
        %3421 = vmatpush1.msra.mxu0 0.0
        %3422 = vmatprep.subr.mxu0 0.0
        %3423 = vmatpush1.msra.mxu0 0.0
        %3424 = vmatprep.subr.mxu0 0.0
        %3425 = vmatpush1.msra.mxu0 0.0
        %3426 = vmatprep.subr.mxu0 0.0
        %3427 = vmatpush1.msra.mxu0 0.0
        %3428 = vmatprep.subr.mxu0 0.0
        %3429 = vmatpush1.msra.mxu0 0.0
        %3430 = vmatprep.subr.mxu0 0.0
        %3431 = vmatpush1.msra.mxu0 0.0
        %3432 = vmatprep.subr.mxu0 0.0
        %3433 = vmatpush1.msra.mxu0 0.0
        %3434 = vmatprep.subr.mxu0 0.0
        %3435 = vmatpush1.msra.mxu0 0.0
        %3436 = vmatprep.subr.mxu0 0.0
        %3437 = vmatpush1.msra.mxu0 0.0
        %3438 = vmatprep.subr.mxu0 0.0
        %3439 = vmatpush1.msra.mxu0 %v234
        %3440 = vmatprep.subr.mxu0 0.0
        %3441 = vmatpush1.msra.mxu0 %v233
        %3442 = vmatprep.subr.mxu0 0.0
        %3443 = vmatpush1.msra.mxu0 %v232
        %3444 = vmatprep.subr.mxu0 0.0
        %3445 = vmatpush1.msra.mxu0 %v231
        %3446 = vmatprep.subr.mxu0 0.0
        %3447 = vmatpush2.msra.mxu0 0.0
        %3448 = vmatprep.subr.mxu0 0.0
        %3449 = vmatpush2.msra.mxu0 0.0
        %3450 = vmatprep.subr.mxu0 0.0
        %3451 = vmatpush2.msra.mxu0 0.0
        %3452 = vmatprep.subr.mxu0 0.0
        %3453 = vmatpush2.msra.mxu0 0.0
        %3454 = vmatprep.subr.mxu0 0.0
        %3455 = vmatpush2.msra.mxu0 0.0
        %3456 = vmatprep.subr.mxu0 0.0
        %3457 = vmatpush2.msra.mxu0 0.0
        %3458 = vmatprep.subr.mxu0 0.0
        %3459 = vmatpush2.msra.mxu0 0.0
        %3460 = vmatprep.subr.mxu0 0.0
        %3461 = vmatpush2.msra.mxu0 0.0
        %3462 = vmatprep.subr.mxu0 0.0
        %3463 = vmatpush2.msra.mxu0 0.0
        %3464 = vmatprep.subr.mxu0 0.0
        %3465 = vmatpush2.msra.mxu0 0.0
        %3466 = vmatprep.subr.mxu0 0.0
        %3467 = vmatpush2.msra.mxu0 0.0
        %3468 = vmatprep.subr.mxu0 0.0
        %3469 = vmatpush2.msra.mxu0 0.0
        %3470 = vmatprep.subr.mxu0 0.0
        %3471 = vmatpush2.msra.mxu0 0.0
        %3472 = vmatprep.subr.mxu0 0.0
        %3473 = vmatpush2.msra.mxu0 0.0
        %3474 = vmatprep.subr.mxu0 0.0
        %3475 = vmatpush2.msra.mxu0 0.0
        %3476 = vmatprep.subr.mxu0 0.0
        %3477 = vmatpush2.msra.mxu0 0.0
        %3478 = vmatprep.mubr.f32.mxu0 0.0
        %3479 = vmatmul.mubr.f32.gmra.mxu0 %v3412
        %v3480 = vpop.f32.mrf.mxu0
        %v3481 = vadd.f32 %v1147, %v3480
        %v3482 = vpop.f32.mrf.mxu0
        %3483 = vdwg.mxu0
        %s3484 = scalar_lea.vmem [#allocation2], 4
        %v3485 = vld [vmem:[%s3484] ss:$8 sm:$0xf]
        %s3486 = scalar_lea.vmem [#allocation3], 4
        %v3487 = vld [vmem:[%s3486] ss:$8 sm:$0xf]
        %v3488 = vld [vmem:[%s3486] ss:$8 sm:$0xf0]
        %v3489 = vor.u32 %v3487, %v3488
        %s3490 = scalar_lea.vmem [#allocation4], 4
        %v3491 = vld [vmem:[%s3490] ss:$8 sm:$0xf]
        %v3492 = vld [vmem:[%s3490] ss:$8 sm:$0xf0]
        %v3493 = vor.u32 %v3491, %v3492
        %v3495 = vsel %vm468, %v3485, 0
        %v3498 = vsel %vm468, %v3489, 0
        %3500 = vmatprep.subr.mxu0 0.0
        %3501 = vmatpush1.xpose.msra.mxu0 0.0
        %3502 = vmatprep.subr.mxu0 0.0
        %3503 = vmatpush1.xpose.msra.mxu0 0.0
        %3504 = vmatprep.subr.mxu0 0.0
        %3505 = vmatpush1.xpose.msra.mxu0 0.0
        %3506 = vmatprep.subr.mxu0 0.0
        %3507 = vmatpush1.xpose.msra.mxu0 0.0
        %3508 = vmatprep.subr.mxu0 0.0
        %3509 = vmatpush1.xpose.msra.mxu0 0.0
        %3510 = vmatprep.subr.mxu0 0.0
        %3511 = vmatpush1.xpose.msra.mxu0 0.0
        %3512 = vmatprep.subr.mxu0 0.0
        %3513 = vmatpush1.xpose.msra.mxu0 0.0
        %3514 = vmatprep.subr.mxu0 0.0
        %3515 = vmatpush1.xpose.msra.mxu0 0.0
        %3516 = vmatprep.subr.mxu0 0.0
        %3517 = vmatpush1.xpose.msra.mxu0 0.0
        %3518 = vmatprep.subr.mxu0 0.0
        %3519 = vmatpush1.xpose.msra.mxu0 0.0
        %3520 = vmatprep.subr.mxu0 0.0
        %3521 = vmatpush1.xpose.msra.mxu0 0.0
        %3522 = vmatprep.subr.mxu0 0.0
        %3523 = vmatpush1.xpose.msra.mxu0 0.0
        %3524 = vmatprep.subr.mxu0 0.0
        %3525 = vmatpush1.xpose.msra.mxu0 0.0
        %3526 = vmatprep.subr.mxu0 0.0
        %3527 = vmatpush1.xpose.msra.mxu0 0.0
        %3528 = vmatprep.subr.mxu0 0.0
        %3529 = vmatpush1.xpose.msra.mxu0 0.0
        %3530 = vmatprep.subr.mxu0 0.0
        %3531 = vmatpush1.xpose.msra.mxu0 %v3498
        %3532 = vmatprep.subr.mxu0 0.0
        %3533 = vmatpush2.xpose.msra.mxu0 0.0
        %3534 = vmatprep.subr.mxu0 0.0
        %3535 = vmatpush2.xpose.msra.mxu0 0.0
        %3536 = vmatprep.subr.mxu0 0.0
        %3537 = vmatpush2.xpose.msra.mxu0 0.0
        %3538 = vmatprep.subr.mxu0 0.0
        %3539 = vmatpush2.xpose.msra.mxu0 0.0
        %3540 = vmatprep.subr.mxu0 0.0
        %3541 = vmatpush2.xpose.msra.mxu0 0.0
        %3542 = vmatprep.subr.mxu0 0.0
        %3543 = vmatpush2.xpose.msra.mxu0 0.0
        %3544 = vmatprep.subr.mxu0 0.0
        %3545 = vmatpush2.xpose.msra.mxu0 0.0
        %3546 = vmatprep.subr.mxu0 0.0
        %3547 = vmatpush2.xpose.msra.mxu0 0.0
        %3548 = vmatprep.subr.mxu0 0.0
        %3549 = vmatpush2.xpose.msra.mxu0 0.0
        %3550 = vmatprep.subr.mxu0 0.0
        %3551 = vmatpush2.xpose.msra.mxu0 0.0
        %3552 = vmatprep.subr.mxu0 0.0
        %3553 = vmatpush2.xpose.msra.mxu0 0.0
        %3554 = vmatprep.subr.mxu0 0.0
        %3555 = vmatpush2.xpose.msra.mxu0 0.0
        %3556 = vmatprep.subr.mxu0 0.0
        %3557 = vmatpush2.xpose.msra.mxu0 0.0
        %3558 = vmatprep.subr.mxu0 0.0
        %3559 = vmatpush2.xpose.msra.mxu0 0.0
        %3560 = vmatprep.subr.mxu0 0.0
        %3561 = vmatpush2.xpose.msra.mxu0 0.0
        %3562 = vmatprep.subr.mxu0 0.0
        %3563 = vmatpush2.xpose.msra.mxu0 0.0
        %3564 = vmatprep.mubr.f32.mxu0 0.0
        %3565 = vmatmul.mubr.f32.gmra.mxu0 %v3495
        %v3566 = vpop.f32.mrf.mxu0
        %v3567 = vadd.f32 0.0, %v3566
        %v3568 = vpop.f32.mrf.mxu0
        %3569 = vdwg.mxu0
        %v3570 = vsel %vm545, %v3567, -inf
        %3571 = vmax.xlane.f32.xlu0 %v3570
        %v3572 = vpop.xlane.xlu0 %3571
        %v3573 = vsub.f32 %v3567, %v3572
        %v3574 = vmul.f32 %v3573, 1.442695
        %v3575 = vpow.pop %v3574
        %v3576 = vsel %vm545, %v3575, 0.0
        %3577 = vadd.xlane.f32.xlu0 %v3576
        %v3578 = vpop.xlane.xlu0 %3577
        %v3580 = vsel %vm468, %v3575, 0
        %3582 = vmatprep.subr.mxu0 0.0
        %3583 = vmatpush1.msra.mxu0 0.0
        %3584 = vmatprep.subr.mxu0 0.0
        %3585 = vmatpush1.msra.mxu0 0.0
        %3586 = vmatprep.subr.mxu0 0.0
        %3587 = vmatpush1.msra.mxu0 0.0
        %3588 = vmatprep.subr.mxu0 0.0
        %3589 = vmatpush1.msra.mxu0 0.0
        %3590 = vmatprep.subr.mxu0 0.0
        %3591 = vmatpush1.msra.mxu0 0.0
        %3592 = vmatprep.subr.mxu0 0.0
        %3593 = vmatpush1.msra.mxu0 0.0
        %3594 = vmatprep.subr.mxu0 0.0
        %3595 = vmatpush1.msra.mxu0 0.0
        %3596 = vmatprep.subr.mxu0 0.0
        %3597 = vmatpush1.msra.mxu0 0.0
        %3598 = vmatprep.subr.mxu0 0.0
        %3599 = vmatpush1.msra.mxu0 0.0
        %3600 = vmatprep.subr.mxu0 0.0
        %3601 = vmatpush1.msra.mxu0 0.0
        %3602 = vmatprep.subr.mxu0 0.0
        %3603 = vmatpush1.msra.mxu0 0.0
        %3604 = vmatprep.subr.mxu0 0.0
        %3605 = vmatpush1.msra.mxu0 0.0
        %3606 = vmatprep.subr.mxu0 0.0
        %3607 = vmatpush1.msra.mxu0 0.0
        %3608 = vmatprep.subr.mxu0 0.0
        %3609 = vmatpush1.msra.mxu0 0.0
        %3610 = vmatprep.subr.mxu0 0.0
        %3611 = vmatpush1.msra.mxu0 0.0
        %3612 = vmatprep.subr.mxu0 0.0
        %3613 = vmatpush1.msra.mxu0 %v3493
        %3614 = vmatprep.subr.mxu0 0.0
        %3615 = vmatpush2.msra.mxu0 0.0
        %3616 = vmatprep.subr.mxu0 0.0
        %3617 = vmatpush2.msra.mxu0 0.0
        %3618 = vmatprep.subr.mxu0 0.0
        %3619 = vmatpush2.msra.mxu0 0.0
        %3620 = vmatprep.subr.mxu0 0.0
        %3621 = vmatpush2.msra.mxu0 0.0
        %3622 = vmatprep.subr.mxu0 0.0
        %3623 = vmatpush2.msra.mxu0 0.0
        %3624 = vmatprep.subr.mxu0 0.0
        %3625 = vmatpush2.msra.mxu0 0.0
        %3626 = vmatprep.subr.mxu0 0.0
        %3627 = vmatpush2.msra.mxu0 0.0
        %3628 = vmatprep.subr.mxu0 0.0
        %3629 = vmatpush2.msra.mxu0 0.0
        %3630 = vmatprep.subr.mxu0 0.0
        %3631 = vmatpush2.msra.mxu0 0.0
        %3632 = vmatprep.subr.mxu0 0.0
        %3633 = vmatpush2.msra.mxu0 0.0
        %3634 = vmatprep.subr.mxu0 0.0
        %3635 = vmatpush2.msra.mxu0 0.0
        %3636 = vmatprep.subr.mxu0 0.0
        %3637 = vmatpush2.msra.mxu0 0.0
        %3638 = vmatprep.subr.mxu0 0.0
        %3639 = vmatpush2.msra.mxu0 0.0
        %3640 = vmatprep.subr.mxu0 0.0
        %3641 = vmatpush2.msra.mxu0 0.0
        %3642 = vmatprep.subr.mxu0 0.0
        %3643 = vmatpush2.msra.mxu0 0.0
        %3644 = vmatprep.subr.mxu0 0.0
        %3645 = vmatpush2.msra.mxu0 0.0
        %3646 = vmatprep.mubr.f32.mxu0 0.0
        %3647 = vmatmul.mubr.f32.gmra.mxu0 %v3580
        %v3648 = vpop.f32.mrf.mxu0
        %v3649 = vadd.f32 0.0, %v3648
        %v3650 = vpop.f32.mrf.mxu0
        %3651 = vdwg.mxu0
        %v3652 = vrcp.pop %v3578
        %v3653 = vmul.f32 %v3649, %v3652
        %3654 = vrot.lane.b32.xlu0 %v3485, 120
        %v3655 = vpop.permute.xlu0 %3654
        %3656 = vrot.lane.b32.xlu0 %v3489, 120
        %v3657 = vpop.permute.xlu0 %3656
        %v3658 = vsel %vm468, %v3655, 0
        %v3660 = vsel %vm468, %v3657, 0
        %3662 = vmatprep.subr.mxu0 0.0
        %3663 = vmatpush1.xpose.msra.mxu0 0.0
        %3664 = vmatprep.subr.mxu0 0.0
        %3665 = vmatpush1.xpose.msra.mxu0 0.0
        %3666 = vmatprep.subr.mxu0 0.0
        %3667 = vmatpush1.xpose.msra.mxu0 0.0
        %3668 = vmatprep.subr.mxu0 0.0
        %3669 = vmatpush1.xpose.msra.mxu0 0.0
        %3670 = vmatprep.subr.mxu0 0.0
        %3671 = vmatpush1.xpose.msra.mxu0 0.0
        %3672 = vmatprep.subr.mxu0 0.0
        %3673 = vmatpush1.xpose.msra.mxu0 0.0
        %3674 = vmatprep.subr.mxu0 0.0
        %3675 = vmatpush1.xpose.msra.mxu0 0.0
        %3676 = vmatprep.subr.mxu0 0.0
        %3677 = vmatpush1.xpose.msra.mxu0 0.0
        %3678 = vmatprep.subr.mxu0 0.0
        %3679 = vmatpush1.xpose.msra.mxu0 0.0
        %3680 = vmatprep.subr.mxu0 0.0
        %3681 = vmatpush1.xpose.msra.mxu0 0.0
        %3682 = vmatprep.subr.mxu0 0.0
        %3683 = vmatpush1.xpose.msra.mxu0 0.0
        %3684 = vmatprep.subr.mxu0 0.0
        %3685 = vmatpush1.xpose.msra.mxu0 0.0
        %3686 = vmatprep.subr.mxu0 0.0
        %3687 = vmatpush1.xpose.msra.mxu0 0.0
        %3688 = vmatprep.subr.mxu0 0.0
        %3689 = vmatpush1.xpose.msra.mxu0 0.0
        %3690 = vmatprep.subr.mxu0 0.0
        %3691 = vmatpush1.xpose.msra.mxu0 0.0
        %3692 = vmatprep.subr.mxu0 0.0
        %3693 = vmatpush1.xpose.msra.mxu0 %v3660
        %3694 = vmatprep.subr.mxu0 0.0
        %3695 = vmatpush2.xpose.msra.mxu0 0.0
        %3696 = vmatprep.subr.mxu0 0.0
        %3697 = vmatpush2.xpose.msra.mxu0 0.0
        %3698 = vmatprep.subr.mxu0 0.0
        %3699 = vmatpush2.xpose.msra.mxu0 0.0
        %3700 = vmatprep.subr.mxu0 0.0
        %3701 = vmatpush2.xpose.msra.mxu0 0.0
        %3702 = vmatprep.subr.mxu0 0.0
        %3703 = vmatpush2.xpose.msra.mxu0 0.0
        %3704 = vmatprep.subr.mxu0 0.0
        %3705 = vmatpush2.xpose.msra.mxu0 0.0
        %3706 = vmatprep.subr.mxu0 0.0
        %3707 = vmatpush2.xpose.msra.mxu0 0.0
        %3708 = vmatprep.subr.mxu0 0.0
        %3709 = vmatpush2.xpose.msra.mxu0 0.0
        %3710 = vmatprep.subr.mxu0 0.0
        %3711 = vmatpush2.xpose.msra.mxu0 0.0
        %3712 = vmatprep.subr.mxu0 0.0
        %3713 = vmatpush2.xpose.msra.mxu0 0.0
        %3714 = vmatprep.subr.mxu0 0.0
        %3715 = vmatpush2.xpose.msra.mxu0 0.0
        %3716 = vmatprep.subr.mxu0 0.0
        %3717 = vmatpush2.xpose.msra.mxu0 0.0
        %3718 = vmatprep.subr.mxu0 0.0
        %3719 = vmatpush2.xpose.msra.mxu0 0.0
        %3720 = vmatprep.subr.mxu0 0.0
        %3721 = vmatpush2.xpose.msra.mxu0 0.0
        %3722 = vmatprep.subr.mxu0 0.0
        %3723 = vmatpush2.xpose.msra.mxu0 0.0
        %3724 = vmatprep.subr.mxu0 0.0
        %3725 = vmatpush2.xpose.msra.mxu0 0.0
        %3726 = vmatprep.mubr.f32.mxu0 0.0
        %3727 = vmatmul.mubr.f32.gmra.mxu0 %v3658
        %v3728 = vpop.f32.mrf.mxu0
        %v3729 = vadd.f32 0.0, %v3728
        %v3730 = vpop.f32.mrf.mxu0
        %3731 = vdwg.mxu0
        %v3732 = vsel %vm545, %v3729, -inf
        %3733 = vmax.xlane.f32.xlu0 %v3732
        %v3734 = vpop.xlane.xlu0 %3733
        %v3735 = vsub.f32 %v3729, %v3734
        %v3736 = vmul.f32 %v3735, 1.442695
        %v3737 = vpow.pop %v3736
        %v3738 = vsel %vm545, %v3737, 0.0
        %3739 = vadd.xlane.f32.xlu0 %v3738
        %v3740 = vpop.xlane.xlu0 %3739
        %3742 = vrot.lane.b32.xlu0 %v3493, 120
        %v3743 = vpop.permute.xlu0 %3742
        %v3746 = vsel %vm468, %v3737, 0
        %3748 = vmatprep.subr.mxu0 0.0
        %3749 = vmatpush1.msra.mxu0 0.0
        %3750 = vmatprep.subr.mxu0 0.0
        %3751 = vmatpush1.msra.mxu0 0.0
        %3752 = vmatprep.subr.mxu0 0.0
        %3753 = vmatpush1.msra.mxu0 0.0
        %3754 = vmatprep.subr.mxu0 0.0
        %3755 = vmatpush1.msra.mxu0 0.0
        %3756 = vmatprep.subr.mxu0 0.0
        %3757 = vmatpush1.msra.mxu0 0.0
        %3758 = vmatprep.subr.mxu0 0.0
        %3759 = vmatpush1.msra.mxu0 0.0
        %3760 = vmatprep.subr.mxu0 0.0
        %3761 = vmatpush1.msra.mxu0 0.0
        %3762 = vmatprep.subr.mxu0 0.0
        %3763 = vmatpush1.msra.mxu0 0.0
        %3764 = vmatprep.subr.mxu0 0.0
        %3765 = vmatpush1.msra.mxu0 0.0
        %3766 = vmatprep.subr.mxu0 0.0
        %3767 = vmatpush1.msra.mxu0 0.0
        %3768 = vmatprep.subr.mxu0 0.0
        %3769 = vmatpush1.msra.mxu0 0.0
        %3770 = vmatprep.subr.mxu0 0.0
        %3771 = vmatpush1.msra.mxu0 0.0
        %3772 = vmatprep.subr.mxu0 0.0
        %3773 = vmatpush1.msra.mxu0 0.0
        %3774 = vmatprep.subr.mxu0 0.0
        %3775 = vmatpush1.msra.mxu0 0.0
        %3776 = vmatprep.subr.mxu0 0.0
        %3777 = vmatpush1.msra.mxu0 0.0
        %3778 = vmatprep.subr.mxu0 0.0
        %3779 = vmatpush1.msra.mxu0 %v3743
        %3780 = vmatprep.subr.mxu0 0.0
        %3781 = vmatpush2.msra.mxu0 0.0
        %3782 = vmatprep.subr.mxu0 0.0
        %3783 = vmatpush2.msra.mxu0 0.0
        %3784 = vmatprep.subr.mxu0 0.0
        %3785 = vmatpush2.msra.mxu0 0.0
        %3786 = vmatprep.subr.mxu0 0.0
        %3787 = vmatpush2.msra.mxu0 0.0
        %3788 = vmatprep.subr.mxu0 0.0
        %3789 = vmatpush2.msra.mxu0 0.0
        %3790 = vmatprep.subr.mxu0 0.0
        %3791 = vmatpush2.msra.mxu0 0.0
        %3792 = vmatprep.subr.mxu0 0.0
        %3793 = vmatpush2.msra.mxu0 0.0
        %3794 = vmatprep.subr.mxu0 0.0
        %3795 = vmatpush2.msra.mxu0 0.0
        %3796 = vmatprep.subr.mxu0 0.0
        %3797 = vmatpush2.msra.mxu0 0.0
        %3798 = vmatprep.subr.mxu0 0.0
        %3799 = vmatpush2.msra.mxu0 0.0
        %3800 = vmatprep.subr.mxu0 0.0
        %3801 = vmatpush2.msra.mxu0 0.0
        %3802 = vmatprep.subr.mxu0 0.0
        %3803 = vmatpush2.msra.mxu0 0.0
        %3804 = vmatprep.subr.mxu0 0.0
        %3805 = vmatpush2.msra.mxu0 0.0
        %3806 = vmatprep.subr.mxu0 0.0
        %3807 = vmatpush2.msra.mxu0 0.0
        %3808 = vmatprep.subr.mxu0 0.0
        %3809 = vmatpush2.msra.mxu0 0.0
        %3810 = vmatprep.subr.mxu0 0.0
        %3811 = vmatpush2.msra.mxu0 0.0
        %3812 = vmatprep.mubr.f32.mxu0 0.0
        %3813 = vmatmul.mubr.f32.gmra.mxu0 %v3746
        %v3814 = vpop.f32.mrf.mxu0
        %v3815 = vadd.f32 0.0, %v3814
        %v3816 = vpop.f32.mrf.mxu0
        %3817 = vdwg.mxu0
        %v3818 = vrcp.pop %v3740
        %v3819 = vmul.f32 %v3815, %v3818
        %3820 = vrot.lane.b32.xlu0 %v3485, 112
        %v3821 = vpop.permute.xlu0 %3820
        %3822 = vrot.lane.b32.xlu0 %v3489, 112
        %v3823 = vpop.permute.xlu0 %3822
        %v3824 = vsel %vm468, %v3821, 0
        %v3826 = vsel %vm468, %v3823, 0
        %3828 = vmatprep.subr.mxu0 0.0
        %3829 = vmatpush1.xpose.msra.mxu0 0.0
        %3830 = vmatprep.subr.mxu0 0.0
        %3831 = vmatpush1.xpose.msra.mxu0 0.0
        %3832 = vmatprep.subr.mxu0 0.0
        %3833 = vmatpush1.xpose.msra.mxu0 0.0
        %3834 = vmatprep.subr.mxu0 0.0
        %3835 = vmatpush1.xpose.msra.mxu0 0.0
        %3836 = vmatprep.subr.mxu0 0.0
        %3837 = vmatpush1.xpose.msra.mxu0 0.0
        %3838 = vmatprep.subr.mxu0 0.0
        %3839 = vmatpush1.xpose.msra.mxu0 0.0
        %3840 = vmatprep.subr.mxu0 0.0
        %3841 = vmatpush1.xpose.msra.mxu0 0.0
        %3842 = vmatprep.subr.mxu0 0.0
        %3843 = vmatpush1.xpose.msra.mxu0 0.0
        %3844 = vmatprep.subr.mxu0 0.0
        %3845 = vmatpush1.xpose.msra.mxu0 0.0
        %3846 = vmatprep.subr.mxu0 0.0
        %3847 = vmatpush1.xpose.msra.mxu0 0.0
        %3848 = vmatprep.subr.mxu0 0.0
        %3849 = vmatpush1.xpose.msra.mxu0 0.0
        %3850 = vmatprep.subr.mxu0 0.0
        %3851 = vmatpush1.xpose.msra.mxu0 0.0
        %3852 = vmatprep.subr.mxu0 0.0
        %3853 = vmatpush1.xpose.msra.mxu0 0.0
        %3854 = vmatprep.subr.mxu0 0.0
        %3855 = vmatpush1.xpose.msra.mxu0 0.0
        %3856 = vmatprep.subr.mxu0 0.0
        %3857 = vmatpush1.xpose.msra.mxu0 0.0
        %3858 = vmatprep.subr.mxu0 0.0
        %3859 = vmatpush1.xpose.msra.mxu0 %v3826
        %3860 = vmatprep.subr.mxu0 0.0
        %3861 = vmatpush2.xpose.msra.mxu0 0.0
        %3862 = vmatprep.subr.mxu0 0.0
        %3863 = vmatpush2.xpose.msra.mxu0 0.0
        %3864 = vmatprep.subr.mxu0 0.0
        %3865 = vmatpush2.xpose.msra.mxu0 0.0
        %3866 = vmatprep.subr.mxu0 0.0
        %3867 = vmatpush2.xpose.msra.mxu0 0.0
        %3868 = vmatprep.subr.mxu0 0.0
        %3869 = vmatpush2.xpose.msra.mxu0 0.0
        %3870 = vmatprep.subr.mxu0 0.0
        %3871 = vmatpush2.xpose.msra.mxu0 0.0
        %3872 = vmatprep.subr.mxu0 0.0
        %3873 = vmatpush2.xpose.msra.mxu0 0.0
        %3874 = vmatprep.subr.mxu0 0.0
        %3875 = vmatpush2.xpose.msra.mxu0 0.0
        %3876 = vmatprep.subr.mxu0 0.0
        %3877 = vmatpush2.xpose.msra.mxu0 0.0
        %3878 = vmatprep.subr.mxu0 0.0
        %3879 = vmatpush2.xpose.msra.mxu0 0.0
        %3880 = vmatprep.subr.mxu0 0.0
        %3881 = vmatpush2.xpose.msra.mxu0 0.0
        %3882 = vmatprep.subr.mxu0 0.0
        %3883 = vmatpush2.xpose.msra.mxu0 0.0
        %3884 = vmatprep.subr.mxu0 0.0
        %3885 = vmatpush2.xpose.msra.mxu0 0.0
        %3886 = vmatprep.subr.mxu0 0.0
        %3887 = vmatpush2.xpose.msra.mxu0 0.0
        %3888 = vmatprep.subr.mxu0 0.0
        %3889 = vmatpush2.xpose.msra.mxu0 0.0
        %3890 = vmatprep.subr.mxu0 0.0
        %3891 = vmatpush2.xpose.msra.mxu0 0.0
        %3892 = vmatprep.mubr.f32.mxu0 0.0
        %3893 = vmatmul.mubr.f32.gmra.mxu0 %v3824
        %v3894 = vpop.f32.mrf.mxu0
        %v3895 = vadd.f32 0.0, %v3894
        %v3896 = vpop.f32.mrf.mxu0
        %3897 = vdwg.mxu0
        %v3898 = vsel %vm545, %v3895, -inf
        %3899 = vmax.xlane.f32.xlu0 %v3898
        %v3900 = vpop.xlane.xlu0 %3899
        %v3901 = vsub.f32 %v3895, %v3900
        %v3902 = vmul.f32 %v3901, 1.442695
        %v3903 = vpow.pop %v3902
        %v3904 = vsel %vm545, %v3903, 0.0
        %3905 = vadd.xlane.f32.xlu0 %v3904
        %v3906 = vpop.xlane.xlu0 %3905
        %3907 = vrot.lane.b32.xlu0 %v3493, 112
        %v3908 = vpop.permute.xlu0 %3907
        %v3911 = vsel %vm468, %v3903, 0
        %3913 = vmatprep.subr.mxu0 0.0
        %3914 = vmatpush1.msra.mxu0 0.0
        %3915 = vmatprep.subr.mxu0 0.0
        %3916 = vmatpush1.msra.mxu0 0.0
        %3917 = vmatprep.subr.mxu0 0.0
        %3918 = vmatpush1.msra.mxu0 0.0
        %3919 = vmatprep.subr.mxu0 0.0
        %3920 = vmatpush1.msra.mxu0 0.0
        %3921 = vmatprep.subr.mxu0 0.0
        %3922 = vmatpush1.msra.mxu0 0.0
        %3923 = vmatprep.subr.mxu0 0.0
        %3924 = vmatpush1.msra.mxu0 0.0
        %3925 = vmatprep.subr.mxu0 0.0
        %3926 = vmatpush1.msra.mxu0 0.0
        %3927 = vmatprep.subr.mxu0 0.0
        %3928 = vmatpush1.msra.mxu0 0.0
        %3929 = vmatprep.subr.mxu0 0.0
        %3930 = vmatpush1.msra.mxu0 0.0
        %3931 = vmatprep.subr.mxu0 0.0
        %3932 = vmatpush1.msra.mxu0 0.0
        %3933 = vmatprep.subr.mxu0 0.0
        %3934 = vmatpush1.msra.mxu0 0.0
        %3935 = vmatprep.subr.mxu0 0.0
        %3936 = vmatpush1.msra.mxu0 0.0
        %3937 = vmatprep.subr.mxu0 0.0
        %3938 = vmatpush1.msra.mxu0 0.0
        %3939 = vmatprep.subr.mxu0 0.0
        %3940 = vmatpush1.msra.mxu0 0.0
        %3941 = vmatprep.subr.mxu0 0.0
        %3942 = vmatpush1.msra.mxu0 0.0
        %3943 = vmatprep.subr.mxu0 0.0
        %3944 = vmatpush1.msra.mxu0 %v3908
        %3945 = vmatprep.subr.mxu0 0.0
        %3946 = vmatpush2.msra.mxu0 0.0
        %3947 = vmatprep.subr.mxu0 0.0
        %3948 = vmatpush2.msra.mxu0 0.0
        %3949 = vmatprep.subr.mxu0 0.0
        %3950 = vmatpush2.msra.mxu0 0.0
        %3951 = vmatprep.subr.mxu0 0.0
        %3952 = vmatpush2.msra.mxu0 0.0
        %3953 = vmatprep.subr.mxu0 0.0
        %3954 = vmatpush2.msra.mxu0 0.0
        %3955 = vmatprep.subr.mxu0 0.0
        %3956 = vmatpush2.msra.mxu0 0.0
        %3957 = vmatprep.subr.mxu0 0.0
        %3958 = vmatpush2.msra.mxu0 0.0
        %3959 = vmatprep.subr.mxu0 0.0
        %3960 = vmatpush2.msra.mxu0 0.0
        %3961 = vmatprep.subr.mxu0 0.0
        %3962 = vmatpush2.msra.mxu0 0.0
        %3963 = vmatprep.subr.mxu0 0.0
        %3964 = vmatpush2.msra.mxu0 0.0
        %3965 = vmatprep.subr.mxu0 0.0
        %3966 = vmatpush2.msra.mxu0 0.0
        %3967 = vmatprep.subr.mxu0 0.0
        %3968 = vmatpush2.msra.mxu0 0.0
        %3969 = vmatprep.subr.mxu0 0.0
        %3970 = vmatpush2.msra.mxu0 0.0
        %3971 = vmatprep.subr.mxu0 0.0
        %3972 = vmatpush2.msra.mxu0 0.0
        %3973 = vmatprep.subr.mxu0 0.0
        %3974 = vmatpush2.msra.mxu0 0.0
        %3975 = vmatprep.subr.mxu0 0.0
        %3976 = vmatpush2.msra.mxu0 0.0
        %3977 = vmatprep.mubr.f32.mxu0 0.0
        %3978 = vmatmul.mubr.f32.gmra.mxu0 %v3911
        %v3979 = vpop.f32.mrf.mxu0
        %v3980 = vadd.f32 0.0, %v3979
        %v3981 = vpop.f32.mrf.mxu0
        %3982 = vdwg.mxu0
        %v3983 = vrcp.pop %v3906
        %v3984 = vmul.f32 %v3980, %v3983
        %3985 = vrot.lane.b32.xlu0 %v3485, 104
        %v3986 = vpop.permute.xlu0 %3985
        %3987 = vrot.lane.b32.xlu0 %v3489, 104
        %v3988 = vpop.permute.xlu0 %3987
        %v3989 = vsel %vm468, %v3986, 0
        %v3991 = vsel %vm468, %v3988, 0
        %3993 = vmatprep.subr.mxu0 0.0
        %3994 = vmatpush1.xpose.msra.mxu0 0.0
        %3995 = vmatprep.subr.mxu0 0.0
        %3996 = vmatpush1.xpose.msra.mxu0 0.0
        %3997 = vmatprep.subr.mxu0 0.0
        %3998 = vmatpush1.xpose.msra.mxu0 0.0
        %3999 = vmatprep.subr.mxu0 0.0
        %4000 = vmatpush1.xpose.msra.mxu0 0.0
        %4001 = vmatprep.subr.mxu0 0.0
        %4002 = vmatpush1.xpose.msra.mxu0 0.0
        %4003 = vmatprep.subr.mxu0 0.0
        %4004 = vmatpush1.xpose.msra.mxu0 0.0
        %4005 = vmatprep.subr.mxu0 0.0
        %4006 = vmatpush1.xpose.msra.mxu0 0.0
        %4007 = vmatprep.subr.mxu0 0.0
        %4008 = vmatpush1.xpose.msra.mxu0 0.0
        %4009 = vmatprep.subr.mxu0 0.0
        %4010 = vmatpush1.xpose.msra.mxu0 0.0
        %4011 = vmatprep.subr.mxu0 0.0
        %4012 = vmatpush1.xpose.msra.mxu0 0.0
        %4013 = vmatprep.subr.mxu0 0.0
        %4014 = vmatpush1.xpose.msra.mxu0 0.0
        %4015 = vmatprep.subr.mxu0 0.0
        %4016 = vmatpush1.xpose.msra.mxu0 0.0
        %4017 = vmatprep.subr.mxu0 0.0
        %4018 = vmatpush1.xpose.msra.mxu0 0.0
        %4019 = vmatprep.subr.mxu0 0.0
        %4020 = vmatpush1.xpose.msra.mxu0 0.0
        %4021 = vmatprep.subr.mxu0 0.0
        %4022 = vmatpush1.xpose.msra.mxu0 0.0
        %4023 = vmatprep.subr.mxu0 0.0
        %4024 = vmatpush1.xpose.msra.mxu0 %v3991
        %4025 = vmatprep.subr.mxu0 0.0
        %4026 = vmatpush2.xpose.msra.mxu0 0.0
        %4027 = vmatprep.subr.mxu0 0.0
        %4028 = vmatpush2.xpose.msra.mxu0 0.0
        %4029 = vmatprep.subr.mxu0 0.0
        %4030 = vmatpush2.xpose.msra.mxu0 0.0
        %4031 = vmatprep.subr.mxu0 0.0
        %4032 = vmatpush2.xpose.msra.mxu0 0.0
        %4033 = vmatprep.subr.mxu0 0.0
        %4034 = vmatpush2.xpose.msra.mxu0 0.0
        %4035 = vmatprep.subr.mxu0 0.0
        %4036 = vmatpush2.xpose.msra.mxu0 0.0
        %4037 = vmatprep.subr.mxu0 0.0
        %4038 = vmatpush2.xpose.msra.mxu0 0.0
        %4039 = vmatprep.subr.mxu0 0.0
        %4040 = vmatpush2.xpose.msra.mxu0 0.0
        %4041 = vmatprep.subr.mxu0 0.0
        %4042 = vmatpush2.xpose.msra.mxu0 0.0
        %4043 = vmatprep.subr.mxu0 0.0
        %4044 = vmatpush2.xpose.msra.mxu0 0.0
        %4045 = vmatprep.subr.mxu0 0.0
        %4046 = vmatpush2.xpose.msra.mxu0 0.0
        %4047 = vmatprep.subr.mxu0 0.0
        %4048 = vmatpush2.xpose.msra.mxu0 0.0
        %4049 = vmatprep.subr.mxu0 0.0
        %4050 = vmatpush2.xpose.msra.mxu0 0.0
        %4051 = vmatprep.subr.mxu0 0.0
        %4052 = vmatpush2.xpose.msra.mxu0 0.0
        %4053 = vmatprep.subr.mxu0 0.0
        %4054 = vmatpush2.xpose.msra.mxu0 0.0
        %4055 = vmatprep.subr.mxu0 0.0
        %4056 = vmatpush2.xpose.msra.mxu0 0.0
        %4057 = vmatprep.mubr.f32.mxu0 0.0
        %4058 = vmatmul.mubr.f32.gmra.mxu0 %v3989
        %v4059 = vpop.f32.mrf.mxu0
        %v4060 = vadd.f32 0.0, %v4059
        %v4061 = vpop.f32.mrf.mxu0
        %4062 = vdwg.mxu0
        %v4063 = vsel %vm545, %v4060, -inf
        %4064 = vmax.xlane.f32.xlu0 %v4063
        %v4065 = vpop.xlane.xlu0 %4064
        %v4066 = vsub.f32 %v4060, %v4065
        %v4067 = vmul.f32 %v4066, 1.442695
        %v4068 = vpow.pop %v4067
        %v4069 = vsel %vm545, %v4068, 0.0
        %4070 = vadd.xlane.f32.xlu0 %v4069
        %v4071 = vpop.xlane.xlu0 %4070
        %4072 = vrot.lane.b32.xlu0 %v3493, 104
        %v4073 = vpop.permute.xlu0 %4072
        %v4076 = vsel %vm468, %v4068, 0
        %4078 = vmatprep.subr.mxu0 0.0
        %4079 = vmatpush1.msra.mxu0 0.0
        %4080 = vmatprep.subr.mxu0 0.0
        %4081 = vmatpush1.msra.mxu0 0.0
        %4082 = vmatprep.subr.mxu0 0.0
        %4083 = vmatpush1.msra.mxu0 0.0
        %4084 = vmatprep.subr.mxu0 0.0
        %4085 = vmatpush1.msra.mxu0 0.0
        %4086 = vmatprep.subr.mxu0 0.0
        %4087 = vmatpush1.msra.mxu0 0.0
        %4088 = vmatprep.subr.mxu0 0.0
        %4089 = vmatpush1.msra.mxu0 0.0
        %4090 = vmatprep.subr.mxu0 0.0
        %4091 = vmatpush1.msra.mxu0 0.0
        %4092 = vmatprep.subr.mxu0 0.0
        %4093 = vmatpush1.msra.mxu0 0.0
        %4094 = vmatprep.subr.mxu0 0.0
        %4095 = vmatpush1.msra.mxu0 0.0
        %4096 = vmatprep.subr.mxu0 0.0
        %4097 = vmatpush1.msra.mxu0 0.0
        %4098 = vmatprep.subr.mxu0 0.0
        %4099 = vmatpush1.msra.mxu0 0.0
        %4100 = vmatprep.subr.mxu0 0.0
        %4101 = vmatpush1.msra.mxu0 0.0
        %4102 = vmatprep.subr.mxu0 0.0
        %4103 = vmatpush1.msra.mxu0 0.0
        %4104 = vmatprep.subr.mxu0 0.0
        %4105 = vmatpush1.msra.mxu0 0.0
        %4106 = vmatprep.subr.mxu0 0.0
        %4107 = vmatpush1.msra.mxu0 0.0
        %4108 = vmatprep.subr.mxu0 0.0
        %4109 = vmatpush1.msra.mxu0 %v4073
        %4110 = vmatprep.subr.mxu0 0.0
        %4111 = vmatpush2.msra.mxu0 0.0
        %4112 = vmatprep.subr.mxu0 0.0
        %4113 = vmatpush2.msra.mxu0 0.0
        %4114 = vmatprep.subr.mxu0 0.0
        %4115 = vmatpush2.msra.mxu0 0.0
        %4116 = vmatprep.subr.mxu0 0.0
        %4117 = vmatpush2.msra.mxu0 0.0
        %4118 = vmatprep.subr.mxu0 0.0
        %4119 = vmatpush2.msra.mxu0 0.0
        %4120 = vmatprep.subr.mxu0 0.0
        %4121 = vmatpush2.msra.mxu0 0.0
        %4122 = vmatprep.subr.mxu0 0.0
        %4123 = vmatpush2.msra.mxu0 0.0
        %4124 = vmatprep.subr.mxu0 0.0
        %4125 = vmatpush2.msra.mxu0 0.0
        %4126 = vmatprep.subr.mxu0 0.0
        %4127 = vmatpush2.msra.mxu0 0.0
        %4128 = vmatprep.subr.mxu0 0.0
        %4129 = vmatpush2.msra.mxu0 0.0
        %4130 = vmatprep.subr.mxu0 0.0
        %4131 = vmatpush2.msra.mxu0 0.0
        %4132 = vmatprep.subr.mxu0 0.0
        %4133 = vmatpush2.msra.mxu0 0.0
        %4134 = vmatprep.subr.mxu0 0.0
        %4135 = vmatpush2.msra.mxu0 0.0
        %4136 = vmatprep.subr.mxu0 0.0
        %4137 = vmatpush2.msra.mxu0 0.0
        %4138 = vmatprep.subr.mxu0 0.0
        %4139 = vmatpush2.msra.mxu0 0.0
        %4140 = vmatprep.subr.mxu0 0.0
        %4141 = vmatpush2.msra.mxu0 0.0
        %4142 = vmatprep.mubr.f32.mxu0 0.0
        %4143 = vmatmul.mubr.f32.gmra.mxu0 %v4076
        %v4144 = vpop.f32.mrf.mxu0
        %v4145 = vadd.f32 0.0, %v4144
        %v4146 = vpop.f32.mrf.mxu0
        %4147 = vdwg.mxu0
        %v4148 = vrcp.pop %v4071
        %v4149 = vmul.f32 %v4145, %v4148
        %4151 = vrot.lane.b32.xlu0 %v3819, 8
        %v4152 = vpop.permute.xlu0 %4151
        %4155 = vrot.lane.b32.xlu0 %v3984, 16
        %v4156 = vpop.permute.xlu0 %4155
        %4159 = vrot.lane.b32.xlu0 %v4149, 24
        %v4160 = vpop.permute.xlu0 %4159
        %v4162 = vsel %vm468, %v3653, %v4152
        %v4163 = vsel %vm1139, %v4162, %v4156
        %v4164 = vsel %vm1141, %v4163, %v4160
        %v4166 = vsel %vm247, %v4164, 0
        %4168 = vmatprep.subr.mxu0 0.0
        %4169 = vmatpush1.msra.mxu0 0.0
        %4170 = vmatprep.subr.mxu0 0.0
        %4171 = vmatpush1.msra.mxu0 0.0
        %4172 = vmatprep.subr.mxu0 0.0
        %4173 = vmatpush1.msra.mxu0 0.0
        %4174 = vmatprep.subr.mxu0 0.0
        %4175 = vmatpush1.msra.mxu0 0.0
        %4176 = vmatprep.subr.mxu0 0.0
        %4177 = vmatpush1.msra.mxu0 0.0
        %4178 = vmatprep.subr.mxu0 0.0
        %4179 = vmatpush1.msra.mxu0 0.0
        %4180 = vmatprep.subr.mxu0 0.0
        %4181 = vmatpush1.msra.mxu0 0.0
        %4182 = vmatprep.subr.mxu0 0.0
        %4183 = vmatpush1.msra.mxu0 0.0
        %4184 = vmatprep.subr.mxu0 0.0
        %4185 = vmatpush1.msra.mxu0 0.0
        %4186 = vmatprep.subr.mxu0 0.0
        %4187 = vmatpush1.msra.mxu0 0.0
        %4188 = vmatprep.subr.mxu0 0.0
        %4189 = vmatpush1.msra.mxu0 0.0
        %4190 = vmatprep.subr.mxu0 0.0
        %4191 = vmatpush1.msra.mxu0 0.0
        %4192 = vmatprep.subr.mxu0 0.0
        %4193 = vmatpush1.msra.mxu0 %v234
        %4194 = vmatprep.subr.mxu0 0.0
        %4195 = vmatpush1.msra.mxu0 %v233
        %4196 = vmatprep.subr.mxu0 0.0
        %4197 = vmatpush1.msra.mxu0 %v232
        %4198 = vmatprep.subr.mxu0 0.0
        %4199 = vmatpush1.msra.mxu0 %v231
        %4200 = vmatprep.subr.mxu0 0.0
        %4201 = vmatpush2.msra.mxu0 0.0
        %4202 = vmatprep.subr.mxu0 0.0
        %4203 = vmatpush2.msra.mxu0 0.0
        %4204 = vmatprep.subr.mxu0 0.0
        %4205 = vmatpush2.msra.mxu0 0.0
        %4206 = vmatprep.subr.mxu0 0.0
        %4207 = vmatpush2.msra.mxu0 0.0
        %4208 = vmatprep.subr.mxu0 0.0
        %4209 = vmatpush2.msra.mxu0 0.0
        %4210 = vmatprep.subr.mxu0 0.0
        %4211 = vmatpush2.msra.mxu0 0.0
        %4212 = vmatprep.subr.mxu0 0.0
        %4213 = vmatpush2.msra.mxu0 0.0
        %4214 = vmatprep.subr.mxu0 0.0
        %4215 = vmatpush2.msra.mxu0 0.0
        %4216 = vmatprep.subr.mxu0 0.0
        %4217 = vmatpush2.msra.mxu0 0.0
        %4218 = vmatprep.subr.mxu0 0.0
        %4219 = vmatpush2.msra.mxu0 0.0
        %4220 = vmatprep.subr.mxu0 0.0
        %4221 = vmatpush2.msra.mxu0 0.0
        %4222 = vmatprep.subr.mxu0 0.0
        %4223 = vmatpush2.msra.mxu0 0.0
        %4224 = vmatprep.subr.mxu0 0.0
        %4225 = vmatpush2.msra.mxu0 0.0
        %4226 = vmatprep.subr.mxu0 0.0
        %4227 = vmatpush2.msra.mxu0 0.0
        %4228 = vmatprep.subr.mxu0 0.0
        %4229 = vmatpush2.msra.mxu0 0.0
        %4230 = vmatprep.subr.mxu0 0.0
        %4231 = vmatpush2.msra.mxu0 0.0
        %4232 = vmatprep.mubr.f32.mxu0 0.0
        %4233 = vmatmul.mubr.f32.gmra.mxu0 %v4166
        %v4234 = vpop.f32.mrf.mxu0
        %v4235 = vadd.f32 %v1147, %v4234
        %v4236 = vpop.f32.mrf.mxu0
        %4237 = vdwg.mxu0
        %s4238 = scalar_lea.vmem [#allocation2], 5
        %v4239 = vld [vmem:[%s4238] ss:$8 sm:$0xf]
        %s4240 = scalar_lea.vmem [#allocation3], 5
        %v4241 = vld [vmem:[%s4240] ss:$8 sm:$0xf]
        %v4242 = vld [vmem:[%s4240] ss:$8 sm:$0xf0]
        %v4243 = vor.u32 %v4241, %v4242
        %s4244 = scalar_lea.vmem [#allocation4], 5
        %v4245 = vld [vmem:[%s4244] ss:$8 sm:$0xf]
        %v4246 = vld [vmem:[%s4244] ss:$8 sm:$0xf0]
        %v4247 = vor.u32 %v4245, %v4246
        %v4249 = vsel %vm468, %v4239, 0
        %v4252 = vsel %vm468, %v4243, 0
        %4254 = vmatprep.subr.mxu0 0.0
        %4255 = vmatpush1.xpose.msra.mxu0 0.0
        %4256 = vmatprep.subr.mxu0 0.0
        %4257 = vmatpush1.xpose.msra.mxu0 0.0
        %4258 = vmatprep.subr.mxu0 0.0
        %4259 = vmatpush1.xpose.msra.mxu0 0.0
        %4260 = vmatprep.subr.mxu0 0.0
        %4261 = vmatpush1.xpose.msra.mxu0 0.0
        %4262 = vmatprep.subr.mxu0 0.0
        %4263 = vmatpush1.xpose.msra.mxu0 0.0
        %4264 = vmatprep.subr.mxu0 0.0
        %4265 = vmatpush1.xpose.msra.mxu0 0.0
        %4266 = vmatprep.subr.mxu0 0.0
        %4267 = vmatpush1.xpose.msra.mxu0 0.0
        %4268 = vmatprep.subr.mxu0 0.0
        %4269 = vmatpush1.xpose.msra.mxu0 0.0
        %4270 = vmatprep.subr.mxu0 0.0
        %4271 = vmatpush1.xpose.msra.mxu0 0.0
        %4272 = vmatprep.subr.mxu0 0.0
        %4273 = vmatpush1.xpose.msra.mxu0 0.0
        %4274 = vmatprep.subr.mxu0 0.0
        %4275 = vmatpush1.xpose.msra.mxu0 0.0
        %4276 = vmatprep.subr.mxu0 0.0
        %4277 = vmatpush1.xpose.msra.mxu0 0.0
        %4278 = vmatprep.subr.mxu0 0.0
        %4279 = vmatpush1.xpose.msra.mxu0 0.0
        %4280 = vmatprep.subr.mxu0 0.0
        %4281 = vmatpush1.xpose.msra.mxu0 0.0
        %4282 = vmatprep.subr.mxu0 0.0
        %4283 = vmatpush1.xpose.msra.mxu0 0.0
        %4284 = vmatprep.subr.mxu0 0.0
        %4285 = vmatpush1.xpose.msra.mxu0 %v4252
        %4286 = vmatprep.subr.mxu0 0.0
        %4287 = vmatpush2.xpose.msra.mxu0 0.0
        %4288 = vmatprep.subr.mxu0 0.0
        %4289 = vmatpush2.xpose.msra.mxu0 0.0
        %4290 = vmatprep.subr.mxu0 0.0
        %4291 = vmatpush2.xpose.msra.mxu0 0.0
        %4292 = vmatprep.subr.mxu0 0.0
        %4293 = vmatpush2.xpose.msra.mxu0 0.0
        %4294 = vmatprep.subr.mxu0 0.0
        %4295 = vmatpush2.xpose.msra.mxu0 0.0
        %4296 = vmatprep.subr.mxu0 0.0
        %4297 = vmatpush2.xpose.msra.mxu0 0.0
        %4298 = vmatprep.subr.mxu0 0.0
        %4299 = vmatpush2.xpose.msra.mxu0 0.0
        %4300 = vmatprep.subr.mxu0 0.0
        %4301 = vmatpush2.xpose.msra.mxu0 0.0
        %4302 = vmatprep.subr.mxu0 0.0
        %4303 = vmatpush2.xpose.msra.mxu0 0.0
        %4304 = vmatprep.subr.mxu0 0.0
        %4305 = vmatpush2.xpose.msra.mxu0 0.0
        %4306 = vmatprep.subr.mxu0 0.0
        %4307 = vmatpush2.xpose.msra.mxu0 0.0
        %4308 = vmatprep.subr.mxu0 0.0
        %4309 = vmatpush2.xpose.msra.mxu0 0.0
        %4310 = vmatprep.subr.mxu0 0.0
        %4311 = vmatpush2.xpose.msra.mxu0 0.0
        %4312 = vmatprep.subr.mxu0 0.0
        %4313 = vmatpush2.xpose.msra.mxu0 0.0
        %4314 = vmatprep.subr.mxu0 0.0
        %4315 = vmatpush2.xpose.msra.mxu0 0.0
        %4316 = vmatprep.subr.mxu0 0.0
        %4317 = vmatpush2.xpose.msra.mxu0 0.0
        %4318 = vmatprep.mubr.f32.mxu0 0.0
        %4319 = vmatmul.mubr.f32.gmra.mxu0 %v4249
        %v4320 = vpop.f32.mrf.mxu0
        %v4321 = vadd.f32 0.0, %v4320
        %v4322 = vpop.f32.mrf.mxu0
        %4323 = vdwg.mxu0
        %v4324 = vsel %vm545, %v4321, -inf
        %4325 = vmax.xlane.f32.xlu0 %v4324
        %v4326 = vpop.xlane.xlu0 %4325
        %v4327 = vsub.f32 %v4321, %v4326
        %v4328 = vmul.f32 %v4327, 1.442695
        %v4329 = vpow.pop %v4328
        %v4330 = vsel %vm545, %v4329, 0.0
        %4331 = vadd.xlane.f32.xlu0 %v4330
        %v4332 = vpop.xlane.xlu0 %4331
        %v4334 = vsel %vm468, %v4329, 0
        %4336 = vmatprep.subr.mxu0 0.0
        %4337 = vmatpush1.msra.mxu0 0.0
        %4338 = vmatprep.subr.mxu0 0.0
        %4339 = vmatpush1.msra.mxu0 0.0
        %4340 = vmatprep.subr.mxu0 0.0
        %4341 = vmatpush1.msra.mxu0 0.0
        %4342 = vmatprep.subr.mxu0 0.0
        %4343 = vmatpush1.msra.mxu0 0.0
        %4344 = vmatprep.subr.mxu0 0.0
        %4345 = vmatpush1.msra.mxu0 0.0
        %4346 = vmatprep.subr.mxu0 0.0
        %4347 = vmatpush1.msra.mxu0 0.0
        %4348 = vmatprep.subr.mxu0 0.0
        %4349 = vmatpush1.msra.mxu0 0.0
        %4350 = vmatprep.subr.mxu0 0.0
        %4351 = vmatpush1.msra.mxu0 0.0
        %4352 = vmatprep.subr.mxu0 0.0
        %4353 = vmatpush1.msra.mxu0 0.0
        %4354 = vmatprep.subr.mxu0 0.0
        %4355 = vmatpush1.msra.mxu0 0.0
        %4356 = vmatprep.subr.mxu0 0.0
        %4357 = vmatpush1.msra.mxu0 0.0
        %4358 = vmatprep.subr.mxu0 0.0
        %4359 = vmatpush1.msra.mxu0 0.0
        %4360 = vmatprep.subr.mxu0 0.0
        %4361 = vmatpush1.msra.mxu0 0.0
        %4362 = vmatprep.subr.mxu0 0.0
        %4363 = vmatpush1.msra.mxu0 0.0
        %4364 = vmatprep.subr.mxu0 0.0
        %4365 = vmatpush1.msra.mxu0 0.0
        %4366 = vmatprep.subr.mxu0 0.0
        %4367 = vmatpush1.msra.mxu0 %v4247
        %4368 = vmatprep.subr.mxu0 0.0
        %4369 = vmatpush2.msra.mxu0 0.0
        %4370 = vmatprep.subr.mxu0 0.0
        %4371 = vmatpush2.msra.mxu0 0.0
        %4372 = vmatprep.subr.mxu0 0.0
        %4373 = vmatpush2.msra.mxu0 0.0
        %4374 = vmatprep.subr.mxu0 0.0
        %4375 = vmatpush2.msra.mxu0 0.0
        %4376 = vmatprep.subr.mxu0 0.0
        %4377 = vmatpush2.msra.mxu0 0.0
        %4378 = vmatprep.subr.mxu0 0.0
        %4379 = vmatpush2.msra.mxu0 0.0
        %4380 = vmatprep.subr.mxu0 0.0
        %4381 = vmatpush2.msra.mxu0 0.0
        %4382 = vmatprep.subr.mxu0 0.0
        %4383 = vmatpush2.msra.mxu0 0.0
        %4384 = vmatprep.subr.mxu0 0.0
        %4385 = vmatpush2.msra.mxu0 0.0
        %4386 = vmatprep.subr.mxu0 0.0
        %4387 = vmatpush2.msra.mxu0 0.0
        %4388 = vmatprep.subr.mxu0 0.0
        %4389 = vmatpush2.msra.mxu0 0.0
        %4390 = vmatprep.subr.mxu0 0.0
        %4391 = vmatpush2.msra.mxu0 0.0
        %4392 = vmatprep.subr.mxu0 0.0
        %4393 = vmatpush2.msra.mxu0 0.0
        %4394 = vmatprep.subr.mxu0 0.0
        %4395 = vmatpush2.msra.mxu0 0.0
        %4396 = vmatprep.subr.mxu0 0.0
        %4397 = vmatpush2.msra.mxu0 0.0
        %4398 = vmatprep.subr.mxu0 0.0
        %4399 = vmatpush2.msra.mxu0 0.0
        %4400 = vmatprep.mubr.f32.mxu0 0.0
        %4401 = vmatmul.mubr.f32.gmra.mxu0 %v4334
        %v4402 = vpop.f32.mrf.mxu0
        %v4403 = vadd.f32 0.0, %v4402
        %v4404 = vpop.f32.mrf.mxu0
        %4405 = vdwg.mxu0
        %v4406 = vrcp.pop %v4332
        %v4407 = vmul.f32 %v4403, %v4406
        %4408 = vrot.lane.b32.xlu0 %v4239, 120
        %v4409 = vpop.permute.xlu0 %4408
        %4410 = vrot.lane.b32.xlu0 %v4243, 120
        %v4411 = vpop.permute.xlu0 %4410
        %v4412 = vsel %vm468, %v4409, 0
        %v4414 = vsel %vm468, %v4411, 0
        %4416 = vmatprep.subr.mxu0 0.0
        %4417 = vmatpush1.xpose.msra.mxu0 0.0
        %4418 = vmatprep.subr.mxu0 0.0
        %4419 = vmatpush1.xpose.msra.mxu0 0.0
        %4420 = vmatprep.subr.mxu0 0.0
        %4421 = vmatpush1.xpose.msra.mxu0 0.0
        %4422 = vmatprep.subr.mxu0 0.0
        %4423 = vmatpush1.xpose.msra.mxu0 0.0
        %4424 = vmatprep.subr.mxu0 0.0
        %4425 = vmatpush1.xpose.msra.mxu0 0.0
        %4426 = vmatprep.subr.mxu0 0.0
        %4427 = vmatpush1.xpose.msra.mxu0 0.0
        %4428 = vmatprep.subr.mxu0 0.0
        %4429 = vmatpush1.xpose.msra.mxu0 0.0
        %4430 = vmatprep.subr.mxu0 0.0
        %4431 = vmatpush1.xpose.msra.mxu0 0.0
        %4432 = vmatprep.subr.mxu0 0.0
        %4433 = vmatpush1.xpose.msra.mxu0 0.0
        %4434 = vmatprep.subr.mxu0 0.0
        %4435 = vmatpush1.xpose.msra.mxu0 0.0
        %4436 = vmatprep.subr.mxu0 0.0
        %4437 = vmatpush1.xpose.msra.mxu0 0.0
        %4438 = vmatprep.subr.mxu0 0.0
        %4439 = vmatpush1.xpose.msra.mxu0 0.0
        %4440 = vmatprep.subr.mxu0 0.0
        %4441 = vmatpush1.xpose.msra.mxu0 0.0
        %4442 = vmatprep.subr.mxu0 0.0
        %4443 = vmatpush1.xpose.msra.mxu0 0.0
        %4444 = vmatprep.subr.mxu0 0.0
        %4445 = vmatpush1.xpose.msra.mxu0 0.0
        %4446 = vmatprep.subr.mxu0 0.0
        %4447 = vmatpush1.xpose.msra.mxu0 %v4414
        %4448 = vmatprep.subr.mxu0 0.0
        %4449 = vmatpush2.xpose.msra.mxu0 0.0
        %4450 = vmatprep.subr.mxu0 0.0
        %4451 = vmatpush2.xpose.msra.mxu0 0.0
        %4452 = vmatprep.subr.mxu0 0.0
        %4453 = vmatpush2.xpose.msra.mxu0 0.0
        %4454 = vmatprep.subr.mxu0 0.0
        %4455 = vmatpush2.xpose.msra.mxu0 0.0
        %4456 = vmatprep.subr.mxu0 0.0
        %4457 = vmatpush2.xpose.msra.mxu0 0.0
        %4458 = vmatprep.subr.mxu0 0.0
        %4459 = vmatpush2.xpose.msra.mxu0 0.0
        %4460 = vmatprep.subr.mxu0 0.0
        %4461 = vmatpush2.xpose.msra.mxu0 0.0
        %4462 = vmatprep.subr.mxu0 0.0
        %4463 = vmatpush2.xpose.msra.mxu0 0.0
        %4464 = vmatprep.subr.mxu0 0.0
        %4465 = vmatpush2.xpose.msra.mxu0 0.0
        %4466 = vmatprep.subr.mxu0 0.0
        %4467 = vmatpush2.xpose.msra.mxu0 0.0
        %4468 = vmatprep.subr.mxu0 0.0
        %4469 = vmatpush2.xpose.msra.mxu0 0.0
        %4470 = vmatprep.subr.mxu0 0.0
        %4471 = vmatpush2.xpose.msra.mxu0 0.0
        %4472 = vmatprep.subr.mxu0 0.0
        %4473 = vmatpush2.xpose.msra.mxu0 0.0
        %4474 = vmatprep.subr.mxu0 0.0
        %4475 = vmatpush2.xpose.msra.mxu0 0.0
        %4476 = vmatprep.subr.mxu0 0.0
        %4477 = vmatpush2.xpose.msra.mxu0 0.0
        %4478 = vmatprep.subr.mxu0 0.0
        %4479 = vmatpush2.xpose.msra.mxu0 0.0
        %4480 = vmatprep.mubr.f32.mxu0 0.0
        %4481 = vmatmul.mubr.f32.gmra.mxu0 %v4412
        %v4482 = vpop.f32.mrf.mxu0
        %v4483 = vadd.f32 0.0, %v4482
        %v4484 = vpop.f32.mrf.mxu0
        %4485 = vdwg.mxu0
        %v4486 = vsel %vm545, %v4483, -inf
        %4487 = vmax.xlane.f32.xlu0 %v4486
        %v4488 = vpop.xlane.xlu0 %4487
        %v4489 = vsub.f32 %v4483, %v4488
        %v4490 = vmul.f32 %v4489, 1.442695
        %v4491 = vpow.pop %v4490
        %v4492 = vsel %vm545, %v4491, 0.0
        %4493 = vadd.xlane.f32.xlu0 %v4492
        %v4494 = vpop.xlane.xlu0 %4493
        %4496 = vrot.lane.b32.xlu0 %v4247, 120
        %v4497 = vpop.permute.xlu0 %4496
        %v4500 = vsel %vm468, %v4491, 0
        %4502 = vmatprep.subr.mxu0 0.0
        %4503 = vmatpush1.msra.mxu0 0.0
        %4504 = vmatprep.subr.mxu0 0.0
        %4505 = vmatpush1.msra.mxu0 0.0
        %4506 = vmatprep.subr.mxu0 0.0
        %4507 = vmatpush1.msra.mxu0 0.0
        %4508 = vmatprep.subr.mxu0 0.0
        %4509 = vmatpush1.msra.mxu0 0.0
        %4510 = vmatprep.subr.mxu0 0.0
        %4511 = vmatpush1.msra.mxu0 0.0
        %4512 = vmatprep.subr.mxu0 0.0
        %4513 = vmatpush1.msra.mxu0 0.0
        %4514 = vmatprep.subr.mxu0 0.0
        %4515 = vmatpush1.msra.mxu0 0.0
        %4516 = vmatprep.subr.mxu0 0.0
        %4517 = vmatpush1.msra.mxu0 0.0
        %4518 = vmatprep.subr.mxu0 0.0
        %4519 = vmatpush1.msra.mxu0 0.0
        %4520 = vmatprep.subr.mxu0 0.0
        %4521 = vmatpush1.msra.mxu0 0.0
        %4522 = vmatprep.subr.mxu0 0.0
        %4523 = vmatpush1.msra.mxu0 0.0
        %4524 = vmatprep.subr.mxu0 0.0
        %4525 = vmatpush1.msra.mxu0 0.0
        %4526 = vmatprep.subr.mxu0 0.0
        %4527 = vmatpush1.msra.mxu0 0.0
        %4528 = vmatprep.subr.mxu0 0.0
        %4529 = vmatpush1.msra.mxu0 0.0
        %4530 = vmatprep.subr.mxu0 0.0
        %4531 = vmatpush1.msra.mxu0 0.0
        %4532 = vmatprep.subr.mxu0 0.0
        %4533 = vmatpush1.msra.mxu0 %v4497
        %4534 = vmatprep.subr.mxu0 0.0
        %4535 = vmatpush2.msra.mxu0 0.0
        %4536 = vmatprep.subr.mxu0 0.0
        %4537 = vmatpush2.msra.mxu0 0.0
        %4538 = vmatprep.subr.mxu0 0.0
        %4539 = vmatpush2.msra.mxu0 0.0
        %4540 = vmatprep.subr.mxu0 0.0
        %4541 = vmatpush2.msra.mxu0 0.0
        %4542 = vmatprep.subr.mxu0 0.0
        %4543 = vmatpush2.msra.mxu0 0.0
        %4544 = vmatprep.subr.mxu0 0.0
        %4545 = vmatpush2.msra.mxu0 0.0
        %4546 = vmatprep.subr.mxu0 0.0
        %4547 = vmatpush2.msra.mxu0 0.0
        %4548 = vmatprep.subr.mxu0 0.0
        %4549 = vmatpush2.msra.mxu0 0.0
        %4550 = vmatprep.subr.mxu0 0.0
        %4551 = vmatpush2.msra.mxu0 0.0
        %4552 = vmatprep.subr.mxu0 0.0
        %4553 = vmatpush2.msra.mxu0 0.0
        %4554 = vmatprep.subr.mxu0 0.0
        %4555 = vmatpush2.msra.mxu0 0.0
        %4556 = vmatprep.subr.mxu0 0.0
        %4557 = vmatpush2.msra.mxu0 0.0
        %4558 = vmatprep.subr.mxu0 0.0
        %4559 = vmatpush2.msra.mxu0 0.0
        %4560 = vmatprep.subr.mxu0 0.0
        %4561 = vmatpush2.msra.mxu0 0.0
        %4562 = vmatprep.subr.mxu0 0.0
        %4563 = vmatpush2.msra.mxu0 0.0
        %4564 = vmatprep.subr.mxu0 0.0
        %4565 = vmatpush2.msra.mxu0 0.0
        %4566 = vmatprep.mubr.f32.mxu0 0.0
        %4567 = vmatmul.mubr.f32.gmra.mxu0 %v4500
        %v4568 = vpop.f32.mrf.mxu0
        %v4569 = vadd.f32 0.0, %v4568
        %v4570 = vpop.f32.mrf.mxu0
        %4571 = vdwg.mxu0
        %v4572 = vrcp.pop %v4494
        %v4573 = vmul.f32 %v4569, %v4572
        %4574 = vrot.lane.b32.xlu0 %v4239, 112
        %v4575 = vpop.permute.xlu0 %4574
        %4576 = vrot.lane.b32.xlu0 %v4243, 112
        %v4577 = vpop.permute.xlu0 %4576
        %v4578 = vsel %vm468, %v4575, 0
        %v4580 = vsel %vm468, %v4577, 0
        %4582 = vmatprep.subr.mxu0 0.0
        %4583 = vmatpush1.xpose.msra.mxu0 0.0
        %4584 = vmatprep.subr.mxu0 0.0
        %4585 = vmatpush1.xpose.msra.mxu0 0.0
        %4586 = vmatprep.subr.mxu0 0.0
        %4587 = vmatpush1.xpose.msra.mxu0 0.0
        %4588 = vmatprep.subr.mxu0 0.0
        %4589 = vmatpush1.xpose.msra.mxu0 0.0
        %4590 = vmatprep.subr.mxu0 0.0
        %4591 = vmatpush1.xpose.msra.mxu0 0.0
        %4592 = vmatprep.subr.mxu0 0.0
        %4593 = vmatpush1.xpose.msra.mxu0 0.0
        %4594 = vmatprep.subr.mxu0 0.0
        %4595 = vmatpush1.xpose.msra.mxu0 0.0
        %4596 = vmatprep.subr.mxu0 0.0
        %4597 = vmatpush1.xpose.msra.mxu0 0.0
        %4598 = vmatprep.subr.mxu0 0.0
        %4599 = vmatpush1.xpose.msra.mxu0 0.0
        %4600 = vmatprep.subr.mxu0 0.0
        %4601 = vmatpush1.xpose.msra.mxu0 0.0
        %4602 = vmatprep.subr.mxu0 0.0
        %4603 = vmatpush1.xpose.msra.mxu0 0.0
        %4604 = vmatprep.subr.mxu0 0.0
        %4605 = vmatpush1.xpose.msra.mxu0 0.0
        %4606 = vmatprep.subr.mxu0 0.0
        %4607 = vmatpush1.xpose.msra.mxu0 0.0
        %4608 = vmatprep.subr.mxu0 0.0
        %4609 = vmatpush1.xpose.msra.mxu0 0.0
        %4610 = vmatprep.subr.mxu0 0.0
        %4611 = vmatpush1.xpose.msra.mxu0 0.0
        %4612 = vmatprep.subr.mxu0 0.0
        %4613 = vmatpush1.xpose.msra.mxu0 %v4580
        %4614 = vmatprep.subr.mxu0 0.0
        %4615 = vmatpush2.xpose.msra.mxu0 0.0
        %4616 = vmatprep.subr.mxu0 0.0
        %4617 = vmatpush2.xpose.msra.mxu0 0.0
        %4618 = vmatprep.subr.mxu0 0.0
        %4619 = vmatpush2.xpose.msra.mxu0 0.0
        %4620 = vmatprep.subr.mxu0 0.0
        %4621 = vmatpush2.xpose.msra.mxu0 0.0
        %4622 = vmatprep.subr.mxu0 0.0
        %4623 = vmatpush2.xpose.msra.mxu0 0.0
        %4624 = vmatprep.subr.mxu0 0.0
        %4625 = vmatpush2.xpose.msra.mxu0 0.0
        %4626 = vmatprep.subr.mxu0 0.0
        %4627 = vmatpush2.xpose.msra.mxu0 0.0
        %4628 = vmatprep.subr.mxu0 0.0
        %4629 = vmatpush2.xpose.msra.mxu0 0.0
        %4630 = vmatprep.subr.mxu0 0.0
        %4631 = vmatpush2.xpose.msra.mxu0 0.0
        %4632 = vmatprep.subr.mxu0 0.0
        %4633 = vmatpush2.xpose.msra.mxu0 0.0
        %4634 = vmatprep.subr.mxu0 0.0
        %4635 = vmatpush2.xpose.msra.mxu0 0.0
        %4636 = vmatprep.subr.mxu0 0.0
        %4637 = vmatpush2.xpose.msra.mxu0 0.0
        %4638 = vmatprep.subr.mxu0 0.0
        %4639 = vmatpush2.xpose.msra.mxu0 0.0
        %4640 = vmatprep.subr.mxu0 0.0
        %4641 = vmatpush2.xpose.msra.mxu0 0.0
        %4642 = vmatprep.subr.mxu0 0.0
        %4643 = vmatpush2.xpose.msra.mxu0 0.0
        %4644 = vmatprep.subr.mxu0 0.0
        %4645 = vmatpush2.xpose.msra.mxu0 0.0
        %4646 = vmatprep.mubr.f32.mxu0 0.0
        %4647 = vmatmul.mubr.f32.gmra.mxu0 %v4578
        %v4648 = vpop.f32.mrf.mxu0
        %v4649 = vadd.f32 0.0, %v4648
        %v4650 = vpop.f32.mrf.mxu0
        %4651 = vdwg.mxu0
        %v4652 = vsel %vm545, %v4649, -inf
        %4653 = vmax.xlane.f32.xlu0 %v4652
        %v4654 = vpop.xlane.xlu0 %4653
        %v4655 = vsub.f32 %v4649, %v4654
        %v4656 = vmul.f32 %v4655, 1.442695
        %v4657 = vpow.pop %v4656
        %v4658 = vsel %vm545, %v4657, 0.0
        %4659 = vadd.xlane.f32.xlu0 %v4658
        %v4660 = vpop.xlane.xlu0 %4659
        %4661 = vrot.lane.b32.xlu0 %v4247, 112
        %v4662 = vpop.permute.xlu0 %4661
        %v4665 = vsel %vm468, %v4657, 0
        %4667 = vmatprep.subr.mxu0 0.0
        %4668 = vmatpush1.msra.mxu0 0.0
        %4669 = vmatprep.subr.mxu0 0.0
        %4670 = vmatpush1.msra.mxu0 0.0
        %4671 = vmatprep.subr.mxu0 0.0
        %4672 = vmatpush1.msra.mxu0 0.0
        %4673 = vmatprep.subr.mxu0 0.0
        %4674 = vmatpush1.msra.mxu0 0.0
        %4675 = vmatprep.subr.mxu0 0.0
        %4676 = vmatpush1.msra.mxu0 0.0
        %4677 = vmatprep.subr.mxu0 0.0
        %4678 = vmatpush1.msra.mxu0 0.0
        %4679 = vmatprep.subr.mxu0 0.0
        %4680 = vmatpush1.msra.mxu0 0.0
        %4681 = vmatprep.subr.mxu0 0.0
        %4682 = vmatpush1.msra.mxu0 0.0
        %4683 = vmatprep.subr.mxu0 0.0
        %4684 = vmatpush1.msra.mxu0 0.0
        %4685 = vmatprep.subr.mxu0 0.0
        %4686 = vmatpush1.msra.mxu0 0.0
        %4687 = vmatprep.subr.mxu0 0.0
        %4688 = vmatpush1.msra.mxu0 0.0
        %4689 = vmatprep.subr.mxu0 0.0
        %4690 = vmatpush1.msra.mxu0 0.0
        %4691 = vmatprep.subr.mxu0 0.0
        %4692 = vmatpush1.msra.mxu0 0.0
        %4693 = vmatprep.subr.mxu0 0.0
        %4694 = vmatpush1.msra.mxu0 0.0
        %4695 = vmatprep.subr.mxu0 0.0
        %4696 = vmatpush1.msra.mxu0 0.0
        %4697 = vmatprep.subr.mxu0 0.0
        %4698 = vmatpush1.msra.mxu0 %v4662
        %4699 = vmatprep.subr.mxu0 0.0
        %4700 = vmatpush2.msra.mxu0 0.0
        %4701 = vmatprep.subr.mxu0 0.0
        %4702 = vmatpush2.msra.mxu0 0.0
        %4703 = vmatprep.subr.mxu0 0.0
        %4704 = vmatpush2.msra.mxu0 0.0
        %4705 = vmatprep.subr.mxu0 0.0
        %4706 = vmatpush2.msra.mxu0 0.0
        %4707 = vmatprep.subr.mxu0 0.0
        %4708 = vmatpush2.msra.mxu0 0.0
        %4709 = vmatprep.subr.mxu0 0.0
        %4710 = vmatpush2.msra.mxu0 0.0
        %4711 = vmatprep.subr.mxu0 0.0
        %4712 = vmatpush2.msra.mxu0 0.0
        %4713 = vmatprep.subr.mxu0 0.0
        %4714 = vmatpush2.msra.mxu0 0.0
        %4715 = vmatprep.subr.mxu0 0.0
        %4716 = vmatpush2.msra.mxu0 0.0
        %4717 = vmatprep.subr.mxu0 0.0
        %4718 = vmatpush2.msra.mxu0 0.0
        %4719 = vmatprep.subr.mxu0 0.0
        %4720 = vmatpush2.msra.mxu0 0.0
        %4721 = vmatprep.subr.mxu0 0.0
        %4722 = vmatpush2.msra.mxu0 0.0
        %4723 = vmatprep.subr.mxu0 0.0
        %4724 = vmatpush2.msra.mxu0 0.0
        %4725 = vmatprep.subr.mxu0 0.0
        %4726 = vmatpush2.msra.mxu0 0.0
        %4727 = vmatprep.subr.mxu0 0.0
        %4728 = vmatpush2.msra.mxu0 0.0
        %4729 = vmatprep.subr.mxu0 0.0
        %4730 = vmatpush2.msra.mxu0 0.0
        %4731 = vmatprep.mubr.f32.mxu0 0.0
        %4732 = vmatmul.mubr.f32.gmra.mxu0 %v4665
        %v4733 = vpop.f32.mrf.mxu0
        %v4734 = vadd.f32 0.0, %v4733
        %v4735 = vpop.f32.mrf.mxu0
        %4736 = vdwg.mxu0
        %v4737 = vrcp.pop %v4660
        %v4738 = vmul.f32 %v4734, %v4737
        %4739 = vrot.lane.b32.xlu0 %v4239, 104
        %v4740 = vpop.permute.xlu0 %4739
        %4741 = vrot.lane.b32.xlu0 %v4243, 104
        %v4742 = vpop.permute.xlu0 %4741
        %v4743 = vsel %vm468, %v4740, 0
        %v4745 = vsel %vm468, %v4742, 0
        %4747 = vmatprep.subr.mxu0 0.0
        %4748 = vmatpush1.xpose.msra.mxu0 0.0
        %4749 = vmatprep.subr.mxu0 0.0
        %4750 = vmatpush1.xpose.msra.mxu0 0.0
        %4751 = vmatprep.subr.mxu0 0.0
        %4752 = vmatpush1.xpose.msra.mxu0 0.0
        %4753 = vmatprep.subr.mxu0 0.0
        %4754 = vmatpush1.xpose.msra.mxu0 0.0
        %4755 = vmatprep.subr.mxu0 0.0
        %4756 = vmatpush1.xpose.msra.mxu0 0.0
        %4757 = vmatprep.subr.mxu0 0.0
        %4758 = vmatpush1.xpose.msra.mxu0 0.0
        %4759 = vmatprep.subr.mxu0 0.0
        %4760 = vmatpush1.xpose.msra.mxu0 0.0
        %4761 = vmatprep.subr.mxu0 0.0
        %4762 = vmatpush1.xpose.msra.mxu0 0.0
        %4763 = vmatprep.subr.mxu0 0.0
        %4764 = vmatpush1.xpose.msra.mxu0 0.0
        %4765 = vmatprep.subr.mxu0 0.0
        %4766 = vmatpush1.xpose.msra.mxu0 0.0
        %4767 = vmatprep.subr.mxu0 0.0
        %4768 = vmatpush1.xpose.msra.mxu0 0.0
        %4769 = vmatprep.subr.mxu0 0.0
        %4770 = vmatpush1.xpose.msra.mxu0 0.0
        %4771 = vmatprep.subr.mxu0 0.0
        %4772 = vmatpush1.xpose.msra.mxu0 0.0
        %4773 = vmatprep.subr.mxu0 0.0
        %4774 = vmatpush1.xpose.msra.mxu0 0.0
        %4775 = vmatprep.subr.mxu0 0.0
        %4776 = vmatpush1.xpose.msra.mxu0 0.0
        %4777 = vmatprep.subr.mxu0 0.0
        %4778 = vmatpush1.xpose.msra.mxu0 %v4745
        %4779 = vmatprep.subr.mxu0 0.0
        %4780 = vmatpush2.xpose.msra.mxu0 0.0
        %4781 = vmatprep.subr.mxu0 0.0
        %4782 = vmatpush2.xpose.msra.mxu0 0.0
        %4783 = vmatprep.subr.mxu0 0.0
        %4784 = vmatpush2.xpose.msra.mxu0 0.0
        %4785 = vmatprep.subr.mxu0 0.0
        %4786 = vmatpush2.xpose.msra.mxu0 0.0
        %4787 = vmatprep.subr.mxu0 0.0
        %4788 = vmatpush2.xpose.msra.mxu0 0.0
        %4789 = vmatprep.subr.mxu0 0.0
        %4790 = vmatpush2.xpose.msra.mxu0 0.0
        %4791 = vmatprep.subr.mxu0 0.0
        %4792 = vmatpush2.xpose.msra.mxu0 0.0
        %4793 = vmatprep.subr.mxu0 0.0
        %4794 = vmatpush2.xpose.msra.mxu0 0.0
        %4795 = vmatprep.subr.mxu0 0.0
        %4796 = vmatpush2.xpose.msra.mxu0 0.0
        %4797 = vmatprep.subr.mxu0 0.0
        %4798 = vmatpush2.xpose.msra.mxu0 0.0
        %4799 = vmatprep.subr.mxu0 0.0
        %4800 = vmatpush2.xpose.msra.mxu0 0.0
        %4801 = vmatprep.subr.mxu0 0.0
        %4802 = vmatpush2.xpose.msra.mxu0 0.0
        %4803 = vmatprep.subr.mxu0 0.0
        %4804 = vmatpush2.xpose.msra.mxu0 0.0
        %4805 = vmatprep.subr.mxu0 0.0
        %4806 = vmatpush2.xpose.msra.mxu0 0.0
        %4807 = vmatprep.subr.mxu0 0.0
        %4808 = vmatpush2.xpose.msra.mxu0 0.0
        %4809 = vmatprep.subr.mxu0 0.0
        %4810 = vmatpush2.xpose.msra.mxu0 0.0
        %4811 = vmatprep.mubr.f32.mxu0 0.0
        %4812 = vmatmul.mubr.f32.gmra.mxu0 %v4743
        %v4813 = vpop.f32.mrf.mxu0
        %v4814 = vadd.f32 0.0, %v4813
        %v4815 = vpop.f32.mrf.mxu0
        %4816 = vdwg.mxu0
        %v4817 = vsel %vm545, %v4814, -inf
        %4818 = vmax.xlane.f32.xlu0 %v4817
        %v4819 = vpop.xlane.xlu0 %4818
        %v4820 = vsub.f32 %v4814, %v4819
        %v4821 = vmul.f32 %v4820, 1.442695
        %v4822 = vpow.pop %v4821
        %v4823 = vsel %vm545, %v4822, 0.0
        %4824 = vadd.xlane.f32.xlu0 %v4823
        %v4825 = vpop.xlane.xlu0 %4824
        %4826 = vrot.lane.b32.xlu0 %v4247, 104
        %v4827 = vpop.permute.xlu0 %4826
        %v4830 = vsel %vm468, %v4822, 0
        %4832 = vmatprep.subr.mxu0 0.0
        %4833 = vmatpush1.msra.mxu0 0.0
        %4834 = vmatprep.subr.mxu0 0.0
        %4835 = vmatpush1.msra.mxu0 0.0
        %4836 = vmatprep.subr.mxu0 0.0
        %4837 = vmatpush1.msra.mxu0 0.0
        %4838 = vmatprep.subr.mxu0 0.0
        %4839 = vmatpush1.msra.mxu0 0.0
        %4840 = vmatprep.subr.mxu0 0.0
        %4841 = vmatpush1.msra.mxu0 0.0
        %4842 = vmatprep.subr.mxu0 0.0
        %4843 = vmatpush1.msra.mxu0 0.0
        %4844 = vmatprep.subr.mxu0 0.0
        %4845 = vmatpush1.msra.mxu0 0.0
        %4846 = vmatprep.subr.mxu0 0.0
        %4847 = vmatpush1.msra.mxu0 0.0
        %4848 = vmatprep.subr.mxu0 0.0
        %4849 = vmatpush1.msra.mxu0 0.0
        %4850 = vmatprep.subr.mxu0 0.0
        %4851 = vmatpush1.msra.mxu0 0.0
        %4852 = vmatprep.subr.mxu0 0.0
        %4853 = vmatpush1.msra.mxu0 0.0
        %4854 = vmatprep.subr.mxu0 0.0
        %4855 = vmatpush1.msra.mxu0 0.0
        %4856 = vmatprep.subr.mxu0 0.0
        %4857 = vmatpush1.msra.mxu0 0.0
        %4858 = vmatprep.subr.mxu0 0.0
        %4859 = vmatpush1.msra.mxu0 0.0
        %4860 = vmatprep.subr.mxu0 0.0
        %4861 = vmatpush1.msra.mxu0 0.0
        %4862 = vmatprep.subr.mxu0 0.0
        %4863 = vmatpush1.msra.mxu0 %v4827
        %4864 = vmatprep.subr.mxu0 0.0
        %4865 = vmatpush2.msra.mxu0 0.0
        %4866 = vmatprep.subr.mxu0 0.0
        %4867 = vmatpush2.msra.mxu0 0.0
        %4868 = vmatprep.subr.mxu0 0.0
        %4869 = vmatpush2.msra.mxu0 0.0
        %4870 = vmatprep.subr.mxu0 0.0
        %4871 = vmatpush2.msra.mxu0 0.0
        %4872 = vmatprep.subr.mxu0 0.0
        %4873 = vmatpush2.msra.mxu0 0.0
        %4874 = vmatprep.subr.mxu0 0.0
        %4875 = vmatpush2.msra.mxu0 0.0
        %4876 = vmatprep.subr.mxu0 0.0
        %4877 = vmatpush2.msra.mxu0 0.0
        %4878 = vmatprep.subr.mxu0 0.0
        %4879 = vmatpush2.msra.mxu0 0.0
        %4880 = vmatprep.subr.mxu0 0.0
        %4881 = vmatpush2.msra.mxu0 0.0
        %4882 = vmatprep.subr.mxu0 0.0
        %4883 = vmatpush2.msra.mxu0 0.0
        %4884 = vmatprep.subr.mxu0 0.0
        %4885 = vmatpush2.msra.mxu0 0.0
        %4886 = vmatprep.subr.mxu0 0.0
        %4887 = vmatpush2.msra.mxu0 0.0
        %4888 = vmatprep.subr.mxu0 0.0
        %4889 = vmatpush2.msra.mxu0 0.0
        %4890 = vmatprep.subr.mxu0 0.0
        %4891 = vmatpush2.msra.mxu0 0.0
        %4892 = vmatprep.subr.mxu0 0.0
        %4893 = vmatpush2.msra.mxu0 0.0
        %4894 = vmatprep.subr.mxu0 0.0
        %4895 = vmatpush2.msra.mxu0 0.0
        %4896 = vmatprep.mubr.f32.mxu0 0.0
        %4897 = vmatmul.mubr.f32.gmra.mxu0 %v4830
        %v4898 = vpop.f32.mrf.mxu0
        %v4899 = vadd.f32 0.0, %v4898
        %v4900 = vpop.f32.mrf.mxu0
        %4901 = vdwg.mxu0
        %v4902 = vrcp.pop %v4825
        %v4903 = vmul.f32 %v4899, %v4902
        %4905 = vrot.lane.b32.xlu0 %v4573, 8
        %v4906 = vpop.permute.xlu0 %4905
        %4909 = vrot.lane.b32.xlu0 %v4738, 16
        %v4910 = vpop.permute.xlu0 %4909
        %4913 = vrot.lane.b32.xlu0 %v4903, 24
        %v4914 = vpop.permute.xlu0 %4913
        %v4916 = vsel %vm468, %v4407, %v4906
        %v4917 = vsel %vm1139, %v4916, %v4910
        %v4918 = vsel %vm1141, %v4917, %v4914
        %v4920 = vsel %vm247, %v4918, 0
        %4922 = vmatprep.subr.mxu0 0.0
        %4923 = vmatpush1.msra.mxu0 0.0
        %4924 = vmatprep.subr.mxu0 0.0
        %4925 = vmatpush1.msra.mxu0 0.0
        %4926 = vmatprep.subr.mxu0 0.0
        %4927 = vmatpush1.msra.mxu0 0.0
        %4928 = vmatprep.subr.mxu0 0.0
        %4929 = vmatpush1.msra.mxu0 0.0
        %4930 = vmatprep.subr.mxu0 0.0
        %4931 = vmatpush1.msra.mxu0 0.0
        %4932 = vmatprep.subr.mxu0 0.0
        %4933 = vmatpush1.msra.mxu0 0.0
        %4934 = vmatprep.subr.mxu0 0.0
        %4935 = vmatpush1.msra.mxu0 0.0
        %4936 = vmatprep.subr.mxu0 0.0
        %4937 = vmatpush1.msra.mxu0 0.0
        %4938 = vmatprep.subr.mxu0 0.0
        %4939 = vmatpush1.msra.mxu0 0.0
        %4940 = vmatprep.subr.mxu0 0.0
        %4941 = vmatpush1.msra.mxu0 0.0
        %4942 = vmatprep.subr.mxu0 0.0
        %4943 = vmatpush1.msra.mxu0 0.0
        %4944 = vmatprep.subr.mxu0 0.0
        %4945 = vmatpush1.msra.mxu0 0.0
        %4946 = vmatprep.subr.mxu0 0.0
        %4947 = vmatpush1.msra.mxu0 %v234
        %4948 = vmatprep.subr.mxu0 0.0
        %4949 = vmatpush1.msra.mxu0 %v233
        %4950 = vmatprep.subr.mxu0 0.0
        %4951 = vmatpush1.msra.mxu0 %v232
        %4952 = vmatprep.subr.mxu0 0.0
        %4953 = vmatpush1.msra.mxu0 %v231
        %4954 = vmatprep.subr.mxu0 0.0
        %4955 = vmatpush2.msra.mxu0 0.0
        %4956 = vmatprep.subr.mxu0 0.0
        %4957 = vmatpush2.msra.mxu0 0.0
        %4958 = vmatprep.subr.mxu0 0.0
        %4959 = vmatpush2.msra.mxu0 0.0
        %4960 = vmatprep.subr.mxu0 0.0
        %4961 = vmatpush2.msra.mxu0 0.0
        %4962 = vmatprep.subr.mxu0 0.0
        %4963 = vmatpush2.msra.mxu0 0.0
        %4964 = vmatprep.subr.mxu0 0.0
        %4965 = vmatpush2.msra.mxu0 0.0
        %4966 = vmatprep.subr.mxu0 0.0
        %4967 = vmatpush2.msra.mxu0 0.0
        %4968 = vmatprep.subr.mxu0 0.0
        %4969 = vmatpush2.msra.mxu0 0.0
        %4970 = vmatprep.subr.mxu0 0.0
        %4971 = vmatpush2.msra.mxu0 0.0
        %4972 = vmatprep.subr.mxu0 0.0
        %4973 = vmatpush2.msra.mxu0 0.0
        %4974 = vmatprep.subr.mxu0 0.0
        %4975 = vmatpush2.msra.mxu0 0.0
        %4976 = vmatprep.subr.mxu0 0.0
        %4977 = vmatpush2.msra.mxu0 0.0
        %4978 = vmatprep.subr.mxu0 0.0
        %4979 = vmatpush2.msra.mxu0 0.0
        %4980 = vmatprep.subr.mxu0 0.0
        %4981 = vmatpush2.msra.mxu0 0.0
        %4982 = vmatprep.subr.mxu0 0.0
        %4983 = vmatpush2.msra.mxu0 0.0
        %4984 = vmatprep.subr.mxu0 0.0
        %4985 = vmatpush2.msra.mxu0 0.0
        %4986 = vmatprep.mubr.f32.mxu0 0.0
        %4987 = vmatmul.mubr.f32.gmra.mxu0 %v4920
        %v4988 = vpop.f32.mrf.mxu0
        %v4989 = vadd.f32 %v1147, %v4988
        %v4990 = vpop.f32.mrf.mxu0
        %4991 = vdwg.mxu0
        %s4992 = scalar_lea.vmem [#allocation2], 6
        %v4993 = vld [vmem:[%s4992] ss:$8 sm:$0xf]
        %s4994 = scalar_lea.vmem [#allocation3], 6
        %v4995 = vld [vmem:[%s4994] ss:$8 sm:$0xf]
        %v4996 = vld [vmem:[%s4994] ss:$8 sm:$0xf0]
        %v4997 = vor.u32 %v4995, %v4996
        %s4998 = scalar_lea.vmem [#allocation4], 6
        %v4999 = vld [vmem:[%s4998] ss:$8 sm:$0xf]
        %v5000 = vld [vmem:[%s4998] ss:$8 sm:$0xf0]
        %v5001 = vor.u32 %v4999, %v5000
        %v5003 = vsel %vm468, %v4993, 0
        %v5006 = vsel %vm468, %v4997, 0
        %5008 = vmatprep.subr.mxu0 0.0
        %5009 = vmatpush1.xpose.msra.mxu0 0.0
        %5010 = vmatprep.subr.mxu0 0.0
        %5011 = vmatpush1.xpose.msra.mxu0 0.0
        %5012 = vmatprep.subr.mxu0 0.0
        %5013 = vmatpush1.xpose.msra.mxu0 0.0
        %5014 = vmatprep.subr.mxu0 0.0
        %5015 = vmatpush1.xpose.msra.mxu0 0.0
        %5016 = vmatprep.subr.mxu0 0.0
        %5017 = vmatpush1.xpose.msra.mxu0 0.0
        %5018 = vmatprep.subr.mxu0 0.0
        %5019 = vmatpush1.xpose.msra.mxu0 0.0
        %5020 = vmatprep.subr.mxu0 0.0
        %5021 = vmatpush1.xpose.msra.mxu0 0.0
        %5022 = vmatprep.subr.mxu0 0.0
        %5023 = vmatpush1.xpose.msra.mxu0 0.0
        %5024 = vmatprep.subr.mxu0 0.0
        %5025 = vmatpush1.xpose.msra.mxu0 0.0
        %5026 = vmatprep.subr.mxu0 0.0
        %5027 = vmatpush1.xpose.msra.mxu0 0.0
        %5028 = vmatprep.subr.mxu0 0.0
        %5029 = vmatpush1.xpose.msra.mxu0 0.0
        %5030 = vmatprep.subr.mxu0 0.0
        %5031 = vmatpush1.xpose.msra.mxu0 0.0
        %5032 = vmatprep.subr.mxu0 0.0
        %5033 = vmatpush1.xpose.msra.mxu0 0.0
        %5034 = vmatprep.subr.mxu0 0.0
        %5035 = vmatpush1.xpose.msra.mxu0 0.0
        %5036 = vmatprep.subr.mxu0 0.0
        %5037 = vmatpush1.xpose.msra.mxu0 0.0
        %5038 = vmatprep.subr.mxu0 0.0
        %5039 = vmatpush1.xpose.msra.mxu0 %v5006
        %5040 = vmatprep.subr.mxu0 0.0
        %5041 = vmatpush2.xpose.msra.mxu0 0.0
        %5042 = vmatprep.subr.mxu0 0.0
        %5043 = vmatpush2.xpose.msra.mxu0 0.0
        %5044 = vmatprep.subr.mxu0 0.0
        %5045 = vmatpush2.xpose.msra.mxu0 0.0
        %5046 = vmatprep.subr.mxu0 0.0
        %5047 = vmatpush2.xpose.msra.mxu0 0.0
        %5048 = vmatprep.subr.mxu0 0.0
        %5049 = vmatpush2.xpose.msra.mxu0 0.0
        %5050 = vmatprep.subr.mxu0 0.0
        %5051 = vmatpush2.xpose.msra.mxu0 0.0
        %5052 = vmatprep.subr.mxu0 0.0
        %5053 = vmatpush2.xpose.msra.mxu0 0.0
        %5054 = vmatprep.subr.mxu0 0.0
        %5055 = vmatpush2.xpose.msra.mxu0 0.0
        %5056 = vmatprep.subr.mxu0 0.0
        %5057 = vmatpush2.xpose.msra.mxu0 0.0
        %5058 = vmatprep.subr.mxu0 0.0
        %5059 = vmatpush2.xpose.msra.mxu0 0.0
        %5060 = vmatprep.subr.mxu0 0.0
        %5061 = vmatpush2.xpose.msra.mxu0 0.0
        %5062 = vmatprep.subr.mxu0 0.0
        %5063 = vmatpush2.xpose.msra.mxu0 0.0
        %5064 = vmatprep.subr.mxu0 0.0
        %5065 = vmatpush2.xpose.msra.mxu0 0.0
        %5066 = vmatprep.subr.mxu0 0.0
        %5067 = vmatpush2.xpose.msra.mxu0 0.0
        %5068 = vmatprep.subr.mxu0 0.0
        %5069 = vmatpush2.xpose.msra.mxu0 0.0
        %5070 = vmatprep.subr.mxu0 0.0
        %5071 = vmatpush2.xpose.msra.mxu0 0.0
        %5072 = vmatprep.mubr.f32.mxu0 0.0
        %5073 = vmatmul.mubr.f32.gmra.mxu0 %v5003
        %v5074 = vpop.f32.mrf.mxu0
        %v5075 = vadd.f32 0.0, %v5074
        %v5076 = vpop.f32.mrf.mxu0
        %5077 = vdwg.mxu0
        %v5078 = vsel %vm545, %v5075, -inf
        %5079 = vmax.xlane.f32.xlu0 %v5078
        %v5080 = vpop.xlane.xlu0 %5079
        %v5081 = vsub.f32 %v5075, %v5080
        %v5082 = vmul.f32 %v5081, 1.442695
        %v5083 = vpow.pop %v5082
        %v5084 = vsel %vm545, %v5083, 0.0
        %5085 = vadd.xlane.f32.xlu0 %v5084
        %v5086 = vpop.xlane.xlu0 %5085
        %v5088 = vsel %vm468, %v5083, 0
        %5090 = vmatprep.subr.mxu0 0.0
        %5091 = vmatpush1.msra.mxu0 0.0
        %5092 = vmatprep.subr.mxu0 0.0
        %5093 = vmatpush1.msra.mxu0 0.0
        %5094 = vmatprep.subr.mxu0 0.0
        %5095 = vmatpush1.msra.mxu0 0.0
        %5096 = vmatprep.subr.mxu0 0.0
        %5097 = vmatpush1.msra.mxu0 0.0
        %5098 = vmatprep.subr.mxu0 0.0
        %5099 = vmatpush1.msra.mxu0 0.0
        %5100 = vmatprep.subr.mxu0 0.0
        %5101 = vmatpush1.msra.mxu0 0.0
        %5102 = vmatprep.subr.mxu0 0.0
        %5103 = vmatpush1.msra.mxu0 0.0
        %5104 = vmatprep.subr.mxu0 0.0
        %5105 = vmatpush1.msra.mxu0 0.0
        %5106 = vmatprep.subr.mxu0 0.0
        %5107 = vmatpush1.msra.mxu0 0.0
        %5108 = vmatprep.subr.mxu0 0.0
        %5109 = vmatpush1.msra.mxu0 0.0
        %5110 = vmatprep.subr.mxu0 0.0
        %5111 = vmatpush1.msra.mxu0 0.0
        %5112 = vmatprep.subr.mxu0 0.0
        %5113 = vmatpush1.msra.mxu0 0.0
        %5114 = vmatprep.subr.mxu0 0.0
        %5115 = vmatpush1.msra.mxu0 0.0
        %5116 = vmatprep.subr.mxu0 0.0
        %5117 = vmatpush1.msra.mxu0 0.0
        %5118 = vmatprep.subr.mxu0 0.0
        %5119 = vmatpush1.msra.mxu0 0.0
        %5120 = vmatprep.subr.mxu0 0.0
        %5121 = vmatpush1.msra.mxu0 %v5001
        %5122 = vmatprep.subr.mxu0 0.0
        %5123 = vmatpush2.msra.mxu0 0.0
        %5124 = vmatprep.subr.mxu0 0.0
        %5125 = vmatpush2.msra.mxu0 0.0
        %5126 = vmatprep.subr.mxu0 0.0
        %5127 = vmatpush2.msra.mxu0 0.0
        %5128 = vmatprep.subr.mxu0 0.0
        %5129 = vmatpush2.msra.mxu0 0.0
        %5130 = vmatprep.subr.mxu0 0.0
        %5131 = vmatpush2.msra.mxu0 0.0
        %5132 = vmatprep.subr.mxu0 0.0
        %5133 = vmatpush2.msra.mxu0 0.0
        %5134 = vmatprep.subr.mxu0 0.0
        %5135 = vmatpush2.msra.mxu0 0.0
        %5136 = vmatprep.subr.mxu0 0.0
        %5137 = vmatpush2.msra.mxu0 0.0
        %5138 = vmatprep.subr.mxu0 0.0
        %5139 = vmatpush2.msra.mxu0 0.0
        %5140 = vmatprep.subr.mxu0 0.0
        %5141 = vmatpush2.msra.mxu0 0.0
        %5142 = vmatprep.subr.mxu0 0.0
        %5143 = vmatpush2.msra.mxu0 0.0
        %5144 = vmatprep.subr.mxu0 0.0
        %5145 = vmatpush2.msra.mxu0 0.0
        %5146 = vmatprep.subr.mxu0 0.0
        %5147 = vmatpush2.msra.mxu0 0.0
        %5148 = vmatprep.subr.mxu0 0.0
        %5149 = vmatpush2.msra.mxu0 0.0
        %5150 = vmatprep.subr.mxu0 0.0
        %5151 = vmatpush2.msra.mxu0 0.0
        %5152 = vmatprep.subr.mxu0 0.0
        %5153 = vmatpush2.msra.mxu0 0.0
        %5154 = vmatprep.mubr.f32.mxu0 0.0
        %5155 = vmatmul.mubr.f32.gmra.mxu0 %v5088
        %v5156 = vpop.f32.mrf.mxu0
        %v5157 = vadd.f32 0.0, %v5156
        %v5158 = vpop.f32.mrf.mxu0
        %5159 = vdwg.mxu0
        %v5160 = vrcp.pop %v5086
        %v5161 = vmul.f32 %v5157, %v5160
        %5162 = vrot.lane.b32.xlu0 %v4993, 120
        %v5163 = vpop.permute.xlu0 %5162
        %5164 = vrot.lane.b32.xlu0 %v4997, 120
        %v5165 = vpop.permute.xlu0 %5164
        %v5166 = vsel %vm468, %v5163, 0
        %v5168 = vsel %vm468, %v5165, 0
        %5170 = vmatprep.subr.mxu0 0.0
        %5171 = vmatpush1.xpose.msra.mxu0 0.0
        %5172 = vmatprep.subr.mxu0 0.0
        %5173 = vmatpush1.xpose.msra.mxu0 0.0
        %5174 = vmatprep.subr.mxu0 0.0
        %5175 = vmatpush1.xpose.msra.mxu0 0.0
        %5176 = vmatprep.subr.mxu0 0.0
        %5177 = vmatpush1.xpose.msra.mxu0 0.0
        %5178 = vmatprep.subr.mxu0 0.0
        %5179 = vmatpush1.xpose.msra.mxu0 0.0
        %5180 = vmatprep.subr.mxu0 0.0
        %5181 = vmatpush1.xpose.msra.mxu0 0.0
        %5182 = vmatprep.subr.mxu0 0.0
        %5183 = vmatpush1.xpose.msra.mxu0 0.0
        %5184 = vmatprep.subr.mxu0 0.0
        %5185 = vmatpush1.xpose.msra.mxu0 0.0
        %5186 = vmatprep.subr.mxu0 0.0
        %5187 = vmatpush1.xpose.msra.mxu0 0.0
        %5188 = vmatprep.subr.mxu0 0.0
        %5189 = vmatpush1.xpose.msra.mxu0 0.0
        %5190 = vmatprep.subr.mxu0 0.0
        %5191 = vmatpush1.xpose.msra.mxu0 0.0
        %5192 = vmatprep.subr.mxu0 0.0
        %5193 = vmatpush1.xpose.msra.mxu0 0.0
        %5194 = vmatprep.subr.mxu0 0.0
        %5195 = vmatpush1.xpose.msra.mxu0 0.0
        %5196 = vmatprep.subr.mxu0 0.0
        %5197 = vmatpush1.xpose.msra.mxu0 0.0
        %5198 = vmatprep.subr.mxu0 0.0
        %5199 = vmatpush1.xpose.msra.mxu0 0.0
        %5200 = vmatprep.subr.mxu0 0.0
        %5201 = vmatpush1.xpose.msra.mxu0 %v5168
        %5202 = vmatprep.subr.mxu0 0.0
        %5203 = vmatpush2.xpose.msra.mxu0 0.0
        %5204 = vmatprep.subr.mxu0 0.0
        %5205 = vmatpush2.xpose.msra.mxu0 0.0
        %5206 = vmatprep.subr.mxu0 0.0
        %5207 = vmatpush2.xpose.msra.mxu0 0.0
        %5208 = vmatprep.subr.mxu0 0.0
        %5209 = vmatpush2.xpose.msra.mxu0 0.0
        %5210 = vmatprep.subr.mxu0 0.0
        %5211 = vmatpush2.xpose.msra.mxu0 0.0
        %5212 = vmatprep.subr.mxu0 0.0
        %5213 = vmatpush2.xpose.msra.mxu0 0.0
        %5214 = vmatprep.subr.mxu0 0.0
        %5215 = vmatpush2.xpose.msra.mxu0 0.0
        %5216 = vmatprep.subr.mxu0 0.0
        %5217 = vmatpush2.xpose.msra.mxu0 0.0
        %5218 = vmatprep.subr.mxu0 0.0
        %5219 = vmatpush2.xpose.msra.mxu0 0.0
        %5220 = vmatprep.subr.mxu0 0.0
        %5221 = vmatpush2.xpose.msra.mxu0 0.0
        %5222 = vmatprep.subr.mxu0 0.0
        %5223 = vmatpush2.xpose.msra.mxu0 0.0
        %5224 = vmatprep.subr.mxu0 0.0
        %5225 = vmatpush2.xpose.msra.mxu0 0.0
        %5226 = vmatprep.subr.mxu0 0.0
        %5227 = vmatpush2.xpose.msra.mxu0 0.0
        %5228 = vmatprep.subr.mxu0 0.0
        %5229 = vmatpush2.xpose.msra.mxu0 0.0
        %5230 = vmatprep.subr.mxu0 0.0
        %5231 = vmatpush2.xpose.msra.mxu0 0.0
        %5232 = vmatprep.subr.mxu0 0.0
        %5233 = vmatpush2.xpose.msra.mxu0 0.0
        %5234 = vmatprep.mubr.f32.mxu0 0.0
        %5235 = vmatmul.mubr.f32.gmra.mxu0 %v5166
        %v5236 = vpop.f32.mrf.mxu0
        %v5237 = vadd.f32 0.0, %v5236
        %v5238 = vpop.f32.mrf.mxu0
        %5239 = vdwg.mxu0
        %v5240 = vsel %vm545, %v5237, -inf
        %5241 = vmax.xlane.f32.xlu0 %v5240
        %v5242 = vpop.xlane.xlu0 %5241
        %v5243 = vsub.f32 %v5237, %v5242
        %v5244 = vmul.f32 %v5243, 1.442695
        %v5245 = vpow.pop %v5244
        %v5246 = vsel %vm545, %v5245, 0.0
        %5247 = vadd.xlane.f32.xlu0 %v5246
        %v5248 = vpop.xlane.xlu0 %5247
        %5250 = vrot.lane.b32.xlu0 %v5001, 120
        %v5251 = vpop.permute.xlu0 %5250
        %v5254 = vsel %vm468, %v5245, 0
        %5256 = vmatprep.subr.mxu0 0.0
        %5257 = vmatpush1.msra.mxu0 0.0
        %5258 = vmatprep.subr.mxu0 0.0
        %5259 = vmatpush1.msra.mxu0 0.0
        %5260 = vmatprep.subr.mxu0 0.0
        %5261 = vmatpush1.msra.mxu0 0.0
        %5262 = vmatprep.subr.mxu0 0.0
        %5263 = vmatpush1.msra.mxu0 0.0
        %5264 = vmatprep.subr.mxu0 0.0
        %5265 = vmatpush1.msra.mxu0 0.0
        %5266 = vmatprep.subr.mxu0 0.0
        %5267 = vmatpush1.msra.mxu0 0.0
        %5268 = vmatprep.subr.mxu0 0.0
        %5269 = vmatpush1.msra.mxu0 0.0
        %5270 = vmatprep.subr.mxu0 0.0
        %5271 = vmatpush1.msra.mxu0 0.0
        %5272 = vmatprep.subr.mxu0 0.0
        %5273 = vmatpush1.msra.mxu0 0.0
        %5274 = vmatprep.subr.mxu0 0.0
        %5275 = vmatpush1.msra.mxu0 0.0
        %5276 = vmatprep.subr.mxu0 0.0
        %5277 = vmatpush1.msra.mxu0 0.0
        %5278 = vmatprep.subr.mxu0 0.0
        %5279 = vmatpush1.msra.mxu0 0.0
        %5280 = vmatprep.subr.mxu0 0.0
        %5281 = vmatpush1.msra.mxu0 0.0
        %5282 = vmatprep.subr.mxu0 0.0
        %5283 = vmatpush1.msra.mxu0 0.0
        %5284 = vmatprep.subr.mxu0 0.0
        %5285 = vmatpush1.msra.mxu0 0.0
        %5286 = vmatprep.subr.mxu0 0.0
        %5287 = vmatpush1.msra.mxu0 %v5251
        %5288 = vmatprep.subr.mxu0 0.0
        %5289 = vmatpush2.msra.mxu0 0.0
        %5290 = vmatprep.subr.mxu0 0.0
        %5291 = vmatpush2.msra.mxu0 0.0
        %5292 = vmatprep.subr.mxu0 0.0
        %5293 = vmatpush2.msra.mxu0 0.0
        %5294 = vmatprep.subr.mxu0 0.0
        %5295 = vmatpush2.msra.mxu0 0.0
        %5296 = vmatprep.subr.mxu0 0.0
        %5297 = vmatpush2.msra.mxu0 0.0
        %5298 = vmatprep.subr.mxu0 0.0
        %5299 = vmatpush2.msra.mxu0 0.0
        %5300 = vmatprep.subr.mxu0 0.0
        %5301 = vmatpush2.msra.mxu0 0.0
        %5302 = vmatprep.subr.mxu0 0.0
        %5303 = vmatpush2.msra.mxu0 0.0
        %5304 = vmatprep.subr.mxu0 0.0
        %5305 = vmatpush2.msra.mxu0 0.0
        %5306 = vmatprep.subr.mxu0 0.0
        %5307 = vmatpush2.msra.mxu0 0.0
        %5308 = vmatprep.subr.mxu0 0.0
        %5309 = vmatpush2.msra.mxu0 0.0
        %5310 = vmatprep.subr.mxu0 0.0
        %5311 = vmatpush2.msra.mxu0 0.0
        %5312 = vmatprep.subr.mxu0 0.0
        %5313 = vmatpush2.msra.mxu0 0.0
        %5314 = vmatprep.subr.mxu0 0.0
        %5315 = vmatpush2.msra.mxu0 0.0
        %5316 = vmatprep.subr.mxu0 0.0
        %5317 = vmatpush2.msra.mxu0 0.0
        %5318 = vmatprep.subr.mxu0 0.0
        %5319 = vmatpush2.msra.mxu0 0.0
        %5320 = vmatprep.mubr.f32.mxu0 0.0
        %5321 = vmatmul.mubr.f32.gmra.mxu0 %v5254
        %v5322 = vpop.f32.mrf.mxu0
        %v5323 = vadd.f32 0.0, %v5322
        %v5324 = vpop.f32.mrf.mxu0
        %5325 = vdwg.mxu0
        %v5326 = vrcp.pop %v5248
        %v5327 = vmul.f32 %v5323, %v5326
        %5328 = vrot.lane.b32.xlu0 %v4993, 112
        %v5329 = vpop.permute.xlu0 %5328
        %5330 = vrot.lane.b32.xlu0 %v4997, 112
        %v5331 = vpop.permute.xlu0 %5330
        %v5332 = vsel %vm468, %v5329, 0
        %v5334 = vsel %vm468, %v5331, 0
        %5336 = vmatprep.subr.mxu0 0.0
        %5337 = vmatpush1.xpose.msra.mxu0 0.0
        %5338 = vmatprep.subr.mxu0 0.0
        %5339 = vmatpush1.xpose.msra.mxu0 0.0
        %5340 = vmatprep.subr.mxu0 0.0
        %5341 = vmatpush1.xpose.msra.mxu0 0.0
        %5342 = vmatprep.subr.mxu0 0.0
        %5343 = vmatpush1.xpose.msra.mxu0 0.0
        %5344 = vmatprep.subr.mxu0 0.0
        %5345 = vmatpush1.xpose.msra.mxu0 0.0
        %5346 = vmatprep.subr.mxu0 0.0
        %5347 = vmatpush1.xpose.msra.mxu0 0.0
        %5348 = vmatprep.subr.mxu0 0.0
        %5349 = vmatpush1.xpose.msra.mxu0 0.0
        %5350 = vmatprep.subr.mxu0 0.0
        %5351 = vmatpush1.xpose.msra.mxu0 0.0
        %5352 = vmatprep.subr.mxu0 0.0
        %5353 = vmatpush1.xpose.msra.mxu0 0.0
        %5354 = vmatprep.subr.mxu0 0.0
        %5355 = vmatpush1.xpose.msra.mxu0 0.0
        %5356 = vmatprep.subr.mxu0 0.0
        %5357 = vmatpush1.xpose.msra.mxu0 0.0
        %5358 = vmatprep.subr.mxu0 0.0
        %5359 = vmatpush1.xpose.msra.mxu0 0.0
        %5360 = vmatprep.subr.mxu0 0.0
        %5361 = vmatpush1.xpose.msra.mxu0 0.0
        %5362 = vmatprep.subr.mxu0 0.0
        %5363 = vmatpush1.xpose.msra.mxu0 0.0
        %5364 = vmatprep.subr.mxu0 0.0
        %5365 = vmatpush1.xpose.msra.mxu0 0.0
        %5366 = vmatprep.subr.mxu0 0.0
        %5367 = vmatpush1.xpose.msra.mxu0 %v5334
        %5368 = vmatprep.subr.mxu0 0.0
        %5369 = vmatpush2.xpose.msra.mxu0 0.0
        %5370 = vmatprep.subr.mxu0 0.0
        %5371 = vmatpush2.xpose.msra.mxu0 0.0
        %5372 = vmatprep.subr.mxu0 0.0
        %5373 = vmatpush2.xpose.msra.mxu0 0.0
        %5374 = vmatprep.subr.mxu0 0.0
        %5375 = vmatpush2.xpose.msra.mxu0 0.0
        %5376 = vmatprep.subr.mxu0 0.0
        %5377 = vmatpush2.xpose.msra.mxu0 0.0
        %5378 = vmatprep.subr.mxu0 0.0
        %5379 = vmatpush2.xpose.msra.mxu0 0.0
        %5380 = vmatprep.subr.mxu0 0.0
        %5381 = vmatpush2.xpose.msra.mxu0 0.0
        %5382 = vmatprep.subr.mxu0 0.0
        %5383 = vmatpush2.xpose.msra.mxu0 0.0
        %5384 = vmatprep.subr.mxu0 0.0
        %5385 = vmatpush2.xpose.msra.mxu0 0.0
        %5386 = vmatprep.subr.mxu0 0.0
        %5387 = vmatpush2.xpose.msra.mxu0 0.0
        %5388 = vmatprep.subr.mxu0 0.0
        %5389 = vmatpush2.xpose.msra.mxu0 0.0
        %5390 = vmatprep.subr.mxu0 0.0
        %5391 = vmatpush2.xpose.msra.mxu0 0.0
        %5392 = vmatprep.subr.mxu0 0.0
        %5393 = vmatpush2.xpose.msra.mxu0 0.0
        %5394 = vmatprep.subr.mxu0 0.0
        %5395 = vmatpush2.xpose.msra.mxu0 0.0
        %5396 = vmatprep.subr.mxu0 0.0
        %5397 = vmatpush2.xpose.msra.mxu0 0.0
        %5398 = vmatprep.subr.mxu0 0.0
        %5399 = vmatpush2.xpose.msra.mxu0 0.0
        %5400 = vmatprep.mubr.f32.mxu0 0.0
        %5401 = vmatmul.mubr.f32.gmra.mxu0 %v5332
        %v5402 = vpop.f32.mrf.mxu0
        %v5403 = vadd.f32 0.0, %v5402
        %v5404 = vpop.f32.mrf.mxu0
        %5405 = vdwg.mxu0
        %v5406 = vsel %vm545, %v5403, -inf
        %5407 = vmax.xlane.f32.xlu0 %v5406
        %v5408 = vpop.xlane.xlu0 %5407
        %v5409 = vsub.f32 %v5403, %v5408
        %v5410 = vmul.f32 %v5409, 1.442695
        %v5411 = vpow.pop %v5410
        %v5412 = vsel %vm545, %v5411, 0.0
        %5413 = vadd.xlane.f32.xlu0 %v5412
        %v5414 = vpop.xlane.xlu0 %5413
        %5415 = vrot.lane.b32.xlu0 %v5001, 112
        %v5416 = vpop.permute.xlu0 %5415
        %v5419 = vsel %vm468, %v5411, 0
        %5421 = vmatprep.subr.mxu0 0.0
        %5422 = vmatpush1.msra.mxu0 0.0
        %5423 = vmatprep.subr.mxu0 0.0
        %5424 = vmatpush1.msra.mxu0 0.0
        %5425 = vmatprep.subr.mxu0 0.0
        %5426 = vmatpush1.msra.mxu0 0.0
        %5427 = vmatprep.subr.mxu0 0.0
        %5428 = vmatpush1.msra.mxu0 0.0
        %5429 = vmatprep.subr.mxu0 0.0
        %5430 = vmatpush1.msra.mxu0 0.0
        %5431 = vmatprep.subr.mxu0 0.0
        %5432 = vmatpush1.msra.mxu0 0.0
        %5433 = vmatprep.subr.mxu0 0.0
        %5434 = vmatpush1.msra.mxu0 0.0
        %5435 = vmatprep.subr.mxu0 0.0
        %5436 = vmatpush1.msra.mxu0 0.0
        %5437 = vmatprep.subr.mxu0 0.0
        %5438 = vmatpush1.msra.mxu0 0.0
        %5439 = vmatprep.subr.mxu0 0.0
        %5440 = vmatpush1.msra.mxu0 0.0
        %5441 = vmatprep.subr.mxu0 0.0
        %5442 = vmatpush1.msra.mxu0 0.0
        %5443 = vmatprep.subr.mxu0 0.0
        %5444 = vmatpush1.msra.mxu0 0.0
        %5445 = vmatprep.subr.mxu0 0.0
        %5446 = vmatpush1.msra.mxu0 0.0
        %5447 = vmatprep.subr.mxu0 0.0
        %5448 = vmatpush1.msra.mxu0 0.0
        %5449 = vmatprep.subr.mxu0 0.0
        %5450 = vmatpush1.msra.mxu0 0.0
        %5451 = vmatprep.subr.mxu0 0.0
        %5452 = vmatpush1.msra.mxu0 %v5416
        %5453 = vmatprep.subr.mxu0 0.0
        %5454 = vmatpush2.msra.mxu0 0.0
        %5455 = vmatprep.subr.mxu0 0.0
        %5456 = vmatpush2.msra.mxu0 0.0
        %5457 = vmatprep.subr.mxu0 0.0
        %5458 = vmatpush2.msra.mxu0 0.0
        %5459 = vmatprep.subr.mxu0 0.0
        %5460 = vmatpush2.msra.mxu0 0.0
        %5461 = vmatprep.subr.mxu0 0.0
        %5462 = vmatpush2.msra.mxu0 0.0
        %5463 = vmatprep.subr.mxu0 0.0
        %5464 = vmatpush2.msra.mxu0 0.0
        %5465 = vmatprep.subr.mxu0 0.0
        %5466 = vmatpush2.msra.mxu0 0.0
        %5467 = vmatprep.subr.mxu0 0.0
        %5468 = vmatpush2.msra.mxu0 0.0
        %5469 = vmatprep.subr.mxu0 0.0
        %5470 = vmatpush2.msra.mxu0 0.0
        %5471 = vmatprep.subr.mxu0 0.0
        %5472 = vmatpush2.msra.mxu0 0.0
        %5473 = vmatprep.subr.mxu0 0.0
        %5474 = vmatpush2.msra.mxu0 0.0
        %5475 = vmatprep.subr.mxu0 0.0
        %5476 = vmatpush2.msra.mxu0 0.0
        %5477 = vmatprep.subr.mxu0 0.0
        %5478 = vmatpush2.msra.mxu0 0.0
        %5479 = vmatprep.subr.mxu0 0.0
        %5480 = vmatpush2.msra.mxu0 0.0
        %5481 = vmatprep.subr.mxu0 0.0
        %5482 = vmatpush2.msra.mxu0 0.0
        %5483 = vmatprep.subr.mxu0 0.0
        %5484 = vmatpush2.msra.mxu0 0.0
        %5485 = vmatprep.mubr.f32.mxu0 0.0
        %5486 = vmatmul.mubr.f32.gmra.mxu0 %v5419
        %v5487 = vpop.f32.mrf.mxu0
        %v5488 = vadd.f32 0.0, %v5487
        %v5489 = vpop.f32.mrf.mxu0
        %5490 = vdwg.mxu0
        %v5491 = vrcp.pop %v5414
        %v5492 = vmul.f32 %v5488, %v5491
        %5493 = vrot.lane.b32.xlu0 %v4993, 104
        %v5494 = vpop.permute.xlu0 %5493
        %5495 = vrot.lane.b32.xlu0 %v4997, 104
        %v5496 = vpop.permute.xlu0 %5495
        %v5497 = vsel %vm468, %v5494, 0
        %v5499 = vsel %vm468, %v5496, 0
        %5501 = vmatprep.subr.mxu0 0.0
        %5502 = vmatpush1.xpose.msra.mxu0 0.0
        %5503 = vmatprep.subr.mxu0 0.0
        %5504 = vmatpush1.xpose.msra.mxu0 0.0
        %5505 = vmatprep.subr.mxu0 0.0
        %5506 = vmatpush1.xpose.msra.mxu0 0.0
        %5507 = vmatprep.subr.mxu0 0.0
        %5508 = vmatpush1.xpose.msra.mxu0 0.0
        %5509 = vmatprep.subr.mxu0 0.0
        %5510 = vmatpush1.xpose.msra.mxu0 0.0
        %5511 = vmatprep.subr.mxu0 0.0
        %5512 = vmatpush1.xpose.msra.mxu0 0.0
        %5513 = vmatprep.subr.mxu0 0.0
        %5514 = vmatpush1.xpose.msra.mxu0 0.0
        %5515 = vmatprep.subr.mxu0 0.0
        %5516 = vmatpush1.xpose.msra.mxu0 0.0
        %5517 = vmatprep.subr.mxu0 0.0
        %5518 = vmatpush1.xpose.msra.mxu0 0.0
        %5519 = vmatprep.subr.mxu0 0.0
        %5520 = vmatpush1.xpose.msra.mxu0 0.0
        %5521 = vmatprep.subr.mxu0 0.0
        %5522 = vmatpush1.xpose.msra.mxu0 0.0
        %5523 = vmatprep.subr.mxu0 0.0
        %5524 = vmatpush1.xpose.msra.mxu0 0.0
        %5525 = vmatprep.subr.mxu0 0.0
        %5526 = vmatpush1.xpose.msra.mxu0 0.0
        %5527 = vmatprep.subr.mxu0 0.0
        %5528 = vmatpush1.xpose.msra.mxu0 0.0
        %5529 = vmatprep.subr.mxu0 0.0
        %5530 = vmatpush1.xpose.msra.mxu0 0.0
        %5531 = vmatprep.subr.mxu0 0.0
        %5532 = vmatpush1.xpose.msra.mxu0 %v5499
        %5533 = vmatprep.subr.mxu0 0.0
        %5534 = vmatpush2.xpose.msra.mxu0 0.0
        %5535 = vmatprep.subr.mxu0 0.0
        %5536 = vmatpush2.xpose.msra.mxu0 0.0
        %5537 = vmatprep.subr.mxu0 0.0
        %5538 = vmatpush2.xpose.msra.mxu0 0.0
        %5539 = vmatprep.subr.mxu0 0.0
        %5540 = vmatpush2.xpose.msra.mxu0 0.0
        %5541 = vmatprep.subr.mxu0 0.0
        %5542 = vmatpush2.xpose.msra.mxu0 0.0
        %5543 = vmatprep.subr.mxu0 0.0
        %5544 = vmatpush2.xpose.msra.mxu0 0.0
        %5545 = vmatprep.subr.mxu0 0.0
        %5546 = vmatpush2.xpose.msra.mxu0 0.0
        %5547 = vmatprep.subr.mxu0 0.0
        %5548 = vmatpush2.xpose.msra.mxu0 0.0
        %5549 = vmatprep.subr.mxu0 0.0
        %5550 = vmatpush2.xpose.msra.mxu0 0.0
        %5551 = vmatprep.subr.mxu0 0.0
        %5552 = vmatpush2.xpose.msra.mxu0 0.0
        %5553 = vmatprep.subr.mxu0 0.0
        %5554 = vmatpush2.xpose.msra.mxu0 0.0
        %5555 = vmatprep.subr.mxu0 0.0
        %5556 = vmatpush2.xpose.msra.mxu0 0.0
        %5557 = vmatprep.subr.mxu0 0.0
        %5558 = vmatpush2.xpose.msra.mxu0 0.0
        %5559 = vmatprep.subr.mxu0 0.0
        %5560 = vmatpush2.xpose.msra.mxu0 0.0
        %5561 = vmatprep.subr.mxu0 0.0
        %5562 = vmatpush2.xpose.msra.mxu0 0.0
        %5563 = vmatprep.subr.mxu0 0.0
        %5564 = vmatpush2.xpose.msra.mxu0 0.0
        %5565 = vmatprep.mubr.f32.mxu0 0.0
        %5566 = vmatmul.mubr.f32.gmra.mxu0 %v5497
        %v5567 = vpop.f32.mrf.mxu0
        %v5568 = vadd.f32 0.0, %v5567
        %v5569 = vpop.f32.mrf.mxu0
        %5570 = vdwg.mxu0
        %v5571 = vsel %vm545, %v5568, -inf
        %5572 = vmax.xlane.f32.xlu0 %v5571
        %v5573 = vpop.xlane.xlu0 %5572
        %v5574 = vsub.f32 %v5568, %v5573
        %v5575 = vmul.f32 %v5574, 1.442695
        %v5576 = vpow.pop %v5575
        %v5577 = vsel %vm545, %v5576, 0.0
        %5578 = vadd.xlane.f32.xlu0 %v5577
        %v5579 = vpop.xlane.xlu0 %5578
        %5580 = vrot.lane.b32.xlu0 %v5001, 104
        %v5581 = vpop.permute.xlu0 %5580
        %v5584 = vsel %vm468, %v5576, 0
        %5586 = vmatprep.subr.mxu0 0.0
        %5587 = vmatpush1.msra.mxu0 0.0
        %5588 = vmatprep.subr.mxu0 0.0
        %5589 = vmatpush1.msra.mxu0 0.0
        %5590 = vmatprep.subr.mxu0 0.0
        %5591 = vmatpush1.msra.mxu0 0.0
        %5592 = vmatprep.subr.mxu0 0.0
        %5593 = vmatpush1.msra.mxu0 0.0
        %5594 = vmatprep.subr.mxu0 0.0
        %5595 = vmatpush1.msra.mxu0 0.0
        %5596 = vmatprep.subr.mxu0 0.0
        %5597 = vmatpush1.msra.mxu0 0.0
        %5598 = vmatprep.subr.mxu0 0.0
        %5599 = vmatpush1.msra.mxu0 0.0
        %5600 = vmatprep.subr.mxu0 0.0
        %5601 = vmatpush1.msra.mxu0 0.0
        %5602 = vmatprep.subr.mxu0 0.0
        %5603 = vmatpush1.msra.mxu0 0.0
        %5604 = vmatprep.subr.mxu0 0.0
        %5605 = vmatpush1.msra.mxu0 0.0
        %5606 = vmatprep.subr.mxu0 0.0
        %5607 = vmatpush1.msra.mxu0 0.0
        %5608 = vmatprep.subr.mxu0 0.0
        %5609 = vmatpush1.msra.mxu0 0.0
        %5610 = vmatprep.subr.mxu0 0.0
        %5611 = vmatpush1.msra.mxu0 0.0
        %5612 = vmatprep.subr.mxu0 0.0
        %5613 = vmatpush1.msra.mxu0 0.0
        %5614 = vmatprep.subr.mxu0 0.0
        %5615 = vmatpush1.msra.mxu0 0.0
        %5616 = vmatprep.subr.mxu0 0.0
        %5617 = vmatpush1.msra.mxu0 %v5581
        %5618 = vmatprep.subr.mxu0 0.0
        %5619 = vmatpush2.msra.mxu0 0.0
        %5620 = vmatprep.subr.mxu0 0.0
        %5621 = vmatpush2.msra.mxu0 0.0
        %5622 = vmatprep.subr.mxu0 0.0
        %5623 = vmatpush2.msra.mxu0 0.0
        %5624 = vmatprep.subr.mxu0 0.0
        %5625 = vmatpush2.msra.mxu0 0.0
        %5626 = vmatprep.subr.mxu0 0.0
        %5627 = vmatpush2.msra.mxu0 0.0
        %5628 = vmatprep.subr.mxu0 0.0
        %5629 = vmatpush2.msra.mxu0 0.0
        %5630 = vmatprep.subr.mxu0 0.0
        %5631 = vmatpush2.msra.mxu0 0.0
        %5632 = vmatprep.subr.mxu0 0.0
        %5633 = vmatpush2.msra.mxu0 0.0
        %5634 = vmatprep.subr.mxu0 0.0
        %5635 = vmatpush2.msra.mxu0 0.0
        %5636 = vmatprep.subr.mxu0 0.0
        %5637 = vmatpush2.msra.mxu0 0.0
        %5638 = vmatprep.subr.mxu0 0.0
        %5639 = vmatpush2.msra.mxu0 0.0
        %5640 = vmatprep.subr.mxu0 0.0
        %5641 = vmatpush2.msra.mxu0 0.0
        %5642 = vmatprep.subr.mxu0 0.0
        %5643 = vmatpush2.msra.mxu0 0.0
        %5644 = vmatprep.subr.mxu0 0.0
        %5645 = vmatpush2.msra.mxu0 0.0
        %5646 = vmatprep.subr.mxu0 0.0
        %5647 = vmatpush2.msra.mxu0 0.0
        %5648 = vmatprep.subr.mxu0 0.0
        %5649 = vmatpush2.msra.mxu0 0.0
        %5650 = vmatprep.mubr.f32.mxu0 0.0
        %5651 = vmatmul.mubr.f32.gmra.mxu0 %v5584
        %v5652 = vpop.f32.mrf.mxu0
        %v5653 = vadd.f32 0.0, %v5652
        %v5654 = vpop.f32.mrf.mxu0
        %5655 = vdwg.mxu0
        %v5656 = vrcp.pop %v5579
        %v5657 = vmul.f32 %v5653, %v5656
        %5659 = vrot.lane.b32.xlu0 %v5327, 8
        %v5660 = vpop.permute.xlu0 %5659
        %5663 = vrot.lane.b32.xlu0 %v5492, 16
        %v5664 = vpop.permute.xlu0 %5663
        %5667 = vrot.lane.b32.xlu0 %v5657, 24
        %v5668 = vpop.permute.xlu0 %5667
        %v5670 = vsel %vm468, %v5161, %v5660
        %v5671 = vsel %vm1139, %v5670, %v5664
        %v5672 = vsel %vm1141, %v5671, %v5668
        %v5674 = vsel %vm247, %v5672, 0
        %5676 = vmatprep.subr.mxu0 0.0
        %5677 = vmatpush1.msra.mxu0 0.0
        %5678 = vmatprep.subr.mxu0 0.0
        %5679 = vmatpush1.msra.mxu0 0.0
        %5680 = vmatprep.subr.mxu0 0.0
        %5681 = vmatpush1.msra.mxu0 0.0
        %5682 = vmatprep.subr.mxu0 0.0
        %5683 = vmatpush1.msra.mxu0 0.0
        %5684 = vmatprep.subr.mxu0 0.0
        %5685 = vmatpush1.msra.mxu0 0.0
        %5686 = vmatprep.subr.mxu0 0.0
        %5687 = vmatpush1.msra.mxu0 0.0
        %5688 = vmatprep.subr.mxu0 0.0
        %5689 = vmatpush1.msra.mxu0 0.0
        %5690 = vmatprep.subr.mxu0 0.0
        %5691 = vmatpush1.msra.mxu0 0.0
        %5692 = vmatprep.subr.mxu0 0.0
        %5693 = vmatpush1.msra.mxu0 0.0
        %5694 = vmatprep.subr.mxu0 0.0
        %5695 = vmatpush1.msra.mxu0 0.0
        %5696 = vmatprep.subr.mxu0 0.0
        %5697 = vmatpush1.msra.mxu0 0.0
        %5698 = vmatprep.subr.mxu0 0.0
        %5699 = vmatpush1.msra.mxu0 0.0
        %5700 = vmatprep.subr.mxu0 0.0
        %5701 = vmatpush1.msra.mxu0 %v234
        %5702 = vmatprep.subr.mxu0 0.0
        %5703 = vmatpush1.msra.mxu0 %v233
        %5704 = vmatprep.subr.mxu0 0.0
        %5705 = vmatpush1.msra.mxu0 %v232
        %5706 = vmatprep.subr.mxu0 0.0
        %5707 = vmatpush1.msra.mxu0 %v231
        %5708 = vmatprep.subr.mxu0 0.0
        %5709 = vmatpush2.msra.mxu0 0.0
        %5710 = vmatprep.subr.mxu0 0.0
        %5711 = vmatpush2.msra.mxu0 0.0
        %5712 = vmatprep.subr.mxu0 0.0
        %5713 = vmatpush2.msra.mxu0 0.0
        %5714 = vmatprep.subr.mxu0 0.0
        %5715 = vmatpush2.msra.mxu0 0.0
        %5716 = vmatprep.subr.mxu0 0.0
        %5717 = vmatpush2.msra.mxu0 0.0
        %5718 = vmatprep.subr.mxu0 0.0
        %5719 = vmatpush2.msra.mxu0 0.0
        %5720 = vmatprep.subr.mxu0 0.0
        %5721 = vmatpush2.msra.mxu0 0.0
        %5722 = vmatprep.subr.mxu0 0.0
        %5723 = vmatpush2.msra.mxu0 0.0
        %5724 = vmatprep.subr.mxu0 0.0
        %5725 = vmatpush2.msra.mxu0 0.0
        %5726 = vmatprep.subr.mxu0 0.0
        %5727 = vmatpush2.msra.mxu0 0.0
        %5728 = vmatprep.subr.mxu0 0.0
        %5729 = vmatpush2.msra.mxu0 0.0
        %5730 = vmatprep.subr.mxu0 0.0
        %5731 = vmatpush2.msra.mxu0 0.0
        %5732 = vmatprep.subr.mxu0 0.0
        %5733 = vmatpush2.msra.mxu0 0.0
        %5734 = vmatprep.subr.mxu0 0.0
        %5735 = vmatpush2.msra.mxu0 0.0
        %5736 = vmatprep.subr.mxu0 0.0
        %5737 = vmatpush2.msra.mxu0 0.0
        %5738 = vmatprep.subr.mxu0 0.0
        %5739 = vmatpush2.msra.mxu0 0.0
        %5740 = vmatprep.mubr.f32.mxu0 0.0
        %5741 = vmatmul.mubr.f32.gmra.mxu0 %v5674
        %v5742 = vpop.f32.mrf.mxu0
        %v5743 = vadd.f32 %v1147, %v5742
        %v5744 = vpop.f32.mrf.mxu0
        %5745 = vdwg.mxu0
        %s5746 = scalar_lea.vmem [#allocation2], 7
        %v5747 = vld [vmem:[%s5746] ss:$8 sm:$0xf]
        %s5748 = scalar_lea.vmem [#allocation3], 7
        %v5749 = vld [vmem:[%s5748] ss:$8 sm:$0xf]
        %v5750 = vld [vmem:[%s5748] ss:$8 sm:$0xf0]
        %v5751 = vor.u32 %v5749, %v5750
        %s5752 = scalar_lea.vmem [#allocation4], 7
        %v5753 = vld [vmem:[%s5752] ss:$8 sm:$0xf]
        %v5754 = vld [vmem:[%s5752] ss:$8 sm:$0xf0]
        %v5755 = vor.u32 %v5753, %v5754
        %v5757 = vsel %vm468, %v5747, 0
        %v5760 = vsel %vm468, %v5751, 0
        %5762 = vmatprep.subr.mxu0 0.0
        %5763 = vmatpush1.xpose.msra.mxu0 0.0
        %5764 = vmatprep.subr.mxu0 0.0
        %5765 = vmatpush1.xpose.msra.mxu0 0.0
        %5766 = vmatprep.subr.mxu0 0.0
        %5767 = vmatpush1.xpose.msra.mxu0 0.0
        %5768 = vmatprep.subr.mxu0 0.0
        %5769 = vmatpush1.xpose.msra.mxu0 0.0
        %5770 = vmatprep.subr.mxu0 0.0
        %5771 = vmatpush1.xpose.msra.mxu0 0.0
        %5772 = vmatprep.subr.mxu0 0.0
        %5773 = vmatpush1.xpose.msra.mxu0 0.0
        %5774 = vmatprep.subr.mxu0 0.0
        %5775 = vmatpush1.xpose.msra.mxu0 0.0
        %5776 = vmatprep.subr.mxu0 0.0
        %5777 = vmatpush1.xpose.msra.mxu0 0.0
        %5778 = vmatprep.subr.mxu0 0.0
        %5779 = vmatpush1.xpose.msra.mxu0 0.0
        %5780 = vmatprep.subr.mxu0 0.0
        %5781 = vmatpush1.xpose.msra.mxu0 0.0
        %5782 = vmatprep.subr.mxu0 0.0
        %5783 = vmatpush1.xpose.msra.mxu0 0.0
        %5784 = vmatprep.subr.mxu0 0.0
        %5785 = vmatpush1.xpose.msra.mxu0 0.0
        %5786 = vmatprep.subr.mxu0 0.0
        %5787 = vmatpush1.xpose.msra.mxu0 0.0
        %5788 = vmatprep.subr.mxu0 0.0
        %5789 = vmatpush1.xpose.msra.mxu0 0.0
        %5790 = vmatprep.subr.mxu0 0.0
        %5791 = vmatpush1.xpose.msra.mxu0 0.0
        %5792 = vmatprep.subr.mxu0 0.0
        %5793 = vmatpush1.xpose.msra.mxu0 %v5760
        %5794 = vmatprep.subr.mxu0 0.0
        %5795 = vmatpush2.xpose.msra.mxu0 0.0
        %5796 = vmatprep.subr.mxu0 0.0
        %5797 = vmatpush2.xpose.msra.mxu0 0.0
        %5798 = vmatprep.subr.mxu0 0.0
        %5799 = vmatpush2.xpose.msra.mxu0 0.0
        %5800 = vmatprep.subr.mxu0 0.0
        %5801 = vmatpush2.xpose.msra.mxu0 0.0
        %5802 = vmatprep.subr.mxu0 0.0
        %5803 = vmatpush2.xpose.msra.mxu0 0.0
        %5804 = vmatprep.subr.mxu0 0.0
        %5805 = vmatpush2.xpose.msra.mxu0 0.0
        %5806 = vmatprep.subr.mxu0 0.0
        %5807 = vmatpush2.xpose.msra.mxu0 0.0
        %5808 = vmatprep.subr.mxu0 0.0
        %5809 = vmatpush2.xpose.msra.mxu0 0.0
        %5810 = vmatprep.subr.mxu0 0.0
        %5811 = vmatpush2.xpose.msra.mxu0 0.0
        %5812 = vmatprep.subr.mxu0 0.0
        %5813 = vmatpush2.xpose.msra.mxu0 0.0
        %5814 = vmatprep.subr.mxu0 0.0
        %5815 = vmatpush2.xpose.msra.mxu0 0.0
        %5816 = vmatprep.subr.mxu0 0.0
        %5817 = vmatpush2.xpose.msra.mxu0 0.0
        %5818 = vmatprep.subr.mxu0 0.0
        %5819 = vmatpush2.xpose.msra.mxu0 0.0
        %5820 = vmatprep.subr.mxu0 0.0
        %5821 = vmatpush2.xpose.msra.mxu0 0.0
        %5822 = vmatprep.subr.mxu0 0.0
        %5823 = vmatpush2.xpose.msra.mxu0 0.0
        %5824 = vmatprep.subr.mxu0 0.0
        %5825 = vmatpush2.xpose.msra.mxu0 0.0
        %5826 = vmatprep.mubr.f32.mxu0 0.0
        %5827 = vmatmul.mubr.f32.gmra.mxu0 %v5757
        %v5828 = vpop.f32.mrf.mxu0
        %v5829 = vadd.f32 0.0, %v5828
        %v5830 = vpop.f32.mrf.mxu0
        %5831 = vdwg.mxu0
        %v5832 = vsel %vm545, %v5829, -inf
        %5833 = vmax.xlane.f32.xlu0 %v5832
        %v5834 = vpop.xlane.xlu0 %5833
        %v5835 = vsub.f32 %v5829, %v5834
        %v5836 = vmul.f32 %v5835, 1.442695
        %v5837 = vpow.pop %v5836
        %v5838 = vsel %vm545, %v5837, 0.0
        %5839 = vadd.xlane.f32.xlu0 %v5838
        %v5840 = vpop.xlane.xlu0 %5839
        %v5842 = vsel %vm468, %v5837, 0
        %5844 = vmatprep.subr.mxu0 0.0
        %5845 = vmatpush1.msra.mxu0 0.0
        %5846 = vmatprep.subr.mxu0 0.0
        %5847 = vmatpush1.msra.mxu0 0.0
        %5848 = vmatprep.subr.mxu0 0.0
        %5849 = vmatpush1.msra.mxu0 0.0
        %5850 = vmatprep.subr.mxu0 0.0
        %5851 = vmatpush1.msra.mxu0 0.0
        %5852 = vmatprep.subr.mxu0 0.0
        %5853 = vmatpush1.msra.mxu0 0.0
        %5854 = vmatprep.subr.mxu0 0.0
        %5855 = vmatpush1.msra.mxu0 0.0
        %5856 = vmatprep.subr.mxu0 0.0
        %5857 = vmatpush1.msra.mxu0 0.0
        %5858 = vmatprep.subr.mxu0 0.0
        %5859 = vmatpush1.msra.mxu0 0.0
        %5860 = vmatprep.subr.mxu0 0.0
        %5861 = vmatpush1.msra.mxu0 0.0
        %5862 = vmatprep.subr.mxu0 0.0
        %5863 = vmatpush1.msra.mxu0 0.0
        %5864 = vmatprep.subr.mxu0 0.0
        %5865 = vmatpush1.msra.mxu0 0.0
        %5866 = vmatprep.subr.mxu0 0.0
        %5867 = vmatpush1.msra.mxu0 0.0
        %5868 = vmatprep.subr.mxu0 0.0
        %5869 = vmatpush1.msra.mxu0 0.0
        %5870 = vmatprep.subr.mxu0 0.0
        %5871 = vmatpush1.msra.mxu0 0.0
        %5872 = vmatprep.subr.mxu0 0.0
        %5873 = vmatpush1.msra.mxu0 0.0
        %5874 = vmatprep.subr.mxu0 0.0
        %5875 = vmatpush1.msra.mxu0 %v5755
        %5876 = vmatprep.subr.mxu0 0.0
        %5877 = vmatpush2.msra.mxu0 0.0
        %5878 = vmatprep.subr.mxu0 0.0
        %5879 = vmatpush2.msra.mxu0 0.0
        %5880 = vmatprep.subr.mxu0 0.0
        %5881 = vmatpush2.msra.mxu0 0.0
        %5882 = vmatprep.subr.mxu0 0.0
        %5883 = vmatpush2.msra.mxu0 0.0
        %5884 = vmatprep.subr.mxu0 0.0
        %5885 = vmatpush2.msra.mxu0 0.0
        %5886 = vmatprep.subr.mxu0 0.0
        %5887 = vmatpush2.msra.mxu0 0.0
        %5888 = vmatprep.subr.mxu0 0.0
        %5889 = vmatpush2.msra.mxu0 0.0
        %5890 = vmatprep.subr.mxu0 0.0
        %5891 = vmatpush2.msra.mxu0 0.0
        %5892 = vmatprep.subr.mxu0 0.0
        %5893 = vmatpush2.msra.mxu0 0.0
        %5894 = vmatprep.subr.mxu0 0.0
        %5895 = vmatpush2.msra.mxu0 0.0
        %5896 = vmatprep.subr.mxu0 0.0
        %5897 = vmatpush2.msra.mxu0 0.0
        %5898 = vmatprep.subr.mxu0 0.0
        %5899 = vmatpush2.msra.mxu0 0.0
        %5900 = vmatprep.subr.mxu0 0.0
        %5901 = vmatpush2.msra.mxu0 0.0
        %5902 = vmatprep.subr.mxu0 0.0
        %5903 = vmatpush2.msra.mxu0 0.0
        %5904 = vmatprep.subr.mxu0 0.0
        %5905 = vmatpush2.msra.mxu0 0.0
        %5906 = vmatprep.subr.mxu0 0.0
        %5907 = vmatpush2.msra.mxu0 0.0
        %5908 = vmatprep.mubr.f32.mxu0 0.0
        %5909 = vmatmul.mubr.f32.gmra.mxu0 %v5842
        %v5910 = vpop.f32.mrf.mxu0
        %v5911 = vadd.f32 0.0, %v5910
        %v5912 = vpop.f32.mrf.mxu0
        %5913 = vdwg.mxu0
        %v5914 = vrcp.pop %v5840
        %v5915 = vmul.f32 %v5911, %v5914
        %5916 = vrot.lane.b32.xlu0 %v5747, 120
        %v5917 = vpop.permute.xlu0 %5916
        %5918 = vrot.lane.b32.xlu0 %v5751, 120
        %v5919 = vpop.permute.xlu0 %5918
        %v5920 = vsel %vm468, %v5917, 0
        %v5922 = vsel %vm468, %v5919, 0
        %5924 = vmatprep.subr.mxu0 0.0
        %5925 = vmatpush1.xpose.msra.mxu0 0.0
        %5926 = vmatprep.subr.mxu0 0.0
        %5927 = vmatpush1.xpose.msra.mxu0 0.0
        %5928 = vmatprep.subr.mxu0 0.0
        %5929 = vmatpush1.xpose.msra.mxu0 0.0
        %5930 = vmatprep.subr.mxu0 0.0
        %5931 = vmatpush1.xpose.msra.mxu0 0.0
        %5932 = vmatprep.subr.mxu0 0.0
        %5933 = vmatpush1.xpose.msra.mxu0 0.0
        %5934 = vmatprep.subr.mxu0 0.0
        %5935 = vmatpush1.xpose.msra.mxu0 0.0
        %5936 = vmatprep.subr.mxu0 0.0
        %5937 = vmatpush1.xpose.msra.mxu0 0.0
        %5938 = vmatprep.subr.mxu0 0.0
        %5939 = vmatpush1.xpose.msra.mxu0 0.0
        %5940 = vmatprep.subr.mxu0 0.0
        %5941 = vmatpush1.xpose.msra.mxu0 0.0
        %5942 = vmatprep.subr.mxu0 0.0
        %5943 = vmatpush1.xpose.msra.mxu0 0.0
        %5944 = vmatprep.subr.mxu0 0.0
        %5945 = vmatpush1.xpose.msra.mxu0 0.0
        %5946 = vmatprep.subr.mxu0 0.0
        %5947 = vmatpush1.xpose.msra.mxu0 0.0
        %5948 = vmatprep.subr.mxu0 0.0
        %5949 = vmatpush1.xpose.msra.mxu0 0.0
        %5950 = vmatprep.subr.mxu0 0.0
        %5951 = vmatpush1.xpose.msra.mxu0 0.0
        %5952 = vmatprep.subr.mxu0 0.0
        %5953 = vmatpush1.xpose.msra.mxu0 0.0
        %5954 = vmatprep.subr.mxu0 0.0
        %5955 = vmatpush1.xpose.msra.mxu0 %v5922
        %5956 = vmatprep.subr.mxu0 0.0
        %5957 = vmatpush2.xpose.msra.mxu0 0.0
        %5958 = vmatprep.subr.mxu0 0.0
        %5959 = vmatpush2.xpose.msra.mxu0 0.0
        %5960 = vmatprep.subr.mxu0 0.0
        %5961 = vmatpush2.xpose.msra.mxu0 0.0
        %5962 = vmatprep.subr.mxu0 0.0
        %5963 = vmatpush2.xpose.msra.mxu0 0.0
        %5964 = vmatprep.subr.mxu0 0.0
        %5965 = vmatpush2.xpose.msra.mxu0 0.0
        %5966 = vmatprep.subr.mxu0 0.0
        %5967 = vmatpush2.xpose.msra.mxu0 0.0
        %5968 = vmatprep.subr.mxu0 0.0
        %5969 = vmatpush2.xpose.msra.mxu0 0.0
        %5970 = vmatprep.subr.mxu0 0.0
        %5971 = vmatpush2.xpose.msra.mxu0 0.0
        %5972 = vmatprep.subr.mxu0 0.0
        %5973 = vmatpush2.xpose.msra.mxu0 0.0
        %5974 = vmatprep.subr.mxu0 0.0
        %5975 = vmatpush2.xpose.msra.mxu0 0.0
        %5976 = vmatprep.subr.mxu0 0.0
        %5977 = vmatpush2.xpose.msra.mxu0 0.0
        %5978 = vmatprep.subr.mxu0 0.0
        %5979 = vmatpush2.xpose.msra.mxu0 0.0
        %5980 = vmatprep.subr.mxu0 0.0
        %5981 = vmatpush2.xpose.msra.mxu0 0.0
        %5982 = vmatprep.subr.mxu0 0.0
        %5983 = vmatpush2.xpose.msra.mxu0 0.0
        %5984 = vmatprep.subr.mxu0 0.0
        %5985 = vmatpush2.xpose.msra.mxu0 0.0
        %5986 = vmatprep.subr.mxu0 0.0
        %5987 = vmatpush2.xpose.msra.mxu0 0.0
        %5988 = vmatprep.mubr.f32.mxu0 0.0
        %5989 = vmatmul.mubr.f32.gmra.mxu0 %v5920
        %v5990 = vpop.f32.mrf.mxu0
        %v5991 = vadd.f32 0.0, %v5990
        %v5992 = vpop.f32.mrf.mxu0
        %5993 = vdwg.mxu0
        %v5994 = vsel %vm545, %v5991, -inf
        %5995 = vmax.xlane.f32.xlu0 %v5994
        %v5996 = vpop.xlane.xlu0 %5995
        %v5997 = vsub.f32 %v5991, %v5996
        %v5998 = vmul.f32 %v5997, 1.442695
        %v5999 = vpow.pop %v5998
        %v6000 = vsel %vm545, %v5999, 0.0
        %6001 = vadd.xlane.f32.xlu0 %v6000
        %v6002 = vpop.xlane.xlu0 %6001
        %6004 = vrot.lane.b32.xlu0 %v5755, 120
        %v6005 = vpop.permute.xlu0 %6004
        %v6008 = vsel %vm468, %v5999, 0
        %6010 = vmatprep.subr.mxu0 0.0
        %6011 = vmatpush1.msra.mxu0 0.0
        %6012 = vmatprep.subr.mxu0 0.0
        %6013 = vmatpush1.msra.mxu0 0.0
        %6014 = vmatprep.subr.mxu0 0.0
        %6015 = vmatpush1.msra.mxu0 0.0
        %6016 = vmatprep.subr.mxu0 0.0
        %6017 = vmatpush1.msra.mxu0 0.0
        %6018 = vmatprep.subr.mxu0 0.0
        %6019 = vmatpush1.msra.mxu0 0.0
        %6020 = vmatprep.subr.mxu0 0.0
        %6021 = vmatpush1.msra.mxu0 0.0
        %6022 = vmatprep.subr.mxu0 0.0
        %6023 = vmatpush1.msra.mxu0 0.0
        %6024 = vmatprep.subr.mxu0 0.0
        %6025 = vmatpush1.msra.mxu0 0.0
        %6026 = vmatprep.subr.mxu0 0.0
        %6027 = vmatpush1.msra.mxu0 0.0
        %6028 = vmatprep.subr.mxu0 0.0
        %6029 = vmatpush1.msra.mxu0 0.0
        %6030 = vmatprep.subr.mxu0 0.0
        %6031 = vmatpush1.msra.mxu0 0.0
        %6032 = vmatprep.subr.mxu0 0.0
        %6033 = vmatpush1.msra.mxu0 0.0
        %6034 = vmatprep.subr.mxu0 0.0
        %6035 = vmatpush1.msra.mxu0 0.0
        %6036 = vmatprep.subr.mxu0 0.0
        %6037 = vmatpush1.msra.mxu0 0.0
        %6038 = vmatprep.subr.mxu0 0.0
        %6039 = vmatpush1.msra.mxu0 0.0
        %6040 = vmatprep.subr.mxu0 0.0
        %6041 = vmatpush1.msra.mxu0 %v6005
        %6042 = vmatprep.subr.mxu0 0.0
        %6043 = vmatpush2.msra.mxu0 0.0
        %6044 = vmatprep.subr.mxu0 0.0
        %6045 = vmatpush2.msra.mxu0 0.0
        %6046 = vmatprep.subr.mxu0 0.0
        %6047 = vmatpush2.msra.mxu0 0.0
        %6048 = vmatprep.subr.mxu0 0.0
        %6049 = vmatpush2.msra.mxu0 0.0
        %6050 = vmatprep.subr.mxu0 0.0
        %6051 = vmatpush2.msra.mxu0 0.0
        %6052 = vmatprep.subr.mxu0 0.0
        %6053 = vmatpush2.msra.mxu0 0.0
        %6054 = vmatprep.subr.mxu0 0.0
        %6055 = vmatpush2.msra.mxu0 0.0
        %6056 = vmatprep.subr.mxu0 0.0
        %6057 = vmatpush2.msra.mxu0 0.0
        %6058 = vmatprep.subr.mxu0 0.0
        %6059 = vmatpush2.msra.mxu0 0.0
        %6060 = vmatprep.subr.mxu0 0.0
        %6061 = vmatpush2.msra.mxu0 0.0
        %6062 = vmatprep.subr.mxu0 0.0
        %6063 = vmatpush2.msra.mxu0 0.0
        %6064 = vmatprep.subr.mxu0 0.0
        %6065 = vmatpush2.msra.mxu0 0.0
        %6066 = vmatprep.subr.mxu0 0.0
        %6067 = vmatpush2.msra.mxu0 0.0
        %6068 = vmatprep.subr.mxu0 0.0
        %6069 = vmatpush2.msra.mxu0 0.0
        %6070 = vmatprep.subr.mxu0 0.0
        %6071 = vmatpush2.msra.mxu0 0.0
        %6072 = vmatprep.subr.mxu0 0.0
        %6073 = vmatpush2.msra.mxu0 0.0
        %6074 = vmatprep.mubr.f32.mxu0 0.0
        %6075 = vmatmul.mubr.f32.gmra.mxu0 %v6008
        %v6076 = vpop.f32.mrf.mxu0
        %v6077 = vadd.f32 0.0, %v6076
        %v6078 = vpop.f32.mrf.mxu0
        %6079 = vdwg.mxu0
        %v6080 = vrcp.pop %v6002
        %v6081 = vmul.f32 %v6077, %v6080
        %6082 = vrot.lane.b32.xlu0 %v5747, 112
        %v6083 = vpop.permute.xlu0 %6082
        %6084 = vrot.lane.b32.xlu0 %v5751, 112
        %v6085 = vpop.permute.xlu0 %6084
        %v6086 = vsel %vm468, %v6083, 0
        %v6088 = vsel %vm468, %v6085, 0
        %6090 = vmatprep.subr.mxu0 0.0
        %6091 = vmatpush1.xpose.msra.mxu0 0.0
        %6092 = vmatprep.subr.mxu0 0.0
        %6093 = vmatpush1.xpose.msra.mxu0 0.0
        %6094 = vmatprep.subr.mxu0 0.0
        %6095 = vmatpush1.xpose.msra.mxu0 0.0
        %6096 = vmatprep.subr.mxu0 0.0
        %6097 = vmatpush1.xpose.msra.mxu0 0.0
        %6098 = vmatprep.subr.mxu0 0.0
        %6099 = vmatpush1.xpose.msra.mxu0 0.0
        %6100 = vmatprep.subr.mxu0 0.0
        %6101 = vmatpush1.xpose.msra.mxu0 0.0
        %6102 = vmatprep.subr.mxu0 0.0
        %6103 = vmatpush1.xpose.msra.mxu0 0.0
        %6104 = vmatprep.subr.mxu0 0.0
        %6105 = vmatpush1.xpose.msra.mxu0 0.0
        %6106 = vmatprep.subr.mxu0 0.0
        %6107 = vmatpush1.xpose.msra.mxu0 0.0
        %6108 = vmatprep.subr.mxu0 0.0
        %6109 = vmatpush1.xpose.msra.mxu0 0.0
        %6110 = vmatprep.subr.mxu0 0.0
        %6111 = vmatpush1.xpose.msra.mxu0 0.0
        %6112 = vmatprep.subr.mxu0 0.0
        %6113 = vmatpush1.xpose.msra.mxu0 0.0
        %6114 = vmatprep.subr.mxu0 0.0
        %6115 = vmatpush1.xpose.msra.mxu0 0.0
        %6116 = vmatprep.subr.mxu0 0.0
        %6117 = vmatpush1.xpose.msra.mxu0 0.0
        %6118 = vmatprep.subr.mxu0 0.0
        %6119 = vmatpush1.xpose.msra.mxu0 0.0
        %6120 = vmatprep.subr.mxu0 0.0
        %6121 = vmatpush1.xpose.msra.mxu0 %v6088
        %6122 = vmatprep.subr.mxu0 0.0
        %6123 = vmatpush2.xpose.msra.mxu0 0.0
        %6124 = vmatprep.subr.mxu0 0.0
        %6125 = vmatpush2.xpose.msra.mxu0 0.0
        %6126 = vmatprep.subr.mxu0 0.0
        %6127 = vmatpush2.xpose.msra.mxu0 0.0
        %6128 = vmatprep.subr.mxu0 0.0
        %6129 = vmatpush2.xpose.msra.mxu0 0.0
        %6130 = vmatprep.subr.mxu0 0.0
        %6131 = vmatpush2.xpose.msra.mxu0 0.0
        %6132 = vmatprep.subr.mxu0 0.0
        %6133 = vmatpush2.xpose.msra.mxu0 0.0
        %6134 = vmatprep.subr.mxu0 0.0
        %6135 = vmatpush2.xpose.msra.mxu0 0.0
        %6136 = vmatprep.subr.mxu0 0.0
        %6137 = vmatpush2.xpose.msra.mxu0 0.0
        %6138 = vmatprep.subr.mxu0 0.0
        %6139 = vmatpush2.xpose.msra.mxu0 0.0
        %6140 = vmatprep.subr.mxu0 0.0
        %6141 = vmatpush2.xpose.msra.mxu0 0.0
        %6142 = vmatprep.subr.mxu0 0.0
        %6143 = vmatpush2.xpose.msra.mxu0 0.0
        %6144 = vmatprep.subr.mxu0 0.0
        %6145 = vmatpush2.xpose.msra.mxu0 0.0
        %6146 = vmatprep.subr.mxu0 0.0
        %6147 = vmatpush2.xpose.msra.mxu0 0.0
        %6148 = vmatprep.subr.mxu0 0.0
        %6149 = vmatpush2.xpose.msra.mxu0 0.0
        %6150 = vmatprep.subr.mxu0 0.0
        %6151 = vmatpush2.xpose.msra.mxu0 0.0
        %6152 = vmatprep.subr.mxu0 0.0
        %6153 = vmatpush2.xpose.msra.mxu0 0.0
        %6154 = vmatprep.mubr.f32.mxu0 0.0
        %6155 = vmatmul.mubr.f32.gmra.mxu0 %v6086
        %v6156 = vpop.f32.mrf.mxu0
        %v6157 = vadd.f32 0.0, %v6156
        %v6158 = vpop.f32.mrf.mxu0
        %6159 = vdwg.mxu0
        %v6160 = vsel %vm545, %v6157, -inf
        %6161 = vmax.xlane.f32.xlu0 %v6160
        %v6162 = vpop.xlane.xlu0 %6161
        %v6163 = vsub.f32 %v6157, %v6162
        %v6164 = vmul.f32 %v6163, 1.442695
        %v6165 = vpow.pop %v6164
        %v6166 = vsel %vm545, %v6165, 0.0
        %6167 = vadd.xlane.f32.xlu0 %v6166
        %v6168 = vpop.xlane.xlu0 %6167
        %6169 = vrot.lane.b32.xlu0 %v5755, 112
        %v6170 = vpop.permute.xlu0 %6169
        %v6173 = vsel %vm468, %v6165, 0
        %6175 = vmatprep.subr.mxu0 0.0
        %6176 = vmatpush1.msra.mxu0 0.0
        %6177 = vmatprep.subr.mxu0 0.0
        %6178 = vmatpush1.msra.mxu0 0.0
        %6179 = vmatprep.subr.mxu0 0.0
        %6180 = vmatpush1.msra.mxu0 0.0
        %6181 = vmatprep.subr.mxu0 0.0
        %6182 = vmatpush1.msra.mxu0 0.0
        %6183 = vmatprep.subr.mxu0 0.0
        %6184 = vmatpush1.msra.mxu0 0.0
        %6185 = vmatprep.subr.mxu0 0.0
        %6186 = vmatpush1.msra.mxu0 0.0
        %6187 = vmatprep.subr.mxu0 0.0
        %6188 = vmatpush1.msra.mxu0 0.0
        %6189 = vmatprep.subr.mxu0 0.0
        %6190 = vmatpush1.msra.mxu0 0.0
        %6191 = vmatprep.subr.mxu0 0.0
        %6192 = vmatpush1.msra.mxu0 0.0
        %6193 = vmatprep.subr.mxu0 0.0
        %6194 = vmatpush1.msra.mxu0 0.0
        %6195 = vmatprep.subr.mxu0 0.0
        %6196 = vmatpush1.msra.mxu0 0.0
        %6197 = vmatprep.subr.mxu0 0.0
        %6198 = vmatpush1.msra.mxu0 0.0
        %6199 = vmatprep.subr.mxu0 0.0
        %6200 = vmatpush1.msra.mxu0 0.0
        %6201 = vmatprep.subr.mxu0 0.0
        %6202 = vmatpush1.msra.mxu0 0.0
        %6203 = vmatprep.subr.mxu0 0.0
        %6204 = vmatpush1.msra.mxu0 0.0
        %6205 = vmatprep.subr.mxu0 0.0
        %6206 = vmatpush1.msra.mxu0 %v6170
        %6207 = vmatprep.subr.mxu0 0.0
        %6208 = vmatpush2.msra.mxu0 0.0
        %6209 = vmatprep.subr.mxu0 0.0
        %6210 = vmatpush2.msra.mxu0 0.0
        %6211 = vmatprep.subr.mxu0 0.0
        %6212 = vmatpush2.msra.mxu0 0.0
        %6213 = vmatprep.subr.mxu0 0.0
        %6214 = vmatpush2.msra.mxu0 0.0
        %6215 = vmatprep.subr.mxu0 0.0
        %6216 = vmatpush2.msra.mxu0 0.0
        %6217 = vmatprep.subr.mxu0 0.0
        %6218 = vmatpush2.msra.mxu0 0.0
        %6219 = vmatprep.subr.mxu0 0.0
        %6220 = vmatpush2.msra.mxu0 0.0
        %6221 = vmatprep.subr.mxu0 0.0
        %6222 = vmatpush2.msra.mxu0 0.0
        %6223 = vmatprep.subr.mxu0 0.0
        %6224 = vmatpush2.msra.mxu0 0.0
        %6225 = vmatprep.subr.mxu0 0.0
        %6226 = vmatpush2.msra.mxu0 0.0
        %6227 = vmatprep.subr.mxu0 0.0
        %6228 = vmatpush2.msra.mxu0 0.0
        %6229 = vmatprep.subr.mxu0 0.0
        %6230 = vmatpush2.msra.mxu0 0.0
        %6231 = vmatprep.subr.mxu0 0.0
        %6232 = vmatpush2.msra.mxu0 0.0
        %6233 = vmatprep.subr.mxu0 0.0
        %6234 = vmatpush2.msra.mxu0 0.0
        %6235 = vmatprep.subr.mxu0 0.0
        %6236 = vmatpush2.msra.mxu0 0.0
        %6237 = vmatprep.subr.mxu0 0.0
        %6238 = vmatpush2.msra.mxu0 0.0
        %6239 = vmatprep.mubr.f32.mxu0 0.0
        %6240 = vmatmul.mubr.f32.gmra.mxu0 %v6173
        %v6241 = vpop.f32.mrf.mxu0
        %v6242 = vadd.f32 0.0, %v6241
        %v6243 = vpop.f32.mrf.mxu0
        %6244 = vdwg.mxu0
        %v6245 = vrcp.pop %v6168
        %v6246 = vmul.f32 %v6242, %v6245
        %6247 = vrot.lane.b32.xlu0 %v5747, 104
        %v6248 = vpop.permute.xlu0 %6247
        %6249 = vrot.lane.b32.xlu0 %v5751, 104
        %v6250 = vpop.permute.xlu0 %6249
        %v6251 = vsel %vm468, %v6248, 0
        %v6253 = vsel %vm468, %v6250, 0
        %6255 = vmatprep.subr.mxu0 0.0
        %6256 = vmatpush1.xpose.msra.mxu0 0.0
        %6257 = vmatprep.subr.mxu0 0.0
        %6258 = vmatpush1.xpose.msra.mxu0 0.0
        %6259 = vmatprep.subr.mxu0 0.0
        %6260 = vmatpush1.xpose.msra.mxu0 0.0
        %6261 = vmatprep.subr.mxu0 0.0
        %6262 = vmatpush1.xpose.msra.mxu0 0.0
        %6263 = vmatprep.subr.mxu0 0.0
        %6264 = vmatpush1.xpose.msra.mxu0 0.0
        %6265 = vmatprep.subr.mxu0 0.0
        %6266 = vmatpush1.xpose.msra.mxu0 0.0
        %6267 = vmatprep.subr.mxu0 0.0
        %6268 = vmatpush1.xpose.msra.mxu0 0.0
        %6269 = vmatprep.subr.mxu0 0.0
        %6270 = vmatpush1.xpose.msra.mxu0 0.0
        %6271 = vmatprep.subr.mxu0 0.0
        %6272 = vmatpush1.xpose.msra.mxu0 0.0
        %6273 = vmatprep.subr.mxu0 0.0
        %6274 = vmatpush1.xpose.msra.mxu0 0.0
        %6275 = vmatprep.subr.mxu0 0.0
        %6276 = vmatpush1.xpose.msra.mxu0 0.0
        %6277 = vmatprep.subr.mxu0 0.0
        %6278 = vmatpush1.xpose.msra.mxu0 0.0
        %6279 = vmatprep.subr.mxu0 0.0
        %6280 = vmatpush1.xpose.msra.mxu0 0.0
        %6281 = vmatprep.subr.mxu0 0.0
        %6282 = vmatpush1.xpose.msra.mxu0 0.0
        %6283 = vmatprep.subr.mxu0 0.0
        %6284 = vmatpush1.xpose.msra.mxu0 0.0
        %6285 = vmatprep.subr.mxu0 0.0
        %6286 = vmatpush1.xpose.msra.mxu0 %v6253
        %6287 = vmatprep.subr.mxu0 0.0
        %6288 = vmatpush2.xpose.msra.mxu0 0.0
        %6289 = vmatprep.subr.mxu0 0.0
        %6290 = vmatpush2.xpose.msra.mxu0 0.0
        %6291 = vmatprep.subr.mxu0 0.0
        %6292 = vmatpush2.xpose.msra.mxu0 0.0
        %6293 = vmatprep.subr.mxu0 0.0
        %6294 = vmatpush2.xpose.msra.mxu0 0.0
        %6295 = vmatprep.subr.mxu0 0.0
        %6296 = vmatpush2.xpose.msra.mxu0 0.0
        %6297 = vmatprep.subr.mxu0 0.0
        %6298 = vmatpush2.xpose.msra.mxu0 0.0
        %6299 = vmatprep.subr.mxu0 0.0
        %6300 = vmatpush2.xpose.msra.mxu0 0.0
        %6301 = vmatprep.subr.mxu0 0.0
        %6302 = vmatpush2.xpose.msra.mxu0 0.0
        %6303 = vmatprep.subr.mxu0 0.0
        %6304 = vmatpush2.xpose.msra.mxu0 0.0
        %6305 = vmatprep.subr.mxu0 0.0
        %6306 = vmatpush2.xpose.msra.mxu0 0.0
        %6307 = vmatprep.subr.mxu0 0.0
        %6308 = vmatpush2.xpose.msra.mxu0 0.0
        %6309 = vmatprep.subr.mxu0 0.0
        %6310 = vmatpush2.xpose.msra.mxu0 0.0
        %6311 = vmatprep.subr.mxu0 0.0
        %6312 = vmatpush2.xpose.msra.mxu0 0.0
        %6313 = vmatprep.subr.mxu0 0.0
        %6314 = vmatpush2.xpose.msra.mxu0 0.0
        %6315 = vmatprep.subr.mxu0 0.0
        %6316 = vmatpush2.xpose.msra.mxu0 0.0
        %6317 = vmatprep.subr.mxu0 0.0
        %6318 = vmatpush2.xpose.msra.mxu0 0.0
        %6319 = vmatprep.mubr.f32.mxu0 0.0
        %6320 = vmatmul.mubr.f32.gmra.mxu0 %v6251
        %v6321 = vpop.f32.mrf.mxu0
        %v6322 = vadd.f32 0.0, %v6321
        %v6323 = vpop.f32.mrf.mxu0
        %6324 = vdwg.mxu0
        %v6325 = vsel %vm545, %v6322, -inf
        %6326 = vmax.xlane.f32.xlu0 %v6325
        %v6327 = vpop.xlane.xlu0 %6326
        %v6328 = vsub.f32 %v6322, %v6327
        %v6329 = vmul.f32 %v6328, 1.442695
        %v6330 = vpow.pop %v6329
        %v6331 = vsel %vm545, %v6330, 0.0
        %6332 = vadd.xlane.f32.xlu0 %v6331
        %v6333 = vpop.xlane.xlu0 %6332
        %6334 = vrot.lane.b32.xlu0 %v5755, 104
        %v6335 = vpop.permute.xlu0 %6334
        %v6338 = vsel %vm468, %v6330, 0
        %6340 = vmatprep.subr.mxu0 0.0
        %6341 = vmatpush1.msra.mxu0 0.0
        %6342 = vmatprep.subr.mxu0 0.0
        %6343 = vmatpush1.msra.mxu0 0.0
        %6344 = vmatprep.subr.mxu0 0.0
        %6345 = vmatpush1.msra.mxu0 0.0
        %6346 = vmatprep.subr.mxu0 0.0
        %6347 = vmatpush1.msra.mxu0 0.0
        %6348 = vmatprep.subr.mxu0 0.0
        %6349 = vmatpush1.msra.mxu0 0.0
        %6350 = vmatprep.subr.mxu0 0.0
        %6351 = vmatpush1.msra.mxu0 0.0
        %6352 = vmatprep.subr.mxu0 0.0
        %6353 = vmatpush1.msra.mxu0 0.0
        %6354 = vmatprep.subr.mxu0 0.0
        %6355 = vmatpush1.msra.mxu0 0.0
        %6356 = vmatprep.subr.mxu0 0.0
        %6357 = vmatpush1.msra.mxu0 0.0
        %6358 = vmatprep.subr.mxu0 0.0
        %6359 = vmatpush1.msra.mxu0 0.0
        %6360 = vmatprep.subr.mxu0 0.0
        %6361 = vmatpush1.msra.mxu0 0.0
        %6362 = vmatprep.subr.mxu0 0.0
        %6363 = vmatpush1.msra.mxu0 0.0
        %6364 = vmatprep.subr.mxu0 0.0
        %6365 = vmatpush1.msra.mxu0 0.0
        %6366 = vmatprep.subr.mxu0 0.0
        %6367 = vmatpush1.msra.mxu0 0.0
        %6368 = vmatprep.subr.mxu0 0.0
        %6369 = vmatpush1.msra.mxu0 0.0
        %6370 = vmatprep.subr.mxu0 0.0
        %6371 = vmatpush1.msra.mxu0 %v6335
        %6372 = vmatprep.subr.mxu0 0.0
        %6373 = vmatpush2.msra.mxu0 0.0
        %6374 = vmatprep.subr.mxu0 0.0
        %6375 = vmatpush2.msra.mxu0 0.0
        %6376 = vmatprep.subr.mxu0 0.0
        %6377 = vmatpush2.msra.mxu0 0.0
        %6378 = vmatprep.subr.mxu0 0.0
        %6379 = vmatpush2.msra.mxu0 0.0
        %6380 = vmatprep.subr.mxu0 0.0
        %6381 = vmatpush2.msra.mxu0 0.0
        %6382 = vmatprep.subr.mxu0 0.0
        %6383 = vmatpush2.msra.mxu0 0.0
        %6384 = vmatprep.subr.mxu0 0.0
        %6385 = vmatpush2.msra.mxu0 0.0
        %6386 = vmatprep.subr.mxu0 0.0
        %6387 = vmatpush2.msra.mxu0 0.0
        %6388 = vmatprep.subr.mxu0 0.0
        %6389 = vmatpush2.msra.mxu0 0.0
        %6390 = vmatprep.subr.mxu0 0.0
        %6391 = vmatpush2.msra.mxu0 0.0
        %6392 = vmatprep.subr.mxu0 0.0
        %6393 = vmatpush2.msra.mxu0 0.0
        %6394 = vmatprep.subr.mxu0 0.0
        %6395 = vmatpush2.msra.mxu0 0.0
        %6396 = vmatprep.subr.mxu0 0.0
        %6397 = vmatpush2.msra.mxu0 0.0
        %6398 = vmatprep.subr.mxu0 0.0
        %6399 = vmatpush2.msra.mxu0 0.0
        %6400 = vmatprep.subr.mxu0 0.0
        %6401 = vmatpush2.msra.mxu0 0.0
        %6402 = vmatprep.subr.mxu0 0.0
        %6403 = vmatpush2.msra.mxu0 0.0
        %6404 = vmatprep.mubr.f32.mxu0 0.0
        %6405 = vmatmul.mubr.f32.gmra.mxu0 %v6338
        %v6406 = vpop.f32.mrf.mxu0
        %v6407 = vadd.f32 0.0, %v6406
        %v6408 = vpop.f32.mrf.mxu0
        %6409 = vdwg.mxu0
        %v6410 = vrcp.pop %v6333
        %v6411 = vmul.f32 %v6407, %v6410
        %6413 = vrot.lane.b32.xlu0 %v6081, 8
        %v6414 = vpop.permute.xlu0 %6413
        %6417 = vrot.lane.b32.xlu0 %v6246, 16
        %v6418 = vpop.permute.xlu0 %6417
        %6421 = vrot.lane.b32.xlu0 %v6411, 24
        %v6422 = vpop.permute.xlu0 %6421
        %v6424 = vsel %vm468, %v5915, %v6414
        %v6425 = vsel %vm1139, %v6424, %v6418
        %v6426 = vsel %vm1141, %v6425, %v6422
        %v6428 = vsel %vm247, %v6426, 0
        %6430 = vmatprep.subr.mxu0 0.0
        %6431 = vmatpush1.msra.mxu0 0.0
        %6432 = vmatprep.subr.mxu0 0.0
        %6433 = vmatpush1.msra.mxu0 0.0
        %6434 = vmatprep.subr.mxu0 0.0
        %6435 = vmatpush1.msra.mxu0 0.0
        %6436 = vmatprep.subr.mxu0 0.0
        %6437 = vmatpush1.msra.mxu0 0.0
        %6438 = vmatprep.subr.mxu0 0.0
        %6439 = vmatpush1.msra.mxu0 0.0
        %6440 = vmatprep.subr.mxu0 0.0
        %6441 = vmatpush1.msra.mxu0 0.0
        %6442 = vmatprep.subr.mxu0 0.0
        %6443 = vmatpush1.msra.mxu0 0.0
        %6444 = vmatprep.subr.mxu0 0.0
        %6445 = vmatpush1.msra.mxu0 0.0
        %6446 = vmatprep.subr.mxu0 0.0
        %6447 = vmatpush1.msra.mxu0 0.0
        %6448 = vmatprep.subr.mxu0 0.0
        %6449 = vmatpush1.msra.mxu0 0.0
        %6450 = vmatprep.subr.mxu0 0.0
        %6451 = vmatpush1.msra.mxu0 0.0
        %6452 = vmatprep.subr.mxu0 0.0
        %6453 = vmatpush1.msra.mxu0 0.0
        %6454 = vmatprep.subr.mxu0 0.0
        %6455 = vmatpush1.msra.mxu0 %v234
        %6456 = vmatprep.subr.mxu0 0.0
        %6457 = vmatpush1.msra.mxu0 %v233
        %6458 = vmatprep.subr.mxu0 0.0
        %6459 = vmatpush1.msra.mxu0 %v232
        %6460 = vmatprep.subr.mxu0 0.0
        %6461 = vmatpush1.msra.mxu0 %v231
        %6462 = vmatprep.subr.mxu0 0.0
        %6463 = vmatpush2.msra.mxu0 0.0
        %6464 = vmatprep.subr.mxu0 0.0
        %6465 = vmatpush2.msra.mxu0 0.0
        %6466 = vmatprep.subr.mxu0 0.0
        %6467 = vmatpush2.msra.mxu0 0.0
        %6468 = vmatprep.subr.mxu0 0.0
        %6469 = vmatpush2.msra.mxu0 0.0
        %6470 = vmatprep.subr.mxu0 0.0
        %6471 = vmatpush2.msra.mxu0 0.0
        %6472 = vmatprep.subr.mxu0 0.0
        %6473 = vmatpush2.msra.mxu0 0.0
        %6474 = vmatprep.subr.mxu0 0.0
        %6475 = vmatpush2.msra.mxu0 0.0
        %6476 = vmatprep.subr.mxu0 0.0
        %6477 = vmatpush2.msra.mxu0 0.0
        %6478 = vmatprep.subr.mxu0 0.0
        %6479 = vmatpush2.msra.mxu0 0.0
        %6480 = vmatprep.subr.mxu0 0.0
        %6481 = vmatpush2.msra.mxu0 0.0
        %6482 = vmatprep.subr.mxu0 0.0
        %6483 = vmatpush2.msra.mxu0 0.0
        %6484 = vmatprep.subr.mxu0 0.0
        %6485 = vmatpush2.msra.mxu0 0.0
        %6486 = vmatprep.subr.mxu0 0.0
        %6487 = vmatpush2.msra.mxu0 0.0
        %6488 = vmatprep.subr.mxu0 0.0
        %6489 = vmatpush2.msra.mxu0 0.0
        %6490 = vmatprep.subr.mxu0 0.0
        %6491 = vmatpush2.msra.mxu0 0.0
        %6492 = vmatprep.subr.mxu0 0.0
        %6493 = vmatpush2.msra.mxu0 0.0
        %6494 = vmatprep.mubr.f32.mxu0 0.0
        %6495 = vmatmul.mubr.f32.gmra.mxu0 %v6428
        %v6496 = vpop.f32.mrf.mxu0
        %v6497 = vadd.f32 %v1147, %v6496
        %v6498 = vpop.f32.mrf.mxu0
        %6499 = vdwg.mxu0
        %6501 = vrot.lane.b32.xlu0 %v1973, 32
        %v6502 = vpop.permute.xlu0 %6501
        %6505 = vrot.lane.b32.xlu0 %v2727, 64
        %v6506 = vpop.permute.xlu0 %6505
        %6509 = vrot.lane.b32.xlu0 %v3481, 96
        %v6510 = vpop.permute.xlu0 %6509
        %6513 = vrot.lane.b32.xlu0 %v4989, 32
        %v6514 = vpop.permute.xlu0 %6513
        %6517 = vrot.lane.b32.xlu0 %v5743, 64
        %v6518 = vpop.permute.xlu0 %6517
        %6521 = vrot.lane.b32.xlu0 %v6497, 96
        %v6522 = vpop.permute.xlu0 %6521
        %v6524 = vsel %vm247, %v1219, %v6502
        %vm6525 = vcmask 523264
        %v6526 = vsel %vm6525, %v6524, %v6506
        %vm6527 = vcmask 785408
        %v6528 = vsel %vm6527, %v6526, %v6510
        %v6529 = vsel %vm247, %v4235, %v6514
        %v6530 = vsel %vm6525, %v6529, %v6518
        %v6531 = vsel %vm6527, %v6530, %v6522
        %v6534 = vcombine.low %v6528, %v6531
        %6536 = vst [vmem:[%s217] sm:$0xff] %v6534
        %s6537 = sand.u32 %s137, 1
        %s6538 = scalar_lea.sflag [#allocation6], %s6537
        %s6539 = sand.u32 %s137, 1
        %s6540 = smul.addr %s6539, 8
        %s6541 = scalar_lea.vmem [#allocation5], %s6540
        // Predicated region
        $region41: #{tpu_custom_call.1} parent=39 // pred_check
          %p6542 = pneg %p147
        $region42: #{tpu_custom_call.1} parent=39 // pred_check_branch
          %6544 = sbr.rel (%p6542) target = $region44
        $region43: #{tpu_custom_call.1} parent=39 // pred_region
          %s6546 = ssub.s32 128, 128
          %6547 = vsyncadd %s6538, %s6546
          %s6548 = smul.addr %s19, 2
          %s6549 = smul.addr %s6548, 64
          %s6550 = scalar_lea.hbm %s5, %s6549
          %s6552 = sshll.u32 %s6541, 4
          %s6553 = int_to_ptr.vmem [resolvable:$true] %s6552
          %6555 = dma.vmem_to_hbm [thread:$0]  %s6553, 128, %s6550, %s6538
        $region44: #{tpu_custom_call.1} parent=39 // pred_fallthru
          _
      $region40: #{tpu_custom_call.1} parent=5 // pred_fallthru
        _
      %p6556 = scmp.le.s32.totalorder 2, %s14
      // Predicated region
      $region45: #{tpu_custom_call.1} parent=5 // pred_check
        %p6557 = pneg %p6556
      $region46: #{tpu_custom_call.1} parent=5 // pred_check_branch
        %6559 = sbr.rel (%p6557) target = $region48
      $region47: #{tpu_custom_call.1} parent=5 // pred_region
        %s6560 = ssub.s32 %s14, 2
        // Predicated region
        $region49: #{tpu_custom_call.1} parent=47 // pred_check
          %p6561 = pneg %p153
        $region50: #{tpu_custom_call.1} parent=47 // pred_check_branch
          %6563 = sbr.rel (%p6561) target = $region52
        $region51: #{tpu_custom_call.1} parent=47 // pred_region
          %s6564 = sand.u32 %s138, 1
          %s6565 = scalar_lea.sflag [#allocation6], %s6564
          %s6566 = sand.u32 %s138, 1
          %s6567 = smul.addr %s6566, 8
          %s6568 = scalar_lea.vmem [#allocation5], %s6567
          %6569 = dma.done %s6565, 128
        $region52: #{tpu_custom_call.1} parent=47 // pred_fallthru
          _
      $region48: #{tpu_custom_call.1} parent=5 // pred_fallthru
        _
    $region6: #{tpu_custom_call.1} parent=1 // loop_footer
      %s18 = sadd.s32 1, %s14
    $region7: #{tpu_custom_call.1} parent=1 // loop_footer_branch
      %13 = sbr.rel target = $region3
    $region8: #{tpu_custom_call.1} parent=1 // loop_exit
      _
    %6570 = vsyncpa [#allocation6], 1
    %s6571 = scalar_lea.sflag [#allocation6], 1
    %6572 = vsyncpa %s6571, 1

</llo_original>
